<compile_context>
chip_gen: v7x
topology: tpu7x:2x2x1
jax: 0.10.0
libtpu: 0.0.40
codegen_flags: <defaults>
</compile_context>

<pallas_src>
import functools

import jax
import jax.numpy as jnp
import numpy as np
from jax.experimental import pallas as pl
from jax.experimental.pallas import tpu as pltpu

EPS = 1e-5          # nn.InstanceNorm2d default eps
NEG_SLOPE = 0.2     # nn.LeakyReLU(0.2)
LANE = 128          # TPU lane width


def _make_genblock_kernel(H, W, Cin, Cout, Cp, KH, KW):
    """Fused (conv -> InstanceNorm -> LeakyReLU) x2 kernel for one sample.

    Refs (per grid step = one sample, channels-last):
      x_ref  : (1, H, W, Cin)         bf16  upsampled, unpadded sample
      w1_ref : (KH*KW*Cin,  Cp)       bf16  im2col conv1 weights (Cout zero-padded to Cp)
      w2_ref : (KH*KW*Cout, Cp)       bf16  im2col conv2 weights
      o_ref  : (1, H, W, Cp)          f32   output (first Cout channels are real)
    VMEM scratch:
      xpad1  : (H+KH-1, W+KW-1, Cin)  bf16  zero-padded conv1 input
      patch1 : (H*W, KH*KW*Cin)       bf16  im2col matrix for conv1
      xpad2  : (H+KH-1, W+KW-1, Cp)   bf16  zero-padded conv2 input (stage-1 result)
      patch2 : (H*W, KH*KW*Cout)      bf16  im2col matrix for conv2
    """
    HW = H * W

    def _conv_in_lrelu(src_ref, n_ch, w_ref, patch_ref):
        # im2col: one lane-column block per conv tap -> one big matmul.
        for ky in range(KH):
            for kx in range(KW):
                t = ky * KW + kx
                tap = src_ref[ky:ky + H, kx:kx + W, :n_ch].reshape(HW, n_ch)
                patch_ref[:, t * n_ch:(t + 1) * n_ch] = tap
        # Single (HW, KH*KW*n_ch) @ (KH*KW*n_ch, Cp) bf16 matmul, f32 accumulation.
        acc = jnp.dot(patch_ref[...], w_ref[...],
                      preferred_element_type=jnp.float32)            # (HW, Cp) f32
        # InstanceNorm2d (affine=False), single-pass biased variance.
        mean = jnp.mean(acc, axis=0, keepdims=True)
        mean_sq = jnp.mean(acc * acc, axis=0, keepdims=True)
        var = jnp.maximum(mean_sq - mean * mean, 0.0)
        y = (acc - mean) * jax.lax.rsqrt(var + EPS)
        # LeakyReLU(0.2)
        return jnp.where(y >= 0, y, NEG_SLOPE * y)

    def kernel(x_ref, w1_ref, w2_ref, o_ref, xpad1, patch1, xpad2, patch2):
        # ---- stage 1: zero-pad input in VMEM -> conv1 -> IN -> LReLU ----
        xpad1[...] = jnp.zeros_like(xpad1)
        xpad1[1:H + 1, 1:W + 1, :] = x_ref[0]
        y1 = _conv_in_lrelu(xpad1, Cin, w1_ref, patch1)               # (HW, Cp) f32

        # ---- stage 2: re-pad stage-1 result in VMEM (no HBM round trip) ----
        xpad2[...] = jnp.zeros_like(xpad2)
        xpad2[1:H + 1, 1:W + 1, :] = y1.reshape(H, W, Cp).astype(xpad2.dtype)
        y2 = _conv_in_lrelu(xpad2, Cout, w2_ref, patch2)              # (HW, Cp) f32

        o_ref[...] = y2.reshape(1, H, W, Cp)

    return kernel


def _convtranspose_to_im2col(w_t, cp):
    """ConvTranspose2d weight (Cin, Cout, KH, KW) -> (KH*KW*Cin, cp) bf16 conv matrix."""
    # stride-1 deconv == conv with spatially flipped kernel, channels kept (in, out)
    w_hwio = jnp.transpose(w_t[:, :, ::-1, ::-1], (2, 3, 0, 1))       # (KH, KW, Cin, Cout)
    kh, kw, ci, co = w_hwio.shape
    w_flat = w_hwio.reshape(kh * kw * ci, co)
    w_flat = jnp.pad(w_flat, ((0, 0), (0, cp - co)))                  # lane-pad Cout -> cp
    return w_flat.astype(jnp.bfloat16)


@functools.partial(jax.jit, static_argnames=("upsample",))
def gen_block_forward(x_nchw, w1_t, w2_t, upsample=True):
    """GenBlock forward (inp=False => both convs are kernel 3, padding 1, stride 1)."""
    cin, cout, kh, kw = w1_t.shape
    cp = pl.cdiv(cout, LANE) * LANE                                   # lane-dense channels

    x = jnp.transpose(x_nchw, (0, 2, 3, 1))                           # NCHW -> NHWC
    if upsample:
        # nn.Upsample(scale_factor=2, mode='nearest') — kept as one XLA op.
        x = jnp.repeat(jnp.repeat(x, 2, axis=1), 2, axis=2)
    x = x.astype(jnp.bfloat16)
    n, h, w, _ = x.shape

    w1 = _convtranspose_to_im2col(w1_t, cp)                           # (kh*kw*cin,  cp)
    w2 = _convtranspose_to_im2col(w2_t, cp)                           # (kh*kw*cout, cp)

    kernel = _make_genblock_kernel(h, w, cin, cout, cp, kh, kw)
    out = pl.pallas_call(
        kernel,
        out_shape=jax.ShapeDtypeStruct((n, h, w, cp), jnp.float32),
        grid=(n,),
        in_specs=[
            pl.BlockSpec((1, h, w, cin), lambda i: (i, 0, 0, 0)),
            pl.BlockSpec((kh * kw * cin, cp), lambda i: (0, 0)),
            pl.BlockSpec((kh * kw * cout, cp), lambda i: (0, 0)),
        ],
        out_specs=pl.BlockSpec((1, h, w, cp), lambda i: (i, 0, 0, 0)),
        scratch_shapes=[
            pltpu.VMEM((h + kh - 1, w + kw - 1, cin), jnp.bfloat16),  # xpad1
            pltpu.VMEM((h * w, kh * kw * cin), jnp.bfloat16),         # patch1
            pltpu.VMEM((h + kh - 1, w + kw - 1, cp), jnp.bfloat16),   # xpad2
            pltpu.VMEM((h * w, kh * kw * cout), jnp.bfloat16),        # patch2
        ],
        compiler_params=pltpu.CompilerParams(
            dimension_semantics=("parallel",),
            vmem_limit_bytes=32 * 1024 * 1024),
    )(x, w1, w2)

    out = out[..., :cout]                                             # drop padded channels
    return jnp.transpose(out, (0, 3, 1, 2))                           # NHWC -> NCHW


def _reference_forward(x_nchw, w1_t, w2_t):
    """Pure-JAX f32 reference replicating the PyTorch forward (NCHW)."""
    def convt(x, w_t):
        w = jnp.transpose(w_t[:, :, ::-1, ::-1], (1, 0, 2, 3))        # (Cout, Cin, KH, KW)
        return jax.lax.conv_general_dilated(
            x, w, window_strides=(1, 1), padding=[(1, 1), (1, 1)],
            dimension_numbers=("NCHW", "OIHW", "NCHW"))

    def inorm(x):
        mean = x.mean(axis=(2, 3), keepdims=True)
        var = ((x - mean) ** 2).mean(axis=(2, 3), keepdims=True)
        return (x - mean) / jnp.sqrt(var + EPS)

    def lrelu(x):
        return jnp.where(x >= 0, x, NEG_SLOPE * x)

    x = jnp.repeat(jnp.repeat(x_nchw, 2, axis=2), 2, axis=3)
    x = lrelu(inorm(convt(x, w1_t)))
    x = lrelu(inorm(convt(x, w2_t)))
    return x


if __name__ == "__main__":
    # Small deterministic shapes: batch=2, in_channels=4, out_channels=8, spatial=8x8
    # (upsampled to 16x16 inside the block).
    N, C_IN, C_OUT, H, W = 2, 4, 8, 8, 8

    key = jax.random.PRNGKey(0)
    kx_, kw1, kw2 = jax.random.split(key, 3)
    x = jax.random.normal(kx_, (N, C_IN, H, W), dtype=jnp.float32)
    # ConvTranspose2d weight shape: (in_channels, out_channels, kH, kW), no bias.
    w1_t = 0.1 * jax.random.normal(kw1, (C_IN, C_OUT, 3, 3), dtype=jnp.float32)
    w2_t = 0.1 * jax.random.normal(kw2, (C_OUT, C_OUT, 3, 3), dtype=jnp.float32)

    out = gen_block_forward(x, w1_t, w2_t, upsample=True)
    out = jax.block_until_ready(out)
    assert out.shape == (N, C_OUT, 2 * H, 2 * W), out.shape

    ref = jax.block_until_ready(_reference_forward(x, w1_t, w2_t))
    # bf16 matmul operands / bf16 intermediate activations => loosened tolerance vs f32 ref.
    np.testing.assert_allclose(np.asarray(out), np.asarray(ref),
                               atol=5e-2, rtol=5e-2)

    print("KERNEL_OK")
</pallas_src>

<mosaic_0001>
module attributes {stable_mosaic.version = 11 : i64} {
  func.func @kernel(%arg0: i32, %arg1: memref<1x16x16x4xbf16, #tpu.memory_space<vmem>>, %arg2: memref<36x128xbf16, #tpu.memory_space<vmem>>, %arg3: memref<72x128xbf16, #tpu.memory_space<vmem>>, %arg4: memref<1x16x16x128xf32, #tpu.memory_space<vmem>>, %arg5: memref<18x18x4xbf16, #tpu.memory_space<vmem>>, %arg6: memref<256x36xbf16, #tpu.memory_space<vmem>>, %arg7: memref<18x18x128xbf16, #tpu.memory_space<vmem>>, %arg8: memref<256x72xbf16, #tpu.memory_space<vmem>>) attributes {dimension_semantics = [#tpu.dimension_semantics<parallel>], iteration_bounds = array<i64: 2>, scalar_prefetch = 0 : i64, scratch_operands = 4 : i64, tpu.core_type = #tpu.core_type<tc>, window_params = [{transform_indices = @transform_0, window_bounds = array<i64: 1, 16, 16, 4>}, {pipeline_mode = #tpu.pipeline_mode<synchronous>, transform_indices = @transform_1, window_bounds = array<i64: 36, 128>}, {pipeline_mode = #tpu.pipeline_mode<synchronous>, transform_indices = @transform_2, window_bounds = array<i64: 72, 128>}, {transform_indices = @transform_3, window_bounds = array<i64: 1, 16, 16, 128>}]} {
    %cst = arith.constant 0.000000e+00 : bf16
    %0 = vector.broadcast %cst : bf16 to vector<18x18x4xbf16>
    %c0 = arith.constant 0 : index
    %c0_0 = arith.constant 0 : index
    %c0_1 = arith.constant 0 : index
    %1 = vector.load %arg5[%c0, %c0_0, %c0_1] : memref<18x18x4xbf16, #tpu.memory_space<vmem>>, vector<18x18x4xbf16>
    tpu.vector_store %arg5[%c0, %c0_0, %c0_1], %0 {strides = array<i32>} : memref<18x18x4xbf16, #tpu.memory_space<vmem>>, vector<18x18x4xbf16>,
    %c0_2 = arith.constant 0 : index
    %c0_3 = arith.constant 0 : index
    %c0_4 = arith.constant 0 : index
    %c0_5 = arith.constant 0 : index
    %2 = vector.load %arg1[%c0_2, %c0_3, %c0_4, %c0_5] : memref<1x16x16x4xbf16, #tpu.memory_space<vmem>>, vector<1x16x16x4xbf16>
    %3 = vector.shape_cast %2 : vector<1x16x16x4xbf16> to vector<16x16x4xbf16>
    %c1 = arith.constant 1 : index
    %c1_6 = arith.constant 1 : index
    %c0_7 = arith.constant 0 : index
    %4 = vector.load %arg5[%c1, %c1_6, %c0_7] : memref<18x18x4xbf16, #tpu.memory_space<vmem>>, vector<16x16x4xbf16>
    tpu.vector_store %arg5[%c1, %c1_6, %c0_7], %3 {strides = array<i32>} : memref<18x18x4xbf16, #tpu.memory_space<vmem>>, vector<16x16x4xbf16>,
    %c0_8 = arith.constant 0 : index
    %c0_9 = arith.constant 0 : index
    %c0_10 = arith.constant 0 : index
    %5 = vector.load %arg5[%c0_8, %c0_9, %c0_10] : memref<18x18x4xbf16, #tpu.memory_space<vmem>>, vector<16x16x4xbf16>
    %6 = vector.shape_cast %5 : vector<16x16x4xbf16> to vector<256x4xbf16>
    %c0_11 = arith.constant 0 : index
    %c0_12 = arith.constant 0 : index
    %7 = vector.load %arg6[%c0_11, %c0_12] : memref<256x36xbf16, #tpu.memory_space<vmem>>, vector<256x4xbf16>
    tpu.vector_store %arg6[%c0_11, %c0_12], %6 {strides = array<i32>} : memref<256x36xbf16, #tpu.memory_space<vmem>>, vector<256x4xbf16>,
    %c0_13 = arith.constant 0 : index
    %c1_14 = arith.constant 1 : index
    %c0_15 = arith.constant 0 : index
    %8 = vector.load %arg5[%c0_13, %c1_14, %c0_15] : memref<18x18x4xbf16, #tpu.memory_space<vmem>>, vector<16x16x4xbf16>
    %9 = vector.shape_cast %8 : vector<16x16x4xbf16> to vector<256x4xbf16>
    %c0_16 = arith.constant 0 : index
    %c4 = arith.constant 4 : index
    %10 = vector.load %arg6[%c0_16, %c4] : memref<256x36xbf16, #tpu.memory_space<vmem>>, vector<256x4xbf16>
    tpu.vector_store %arg6[%c0_16, %c4], %9 {strides = array<i32>} : memref<256x36xbf16, #tpu.memory_space<vmem>>, vector<256x4xbf16>,
    %c0_17 = arith.constant 0 : index
    %c2 = arith.constant 2 : index
    %c0_18 = arith.constant 0 : index
    %11 = vector.load %arg5[%c0_17, %c2, %c0_18] : memref<18x18x4xbf16, #tpu.memory_space<vmem>>, vector<16x16x4xbf16>
    %12 = vector.shape_cast %11 : vector<16x16x4xbf16> to vector<256x4xbf16>
    %c0_19 = arith.constant 0 : index
    %c8 = arith.constant 8 : index
    %13 = vector.load %arg6[%c0_19, %c8] : memref<256x36xbf16, #tpu.memory_space<vmem>>, vector<256x4xbf16>
    tpu.vector_store %arg6[%c0_19, %c8], %12 {strides = array<i32>} : memref<256x36xbf16, #tpu.memory_space<vmem>>, vector<256x4xbf16>,
    %c1_20 = arith.constant 1 : index
    %c0_21 = arith.constant 0 : index
    %c0_22 = arith.constant 0 : index
    %14 = vector.load %arg5[%c1_20, %c0_21, %c0_22] : memref<18x18x4xbf16, #tpu.memory_space<vmem>>, vector<16x16x4xbf16>
    %15 = vector.shape_cast %14 : vector<16x16x4xbf16> to vector<256x4xbf16>
    %c0_23 = arith.constant 0 : index
    %c12 = arith.constant 12 : index
    %16 = vector.load %arg6[%c0_23, %c12] : memref<256x36xbf16, #tpu.memory_space<vmem>>, vector<256x4xbf16>
    tpu.vector_store %arg6[%c0_23, %c12], %15 {strides = array<i32>} : memref<256x36xbf16, #tpu.memory_space<vmem>>, vector<256x4xbf16>,
    %c1_24 = arith.constant 1 : index
    %c1_25 = arith.constant 1 : index
    %c0_26 = arith.constant 0 : index
    %17 = vector.load %arg5[%c1_24, %c1_25, %c0_26] : memref<18x18x4xbf16, #tpu.memory_space<vmem>>, vector<16x16x4xbf16>
    %18 = vector.shape_cast %17 : vector<16x16x4xbf16> to vector<256x4xbf16>
    %c0_27 = arith.constant 0 : index
    %c16 = arith.constant 16 : index
    %19 = vector.load %arg6[%c0_27, %c16] : memref<256x36xbf16, #tpu.memory_space<vmem>>, vector<256x4xbf16>
    tpu.vector_store %arg6[%c0_27, %c16], %18 {strides = array<i32>} : memref<256x36xbf16, #tpu.memory_space<vmem>>, vector<256x4xbf16>,
    %c1_28 = arith.constant 1 : index
    %c2_29 = arith.constant 2 : index
    %c0_30 = arith.constant 0 : index
    %20 = vector.load %arg5[%c1_28, %c2_29, %c0_30] : memref<18x18x4xbf16, #tpu.memory_space<vmem>>, vector<16x16x4xbf16>
    %21 = vector.shape_cast %20 : vector<16x16x4xbf16> to vector<256x4xbf16>
    %c0_31 = arith.constant 0 : index
    %c20 = arith.constant 20 : index
    %22 = vector.load %arg6[%c0_31, %c20] : memref<256x36xbf16, #tpu.memory_space<vmem>>, vector<256x4xbf16>
    tpu.vector_store %arg6[%c0_31, %c20], %21 {strides = array<i32>} : memref<256x36xbf16, #tpu.memory_space<vmem>>, vector<256x4xbf16>,
    %c2_32 = arith.constant 2 : index
    %c0_33 = arith.constant 0 : index
    %c0_34 = arith.constant 0 : index
    %23 = vector.load %arg5[%c2_32, %c0_33, %c0_34] : memref<18x18x4xbf16, #tpu.memory_space<vmem>>, vector<16x16x4xbf16>
    %24 = vector.shape_cast %23 : vector<16x16x4xbf16> to vector<256x4xbf16>
    %c0_35 = arith.constant 0 : index
    %c24 = arith.constant 24 : index
    %25 = vector.load %arg6[%c0_35, %c24] : memref<256x36xbf16, #tpu.memory_space<vmem>>, vector<256x4xbf16>
    tpu.vector_store %arg6[%c0_35, %c24], %24 {strides = array<i32>} : memref<256x36xbf16, #tpu.memory_space<vmem>>, vector<256x4xbf16>,
    %c2_36 = arith.constant 2 : index
    %c1_37 = arith.constant 1 : index
    %c0_38 = arith.constant 0 : index
    %26 = vector.load %arg5[%c2_36, %c1_37, %c0_38] : memref<18x18x4xbf16, #tpu.memory_space<vmem>>, vector<16x16x4xbf16>
    %27 = vector.shape_cast %26 : vector<16x16x4xbf16> to vector<256x4xbf16>
    %c0_39 = arith.constant 0 : index
    %c28 = arith.constant 28 : index
    %28 = vector.load %arg6[%c0_39, %c28] : memref<256x36xbf16, #tpu.memory_space<vmem>>, vector<256x4xbf16>
    tpu.vector_store %arg6[%c0_39, %c28], %27 {strides = array<i32>} : memref<256x36xbf16, #tpu.memory_space<vmem>>, vector<256x4xbf16>,
    %c2_40 = arith.constant 2 : index
    %c2_41 = arith.constant 2 : index
    %c0_42 = arith.constant 0 : index
    %29 = vector.load %arg5[%c2_40, %c2_41, %c0_42] : memref<18x18x4xbf16, #tpu.memory_space<vmem>>, vector<16x16x4xbf16>
    %30 = vector.shape_cast %29 : vector<16x16x4xbf16> to vector<256x4xbf16>
    %c0_43 = arith.constant 0 : index
    %c32 = arith.constant 32 : index
    %31 = vector.load %arg6[%c0_43, %c32] : memref<256x36xbf16, #tpu.memory_space<vmem>>, vector<256x4xbf16>
    tpu.vector_store %arg6[%c0_43, %c32], %30 {strides = array<i32>} : memref<256x36xbf16, #tpu.memory_space<vmem>>, vector<256x4xbf16>,
    %c0_44 = arith.constant 0 : index
    %c0_45 = arith.constant 0 : index
    %32 = vector.load %arg6[%c0_44, %c0_45] : memref<256x36xbf16, #tpu.memory_space<vmem>>, vector<256x36xbf16>
    %c0_46 = arith.constant 0 : index
    %c0_47 = arith.constant 0 : index
    %33 = vector.load %arg2[%c0_46, %c0_47] : memref<36x128xbf16, #tpu.memory_space<vmem>>, vector<36x128xbf16>
    %cst_48 = arith.constant dense<0.000000e+00> : vector<256x128xf32>
    %34 = tpu.matmul %32, %33, %cst_48 {dimension_numbers = #tpu.dot_dimension_numbers<[1], [0], [0], [1], [0, 0, 1, 1], [], []>} : vector<256x36xbf16>, vector<36x128xbf16>, vector<256x128xf32> -> vector<256x128xf32>
    %cst_49 = arith.constant dense<0.000000e+00> : vector<128xf32>
    %35 = vector.multi_reduction <add>, %34, %cst_49 [0] : vector<256x128xf32> to vector<128xf32>
    %36 = vector.shape_cast %35 : vector<128xf32> to vector<1x128xf32>
    %cst_50 = arith.constant 2.560000e+02 : f32
    %37 = vector.broadcast %cst_50 : f32 to vector<1x128xf32>
    %38 = arith.divf %36, %37 : vector<1x128xf32>
    %39 = arith.mulf %34, %34 : vector<256x128xf32>
    %cst_51 = arith.constant dense<0.000000e+00> : vector<128xf32>
    %40 = vector.multi_reduction <add>, %39, %cst_51 [0] : vector<256x128xf32> to vector<128xf32>
    %41 = vector.shape_cast %40 : vector<128xf32> to vector<1x128xf32>
    %cst_52 = arith.constant 2.560000e+02 : f32
    %42 = vector.broadcast %cst_52 : f32 to vector<1x128xf32>
    %43 = arith.divf %41, %42 : vector<1x128xf32>
    %44 = arith.mulf %38, %38 : vector<1x128xf32>
    %45 = arith.subf %43, %44 : vector<1x128xf32>
    %cst_53 = arith.constant 0.000000e+00 : f32
    %46 = vector.broadcast %cst_53 : f32 to vector<1x128xf32>
    %47 = arith.maximumf %45, %46 : vector<1x128xf32>
    %48 = vector.broadcast %38 : vector<1x128xf32> to vector<256x128xf32>
    %49 = arith.subf %34, %48 : vector<256x128xf32>
    %cst_54 = arith.constant 9.99999974E-6 : f32
    %50 = vector.broadcast %cst_54 : f32 to vector<1x128xf32>
    %51 = arith.addf %47, %50 : vector<1x128xf32>
    %52 = math.rsqrt %51 : vector<1x128xf32>
    %53 = vector.broadcast %52 : vector<1x128xf32> to vector<256x128xf32>
    %54 = arith.mulf %49, %53 : vector<256x128xf32>
    %cst_55 = arith.constant 0.000000e+00 : f32
    %55 = vector.broadcast %cst_55 : f32 to vector<256x128xf32>
    %56 = arith.cmpf oge, %54, %55 : vector<256x128xf32>
    %cst_56 = arith.constant 2.000000e-01 : f32
    %57 = vector.broadcast %cst_56 : f32 to vector<256x128xf32>
    %58 = arith.mulf %57, %54 : vector<256x128xf32>
    %59 = arith.select %56, %54, %58 : vector<256x128xi1>, vector<256x128xf32>
    %cst_57 = arith.constant 0.000000e+00 : bf16
    %60 = vector.broadcast %cst_57 : bf16 to vector<18x18x128xbf16>
    %c0_58 = arith.constant 0 : index
    %c0_59 = arith.constant 0 : index
    %c0_60 = arith.constant 0 : index
    %61 = vector.load %arg7[%c0_58, %c0_59, %c0_60] : memref<18x18x128xbf16, #tpu.memory_space<vmem>>, vector<18x18x128xbf16>
    tpu.vector_store %arg7[%c0_58, %c0_59, %c0_60], %60 {strides = array<i32>} : memref<18x18x128xbf16, #tpu.memory_space<vmem>>, vector<18x18x128xbf16>,
    %62 = vector.shape_cast %59 : vector<256x128xf32> to vector<16x16x128xf32>
    %63 = arith.truncf %62 : vector<16x16x128xf32> to vector<16x16x128xbf16>
    %c1_61 = arith.constant 1 : index
    %c1_62 = arith.constant 1 : index
    %c0_63 = arith.constant 0 : index
    %64 = vector.load %arg7[%c1_61, %c1_62, %c0_63] : memref<18x18x128xbf16, #tpu.memory_space<vmem>>, vector<16x16x128xbf16>
    tpu.vector_store %arg7[%c1_61, %c1_62, %c0_63], %63 {strides = array<i32>} : memref<18x18x128xbf16, #tpu.memory_space<vmem>>, vector<16x16x128xbf16>,
    %c0_64 = arith.constant 0 : index
    %c0_65 = arith.constant 0 : index
    %c0_66 = arith.constant 0 : index
    %65 = vector.load %arg7[%c0_64, %c0_65, %c0_66] : memref<18x18x128xbf16, #tpu.memory_space<vmem>>, vector<16x16x8xbf16>
    %66 = vector.shape_cast %65 : vector<16x16x8xbf16> to vector<256x8xbf16>
    %c0_67 = arith.constant 0 : index
    %c0_68 = arith.constant 0 : index
    %67 = vector.load %arg8[%c0_67, %c0_68] : memref<256x72xbf16, #tpu.memory_space<vmem>>, vector<256x8xbf16>
    tpu.vector_store %arg8[%c0_67, %c0_68], %66 {strides = array<i32>} : memref<256x72xbf16, #tpu.memory_space<vmem>>, vector<256x8xbf16>,
    %c0_69 = arith.constant 0 : index
    %c1_70 = arith.constant 1 : index
    %c0_71 = arith.constant 0 : index
    %68 = vector.load %arg7[%c0_69, %c1_70, %c0_71] : memref<18x18x128xbf16, #tpu.memory_space<vmem>>, vector<16x16x8xbf16>
    %69 = vector.shape_cast %68 : vector<16x16x8xbf16> to vector<256x8xbf16>
    %c0_72 = arith.constant 0 : index
    %c8_73 = arith.constant 8 : index
    %70 = vector.load %arg8[%c0_72, %c8_73] : memref<256x72xbf16, #tpu.memory_space<vmem>>, vector<256x8xbf16>
    tpu.vector_store %arg8[%c0_72, %c8_73], %69 {strides = array<i32>} : memref<256x72xbf16, #tpu.memory_space<vmem>>, vector<256x8xbf16>,
    %c0_74 = arith.constant 0 : index
    %c2_75 = arith.constant 2 : index
    %c0_76 = arith.constant 0 : index
    %71 = vector.load %arg7[%c0_74, %c2_75, %c0_76] : memref<18x18x128xbf16, #tpu.memory_space<vmem>>, vector<16x16x8xbf16>
    %72 = vector.shape_cast %71 : vector<16x16x8xbf16> to vector<256x8xbf16>
    %c0_77 = arith.constant 0 : index
    %c16_78 = arith.constant 16 : index
    %73 = vector.load %arg8[%c0_77, %c16_78] : memref<256x72xbf16, #tpu.memory_space<vmem>>, vector<256x8xbf16>
    tpu.vector_store %arg8[%c0_77, %c16_78], %72 {strides = array<i32>} : memref<256x72xbf16, #tpu.memory_space<vmem>>, vector<256x8xbf16>,
    %c1_79 = arith.constant 1 : index
    %c0_80 = arith.constant 0 : index
    %c0_81 = arith.constant 0 : index
    %74 = vector.load %arg7[%c1_79, %c0_80, %c0_81] : memref<18x18x128xbf16, #tpu.memory_space<vmem>>, vector<16x16x8xbf16>
    %75 = vector.shape_cast %74 : vector<16x16x8xbf16> to vector<256x8xbf16>
    %c0_82 = arith.constant 0 : index
    %c24_83 = arith.constant 24 : index
    %76 = vector.load %arg8[%c0_82, %c24_83] : memref<256x72xbf16, #tpu.memory_space<vmem>>, vector<256x8xbf16>
    tpu.vector_store %arg8[%c0_82, %c24_83], %75 {strides = array<i32>} : memref<256x72xbf16, #tpu.memory_space<vmem>>, vector<256x8xbf16>,
    %c1_84 = arith.constant 1 : index
    %c1_85 = arith.constant 1 : index
    %c0_86 = arith.constant 0 : index
    %77 = vector.load %arg7[%c1_84, %c1_85, %c0_86] : memref<18x18x128xbf16, #tpu.memory_space<vmem>>, vector<16x16x8xbf16>
    %78 = vector.shape_cast %77 : vector<16x16x8xbf16> to vector<256x8xbf16>
    %c0_87 = arith.constant 0 : index
    %c32_88 = arith.constant 32 : index
    %79 = vector.load %arg8[%c0_87, %c32_88] : memref<256x72xbf16, #tpu.memory_space<vmem>>, vector<256x8xbf16>
    tpu.vector_store %arg8[%c0_87, %c32_88], %78 {strides = array<i32>} : memref<256x72xbf16, #tpu.memory_space<vmem>>, vector<256x8xbf16>,
    %c1_89 = arith.constant 1 : index
    %c2_90 = arith.constant 2 : index
    %c0_91 = arith.constant 0 : index
    %80 = vector.load %arg7[%c1_89, %c2_90, %c0_91] : memref<18x18x128xbf16, #tpu.memory_space<vmem>>, vector<16x16x8xbf16>
    %81 = vector.shape_cast %80 : vector<16x16x8xbf16> to vector<256x8xbf16>
    %c0_92 = arith.constant 0 : index
    %c40 = arith.constant 40 : index
    %82 = vector.load %arg8[%c0_92, %c40] : memref<256x72xbf16, #tpu.memory_space<vmem>>, vector<256x8xbf16>
    tpu.vector_store %arg8[%c0_92, %c40], %81 {strides = array<i32>} : memref<256x72xbf16, #tpu.memory_space<vmem>>, vector<256x8xbf16>,
    %c2_93 = arith.constant 2 : index
    %c0_94 = arith.constant 0 : index
    %c0_95 = arith.constant 0 : index
    %83 = vector.load %arg7[%c2_93, %c0_94, %c0_95] : memref<18x18x128xbf16, #tpu.memory_space<vmem>>, vector<16x16x8xbf16>
    %84 = vector.shape_cast %83 : vector<16x16x8xbf16> to vector<256x8xbf16>
    %c0_96 = arith.constant 0 : index
    %c48 = arith.constant 48 : index
    %85 = vector.load %arg8[%c0_96, %c48] : memref<256x72xbf16, #tpu.memory_space<vmem>>, vector<256x8xbf16>
    tpu.vector_store %arg8[%c0_96, %c48], %84 {strides = array<i32>} : memref<256x72xbf16, #tpu.memory_space<vmem>>, vector<256x8xbf16>,
    %c2_97 = arith.constant 2 : index
    %c1_98 = arith.constant 1 : index
    %c0_99 = arith.constant 0 : index
    %86 = vector.load %arg7[%c2_97, %c1_98, %c0_99] : memref<18x18x128xbf16, #tpu.memory_space<vmem>>, vector<16x16x8xbf16>
    %87 = vector.shape_cast %86 : vector<16x16x8xbf16> to vector<256x8xbf16>
    %c0_100 = arith.constant 0 : index
    %c56 = arith.constant 56 : index
    %88 = vector.load %arg8[%c0_100, %c56] : memref<256x72xbf16, #tpu.memory_space<vmem>>, vector<256x8xbf16>
    tpu.vector_store %arg8[%c0_100, %c56], %87 {strides = array<i32>} : memref<256x72xbf16, #tpu.memory_space<vmem>>, vector<256x8xbf16>,
    %c2_101 = arith.constant 2 : index
    %c2_102 = arith.constant 2 : index
    %c0_103 = arith.constant 0 : index
    %89 = vector.load %arg7[%c2_101, %c2_102, %c0_103] : memref<18x18x128xbf16, #tpu.memory_space<vmem>>, vector<16x16x8xbf16>
    %90 = vector.shape_cast %89 : vector<16x16x8xbf16> to vector<256x8xbf16>
    %c0_104 = arith.constant 0 : index
    %c64 = arith.constant 64 : index
    %91 = vector.load %arg8[%c0_104, %c64] : memref<256x72xbf16, #tpu.memory_space<vmem>>, vector<256x8xbf16>
    tpu.vector_store %arg8[%c0_104, %c64], %90 {strides = array<i32>} : memref<256x72xbf16, #tpu.memory_space<vmem>>, vector<256x8xbf16>,
    %c0_105 = arith.constant 0 : index
    %c0_106 = arith.constant 0 : index
    %92 = vector.load %arg8[%c0_105, %c0_106] : memref<256x72xbf16, #tpu.memory_space<vmem>>, vector<256x72xbf16>
    %c0_107 = arith.constant 0 : index
    %c0_108 = arith.constant 0 : index
    %93 = vector.load %arg3[%c0_107, %c0_108] : memref<72x128xbf16, #tpu.memory_space<vmem>>, vector<72x128xbf16>
    %cst_109 = arith.constant dense<0.000000e+00> : vector<256x128xf32>
    %94 = tpu.matmul %92, %93, %cst_109 {dimension_numbers = #tpu.dot_dimension_numbers<[1], [0], [0], [1], [0, 0, 1, 1], [], []>} : vector<256x72xbf16>, vector<72x128xbf16>, vector<256x128xf32> -> vector<256x128xf32>
    %cst_110 = arith.constant dense<0.000000e+00> : vector<128xf32>
    %95 = vector.multi_reduction <add>, %94, %cst_110 [0] : vector<256x128xf32> to vector<128xf32>
    %96 = vector.shape_cast %95 : vector<128xf32> to vector<1x128xf32>
    %cst_111 = arith.constant 2.560000e+02 : f32
    %97 = vector.broadcast %cst_111 : f32 to vector<1x128xf32>
    %98 = arith.divf %96, %97 : vector<1x128xf32>
    %99 = arith.mulf %94, %94 : vector<256x128xf32>
    %cst_112 = arith.constant dense<0.000000e+00> : vector<128xf32>
    %100 = vector.multi_reduction <add>, %99, %cst_112 [0] : vector<256x128xf32> to vector<128xf32>
    %101 = vector.shape_cast %100 : vector<128xf32> to vector<1x128xf32>
    %cst_113 = arith.constant 2.560000e+02 : f32
    %102 = vector.broadcast %cst_113 : f32 to vector<1x128xf32>
    %103 = arith.divf %101, %102 : vector<1x128xf32>
    %104 = arith.mulf %98, %98 : vector<1x128xf32>
    %105 = arith.subf %103, %104 : vector<1x128xf32>
    %cst_114 = arith.constant 0.000000e+00 : f32
    %106 = vector.broadcast %cst_114 : f32 to vector<1x128xf32>
    %107 = arith.maximumf %105, %106 : vector<1x128xf32>
    %108 = vector.broadcast %98 : vector<1x128xf32> to vector<256x128xf32>
    %109 = arith.subf %94, %108 : vector<256x128xf32>
    %cst_115 = arith.constant 9.99999974E-6 : f32
    %110 = vector.broadcast %cst_115 : f32 to vector<1x128xf32>
    %111 = arith.addf %107, %110 : vector<1x128xf32>
    %112 = math.rsqrt %111 : vector<1x128xf32>
    %113 = vector.broadcast %112 : vector<1x128xf32> to vector<256x128xf32>
    %114 = arith.mulf %109, %113 : vector<256x128xf32>
    %cst_116 = arith.constant 0.000000e+00 : f32
    %115 = vector.broadcast %cst_116 : f32 to vector<256x128xf32>
    %116 = arith.cmpf oge, %114, %115 : vector<256x128xf32>
    %cst_117 = arith.constant 2.000000e-01 : f32
    %117 = vector.broadcast %cst_117 : f32 to vector<256x128xf32>
    %118 = arith.mulf %117, %114 : vector<256x128xf32>
    %119 = arith.select %116, %114, %118 : vector<256x128xi1>, vector<256x128xf32>
    %120 = vector.shape_cast %119 : vector<256x128xf32> to vector<1x16x16x128xf32>
    %c0_118 = arith.constant 0 : index
    %c0_119 = arith.constant 0 : index
    %c0_120 = arith.constant 0 : index
    %c0_121 = arith.constant 0 : index
    %121 = vector.load %arg4[%c0_118, %c0_119, %c0_120, %c0_121] : memref<1x16x16x128xf32, #tpu.memory_space<vmem>>, vector<1x16x16x128xf32>
    tpu.vector_store %arg4[%c0_118, %c0_119, %c0_120, %c0_121], %120 {strides = array<i32>} : memref<1x16x16x128xf32, #tpu.memory_space<vmem>>, vector<1x16x16x128xf32>,
    return
  }
  func.func @transform_0(%arg0: i32) -> (i32, i32, i32, i32) {
    %c0_i32 = arith.constant 0 : i32
    %c0_i32_0 = arith.constant 0 : i32
    %c0_i32_1 = arith.constant 0 : i32
    %c0_i32_2 = arith.constant 0 : i32
    return %arg0, %c0_i32, %c0_i32_0, %c0_i32_1 : i32, i32, i32, i32
  }
  func.func @transform_1(%arg0: i32) -> (i32, i32) {
    %c0_i32 = arith.constant 0 : i32
    %c0_i32_0 = arith.constant 0 : i32
    %c0_i32_1 = arith.constant 0 : i32
    return %c0_i32, %c0_i32_0 : i32, i32
  }
  func.func @transform_2(%arg0: i32) -> (i32, i32) {
    %c0_i32 = arith.constant 0 : i32
    %c0_i32_0 = arith.constant 0 : i32
    %c0_i32_1 = arith.constant 0 : i32
    return %c0_i32, %c0_i32_0 : i32, i32
  }
  func.func @transform_3(%arg0: i32) -> (i32, i32, i32, i32) {
    %c0_i32 = arith.constant 0 : i32
    %c0_i32_0 = arith.constant 0 : i32
    %c0_i32_1 = arith.constant 0 : i32
    %c0_i32_2 = arith.constant 0 : i32
    return %arg0, %c0_i32, %c0_i32_0, %c0_i32_1 : i32, i32, i32, i32
  }
}

</mosaic_0001>

<llo_original>
// kernel: gen_block_forward.1
$region0: #{gen_block_forward.1}
  #allocation0 [shape = 'u32[]', space=smem, size = 0x4, offset = 0x4, fixed_abs, tag = 'smem constant byte address 0x4 - core index']
  #allocation1 [shape = 'u32[144,128]{1,0:T(1,128)}', space=vmem, size = 0x12000, scoped, tag = 'internal scratch']
  #allocation2 [shape = 'bf16[18,18,4]{2,1,0:T(8,128)(2,1)}', space=vmem, size = 0x1b000, scoped, tag = 'scratch operand']
  #allocation3 [shape = 'bf16[256,36]{1,0:T(16,128)(2,1)}', space=vmem, size = 0x10000, scoped, tag = 'scratch operand']
  #allocation4 [shape = 'bf16[18,18,128]{2,1,0:T(8,128)(2,1)}', space=vmem, size = 0x1b000, scoped, tag = 'scratch operand']
  #allocation5 [shape = 'bf16[256,72]{1,0:T(16,128)(2,1)}', space=vmem, size = 0x10000, scoped, tag = 'scratch operand']
  %s0 = inlined_call_operand.vmem [shape: bf16[2,16,16,4], index: 0, kind: input, shape index: {}]
  %s1 = inlined_call_operand.vmem [shape: bf16[36,128], index: 1, kind: input, shape index: {}]
  %s2 = inlined_call_operand.vmem [shape: bf16[72,128], index: 2, kind: input, shape index: {}]
  %s3 = inlined_call_operand.vmem [shape: f32[2,16,16,128], index: 3, kind: output, shape index: {}]
  %s4 = sld [smem:[#allocation0]]
  $region45: #{gen_block_forward.1} parent=0
    _
  %s6 = ssub.s32 1, %s4
  %s7 = scalar_select 0, %s6, %s4
  loop: start=0, step=1, limit=4
  $region2: #{gen_block_forward.1} parent=0 // loop_pre_header
    _
  $region3: #{gen_block_forward.1} parent=0 // loop_header
    %s9 = sphi 0, %s13
    %p10 = scmp.ge.s32.totalorder %s9, 4
    %s19 = sphi 0, %s21
    %s22 = sphi 0, %s19
    %s23 = sphi 0, %s22
    %s39 = sphi 0, %s23
    %s43 = sphi 0, %s43
    %s45 = sphi 0, %s43
    %s46 = sphi 0, %s45
    %s60 = sphi 0, %s46
    %s64 = sphi 0, %s64
    %s66 = sphi 0, %s64
    %s67 = sphi 0, %s66
    %s81 = sphi 0, %s67
    %s87 = sphi 0, %s89
    %s90 = sphi 0, %s87
    %s91 = sphi 0, %s90
    %s107 = sphi 0, %s91
  $region4: #{gen_block_forward.1} parent=0 // loop_header_branch
    %12 = sbr.rel (%p10) target = $region8
  $region5: #{gen_block_forward.1} parent=0 // loop_body
    %s14 = ssub.s32 %s9, 1
    %s15 = ssub.s32 %s9, 2
    %s16 = sadd.s32 %s9, 1
    %s17 = ssub.s32 %s9, %s16
    %p18 = scmp.eq.s32.totalorder %s17, 0
    %s20 = sadd.s32 %s19, 1
    %s21 = scalar_select %p18, %s19, %s20
    %p24 = pneg %p18
    %p25 = scmp.eq.s32.totalorder %s9, 1
    %p26 = por %p24, %p25
    %p27 = scmp.ne.s32.totalorder %s19, %s22
    %p28 = scmp.eq.s32.totalorder %s9, 0
    %p29 = por %p27, %p28
    %p30 = scmp.ne.s32.totalorder %s19, %s22
    %p31 = scmp.eq.s32.totalorder %s14, 1
    %p32 = por %p30, %p31
    %p33 = scmp.ne.s32.totalorder %s22, %s23
    %p34 = scmp.eq.s32.totalorder %s14, 0
    %p35 = por %p33, %p34
    %p36 = scmp.ne.s32.totalorder %s22, %s23
    %p37 = scmp.eq.s32.totalorder %s15, 1
    %p38 = por %p36, %p37
    %p40 = scmp.ne.s32.totalorder %s23, %s39
    %p41 = scmp.eq.s32.totalorder %s15, 0
    %p42 = por %p40, %p41
    %s44 = sadd.s32 %s43, 1
    %p47 = scmp.eq.s32.totalorder %s9, 1
    %p48 = scmp.ne.s32.totalorder %s43, %s45
    %p49 = scmp.eq.s32.totalorder %s9, 0
    %p50 = por %p48, %p49
    %p51 = scmp.ne.s32.totalorder %s43, %s45
    %p52 = scmp.eq.s32.totalorder %s14, 1
    %p53 = por %p51, %p52
    %p54 = scmp.ne.s32.totalorder %s45, %s46
    %p55 = scmp.eq.s32.totalorder %s14, 0
    %p56 = por %p54, %p55
    %p57 = scmp.ne.s32.totalorder %s45, %s46
    %p58 = scmp.eq.s32.totalorder %s15, 1
    %p59 = por %p57, %p58
    %p61 = scmp.ne.s32.totalorder %s46, %s60
    %p62 = scmp.eq.s32.totalorder %s15, 0
    %p63 = por %p61, %p62
    %s65 = sadd.s32 %s64, 1
    %p68 = scmp.eq.s32.totalorder %s9, 1
    %p69 = scmp.ne.s32.totalorder %s64, %s66
    %p70 = scmp.eq.s32.totalorder %s9, 0
    %p71 = por %p69, %p70
    %p72 = scmp.ne.s32.totalorder %s64, %s66
    %p73 = scmp.eq.s32.totalorder %s14, 1
    %p74 = por %p72, %p73
    %p75 = scmp.ne.s32.totalorder %s66, %s67
    %p76 = scmp.eq.s32.totalorder %s14, 0
    %p77 = por %p75, %p76
    %p78 = scmp.ne.s32.totalorder %s66, %s67
    %p79 = scmp.eq.s32.totalorder %s15, 1
    %p80 = por %p78, %p79
    %p82 = scmp.ne.s32.totalorder %s67, %s81
    %p83 = scmp.eq.s32.totalorder %s15, 0
    %p84 = por %p82, %p83
    %s85 = ssub.s32 %s9, %s16
    %p86 = scmp.eq.s32.totalorder %s85, 0
    %s88 = sadd.s32 %s87, 1
    %s89 = scalar_select %p86, %s87, %s88
    %p92 = pneg %p86
    %p93 = scmp.eq.s32.totalorder %s9, 1
    %p94 = por %p92, %p93
    %p95 = scmp.ne.s32.totalorder %s87, %s90
    %p96 = scmp.eq.s32.totalorder %s9, 0
    %p97 = por %p95, %p96
    %p98 = scmp.ne.s32.totalorder %s87, %s90
    %p99 = scmp.eq.s32.totalorder %s14, 1
    %p100 = por %p98, %p99
    %p101 = scmp.ne.s32.totalorder %s90, %s91
    %p102 = scmp.eq.s32.totalorder %s14, 0
    %p103 = por %p101, %p102
    %p104 = scmp.ne.s32.totalorder %s90, %s91
    %p105 = scmp.eq.s32.totalorder %s15, 1
    %p106 = por %p104, %p105
    %p108 = scmp.ne.s32.totalorder %s91, %s107
    %p109 = scmp.eq.s32.totalorder %s15, 0
    %p110 = por %p108, %p109
    %p111 = scmp.le.s32.totalorder 1, %s9
    %p112 = scmp.lt.s32.totalorder %s9, 3
    %p113 = pnand %p111, %p112
    %p114 = pneg %p113
    // Predicated region
    $region9: #{gen_block_forward.1} parent=5 // pred_check
      _
    $region10: #{gen_block_forward.1} parent=5 // pred_check_branch
      %116 = sbr.rel (%p113) target = $region12
    $region11: #{gen_block_forward.1} parent=5 // pred_region
      %s117 = ssub.s32 %s9, 1
      // Predicated region
      $region13: #{gen_block_forward.1} parent=11 // pred_check
        %p118 = pneg %p56
      $region14: #{gen_block_forward.1} parent=11 // pred_check_branch
        %120 = sbr.rel (%p118) target = $region16
      $region15: #{gen_block_forward.1} parent=11 // pred_region
        _
      $region16: #{gen_block_forward.1} parent=11 // pred_fallthru
        _
      // Predicated region
      $region17: #{gen_block_forward.1} parent=11 // pred_check
        %p121 = pneg %p77
      $region18: #{gen_block_forward.1} parent=11 // pred_check_branch
        %123 = sbr.rel (%p121) target = $region20
      $region19: #{gen_block_forward.1} parent=11 // pred_region
        _
      $region20: #{gen_block_forward.1} parent=11 // pred_fallthru
        _
    $region12: #{gen_block_forward.1} parent=5 // pred_fallthru
      _
    %p124 = scmp.lt.s32.totalorder %s9, 2
    // Predicated region
    $region21: #{gen_block_forward.1} parent=5 // pred_check
      %p125 = pneg %p124
    $region22: #{gen_block_forward.1} parent=5 // pred_check_branch
      %127 = sbr.rel (%p125) target = $region24
    $region23: #{gen_block_forward.1} parent=5 // pred_region
      // Predicated region
      $region25: #{gen_block_forward.1} parent=23 // pred_check
        %p128 = pneg %p29
      $region26: #{gen_block_forward.1} parent=23 // pred_check_branch
        %130 = sbr.rel (%p128) target = $region28
      $region27: #{gen_block_forward.1} parent=23 // pred_region
        %p131 = scmp.lt.s32.totalorder %s9, 1
        %s132 = scalar_select %p131, %s9, 1
        %s133 = smul.addr %s132, 32
        %s134 = smul.addr %s133, 4
        %s135 = scalar_lea.vmem %s0, %s134
      $region28: #{gen_block_forward.1} parent=23 // pred_fallthru
        _
    $region24: #{gen_block_forward.1} parent=5 // pred_fallthru
      _
    %p136 = scmp.le.s32.totalorder 1, %s9
    %p137 = scmp.lt.s32.totalorder %s9, 3
    %p138 = pnand %p136, %p137
    %p139 = pneg %p138
    // Predicated region
    $region29: #{gen_block_forward.1} parent=5 // pred_check
      _
    $region30: #{gen_block_forward.1} parent=5 // pred_check_branch
      %141 = sbr.rel (%p138) target = $region32
    $region31: #{gen_block_forward.1} parent=5 // pred_region
      %s142 = ssub.s32 %s9, 1
      %p143 = scmp.lt.s32.totalorder %s14, 1
      %s144 = scalar_select %p143, %s14, 1
      %s145 = smul.addr %s144, 32
      %s146 = smul.addr %s145, 4
      %s147 = scalar_lea.vmem %s0, %s146
      %p148 = pneg %p35
      %p149 = pneg %p32
      %p150 = pneg %p56
      %p151 = pneg %p53
      %p152 = pneg %p77
      %p153 = pneg %p74
      %p154 = pneg %p103
      %p155 = pneg %p100
      %p156 = scmp.lt.s32.totalorder %s14, 1
      %s157 = scalar_select %p156, %s14, 1
      %s158 = smul.addr %s157, 32
      %s159 = smul.addr %s158, 8
      %s160 = scalar_lea.vmem %s3, %s159
      %p161 = scmp.lt.s32.totalorder %s14, 1
      %s162 = scalar_select %p161, %s14, 1
      %s163 = smul.addr %s162, 32
      %s164 = smul.addr %s163, 4
      %s165 = scalar_lea.vmem %s0, %s164
      %p166 = scmp.lt.s32.totalorder %s14, 1
      %s167 = scalar_select %p166, %s14, 1
      %s168 = smul.addr %s167, 32
      %s169 = smul.addr %s168, 8
      %s170 = scalar_lea.vmem %s3, %s169
      %vm172 = vcmask 27648
      %173 = vst.msk [vmem:[#allocation2] sm:$0xf] %vm172, 0
      %174 = vst.msk [vmem:[#allocation2 + $0x4] sm:$0xf] %vm172, 0
      %vm175 = vcmask 24576
      %176 = vst.msk [vmem:[#allocation2 + $0x8] sm:$0x1] %vm175, 0
      %177 = vst.msk [vmem:[#allocation2 + $0xc] sm:$0xf] %vm172, 0
      %178 = vst.msk [vmem:[#allocation2 + $0x10] sm:$0xf] %vm172, 0
      %179 = vst.msk [vmem:[#allocation2 + $0x14] sm:$0x1] %vm175, 0
      %180 = vst.msk [vmem:[#allocation2 + $0x18] sm:$0xf] %vm172, 0
      %181 = vst.msk [vmem:[#allocation2 + $0x1c] sm:$0xf] %vm172, 0
      %182 = vst.msk [vmem:[#allocation2 + $0x20] sm:$0x1] %vm175, 0
      %183 = vst.msk [vmem:[#allocation2 + $0x24] sm:$0xf] %vm172, 0
      %184 = vst.msk [vmem:[#allocation2 + $0x28] sm:$0xf] %vm172, 0
      %185 = vst.msk [vmem:[#allocation2 + $0x2c] sm:$0x1] %vm175, 0
      %186 = vst.msk [vmem:[#allocation2 + $0x30] sm:$0xf] %vm172, 0
      %187 = vst.msk [vmem:[#allocation2 + $0x34] sm:$0xf] %vm172, 0
      %188 = vst.msk [vmem:[#allocation2 + $0x38] sm:$0x1] %vm175, 0
      %189 = vst.msk [vmem:[#allocation2 + $0x3c] sm:$0xf] %vm172, 0
      %190 = vst.msk [vmem:[#allocation2 + $0x40] sm:$0xf] %vm172, 0
      %191 = vst.msk [vmem:[#allocation2 + $0x44] sm:$0x1] %vm175, 0
      %192 = vst.msk [vmem:[#allocation2 + $0x48] sm:$0xf] %vm172, 0
      %193 = vst.msk [vmem:[#allocation2 + $0x4c] sm:$0xf] %vm172, 0
      %194 = vst.msk [vmem:[#allocation2 + $0x50] sm:$0x1] %vm175, 0
      %195 = vst.msk [vmem:[#allocation2 + $0x54] sm:$0xf] %vm172, 0
      %196 = vst.msk [vmem:[#allocation2 + $0x58] sm:$0xf] %vm172, 0
      %197 = vst.msk [vmem:[#allocation2 + $0x5c] sm:$0x1] %vm175, 0
      %198 = vst.msk [vmem:[#allocation2 + $0x60] sm:$0xf] %vm172, 0
      %199 = vst.msk [vmem:[#allocation2 + $0x64] sm:$0xf] %vm172, 0
      %200 = vst.msk [vmem:[#allocation2 + $0x68] sm:$0x1] %vm175, 0
      %201 = vst.msk [vmem:[#allocation2 + $0x6c] sm:$0xf] %vm172, 0
      %202 = vst.msk [vmem:[#allocation2 + $0x70] sm:$0xf] %vm172, 0
      %203 = vst.msk [vmem:[#allocation2 + $0x74] sm:$0x1] %vm175, 0
      %204 = vst.msk [vmem:[#allocation2 + $0x78] sm:$0xf] %vm172, 0
      %205 = vst.msk [vmem:[#allocation2 + $0x7c] sm:$0xf] %vm172, 0
      %206 = vst.msk [vmem:[#allocation2 + $0x80] sm:$0x1] %vm175, 0
      %207 = vst.msk [vmem:[#allocation2 + $0x84] sm:$0xf] %vm172, 0
      %208 = vst.msk [vmem:[#allocation2 + $0x88] sm:$0xf] %vm172, 0
      %209 = vst.msk [vmem:[#allocation2 + $0x8c] sm:$0x1] %vm175, 0
      %210 = vst.msk [vmem:[#allocation2 + $0x90] sm:$0xf] %vm172, 0
      %211 = vst.msk [vmem:[#allocation2 + $0x94] sm:$0xf] %vm172, 0
      %212 = vst.msk [vmem:[#allocation2 + $0x98] sm:$0x1] %vm175, 0
      %213 = vst.msk [vmem:[#allocation2 + $0x9c] sm:$0xf] %vm172, 0
      %214 = vst.msk [vmem:[#allocation2 + $0xa0] sm:$0xf] %vm172, 0
      %215 = vst.msk [vmem:[#allocation2 + $0xa4] sm:$0x1] %vm175, 0
      %216 = vst.msk [vmem:[#allocation2 + $0xa8] sm:$0xf] %vm172, 0
      %217 = vst.msk [vmem:[#allocation2 + $0xac] sm:$0xf] %vm172, 0
      %218 = vst.msk [vmem:[#allocation2 + $0xb0] sm:$0x1] %vm175, 0
      %219 = vst.msk [vmem:[#allocation2 + $0xb4] sm:$0xf] %vm172, 0
      %220 = vst.msk [vmem:[#allocation2 + $0xb8] sm:$0xf] %vm172, 0
      %221 = vst.msk [vmem:[#allocation2 + $0xbc] sm:$0x1] %vm175, 0
      %222 = vst.msk [vmem:[#allocation2 + $0xc0] sm:$0xf] %vm172, 0
      %223 = vst.msk [vmem:[#allocation2 + $0xc4] sm:$0xf] %vm172, 0
      %224 = vst.msk [vmem:[#allocation2 + $0xc8] sm:$0x1] %vm175, 0
      %225 = vst.msk [vmem:[#allocation2 + $0xcc] sm:$0xf] %vm172, 0
      %226 = vst.msk [vmem:[#allocation2 + $0xd0] sm:$0xf] %vm172, 0
      %227 = vst.msk [vmem:[#allocation2 + $0xd4] sm:$0x1] %vm175, 0
      %v228 = vld [vmem:[%s165] sm:$0xf]
      %v229 = vld [vmem:[%s165 + $0x4] sm:$0xf]
      %v230 = vld [vmem:[%s165 + $0x8] sm:$0xf]
      %v231 = vld [vmem:[%s165 + $0xc] sm:$0xf]
      %v232 = vld [vmem:[%s165 + $0x10] sm:$0xf]
      %v233 = vld [vmem:[%s165 + $0x14] sm:$0xf]
      %v234 = vld [vmem:[%s165 + $0x18] sm:$0xf]
      %v235 = vld [vmem:[%s165 + $0x1c] sm:$0xf]
      %v236 = vld [vmem:[%s165 + $0x20] sm:$0xf]
      %v237 = vld [vmem:[%s165 + $0x24] sm:$0xf]
      %v238 = vld [vmem:[%s165 + $0x28] sm:$0xf]
      %v239 = vld [vmem:[%s165 + $0x2c] sm:$0xf]
      %v240 = vld [vmem:[%s165 + $0x30] sm:$0xf]
      %v241 = vld [vmem:[%s165 + $0x34] sm:$0xf]
      %v242 = vld [vmem:[%s165 + $0x38] sm:$0xf]
      %v243 = vld [vmem:[%s165 + $0x3c] sm:$0xf]
      %v244 = vld [vmem:[%s165 + $0x40] sm:$0xf]
      %v245 = vld [vmem:[%s165 + $0x44] sm:$0xf]
      %v246 = vld [vmem:[%s165 + $0x48] sm:$0xf]
      %v247 = vld [vmem:[%s165 + $0x4c] sm:$0xf]
      %v248 = vld [vmem:[%s165 + $0x50] sm:$0xf]
      %v249 = vld [vmem:[%s165 + $0x54] sm:$0xf]
      %v250 = vld [vmem:[%s165 + $0x58] sm:$0xf]
      %v251 = vld [vmem:[%s165 + $0x5c] sm:$0xf]
      %v252 = vld [vmem:[%s165 + $0x60] sm:$0xf]
      %v253 = vld [vmem:[%s165 + $0x64] sm:$0xf]
      %v254 = vld [vmem:[%s165 + $0x68] sm:$0xf]
      %v255 = vld [vmem:[%s165 + $0x6c] sm:$0xf]
      %v256 = vld [vmem:[%s165 + $0x70] sm:$0xf]
      %v257 = vld [vmem:[%s165 + $0x74] sm:$0xf]
      %v258 = vld [vmem:[%s165 + $0x78] sm:$0xf]
      %v259 = vld [vmem:[%s165 + $0x7c] sm:$0xf]
      %vm260 = vsmask.f32 256
      %vm261 = vsmask.f32 4368
      %vm262 = vmor %vm260, %vm261
      %v264 = vshrl.u32 %v228, 16
      %v266 = vrot.slane %v264, 7
      %v267 = vshll.u32 %v228, 16
      %v269 = vor.u32 %v266, %v267
      %v270 = vrot.slane %v266, 4
      %v272 = vshrl.u32 %v229, 16
      %v274 = vrot.slane %v272, 7
      %v275 = vshll.u32 %v229, 16
      %v277 = vor.u32 %v274, %v275
      %v278 = vsel %vm262, %v270, %v277
      %v279 = vrot.slane %v274, 4
      %v281 = vshrl.u32 %v230, 16
      %v283 = vrot.slane %v281, 7
      %v284 = vshll.u32 %v230, 16
      %v286 = vor.u32 %v283, %v284
      %v287 = vrot.slane %v283, 4
      %v289 = vshrl.u32 %v231, 16
      %v291 = vrot.slane %v289, 7
      %v292 = vshll.u32 %v231, 16
      %v294 = vor.u32 %v291, %v292
      %v295 = vsel %vm262, %v287, %v294
      %v296 = vrot.slane %v291, 4
      %v298 = vshrl.u32 %v232, 16
      %v300 = vrot.slane %v298, 7
      %v301 = vshll.u32 %v232, 16
      %v303 = vor.u32 %v300, %v301
      %v304 = vrot.slane %v300, 4
      %v306 = vshrl.u32 %v233, 16
      %v308 = vrot.slane %v306, 7
      %v309 = vshll.u32 %v233, 16
      %v311 = vor.u32 %v308, %v309
      %v312 = vsel %vm262, %v304, %v311
      %v313 = vrot.slane %v308, 4
      %v315 = vshrl.u32 %v234, 16
      %v317 = vrot.slane %v315, 7
      %v318 = vshll.u32 %v234, 16
      %v320 = vor.u32 %v317, %v318
      %v321 = vrot.slane %v317, 4
      %v323 = vshrl.u32 %v235, 16
      %v325 = vrot.slane %v323, 7
      %v326 = vshll.u32 %v235, 16
      %v328 = vor.u32 %v325, %v326
      %v329 = vsel %vm262, %v321, %v328
      %v330 = vrot.slane %v325, 4
      %v332 = vshrl.u32 %v236, 16
      %v334 = vrot.slane %v332, 7
      %v335 = vshll.u32 %v236, 16
      %v337 = vor.u32 %v334, %v335
      %v338 = vrot.slane %v334, 4
      %v340 = vshrl.u32 %v237, 16
      %v342 = vrot.slane %v340, 7
      %v343 = vshll.u32 %v237, 16
      %v345 = vor.u32 %v342, %v343
      %v346 = vsel %vm262, %v338, %v345
      %v347 = vrot.slane %v342, 4
      %v349 = vshrl.u32 %v238, 16
      %v351 = vrot.slane %v349, 7
      %v352 = vshll.u32 %v238, 16
      %v354 = vor.u32 %v351, %v352
      %v355 = vrot.slane %v351, 4
      %v357 = vshrl.u32 %v239, 16
      %v359 = vrot.slane %v357, 7
      %v360 = vshll.u32 %v239, 16
      %v362 = vor.u32 %v359, %v360
      %v363 = vsel %vm262, %v355, %v362
      %v364 = vrot.slane %v359, 4
      %v366 = vshrl.u32 %v240, 16
      %v368 = vrot.slane %v366, 7
      %v369 = vshll.u32 %v240, 16
      %v371 = vor.u32 %v368, %v369
      %v372 = vrot.slane %v368, 4
      %v374 = vshrl.u32 %v241, 16
      %v376 = vrot.slane %v374, 7
      %v377 = vshll.u32 %v241, 16
      %v379 = vor.u32 %v376, %v377
      %v380 = vsel %vm262, %v372, %v379
      %v381 = vrot.slane %v376, 4
      %v383 = vshrl.u32 %v242, 16
      %v385 = vrot.slane %v383, 7
      %v386 = vshll.u32 %v242, 16
      %v388 = vor.u32 %v385, %v386
      %v389 = vrot.slane %v385, 4
      %v391 = vshrl.u32 %v243, 16
      %v393 = vrot.slane %v391, 7
      %v394 = vshll.u32 %v243, 16
      %v396 = vor.u32 %v393, %v394
      %v397 = vsel %vm262, %v389, %v396
      %v398 = vrot.slane %v393, 4
      %v400 = vshrl.u32 %v244, 16
      %v402 = vrot.slane %v400, 7
      %v403 = vshll.u32 %v244, 16
      %v405 = vor.u32 %v402, %v403
      %v406 = vrot.slane %v402, 4
      %v408 = vshrl.u32 %v245, 16
      %v410 = vrot.slane %v408, 7
      %v411 = vshll.u32 %v245, 16
      %v413 = vor.u32 %v410, %v411
      %v414 = vsel %vm262, %v406, %v413
      %v415 = vrot.slane %v410, 4
      %v417 = vshrl.u32 %v246, 16
      %v419 = vrot.slane %v417, 7
      %v420 = vshll.u32 %v246, 16
      %v422 = vor.u32 %v419, %v420
      %v423 = vrot.slane %v419, 4
      %v425 = vshrl.u32 %v247, 16
      %v427 = vrot.slane %v425, 7
      %v428 = vshll.u32 %v247, 16
      %v430 = vor.u32 %v427, %v428
      %v431 = vsel %vm262, %v423, %v430
      %v432 = vrot.slane %v427, 4
      %v434 = vshrl.u32 %v248, 16
      %v436 = vrot.slane %v434, 7
      %v437 = vshll.u32 %v248, 16
      %v439 = vor.u32 %v436, %v437
      %v440 = vrot.slane %v436, 4
      %v442 = vshrl.u32 %v249, 16
      %v444 = vrot.slane %v442, 7
      %v445 = vshll.u32 %v249, 16
      %v447 = vor.u32 %v444, %v445
      %v448 = vsel %vm262, %v440, %v447
      %v449 = vrot.slane %v444, 4
      %v451 = vshrl.u32 %v250, 16
      %v453 = vrot.slane %v451, 7
      %v454 = vshll.u32 %v250, 16
      %v456 = vor.u32 %v453, %v454
      %v457 = vrot.slane %v453, 4
      %v459 = vshrl.u32 %v251, 16
      %v461 = vrot.slane %v459, 7
      %v462 = vshll.u32 %v251, 16
      %v464 = vor.u32 %v461, %v462
      %v465 = vsel %vm262, %v457, %v464
      %v466 = vrot.slane %v461, 4
      %v468 = vshrl.u32 %v252, 16
      %v470 = vrot.slane %v468, 7
      %v471 = vshll.u32 %v252, 16
      %v473 = vor.u32 %v470, %v471
      %v474 = vrot.slane %v470, 4
      %v476 = vshrl.u32 %v253, 16
      %v478 = vrot.slane %v476, 7
      %v479 = vshll.u32 %v253, 16
      %v481 = vor.u32 %v478, %v479
      %v482 = vsel %vm262, %v474, %v481
      %v483 = vrot.slane %v478, 4
      %v485 = vshrl.u32 %v254, 16
      %v487 = vrot.slane %v485, 7
      %v488 = vshll.u32 %v254, 16
      %v490 = vor.u32 %v487, %v488
      %v491 = vrot.slane %v487, 4
      %v493 = vshrl.u32 %v255, 16
      %v495 = vrot.slane %v493, 7
      %v496 = vshll.u32 %v255, 16
      %v498 = vor.u32 %v495, %v496
      %v499 = vsel %vm262, %v491, %v498
      %v500 = vrot.slane %v495, 4
      %v502 = vshrl.u32 %v256, 16
      %v504 = vrot.slane %v502, 7
      %v505 = vshll.u32 %v256, 16
      %v507 = vor.u32 %v504, %v505
      %v508 = vrot.slane %v504, 4
      %v510 = vshrl.u32 %v257, 16
      %v512 = vrot.slane %v510, 7
      %v513 = vshll.u32 %v257, 16
      %v515 = vor.u32 %v512, %v513
      %v516 = vsel %vm262, %v508, %v515
      %v517 = vrot.slane %v512, 4
      %v519 = vshrl.u32 %v258, 16
      %v521 = vrot.slane %v519, 7
      %v522 = vshll.u32 %v258, 16
      %v524 = vor.u32 %v521, %v522
      %v525 = vrot.slane %v521, 4
      %v527 = vshrl.u32 %v259, 16
      %v529 = vrot.slane %v527, 7
      %v530 = vshll.u32 %v259, 16
      %v532 = vor.u32 %v529, %v530
      %v533 = vsel %vm262, %v525, %v532
      %v534 = vrot.slane %v529, 4
      %s583 = scalar_lea.vmem [#allocation2], 12
      %vm584 = vcmask 27648
      %vm585 = vsmask.f32 7938
      %vm586 = vmand %vm584, %vm585
      %v587 = vld [vmem:[%s583] sm:$0xf]
      %v588 = vsel %vm586, %v269, %v587
      %589 = vst [vmem:[%s583] sm:$0xf] %v588
      %590 = vst.msk [vmem:[%s583 + $0x4] sm:$0xf] %vm172, %v278
      %vm591 = vcmask 24576
      %vm592 = vmand %vm591, %vm260
      %v593 = vld [vmem:[%s583 + $0x8] sm:$0x1]
      %v594 = vsel %vm592, %v279, %v593
      %595 = vst [vmem:[%s583 + $0x8] sm:$0x1] %v594
      %v596 = vld [vmem:[%s583 + $0xc] sm:$0xf]
      %v597 = vsel %vm586, %v286, %v596
      %598 = vst [vmem:[%s583 + $0xc] sm:$0xf] %v597
      %599 = vst.msk [vmem:[%s583 + $0x10] sm:$0xf] %vm172, %v295
      %v600 = vld [vmem:[%s583 + $0x14] sm:$0x1]
      %v601 = vsel %vm592, %v296, %v600
      %602 = vst [vmem:[%s583 + $0x14] sm:$0x1] %v601
      %v603 = vld [vmem:[%s583 + $0x18] sm:$0xf]
      %v604 = vsel %vm586, %v303, %v603
      %605 = vst [vmem:[%s583 + $0x18] sm:$0xf] %v604
      %606 = vst.msk [vmem:[%s583 + $0x1c] sm:$0xf] %vm172, %v312
      %v607 = vld [vmem:[%s583 + $0x20] sm:$0x1]
      %v608 = vsel %vm592, %v313, %v607
      %609 = vst [vmem:[%s583 + $0x20] sm:$0x1] %v608
      %v610 = vld [vmem:[%s583 + $0x24] sm:$0xf]
      %v611 = vsel %vm586, %v320, %v610
      %612 = vst [vmem:[%s583 + $0x24] sm:$0xf] %v611
      %613 = vst.msk [vmem:[%s583 + $0x28] sm:$0xf] %vm172, %v329
      %v614 = vld [vmem:[%s583 + $0x2c] sm:$0x1]
      %v615 = vsel %vm592, %v330, %v614
      %616 = vst [vmem:[%s583 + $0x2c] sm:$0x1] %v615
      %v617 = vld [vmem:[%s583 + $0x30] sm:$0xf]
      %v618 = vsel %vm586, %v337, %v617
      %619 = vst [vmem:[%s583 + $0x30] sm:$0xf] %v618
      %620 = vst.msk [vmem:[%s583 + $0x34] sm:$0xf] %vm172, %v346
      %v621 = vld [vmem:[%s583 + $0x38] sm:$0x1]
      %v622 = vsel %vm592, %v347, %v621
      %623 = vst [vmem:[%s583 + $0x38] sm:$0x1] %v622
      %v624 = vld [vmem:[%s583 + $0x3c] sm:$0xf]
      %v625 = vsel %vm586, %v354, %v624
      %626 = vst [vmem:[%s583 + $0x3c] sm:$0xf] %v625
      %627 = vst.msk [vmem:[%s583 + $0x40] sm:$0xf] %vm172, %v363
      %v628 = vld [vmem:[%s583 + $0x44] sm:$0x1]
      %v629 = vsel %vm592, %v364, %v628
      %630 = vst [vmem:[%s583 + $0x44] sm:$0x1] %v629
      %v631 = vld [vmem:[%s583 + $0x48] sm:$0xf]
      %v632 = vsel %vm586, %v371, %v631
      %633 = vst [vmem:[%s583 + $0x48] sm:$0xf] %v632
      %634 = vst.msk [vmem:[%s583 + $0x4c] sm:$0xf] %vm172, %v380
      %v635 = vld [vmem:[%s583 + $0x50] sm:$0x1]
      %v636 = vsel %vm592, %v381, %v635
      %637 = vst [vmem:[%s583 + $0x50] sm:$0x1] %v636
      %v638 = vld [vmem:[%s583 + $0x54] sm:$0xf]
      %v639 = vsel %vm586, %v388, %v638
      %640 = vst [vmem:[%s583 + $0x54] sm:$0xf] %v639
      %641 = vst.msk [vmem:[%s583 + $0x58] sm:$0xf] %vm172, %v397
      %v642 = vld [vmem:[%s583 + $0x5c] sm:$0x1]
      %v643 = vsel %vm592, %v398, %v642
      %644 = vst [vmem:[%s583 + $0x5c] sm:$0x1] %v643
      %v645 = vld [vmem:[%s583 + $0x60] sm:$0xf]
      %v646 = vsel %vm586, %v405, %v645
      %647 = vst [vmem:[%s583 + $0x60] sm:$0xf] %v646
      %648 = vst.msk [vmem:[%s583 + $0x64] sm:$0xf] %vm172, %v414
      %v649 = vld [vmem:[%s583 + $0x68] sm:$0x1]
      %v650 = vsel %vm592, %v415, %v649
      %651 = vst [vmem:[%s583 + $0x68] sm:$0x1] %v650
      %v652 = vld [vmem:[%s583 + $0x6c] sm:$0xf]
      %v653 = vsel %vm586, %v422, %v652
      %654 = vst [vmem:[%s583 + $0x6c] sm:$0xf] %v653
      %655 = vst.msk [vmem:[%s583 + $0x70] sm:$0xf] %vm172, %v431
      %v656 = vld [vmem:[%s583 + $0x74] sm:$0x1]
      %v657 = vsel %vm592, %v432, %v656
      %658 = vst [vmem:[%s583 + $0x74] sm:$0x1] %v657
      %v659 = vld [vmem:[%s583 + $0x78] sm:$0xf]
      %v660 = vsel %vm586, %v439, %v659
      %661 = vst [vmem:[%s583 + $0x78] sm:$0xf] %v660
      %662 = vst.msk [vmem:[%s583 + $0x7c] sm:$0xf] %vm172, %v448
      %v663 = vld [vmem:[%s583 + $0x80] sm:$0x1]
      %v664 = vsel %vm592, %v449, %v663
      %665 = vst [vmem:[%s583 + $0x80] sm:$0x1] %v664
      %v666 = vld [vmem:[%s583 + $0x84] sm:$0xf]
      %v667 = vsel %vm586, %v456, %v666
      %668 = vst [vmem:[%s583 + $0x84] sm:$0xf] %v667
      %669 = vst.msk [vmem:[%s583 + $0x88] sm:$0xf] %vm172, %v465
      %v670 = vld [vmem:[%s583 + $0x8c] sm:$0x1]
      %v671 = vsel %vm592, %v466, %v670
      %672 = vst [vmem:[%s583 + $0x8c] sm:$0x1] %v671
      %v673 = vld [vmem:[%s583 + $0x90] sm:$0xf]
      %v674 = vsel %vm586, %v473, %v673
      %675 = vst [vmem:[%s583 + $0x90] sm:$0xf] %v674
      %676 = vst.msk [vmem:[%s583 + $0x94] sm:$0xf] %vm172, %v482
      %v677 = vld [vmem:[%s583 + $0x98] sm:$0x1]
      %v678 = vsel %vm592, %v483, %v677
      %679 = vst [vmem:[%s583 + $0x98] sm:$0x1] %v678
      %v680 = vld [vmem:[%s583 + $0x9c] sm:$0xf]
      %v681 = vsel %vm586, %v490, %v680
      %682 = vst [vmem:[%s583 + $0x9c] sm:$0xf] %v681
      %683 = vst.msk [vmem:[%s583 + $0xa0] sm:$0xf] %vm172, %v499
      %v684 = vld [vmem:[%s583 + $0xa4] sm:$0x1]
      %v685 = vsel %vm592, %v500, %v684
      %686 = vst [vmem:[%s583 + $0xa4] sm:$0x1] %v685
      %v687 = vld [vmem:[%s583 + $0xa8] sm:$0xf]
      %v688 = vsel %vm586, %v507, %v687
      %689 = vst [vmem:[%s583 + $0xa8] sm:$0xf] %v688
      %690 = vst.msk [vmem:[%s583 + $0xac] sm:$0xf] %vm172, %v516
      %v691 = vld [vmem:[%s583 + $0xb0] sm:$0x1]
      %v692 = vsel %vm592, %v517, %v691
      %693 = vst [vmem:[%s583 + $0xb0] sm:$0x1] %v692
      %v694 = vld [vmem:[%s583 + $0xb4] sm:$0xf]
      %v695 = vsel %vm586, %v524, %v694
      %696 = vst [vmem:[%s583 + $0xb4] sm:$0xf] %v695
      %697 = vst.msk [vmem:[%s583 + $0xb8] sm:$0xf] %vm172, %v533
      %v698 = vld [vmem:[%s583 + $0xbc] sm:$0x1]
      %v699 = vsel %vm592, %v534, %v698
      %700 = vst [vmem:[%s583 + $0xbc] sm:$0x1] %v699
      %v701 = vld [vmem:[#allocation2] sm:$0xf]
      %v702 = vld [vmem:[#allocation2 + $0x4] sm:$0xf]
      %v703 = vld [vmem:[#allocation2 + $0xc] sm:$0xf]
      %v704 = vld [vmem:[#allocation2 + $0x10] sm:$0xf]
      %v705 = vld [vmem:[#allocation2 + $0x18] sm:$0xf]
      %v706 = vld [vmem:[#allocation2 + $0x1c] sm:$0xf]
      %v707 = vld [vmem:[#allocation2 + $0x24] sm:$0xf]
      %v708 = vld [vmem:[#allocation2 + $0x28] sm:$0xf]
      %v709 = vld [vmem:[#allocation2 + $0x30] sm:$0xf]
      %v710 = vld [vmem:[#allocation2 + $0x34] sm:$0xf]
      %v711 = vld [vmem:[#allocation2 + $0x3c] sm:$0xf]
      %v712 = vld [vmem:[#allocation2 + $0x40] sm:$0xf]
      %v713 = vld [vmem:[#allocation2 + $0x48] sm:$0xf]
      %v714 = vld [vmem:[#allocation2 + $0x4c] sm:$0xf]
      %v715 = vld [vmem:[#allocation2 + $0x54] sm:$0xf]
      %v716 = vld [vmem:[#allocation2 + $0x58] sm:$0xf]
      %v717 = vld [vmem:[#allocation2 + $0x60] sm:$0xf]
      %v718 = vld [vmem:[#allocation2 + $0x64] sm:$0xf]
      %v719 = vld [vmem:[#allocation2 + $0x6c] sm:$0xf]
      %v720 = vld [vmem:[#allocation2 + $0x70] sm:$0xf]
      %v721 = vld [vmem:[#allocation2 + $0x78] sm:$0xf]
      %v722 = vld [vmem:[#allocation2 + $0x7c] sm:$0xf]
      %v723 = vld [vmem:[#allocation2 + $0x84] sm:$0xf]
      %v724 = vld [vmem:[#allocation2 + $0x88] sm:$0xf]
      %v725 = vld [vmem:[#allocation2 + $0x90] sm:$0xf]
      %v726 = vld [vmem:[#allocation2 + $0x94] sm:$0xf]
      %v727 = vld [vmem:[#allocation2 + $0x9c] sm:$0xf]
      %v728 = vld [vmem:[#allocation2 + $0xa0] sm:$0xf]
      %v729 = vld [vmem:[#allocation2 + $0xa8] sm:$0xf]
      %v730 = vld [vmem:[#allocation2 + $0xac] sm:$0xf]
      %v731 = vld [vmem:[#allocation2 + $0xb4] sm:$0xf]
      %v732 = vld [vmem:[#allocation2 + $0xb8] sm:$0xf]
      %v765 = vunpack.c.l.b16 %v701
      %v766 = vunpack.c.l.b16 %v702
      %v767 = vunpack.c.l.b16 %v703
      %v768 = vunpack.c.l.b16 %v704
      %v769 = vunpack.c.l.b16 %v705
      %v770 = vunpack.c.l.b16 %v706
      %v771 = vunpack.c.l.b16 %v707
      %v772 = vunpack.c.l.b16 %v708
      %v773 = vunpack.c.l.b16 %v709
      %v774 = vunpack.c.l.b16 %v710
      %v775 = vunpack.c.l.b16 %v711
      %v776 = vunpack.c.l.b16 %v712
      %v777 = vunpack.c.l.b16 %v713
      %v778 = vunpack.c.l.b16 %v714
      %v779 = vunpack.c.l.b16 %v715
      %v780 = vunpack.c.l.b16 %v716
      %v781 = vunpack.c.l.b16 %v717
      %v782 = vunpack.c.l.b16 %v718
      %v783 = vunpack.c.l.b16 %v719
      %v784 = vunpack.c.l.b16 %v720
      %v785 = vunpack.c.l.b16 %v721
      %v786 = vunpack.c.l.b16 %v722
      %v787 = vunpack.c.l.b16 %v723
      %v788 = vunpack.c.l.b16 %v724
      %v789 = vunpack.c.l.b16 %v725
      %v790 = vunpack.c.l.b16 %v726
      %v791 = vunpack.c.l.b16 %v727
      %v792 = vunpack.c.l.b16 %v728
      %v793 = vunpack.c.l.b16 %v729
      %v794 = vunpack.c.l.b16 %v730
      %v795 = vunpack.c.l.b16 %v731
      %v796 = vunpack.c.l.b16 %v732
      %v797 = vpack.c.b16 %v766, %v765
      %v798 = vpack.c.b16 %v768, %v767
      %v799 = vpack.c.b16 %v770, %v769
      %v800 = vpack.c.b16 %v772, %v771
      %v801 = vpack.c.b16 %v774, %v773
      %v802 = vpack.c.b16 %v776, %v775
      %v803 = vpack.c.b16 %v778, %v777
      %v804 = vpack.c.b16 %v780, %v779
      %v805 = vpack.c.b16 %v782, %v781
      %v806 = vpack.c.b16 %v784, %v783
      %v807 = vpack.c.b16 %v786, %v785
      %v808 = vpack.c.b16 %v788, %v787
      %v809 = vpack.c.b16 %v790, %v789
      %v810 = vpack.c.b16 %v792, %v791
      %v811 = vpack.c.b16 %v794, %v793
      %v812 = vpack.c.b16 %v796, %v795
      %vm829 = vcmask 31744
      %830 = vst.msk [vmem:[#allocation3] sm:$0xff] %vm829, %v797
      %831 = vst.msk [vmem:[#allocation3 + $0x8] sm:$0xff] %vm829, %v798
      %832 = vst.msk [vmem:[#allocation3 + $0x10] sm:$0xff] %vm829, %v799
      %833 = vst.msk [vmem:[#allocation3 + $0x18] sm:$0xff] %vm829, %v800
      %834 = vst.msk [vmem:[#allocation3 + $0x20] sm:$0xff] %vm829, %v801
      %835 = vst.msk [vmem:[#allocation3 + $0x28] sm:$0xff] %vm829, %v802
      %836 = vst.msk [vmem:[#allocation3 + $0x30] sm:$0xff] %vm829, %v803
      %837 = vst.msk [vmem:[#allocation3 + $0x38] sm:$0xff] %vm829, %v804
      %838 = vst.msk [vmem:[#allocation3 + $0x40] sm:$0xff] %vm829, %v805
      %839 = vst.msk [vmem:[#allocation3 + $0x48] sm:$0xff] %vm829, %v806
      %840 = vst.msk [vmem:[#allocation3 + $0x50] sm:$0xff] %vm829, %v807
      %841 = vst.msk [vmem:[#allocation3 + $0x58] sm:$0xff] %vm829, %v808
      %842 = vst.msk [vmem:[#allocation3 + $0x60] sm:$0xff] %vm829, %v809
      %843 = vst.msk [vmem:[#allocation3 + $0x68] sm:$0xff] %vm829, %v810
      %844 = vst.msk [vmem:[#allocation3 + $0x70] sm:$0xff] %vm829, %v811
      %845 = vst.msk [vmem:[#allocation3 + $0x78] sm:$0xff] %vm829, %v812
      %v846 = vld [vmem:[#allocation2] sm:$0xf]
      %v847 = vld [vmem:[#allocation2 + $0x4] sm:$0xf]
      %v848 = vld [vmem:[#allocation2 + $0x8] sm:$0x1]
      %v849 = vld [vmem:[#allocation2 + $0xc] sm:$0xf]
      %v850 = vld [vmem:[#allocation2 + $0x10] sm:$0xf]
      %v851 = vld [vmem:[#allocation2 + $0x14] sm:$0x1]
      %v852 = vld [vmem:[#allocation2 + $0x18] sm:$0xf]
      %v853 = vld [vmem:[#allocation2 + $0x1c] sm:$0xf]
      %v854 = vld [vmem:[#allocation2 + $0x20] sm:$0x1]
      %v855 = vld [vmem:[#allocation2 + $0x24] sm:$0xf]
      %v856 = vld [vmem:[#allocation2 + $0x28] sm:$0xf]
      %v857 = vld [vmem:[#allocation2 + $0x2c] sm:$0x1]
      %v858 = vld [vmem:[#allocation2 + $0x30] sm:$0xf]
      %v859 = vld [vmem:[#allocation2 + $0x34] sm:$0xf]
      %v860 = vld [vmem:[#allocation2 + $0x38] sm:$0x1]
      %v861 = vld [vmem:[#allocation2 + $0x3c] sm:$0xf]
      %v862 = vld [vmem:[#allocation2 + $0x40] sm:$0xf]
      %v863 = vld [vmem:[#allocation2 + $0x44] sm:$0x1]
      %v864 = vld [vmem:[#allocation2 + $0x48] sm:$0xf]
      %v865 = vld [vmem:[#allocation2 + $0x4c] sm:$0xf]
      %v866 = vld [vmem:[#allocation2 + $0x50] sm:$0x1]
      %v867 = vld [vmem:[#allocation2 + $0x54] sm:$0xf]
      %v868 = vld [vmem:[#allocation2 + $0x58] sm:$0xf]
      %v869 = vld [vmem:[#allocation2 + $0x5c] sm:$0x1]
      %v870 = vld [vmem:[#allocation2 + $0x60] sm:$0xf]
      %v871 = vld [vmem:[#allocation2 + $0x64] sm:$0xf]
      %v872 = vld [vmem:[#allocation2 + $0x68] sm:$0x1]
      %v873 = vld [vmem:[#allocation2 + $0x6c] sm:$0xf]
      %v874 = vld [vmem:[#allocation2 + $0x70] sm:$0xf]
      %v875 = vld [vmem:[#allocation2 + $0x74] sm:$0x1]
      %v876 = vld [vmem:[#allocation2 + $0x78] sm:$0xf]
      %v877 = vld [vmem:[#allocation2 + $0x7c] sm:$0xf]
      %v878 = vld [vmem:[#allocation2 + $0x80] sm:$0x1]
      %v879 = vld [vmem:[#allocation2 + $0x84] sm:$0xf]
      %v880 = vld [vmem:[#allocation2 + $0x88] sm:$0xf]
      %v881 = vld [vmem:[#allocation2 + $0x8c] sm:$0x1]
      %v882 = vld [vmem:[#allocation2 + $0x90] sm:$0xf]
      %v883 = vld [vmem:[#allocation2 + $0x94] sm:$0xf]
      %v884 = vld [vmem:[#allocation2 + $0x98] sm:$0x1]
      %v885 = vld [vmem:[#allocation2 + $0x9c] sm:$0xf]
      %v886 = vld [vmem:[#allocation2 + $0xa0] sm:$0xf]
      %v887 = vld [vmem:[#allocation2 + $0xa4] sm:$0x1]
      %v888 = vld [vmem:[#allocation2 + $0xa8] sm:$0xf]
      %v889 = vld [vmem:[#allocation2 + $0xac] sm:$0xf]
      %v890 = vld [vmem:[#allocation2 + $0xb0] sm:$0x1]
      %v891 = vld [vmem:[#allocation2 + $0xb4] sm:$0xf]
      %v892 = vld [vmem:[#allocation2 + $0xb8] sm:$0xf]
      %v893 = vld [vmem:[#allocation2 + $0xbc] sm:$0x1]
      %vm894 = vsmask.f32 3328
      %vm895 = vsmask.f32 7440
      %vm896 = vmor %vm894, %vm895
      %v898 = vshrl.u32 %v846, 16
      %v900 = vrot.slane %v898, 4
      %v901 = vshll.u32 %v846, 16
      %v903 = vrot.slane %v901, 5
      %v904 = vor.u32 %v900, %v903
      %v905 = vrot.slane %v904, 4
      %v907 = vshll.u32 %v847, 16
      %v909 = vrot.slane %v907, 5
      %v910 = vsel %vm896, %v905, %v909
      %v911 = vshrl.u32 %v847, 16
      %v913 = vrot.slane %v911, 4
      %v914 = vor.u32 %v913, %v909
      %v915 = vrot.slane %v914, 4
      %v917 = vshll.u32 %v848, 16
      %v919 = vrot.slane %v917, 5
      %v920 = vsel %vm896, %v915, %v919
      %v922 = vshrl.u32 %v849, 16
      %v924 = vrot.slane %v922, 4
      %v925 = vshll.u32 %v849, 16
      %v927 = vrot.slane %v925, 5
      %v928 = vor.u32 %v924, %v927
      %v929 = vrot.slane %v928, 4
      %v931 = vshll.u32 %v850, 16
      %v933 = vrot.slane %v931, 5
      %v934 = vsel %vm896, %v929, %v933
      %v935 = vshrl.u32 %v850, 16
      %v937 = vrot.slane %v935, 4
      %v938 = vor.u32 %v937, %v933
      %v939 = vrot.slane %v938, 4
      %v941 = vshll.u32 %v851, 16
      %v943 = vrot.slane %v941, 5
      %v944 = vsel %vm896, %v939, %v943
      %v946 = vshrl.u32 %v852, 16
      %v948 = vrot.slane %v946, 4
      %v949 = vshll.u32 %v852, 16
      %v951 = vrot.slane %v949, 5
      %v952 = vor.u32 %v948, %v951
      %v953 = vrot.slane %v952, 4
      %v955 = vshll.u32 %v853, 16
      %v957 = vrot.slane %v955, 5
      %v958 = vsel %vm896, %v953, %v957
      %v959 = vshrl.u32 %v853, 16
      %v961 = vrot.slane %v959, 4
      %v962 = vor.u32 %v961, %v957
      %v963 = vrot.slane %v962, 4
      %v965 = vshll.u32 %v854, 16
      %v967 = vrot.slane %v965, 5
      %v968 = vsel %vm896, %v963, %v967
      %v970 = vshrl.u32 %v855, 16
      %v972 = vrot.slane %v970, 4
      %v973 = vshll.u32 %v855, 16
      %v975 = vrot.slane %v973, 5
      %v976 = vor.u32 %v972, %v975
      %v977 = vrot.slane %v976, 4
      %v979 = vshll.u32 %v856, 16
      %v981 = vrot.slane %v979, 5
      %v982 = vsel %vm896, %v977, %v981
      %v983 = vshrl.u32 %v856, 16
      %v985 = vrot.slane %v983, 4
      %v986 = vor.u32 %v985, %v981
      %v987 = vrot.slane %v986, 4
      %v989 = vshll.u32 %v857, 16
      %v991 = vrot.slane %v989, 5
      %v992 = vsel %vm896, %v987, %v991
      %v994 = vshrl.u32 %v858, 16
      %v996 = vrot.slane %v994, 4
      %v997 = vshll.u32 %v858, 16
      %v999 = vrot.slane %v997, 5
      %v1000 = vor.u32 %v996, %v999
      %v1001 = vrot.slane %v1000, 4
      %v1003 = vshll.u32 %v859, 16
      %v1005 = vrot.slane %v1003, 5
      %v1006 = vsel %vm896, %v1001, %v1005
      %v1007 = vshrl.u32 %v859, 16
      %v1009 = vrot.slane %v1007, 4
      %v1010 = vor.u32 %v1009, %v1005
      %v1011 = vrot.slane %v1010, 4
      %v1013 = vshll.u32 %v860, 16
      %v1015 = vrot.slane %v1013, 5
      %v1016 = vsel %vm896, %v1011, %v1015
      %v1018 = vshrl.u32 %v861, 16
      %v1020 = vrot.slane %v1018, 4
      %v1021 = vshll.u32 %v861, 16
      %v1023 = vrot.slane %v1021, 5
      %v1024 = vor.u32 %v1020, %v1023
      %v1025 = vrot.slane %v1024, 4
      %v1027 = vshll.u32 %v862, 16
      %v1029 = vrot.slane %v1027, 5
      %v1030 = vsel %vm896, %v1025, %v1029
      %v1031 = vshrl.u32 %v862, 16
      %v1033 = vrot.slane %v1031, 4
      %v1034 = vor.u32 %v1033, %v1029
      %v1035 = vrot.slane %v1034, 4
      %v1037 = vshll.u32 %v863, 16
      %v1039 = vrot.slane %v1037, 5
      %v1040 = vsel %vm896, %v1035, %v1039
      %v1042 = vshrl.u32 %v864, 16
      %v1044 = vrot.slane %v1042, 4
      %v1045 = vshll.u32 %v864, 16
      %v1047 = vrot.slane %v1045, 5
      %v1048 = vor.u32 %v1044, %v1047
      %v1049 = vrot.slane %v1048, 4
      %v1051 = vshll.u32 %v865, 16
      %v1053 = vrot.slane %v1051, 5
      %v1054 = vsel %vm896, %v1049, %v1053
      %v1055 = vshrl.u32 %v865, 16
      %v1057 = vrot.slane %v1055, 4
      %v1058 = vor.u32 %v1057, %v1053
      %v1059 = vrot.slane %v1058, 4
      %v1061 = vshll.u32 %v866, 16
      %v1063 = vrot.slane %v1061, 5
      %v1064 = vsel %vm896, %v1059, %v1063
      %v1066 = vshrl.u32 %v867, 16
      %v1068 = vrot.slane %v1066, 4
      %v1069 = vshll.u32 %v867, 16
      %v1071 = vrot.slane %v1069, 5
      %v1072 = vor.u32 %v1068, %v1071
      %v1073 = vrot.slane %v1072, 4
      %v1075 = vshll.u32 %v868, 16
      %v1077 = vrot.slane %v1075, 5
      %v1078 = vsel %vm896, %v1073, %v1077
      %v1079 = vshrl.u32 %v868, 16
      %v1081 = vrot.slane %v1079, 4
      %v1082 = vor.u32 %v1081, %v1077
      %v1083 = vrot.slane %v1082, 4
      %v1085 = vshll.u32 %v869, 16
      %v1087 = vrot.slane %v1085, 5
      %v1088 = vsel %vm896, %v1083, %v1087
      %v1090 = vshrl.u32 %v870, 16
      %v1092 = vrot.slane %v1090, 4
      %v1093 = vshll.u32 %v870, 16
      %v1095 = vrot.slane %v1093, 5
      %v1096 = vor.u32 %v1092, %v1095
      %v1097 = vrot.slane %v1096, 4
      %v1099 = vshll.u32 %v871, 16
      %v1101 = vrot.slane %v1099, 5
      %v1102 = vsel %vm896, %v1097, %v1101
      %v1103 = vshrl.u32 %v871, 16
      %v1105 = vrot.slane %v1103, 4
      %v1106 = vor.u32 %v1105, %v1101
      %v1107 = vrot.slane %v1106, 4
      %v1109 = vshll.u32 %v872, 16
      %v1111 = vrot.slane %v1109, 5
      %v1112 = vsel %vm896, %v1107, %v1111
      %v1114 = vshrl.u32 %v873, 16
      %v1116 = vrot.slane %v1114, 4
      %v1117 = vshll.u32 %v873, 16
      %v1119 = vrot.slane %v1117, 5
      %v1120 = vor.u32 %v1116, %v1119
      %v1121 = vrot.slane %v1120, 4
      %v1123 = vshll.u32 %v874, 16
      %v1125 = vrot.slane %v1123, 5
      %v1126 = vsel %vm896, %v1121, %v1125
      %v1127 = vshrl.u32 %v874, 16
      %v1129 = vrot.slane %v1127, 4
      %v1130 = vor.u32 %v1129, %v1125
      %v1131 = vrot.slane %v1130, 4
      %v1133 = vshll.u32 %v875, 16
      %v1135 = vrot.slane %v1133, 5
      %v1136 = vsel %vm896, %v1131, %v1135
      %v1138 = vshrl.u32 %v876, 16
      %v1140 = vrot.slane %v1138, 4
      %v1141 = vshll.u32 %v876, 16
      %v1143 = vrot.slane %v1141, 5
      %v1144 = vor.u32 %v1140, %v1143
      %v1145 = vrot.slane %v1144, 4
      %v1147 = vshll.u32 %v877, 16
      %v1149 = vrot.slane %v1147, 5
      %v1150 = vsel %vm896, %v1145, %v1149
      %v1151 = vshrl.u32 %v877, 16
      %v1153 = vrot.slane %v1151, 4
      %v1154 = vor.u32 %v1153, %v1149
      %v1155 = vrot.slane %v1154, 4
      %v1157 = vshll.u32 %v878, 16
      %v1159 = vrot.slane %v1157, 5
      %v1160 = vsel %vm896, %v1155, %v1159
      %v1162 = vshrl.u32 %v879, 16
      %v1164 = vrot.slane %v1162, 4
      %v1165 = vshll.u32 %v879, 16
      %v1167 = vrot.slane %v1165, 5
      %v1168 = vor.u32 %v1164, %v1167
      %v1169 = vrot.slane %v1168, 4
      %v1171 = vshll.u32 %v880, 16
      %v1173 = vrot.slane %v1171, 5
      %v1174 = vsel %vm896, %v1169, %v1173
      %v1175 = vshrl.u32 %v880, 16
      %v1177 = vrot.slane %v1175, 4
      %v1178 = vor.u32 %v1177, %v1173
      %v1179 = vrot.slane %v1178, 4
      %v1181 = vshll.u32 %v881, 16
      %v1183 = vrot.slane %v1181, 5
      %v1184 = vsel %vm896, %v1179, %v1183
      %v1186 = vshrl.u32 %v882, 16
      %v1188 = vrot.slane %v1186, 4
      %v1189 = vshll.u32 %v882, 16
      %v1191 = vrot.slane %v1189, 5
      %v1192 = vor.u32 %v1188, %v1191
      %v1193 = vrot.slane %v1192, 4
      %v1195 = vshll.u32 %v883, 16
      %v1197 = vrot.slane %v1195, 5
      %v1198 = vsel %vm896, %v1193, %v1197
      %v1199 = vshrl.u32 %v883, 16
      %v1201 = vrot.slane %v1199, 4
      %v1202 = vor.u32 %v1201, %v1197
      %v1203 = vrot.slane %v1202, 4
      %v1205 = vshll.u32 %v884, 16
      %v1207 = vrot.slane %v1205, 5
      %v1208 = vsel %vm896, %v1203, %v1207
      %v1210 = vshrl.u32 %v885, 16
      %v1212 = vrot.slane %v1210, 4
      %v1213 = vshll.u32 %v885, 16
      %v1215 = vrot.slane %v1213, 5
      %v1216 = vor.u32 %v1212, %v1215
      %v1217 = vrot.slane %v1216, 4
      %v1219 = vshll.u32 %v886, 16
      %v1221 = vrot.slane %v1219, 5
      %v1222 = vsel %vm896, %v1217, %v1221
      %v1223 = vshrl.u32 %v886, 16
      %v1225 = vrot.slane %v1223, 4
      %v1226 = vor.u32 %v1225, %v1221
      %v1227 = vrot.slane %v1226, 4
      %v1229 = vshll.u32 %v887, 16
      %v1231 = vrot.slane %v1229, 5
      %v1232 = vsel %vm896, %v1227, %v1231
      %v1234 = vshrl.u32 %v888, 16
      %v1236 = vrot.slane %v1234, 4
      %v1237 = vshll.u32 %v888, 16
      %v1239 = vrot.slane %v1237, 5
      %v1240 = vor.u32 %v1236, %v1239
      %v1241 = vrot.slane %v1240, 4
      %v1243 = vshll.u32 %v889, 16
      %v1245 = vrot.slane %v1243, 5
      %v1246 = vsel %vm896, %v1241, %v1245
      %v1247 = vshrl.u32 %v889, 16
      %v1249 = vrot.slane %v1247, 4
      %v1250 = vor.u32 %v1249, %v1245
      %v1251 = vrot.slane %v1250, 4
      %v1253 = vshll.u32 %v890, 16
      %v1255 = vrot.slane %v1253, 5
      %v1256 = vsel %vm896, %v1251, %v1255
      %v1258 = vshrl.u32 %v891, 16
      %v1260 = vrot.slane %v1258, 4
      %v1261 = vshll.u32 %v891, 16
      %v1263 = vrot.slane %v1261, 5
      %v1264 = vor.u32 %v1260, %v1263
      %v1265 = vrot.slane %v1264, 4
      %v1267 = vshll.u32 %v892, 16
      %v1269 = vrot.slane %v1267, 5
      %v1270 = vsel %vm896, %v1265, %v1269
      %v1271 = vshrl.u32 %v892, 16
      %v1273 = vrot.slane %v1271, 4
      %v1274 = vor.u32 %v1273, %v1269
      %v1275 = vrot.slane %v1274, 4
      %v1277 = vshll.u32 %v893, 16
      %v1279 = vrot.slane %v1277, 5
      %v1280 = vsel %vm896, %v1275, %v1279
      %v1281 = vunpack.c.l.b16 %v910
      %v1282 = vunpack.c.l.b16 %v920
      %v1283 = vunpack.c.l.b16 %v934
      %v1284 = vunpack.c.l.b16 %v944
      %v1285 = vunpack.c.l.b16 %v958
      %v1286 = vunpack.c.l.b16 %v968
      %v1287 = vunpack.c.l.b16 %v982
      %v1288 = vunpack.c.l.b16 %v992
      %v1289 = vunpack.c.l.b16 %v1006
      %v1290 = vunpack.c.l.b16 %v1016
      %v1291 = vunpack.c.l.b16 %v1030
      %v1292 = vunpack.c.l.b16 %v1040
      %v1293 = vunpack.c.l.b16 %v1054
      %v1294 = vunpack.c.l.b16 %v1064
      %v1295 = vunpack.c.l.b16 %v1078
      %v1296 = vunpack.c.l.b16 %v1088
      %v1297 = vunpack.c.l.b16 %v1102
      %v1298 = vunpack.c.l.b16 %v1112
      %v1299 = vunpack.c.l.b16 %v1126
      %v1300 = vunpack.c.l.b16 %v1136
      %v1301 = vunpack.c.l.b16 %v1150
      %v1302 = vunpack.c.l.b16 %v1160
      %v1303 = vunpack.c.l.b16 %v1174
      %v1304 = vunpack.c.l.b16 %v1184
      %v1305 = vunpack.c.l.b16 %v1198
      %v1306 = vunpack.c.l.b16 %v1208
      %v1307 = vunpack.c.l.b16 %v1222
      %v1308 = vunpack.c.l.b16 %v1232
      %v1309 = vunpack.c.l.b16 %v1246
      %v1310 = vunpack.c.l.b16 %v1256
      %v1311 = vunpack.c.l.b16 %v1270
      %v1312 = vunpack.c.l.b16 %v1280
      %v1313 = vpack.c.b16 %v1282, %v1281
      %v1314 = vpack.c.b16 %v1284, %v1283
      %v1315 = vpack.c.b16 %v1286, %v1285
      %v1316 = vpack.c.b16 %v1288, %v1287
      %v1317 = vpack.c.b16 %v1290, %v1289
      %v1318 = vpack.c.b16 %v1292, %v1291
      %v1319 = vpack.c.b16 %v1294, %v1293
      %v1320 = vpack.c.b16 %v1296, %v1295
      %v1321 = vpack.c.b16 %v1298, %v1297
      %v1322 = vpack.c.b16 %v1300, %v1299
      %v1323 = vpack.c.b16 %v1302, %v1301
      %v1324 = vpack.c.b16 %v1304, %v1303
      %v1325 = vpack.c.b16 %v1306, %v1305
      %v1326 = vpack.c.b16 %v1308, %v1307
      %v1327 = vpack.c.b16 %v1310, %v1309
      %v1328 = vpack.c.b16 %v1312, %v1311
      %1329 = vrot.lane.b32.xlu0 %v1313, 4
      %v1330 = vpop.permute.xlu0 %1329
      %1331 = vrot.lane.b32.xlu0 %v1314, 4
      %v1332 = vpop.permute.xlu0 %1331
      %1333 = vrot.lane.b32.xlu0 %v1315, 4
      %v1334 = vpop.permute.xlu0 %1333
      %1335 = vrot.lane.b32.xlu0 %v1316, 4
      %v1336 = vpop.permute.xlu0 %1335
      %1337 = vrot.lane.b32.xlu0 %v1317, 4
      %v1338 = vpop.permute.xlu0 %1337
      %1339 = vrot.lane.b32.xlu0 %v1318, 4
      %v1340 = vpop.permute.xlu0 %1339
      %1341 = vrot.lane.b32.xlu0 %v1319, 4
      %v1342 = vpop.permute.xlu0 %1341
      %1343 = vrot.lane.b32.xlu0 %v1320, 4
      %v1344 = vpop.permute.xlu0 %1343
      %1345 = vrot.lane.b32.xlu0 %v1321, 4
      %v1346 = vpop.permute.xlu0 %1345
      %1347 = vrot.lane.b32.xlu0 %v1322, 4
      %v1348 = vpop.permute.xlu0 %1347
      %1349 = vrot.lane.b32.xlu0 %v1323, 4
      %v1350 = vpop.permute.xlu0 %1349
      %1351 = vrot.lane.b32.xlu0 %v1324, 4
      %v1352 = vpop.permute.xlu0 %1351
      %1353 = vrot.lane.b32.xlu0 %v1325, 4
      %v1354 = vpop.permute.xlu0 %1353
      %1355 = vrot.lane.b32.xlu0 %v1326, 4
      %v1356 = vpop.permute.xlu0 %1355
      %1357 = vrot.lane.b32.xlu0 %v1327, 4
      %v1358 = vpop.permute.xlu0 %1357
      %1359 = vrot.lane.b32.xlu0 %v1328, 4
      %v1360 = vpop.permute.xlu0 %1359
      %vm1377 = vcmask 64544
      %1378 = vst.msk [vmem:[#allocation3] sm:$0xff] %vm1377, %v1330
      %1379 = vst.msk [vmem:[#allocation3 + $0x8] sm:$0xff] %vm1377, %v1332
      %1380 = vst.msk [vmem:[#allocation3 + $0x10] sm:$0xff] %vm1377, %v1334
      %1381 = vst.msk [vmem:[#allocation3 + $0x18] sm:$0xff] %vm1377, %v1336
      %1382 = vst.msk [vmem:[#allocation3 + $0x20] sm:$0xff] %vm1377, %v1338
      %1383 = vst.msk [vmem:[#allocation3 + $0x28] sm:$0xff] %vm1377, %v1340
      %1384 = vst.msk [vmem:[#allocation3 + $0x30] sm:$0xff] %vm1377, %v1342
      %1385 = vst.msk [vmem:[#allocation3 + $0x38] sm:$0xff] %vm1377, %v1344
      %1386 = vst.msk [vmem:[#allocation3 + $0x40] sm:$0xff] %vm1377, %v1346
      %1387 = vst.msk [vmem:[#allocation3 + $0x48] sm:$0xff] %vm1377, %v1348
      %1388 = vst.msk [vmem:[#allocation3 + $0x50] sm:$0xff] %vm1377, %v1350
      %1389 = vst.msk [vmem:[#allocation3 + $0x58] sm:$0xff] %vm1377, %v1352
      %1390 = vst.msk [vmem:[#allocation3 + $0x60] sm:$0xff] %vm1377, %v1354
      %1391 = vst.msk [vmem:[#allocation3 + $0x68] sm:$0xff] %vm1377, %v1356
      %1392 = vst.msk [vmem:[#allocation3 + $0x70] sm:$0xff] %vm1377, %v1358
      %1393 = vst.msk [vmem:[#allocation3 + $0x78] sm:$0xff] %vm1377, %v1360
      %v1394 = vld [vmem:[#allocation2] sm:$0xe]
      %v1395 = vld [vmem:[#allocation2 + $0x4] sm:$0xf]
      %v1396 = vld [vmem:[#allocation2 + $0x8] sm:$0x1]
      %v1397 = vld [vmem:[#allocation2 + $0xc] sm:$0xe]
      %v1398 = vld [vmem:[#allocation2 + $0x10] sm:$0xf]
      %v1399 = vld [vmem:[#allocation2 + $0x14] sm:$0x1]
      %v1400 = vld [vmem:[#allocation2 + $0x18] sm:$0xe]
      %v1401 = vld [vmem:[#allocation2 + $0x1c] sm:$0xf]
      %v1402 = vld [vmem:[#allocation2 + $0x20] sm:$0x1]
      %v1403 = vld [vmem:[#allocation2 + $0x24] sm:$0xe]
      %v1404 = vld [vmem:[#allocation2 + $0x28] sm:$0xf]
      %v1405 = vld [vmem:[#allocation2 + $0x2c] sm:$0x1]
      %v1406 = vld [vmem:[#allocation2 + $0x30] sm:$0xe]
      %v1407 = vld [vmem:[#allocation2 + $0x34] sm:$0xf]
      %v1408 = vld [vmem:[#allocation2 + $0x38] sm:$0x1]
      %v1409 = vld [vmem:[#allocation2 + $0x3c] sm:$0xe]
      %v1410 = vld [vmem:[#allocation2 + $0x40] sm:$0xf]
      %v1411 = vld [vmem:[#allocation2 + $0x44] sm:$0x1]
      %v1412 = vld [vmem:[#allocation2 + $0x48] sm:$0xe]
      %v1413 = vld [vmem:[#allocation2 + $0x4c] sm:$0xf]
      %v1414 = vld [vmem:[#allocation2 + $0x50] sm:$0x1]
      %v1415 = vld [vmem:[#allocation2 + $0x54] sm:$0xe]
      %v1416 = vld [vmem:[#allocation2 + $0x58] sm:$0xf]
      %v1417 = vld [vmem:[#allocation2 + $0x5c] sm:$0x1]
      %v1418 = vld [vmem:[#allocation2 + $0x60] sm:$0xe]
      %v1419 = vld [vmem:[#allocation2 + $0x64] sm:$0xf]
      %v1420 = vld [vmem:[#allocation2 + $0x68] sm:$0x1]
      %v1421 = vld [vmem:[#allocation2 + $0x6c] sm:$0xe]
      %v1422 = vld [vmem:[#allocation2 + $0x70] sm:$0xf]
      %v1423 = vld [vmem:[#allocation2 + $0x74] sm:$0x1]
      %v1424 = vld [vmem:[#allocation2 + $0x78] sm:$0xe]
      %v1425 = vld [vmem:[#allocation2 + $0x7c] sm:$0xf]
      %v1426 = vld [vmem:[#allocation2 + $0x80] sm:$0x1]
      %v1427 = vld [vmem:[#allocation2 + $0x84] sm:$0xe]
      %v1428 = vld [vmem:[#allocation2 + $0x88] sm:$0xf]
      %v1429 = vld [vmem:[#allocation2 + $0x8c] sm:$0x1]
      %v1430 = vld [vmem:[#allocation2 + $0x90] sm:$0xe]
      %v1431 = vld [vmem:[#allocation2 + $0x94] sm:$0xf]
      %v1432 = vld [vmem:[#allocation2 + $0x98] sm:$0x1]
      %v1433 = vld [vmem:[#allocation2 + $0x9c] sm:$0xe]
      %v1434 = vld [vmem:[#allocation2 + $0xa0] sm:$0xf]
      %v1435 = vld [vmem:[#allocation2 + $0xa4] sm:$0x1]
      %v1436 = vld [vmem:[#allocation2 + $0xa8] sm:$0xe]
      %v1437 = vld [vmem:[#allocation2 + $0xac] sm:$0xf]
      %v1438 = vld [vmem:[#allocation2 + $0xb0] sm:$0x1]
      %v1439 = vld [vmem:[#allocation2 + $0xb4] sm:$0xe]
      %v1440 = vld [vmem:[#allocation2 + $0xb8] sm:$0xf]
      %v1441 = vld [vmem:[#allocation2 + $0xbc] sm:$0x1]
      %vm1490 = vcmask 1042432
      %vm1491 = vcmask 1046532
      %vm1492 = vmor %vm1490, %vm1491
      %v1493 = vrot.slane %v1394, 5
      %v1494 = vrot.slane %v1493, 4
      %v1495 = vrot.slane %v1395, 5
      %v1496 = vsel %vm1492, %v1494, %v1495
      %v1497 = vrot.slane %v1495, 4
      %v1498 = vrot.slane %v1396, 5
      %v1499 = vsel %vm1492, %v1497, %v1498
      %v1500 = vrot.slane %v1397, 5
      %v1501 = vrot.slane %v1500, 4
      %v1502 = vrot.slane %v1398, 5
      %v1503 = vsel %vm1492, %v1501, %v1502
      %v1504 = vrot.slane %v1502, 4
      %v1505 = vrot.slane %v1399, 5
      %v1506 = vsel %vm1492, %v1504, %v1505
      %v1507 = vrot.slane %v1400, 5
      %v1508 = vrot.slane %v1507, 4
      %v1509 = vrot.slane %v1401, 5
      %v1510 = vsel %vm1492, %v1508, %v1509
      %v1511 = vrot.slane %v1509, 4
      %v1512 = vrot.slane %v1402, 5
      %v1513 = vsel %vm1492, %v1511, %v1512
      %v1514 = vrot.slane %v1403, 5
      %v1515 = vrot.slane %v1514, 4
      %v1516 = vrot.slane %v1404, 5
      %v1517 = vsel %vm1492, %v1515, %v1516
      %v1518 = vrot.slane %v1516, 4
      %v1519 = vrot.slane %v1405, 5
      %v1520 = vsel %vm1492, %v1518, %v1519
      %v1521 = vrot.slane %v1406, 5
      %v1522 = vrot.slane %v1521, 4
      %v1523 = vrot.slane %v1407, 5
      %v1524 = vsel %vm1492, %v1522, %v1523
      %v1525 = vrot.slane %v1523, 4
      %v1526 = vrot.slane %v1408, 5
      %v1527 = vsel %vm1492, %v1525, %v1526
      %v1528 = vrot.slane %v1409, 5
      %v1529 = vrot.slane %v1528, 4
      %v1530 = vrot.slane %v1410, 5
      %v1531 = vsel %vm1492, %v1529, %v1530
      %v1532 = vrot.slane %v1530, 4
      %v1533 = vrot.slane %v1411, 5
      %v1534 = vsel %vm1492, %v1532, %v1533
      %v1535 = vrot.slane %v1412, 5
      %v1536 = vrot.slane %v1535, 4
      %v1537 = vrot.slane %v1413, 5
      %v1538 = vsel %vm1492, %v1536, %v1537
      %v1539 = vrot.slane %v1537, 4
      %v1540 = vrot.slane %v1414, 5
      %v1541 = vsel %vm1492, %v1539, %v1540
      %v1542 = vrot.slane %v1415, 5
      %v1543 = vrot.slane %v1542, 4
      %v1544 = vrot.slane %v1416, 5
      %v1545 = vsel %vm1492, %v1543, %v1544
      %v1546 = vrot.slane %v1544, 4
      %v1547 = vrot.slane %v1417, 5
      %v1548 = vsel %vm1492, %v1546, %v1547
      %v1549 = vrot.slane %v1418, 5
      %v1550 = vrot.slane %v1549, 4
      %v1551 = vrot.slane %v1419, 5
      %v1552 = vsel %vm1492, %v1550, %v1551
      %v1553 = vrot.slane %v1551, 4
      %v1554 = vrot.slane %v1420, 5
      %v1555 = vsel %vm1492, %v1553, %v1554
      %v1556 = vrot.slane %v1421, 5
      %v1557 = vrot.slane %v1556, 4
      %v1558 = vrot.slane %v1422, 5
      %v1559 = vsel %vm1492, %v1557, %v1558
      %v1560 = vrot.slane %v1558, 4
      %v1561 = vrot.slane %v1423, 5
      %v1562 = vsel %vm1492, %v1560, %v1561
      %v1563 = vrot.slane %v1424, 5
      %v1564 = vrot.slane %v1563, 4
      %v1565 = vrot.slane %v1425, 5
      %v1566 = vsel %vm1492, %v1564, %v1565
      %v1567 = vrot.slane %v1565, 4
      %v1568 = vrot.slane %v1426, 5
      %v1569 = vsel %vm1492, %v1567, %v1568
      %v1570 = vrot.slane %v1427, 5
      %v1571 = vrot.slane %v1570, 4
      %v1572 = vrot.slane %v1428, 5
      %v1573 = vsel %vm1492, %v1571, %v1572
      %v1574 = vrot.slane %v1572, 4
      %v1575 = vrot.slane %v1429, 5
      %v1576 = vsel %vm1492, %v1574, %v1575
      %v1577 = vrot.slane %v1430, 5
      %v1578 = vrot.slane %v1577, 4
      %v1579 = vrot.slane %v1431, 5
      %v1580 = vsel %vm1492, %v1578, %v1579
      %v1581 = vrot.slane %v1579, 4
      %v1582 = vrot.slane %v1432, 5
      %v1583 = vsel %vm1492, %v1581, %v1582
      %v1584 = vrot.slane %v1433, 5
      %v1585 = vrot.slane %v1584, 4
      %v1586 = vrot.slane %v1434, 5
      %v1587 = vsel %vm1492, %v1585, %v1586
      %v1588 = vrot.slane %v1586, 4
      %v1589 = vrot.slane %v1435, 5
      %v1590 = vsel %vm1492, %v1588, %v1589
      %v1591 = vrot.slane %v1436, 5
      %v1592 = vrot.slane %v1591, 4
      %v1593 = vrot.slane %v1437, 5
      %v1594 = vsel %vm1492, %v1592, %v1593
      %v1595 = vrot.slane %v1593, 4
      %v1596 = vrot.slane %v1438, 5
      %v1597 = vsel %vm1492, %v1595, %v1596
      %v1598 = vrot.slane %v1439, 5
      %v1599 = vrot.slane %v1598, 4
      %v1600 = vrot.slane %v1440, 5
      %v1601 = vsel %vm1492, %v1599, %v1600
      %v1602 = vrot.slane %v1600, 4
      %v1603 = vrot.slane %v1441, 5
      %v1604 = vsel %vm1492, %v1602, %v1603
      %v1605 = vunpack.c.l.b16 %v1496
      %v1606 = vunpack.c.l.b16 %v1499
      %v1607 = vunpack.c.l.b16 %v1503
      %v1608 = vunpack.c.l.b16 %v1506
      %v1609 = vunpack.c.l.b16 %v1510
      %v1610 = vunpack.c.l.b16 %v1513
      %v1611 = vunpack.c.l.b16 %v1517
      %v1612 = vunpack.c.l.b16 %v1520
      %v1613 = vunpack.c.l.b16 %v1524
      %v1614 = vunpack.c.l.b16 %v1527
      %v1615 = vunpack.c.l.b16 %v1531
      %v1616 = vunpack.c.l.b16 %v1534
      %v1617 = vunpack.c.l.b16 %v1538
      %v1618 = vunpack.c.l.b16 %v1541
      %v1619 = vunpack.c.l.b16 %v1545
      %v1620 = vunpack.c.l.b16 %v1548
      %v1621 = vunpack.c.l.b16 %v1552
      %v1622 = vunpack.c.l.b16 %v1555
      %v1623 = vunpack.c.l.b16 %v1559
      %v1624 = vunpack.c.l.b16 %v1562
      %v1625 = vunpack.c.l.b16 %v1566
      %v1626 = vunpack.c.l.b16 %v1569
      %v1627 = vunpack.c.l.b16 %v1573
      %v1628 = vunpack.c.l.b16 %v1576
      %v1629 = vunpack.c.l.b16 %v1580
      %v1630 = vunpack.c.l.b16 %v1583
      %v1631 = vunpack.c.l.b16 %v1587
      %v1632 = vunpack.c.l.b16 %v1590
      %v1633 = vunpack.c.l.b16 %v1594
      %v1634 = vunpack.c.l.b16 %v1597
      %v1635 = vunpack.c.l.b16 %v1601
      %v1636 = vunpack.c.l.b16 %v1604
      %v1637 = vpack.c.b16 %v1606, %v1605
      %v1638 = vpack.c.b16 %v1608, %v1607
      %v1639 = vpack.c.b16 %v1610, %v1609
      %v1640 = vpack.c.b16 %v1612, %v1611
      %v1641 = vpack.c.b16 %v1614, %v1613
      %v1642 = vpack.c.b16 %v1616, %v1615
      %v1643 = vpack.c.b16 %v1618, %v1617
      %v1644 = vpack.c.b16 %v1620, %v1619
      %v1645 = vpack.c.b16 %v1622, %v1621
      %v1646 = vpack.c.b16 %v1624, %v1623
      %v1647 = vpack.c.b16 %v1626, %v1625
      %v1648 = vpack.c.b16 %v1628, %v1627
      %v1649 = vpack.c.b16 %v1630, %v1629
      %v1650 = vpack.c.b16 %v1632, %v1631
      %v1651 = vpack.c.b16 %v1634, %v1633
      %v1652 = vpack.c.b16 %v1636, %v1635
      %1653 = vrot.lane.b32.xlu0 %v1637, 8
      %v1654 = vpop.permute.xlu0 %1653
      %1655 = vrot.lane.b32.xlu0 %v1638, 8
      %v1656 = vpop.permute.xlu0 %1655
      %1657 = vrot.lane.b32.xlu0 %v1639, 8
      %v1658 = vpop.permute.xlu0 %1657
      %1659 = vrot.lane.b32.xlu0 %v1640, 8
      %v1660 = vpop.permute.xlu0 %1659
      %1661 = vrot.lane.b32.xlu0 %v1641, 8
      %v1662 = vpop.permute.xlu0 %1661
      %1663 = vrot.lane.b32.xlu0 %v1642, 8
      %v1664 = vpop.permute.xlu0 %1663
      %1665 = vrot.lane.b32.xlu0 %v1643, 8
      %v1666 = vpop.permute.xlu0 %1665
      %1667 = vrot.lane.b32.xlu0 %v1644, 8
      %v1668 = vpop.permute.xlu0 %1667
      %1669 = vrot.lane.b32.xlu0 %v1645, 8
      %v1670 = vpop.permute.xlu0 %1669
      %1671 = vrot.lane.b32.xlu0 %v1646, 8
      %v1672 = vpop.permute.xlu0 %1671
      %1673 = vrot.lane.b32.xlu0 %v1647, 8
      %v1674 = vpop.permute.xlu0 %1673
      %1675 = vrot.lane.b32.xlu0 %v1648, 8
      %v1676 = vpop.permute.xlu0 %1675
      %1677 = vrot.lane.b32.xlu0 %v1649, 8
      %v1678 = vpop.permute.xlu0 %1677
      %1679 = vrot.lane.b32.xlu0 %v1650, 8
      %v1680 = vpop.permute.xlu0 %1679
      %1681 = vrot.lane.b32.xlu0 %v1651, 8
      %v1682 = vpop.permute.xlu0 %1681
      %1683 = vrot.lane.b32.xlu0 %v1652, 8
      %v1684 = vpop.permute.xlu0 %1683
      %vm1701 = vcmask 97344
      %1702 = vst.msk [vmem:[#allocation3] sm:$0xff] %vm1701, %v1654
      %1703 = vst.msk [vmem:[#allocation3 + $0x8] sm:$0xff] %vm1701, %v1656
      %1704 = vst.msk [vmem:[#allocation3 + $0x10] sm:$0xff] %vm1701, %v1658
      %1705 = vst.msk [vmem:[#allocation3 + $0x18] sm:$0xff] %vm1701, %v1660
      %1706 = vst.msk [vmem:[#allocation3 + $0x20] sm:$0xff] %vm1701, %v1662
      %1707 = vst.msk [vmem:[#allocation3 + $0x28] sm:$0xff] %vm1701, %v1664
      %1708 = vst.msk [vmem:[#allocation3 + $0x30] sm:$0xff] %vm1701, %v1666
      %1709 = vst.msk [vmem:[#allocation3 + $0x38] sm:$0xff] %vm1701, %v1668
      %1710 = vst.msk [vmem:[#allocation3 + $0x40] sm:$0xff] %vm1701, %v1670
      %1711 = vst.msk [vmem:[#allocation3 + $0x48] sm:$0xff] %vm1701, %v1672
      %1712 = vst.msk [vmem:[#allocation3 + $0x50] sm:$0xff] %vm1701, %v1674
      %1713 = vst.msk [vmem:[#allocation3 + $0x58] sm:$0xff] %vm1701, %v1676
      %1714 = vst.msk [vmem:[#allocation3 + $0x60] sm:$0xff] %vm1701, %v1678
      %1715 = vst.msk [vmem:[#allocation3 + $0x68] sm:$0xff] %vm1701, %v1680
      %1716 = vst.msk [vmem:[#allocation3 + $0x70] sm:$0xff] %vm1701, %v1682
      %1717 = vst.msk [vmem:[#allocation3 + $0x78] sm:$0xff] %vm1701, %v1684
      %v1718 = vld [vmem:[%s583] sm:$0xf]
      %v1719 = vld [vmem:[%s583 + $0x4] sm:$0xf]
      %v1720 = vld [vmem:[%s583 + $0xc] sm:$0xf]
      %v1721 = vld [vmem:[%s583 + $0x10] sm:$0xf]
      %v1722 = vld [vmem:[%s583 + $0x18] sm:$0xf]
      %v1723 = vld [vmem:[%s583 + $0x1c] sm:$0xf]
      %v1724 = vld [vmem:[%s583 + $0x24] sm:$0xf]
      %v1725 = vld [vmem:[%s583 + $0x28] sm:$0xf]
      %v1726 = vld [vmem:[%s583 + $0x30] sm:$0xf]
      %v1727 = vld [vmem:[%s583 + $0x34] sm:$0xf]
      %v1728 = vld [vmem:[%s583 + $0x3c] sm:$0xf]
      %v1729 = vld [vmem:[%s583 + $0x40] sm:$0xf]
      %v1730 = vld [vmem:[%s583 + $0x48] sm:$0xf]
      %v1731 = vld [vmem:[%s583 + $0x4c] sm:$0xf]
      %v1732 = vld [vmem:[%s583 + $0x54] sm:$0xf]
      %v1733 = vld [vmem:[%s583 + $0x58] sm:$0xf]
      %v1734 = vld [vmem:[%s583 + $0x60] sm:$0xf]
      %v1735 = vld [vmem:[%s583 + $0x64] sm:$0xf]
      %v1736 = vld [vmem:[%s583 + $0x6c] sm:$0xf]
      %v1737 = vld [vmem:[%s583 + $0x70] sm:$0xf]
      %v1738 = vld [vmem:[%s583 + $0x78] sm:$0xf]
      %v1739 = vld [vmem:[%s583 + $0x7c] sm:$0xf]
      %v1740 = vld [vmem:[%s583 + $0x84] sm:$0xf]
      %v1741 = vld [vmem:[%s583 + $0x88] sm:$0xf]
      %v1742 = vld [vmem:[%s583 + $0x90] sm:$0xf]
      %v1743 = vld [vmem:[%s583 + $0x94] sm:$0xf]
      %v1744 = vld [vmem:[%s583 + $0x9c] sm:$0xf]
      %v1745 = vld [vmem:[%s583 + $0xa0] sm:$0xf]
      %v1746 = vld [vmem:[%s583 + $0xa8] sm:$0xf]
      %v1747 = vld [vmem:[%s583 + $0xac] sm:$0xf]
      %v1748 = vld [vmem:[%s583 + $0xb4] sm:$0xf]
      %v1749 = vld [vmem:[%s583 + $0xb8] sm:$0xf]
      %v1782 = vunpack.c.l.b16 %v1718
      %v1783 = vunpack.c.l.b16 %v1719
      %v1784 = vunpack.c.l.b16 %v1720
      %v1785 = vunpack.c.l.b16 %v1721
      %v1786 = vunpack.c.l.b16 %v1722
      %v1787 = vunpack.c.l.b16 %v1723
      %v1788 = vunpack.c.l.b16 %v1724
      %v1789 = vunpack.c.l.b16 %v1725
      %v1790 = vunpack.c.l.b16 %v1726
      %v1791 = vunpack.c.l.b16 %v1727
      %v1792 = vunpack.c.l.b16 %v1728
      %v1793 = vunpack.c.l.b16 %v1729
      %v1794 = vunpack.c.l.b16 %v1730
      %v1795 = vunpack.c.l.b16 %v1731
      %v1796 = vunpack.c.l.b16 %v1732
      %v1797 = vunpack.c.l.b16 %v1733
      %v1798 = vunpack.c.l.b16 %v1734
      %v1799 = vunpack.c.l.b16 %v1735
      %v1800 = vunpack.c.l.b16 %v1736
      %v1801 = vunpack.c.l.b16 %v1737
      %v1802 = vunpack.c.l.b16 %v1738
      %v1803 = vunpack.c.l.b16 %v1739
      %v1804 = vunpack.c.l.b16 %v1740
      %v1805 = vunpack.c.l.b16 %v1741
      %v1806 = vunpack.c.l.b16 %v1742
      %v1807 = vunpack.c.l.b16 %v1743
      %v1808 = vunpack.c.l.b16 %v1744
      %v1809 = vunpack.c.l.b16 %v1745
      %v1810 = vunpack.c.l.b16 %v1746
      %v1811 = vunpack.c.l.b16 %v1747
      %v1812 = vunpack.c.l.b16 %v1748
      %v1813 = vunpack.c.l.b16 %v1749
      %v1814 = vpack.c.b16 %v1783, %v1782
      %v1815 = vpack.c.b16 %v1785, %v1784
      %v1816 = vpack.c.b16 %v1787, %v1786
      %v1817 = vpack.c.b16 %v1789, %v1788
      %v1818 = vpack.c.b16 %v1791, %v1790
      %v1819 = vpack.c.b16 %v1793, %v1792
      %v1820 = vpack.c.b16 %v1795, %v1794
      %v1821 = vpack.c.b16 %v1797, %v1796
      %v1822 = vpack.c.b16 %v1799, %v1798
      %v1823 = vpack.c.b16 %v1801, %v1800
      %v1824 = vpack.c.b16 %v1803, %v1802
      %v1825 = vpack.c.b16 %v1805, %v1804
      %v1826 = vpack.c.b16 %v1807, %v1806
      %v1827 = vpack.c.b16 %v1809, %v1808
      %v1828 = vpack.c.b16 %v1811, %v1810
      %v1829 = vpack.c.b16 %v1813, %v1812
      %1830 = vrot.lane.b32.xlu0 %v1814, 12
      %v1831 = vpop.permute.xlu0 %1830
      %1832 = vrot.lane.b32.xlu0 %v1815, 12
      %v1833 = vpop.permute.xlu0 %1832
      %1834 = vrot.lane.b32.xlu0 %v1816, 12
      %v1835 = vpop.permute.xlu0 %1834
      %1836 = vrot.lane.b32.xlu0 %v1817, 12
      %v1837 = vpop.permute.xlu0 %1836
      %1838 = vrot.lane.b32.xlu0 %v1818, 12
      %v1839 = vpop.permute.xlu0 %1838
      %1840 = vrot.lane.b32.xlu0 %v1819, 12
      %v1841 = vpop.permute.xlu0 %1840
      %1842 = vrot.lane.b32.xlu0 %v1820, 12
      %v1843 = vpop.permute.xlu0 %1842
      %1844 = vrot.lane.b32.xlu0 %v1821, 12
      %v1845 = vpop.permute.xlu0 %1844
      %1846 = vrot.lane.b32.xlu0 %v1822, 12
      %v1847 = vpop.permute.xlu0 %1846
      %1848 = vrot.lane.b32.xlu0 %v1823, 12
      %v1849 = vpop.permute.xlu0 %1848
      %1850 = vrot.lane.b32.xlu0 %v1824, 12
      %v1851 = vpop.permute.xlu0 %1850
      %1852 = vrot.lane.b32.xlu0 %v1825, 12
      %v1853 = vpop.permute.xlu0 %1852
      %1854 = vrot.lane.b32.xlu0 %v1826, 12
      %v1855 = vpop.permute.xlu0 %1854
      %1856 = vrot.lane.b32.xlu0 %v1827, 12
      %v1857 = vpop.permute.xlu0 %1856
      %1858 = vrot.lane.b32.xlu0 %v1828, 12
      %v1859 = vpop.permute.xlu0 %1858
      %1860 = vrot.lane.b32.xlu0 %v1829, 12
      %v1861 = vpop.permute.xlu0 %1860
      %vm1878 = vcmask 130144
      %1879 = vst.msk [vmem:[#allocation3] sm:$0xff] %vm1878, %v1831
      %1880 = vst.msk [vmem:[#allocation3 + $0x8] sm:$0xff] %vm1878, %v1833
      %1881 = vst.msk [vmem:[#allocation3 + $0x10] sm:$0xff] %vm1878, %v1835
      %1882 = vst.msk [vmem:[#allocation3 + $0x18] sm:$0xff] %vm1878, %v1837
      %1883 = vst.msk [vmem:[#allocation3 + $0x20] sm:$0xff] %vm1878, %v1839
      %1884 = vst.msk [vmem:[#allocation3 + $0x28] sm:$0xff] %vm1878, %v1841
      %1885 = vst.msk [vmem:[#allocation3 + $0x30] sm:$0xff] %vm1878, %v1843
      %1886 = vst.msk [vmem:[#allocation3 + $0x38] sm:$0xff] %vm1878, %v1845
      %1887 = vst.msk [vmem:[#allocation3 + $0x40] sm:$0xff] %vm1878, %v1847
      %1888 = vst.msk [vmem:[#allocation3 + $0x48] sm:$0xff] %vm1878, %v1849
      %1889 = vst.msk [vmem:[#allocation3 + $0x50] sm:$0xff] %vm1878, %v1851
      %1890 = vst.msk [vmem:[#allocation3 + $0x58] sm:$0xff] %vm1878, %v1853
      %1891 = vst.msk [vmem:[#allocation3 + $0x60] sm:$0xff] %vm1878, %v1855
      %1892 = vst.msk [vmem:[#allocation3 + $0x68] sm:$0xff] %vm1878, %v1857
      %1893 = vst.msk [vmem:[#allocation3 + $0x70] sm:$0xff] %vm1878, %v1859
      %1894 = vst.msk [vmem:[#allocation3 + $0x78] sm:$0xff] %vm1878, %v1861
      %v1895 = vld [vmem:[%s583] sm:$0xf]
      %v1896 = vld [vmem:[%s583 + $0x4] sm:$0xf]
      %v1897 = vld [vmem:[%s583 + $0x8] sm:$0x1]
      %v1898 = vld [vmem:[%s583 + $0xc] sm:$0xf]
      %v1899 = vld [vmem:[%s583 + $0x10] sm:$0xf]
      %v1900 = vld [vmem:[%s583 + $0x14] sm:$0x1]
      %v1901 = vld [vmem:[%s583 + $0x18] sm:$0xf]
      %v1902 = vld [vmem:[%s583 + $0x1c] sm:$0xf]
      %v1903 = vld [vmem:[%s583 + $0x20] sm:$0x1]
      %v1904 = vld [vmem:[%s583 + $0x24] sm:$0xf]
      %v1905 = vld [vmem:[%s583 + $0x28] sm:$0xf]
      %v1906 = vld [vmem:[%s583 + $0x2c] sm:$0x1]
      %v1907 = vld [vmem:[%s583 + $0x30] sm:$0xf]
      %v1908 = vld [vmem:[%s583 + $0x34] sm:$0xf]
      %v1909 = vld [vmem:[%s583 + $0x38] sm:$0x1]
      %v1910 = vld [vmem:[%s583 + $0x3c] sm:$0xf]
      %v1911 = vld [vmem:[%s583 + $0x40] sm:$0xf]
      %v1912 = vld [vmem:[%s583 + $0x44] sm:$0x1]
      %v1913 = vld [vmem:[%s583 + $0x48] sm:$0xf]
      %v1914 = vld [vmem:[%s583 + $0x4c] sm:$0xf]
      %v1915 = vld [vmem:[%s583 + $0x50] sm:$0x1]
      %v1916 = vld [vmem:[%s583 + $0x54] sm:$0xf]
      %v1917 = vld [vmem:[%s583 + $0x58] sm:$0xf]
      %v1918 = vld [vmem:[%s583 + $0x5c] sm:$0x1]
      %v1919 = vld [vmem:[%s583 + $0x60] sm:$0xf]
      %v1920 = vld [vmem:[%s583 + $0x64] sm:$0xf]
      %v1921 = vld [vmem:[%s583 + $0x68] sm:$0x1]
      %v1922 = vld [vmem:[%s583 + $0x6c] sm:$0xf]
      %v1923 = vld [vmem:[%s583 + $0x70] sm:$0xf]
      %v1924 = vld [vmem:[%s583 + $0x74] sm:$0x1]
      %v1925 = vld [vmem:[%s583 + $0x78] sm:$0xf]
      %v1926 = vld [vmem:[%s583 + $0x7c] sm:$0xf]
      %v1927 = vld [vmem:[%s583 + $0x80] sm:$0x1]
      %v1928 = vld [vmem:[%s583 + $0x84] sm:$0xf]
      %v1929 = vld [vmem:[%s583 + $0x88] sm:$0xf]
      %v1930 = vld [vmem:[%s583 + $0x8c] sm:$0x1]
      %v1931 = vld [vmem:[%s583 + $0x90] sm:$0xf]
      %v1932 = vld [vmem:[%s583 + $0x94] sm:$0xf]
      %v1933 = vld [vmem:[%s583 + $0x98] sm:$0x1]
      %v1934 = vld [vmem:[%s583 + $0x9c] sm:$0xf]
      %v1935 = vld [vmem:[%s583 + $0xa0] sm:$0xf]
      %v1936 = vld [vmem:[%s583 + $0xa4] sm:$0x1]
      %v1937 = vld [vmem:[%s583 + $0xa8] sm:$0xf]
      %v1938 = vld [vmem:[%s583 + $0xac] sm:$0xf]
      %v1939 = vld [vmem:[%s583 + $0xb0] sm:$0x1]
      %v1940 = vld [vmem:[%s583 + $0xb4] sm:$0xf]
      %v1941 = vld [vmem:[%s583 + $0xb8] sm:$0xf]
      %v1942 = vld [vmem:[%s583 + $0xbc] sm:$0x1]
      %v1944 = vshrl.u32 %v1895, 16
      %v1946 = vrot.slane %v1944, 4
      %v1947 = vshll.u32 %v1895, 16
      %v1949 = vrot.slane %v1947, 5
      %v1950 = vor.u32 %v1946, %v1949
      %v1951 = vrot.slane %v1950, 4
      %v1953 = vshll.u32 %v1896, 16
      %v1955 = vrot.slane %v1953, 5
      %v1956 = vsel %vm896, %v1951, %v1955
      %v1957 = vshrl.u32 %v1896, 16
      %v1959 = vrot.slane %v1957, 4
      %v1960 = vor.u32 %v1959, %v1955
      %v1961 = vrot.slane %v1960, 4
      %v1963 = vshll.u32 %v1897, 16
      %v1965 = vrot.slane %v1963, 5
      %v1966 = vsel %vm896, %v1961, %v1965
      %v1968 = vshrl.u32 %v1898, 16
      %v1970 = vrot.slane %v1968, 4
      %v1971 = vshll.u32 %v1898, 16
      %v1973 = vrot.slane %v1971, 5
      %v1974 = vor.u32 %v1970, %v1973
      %v1975 = vrot.slane %v1974, 4
      %v1977 = vshll.u32 %v1899, 16
      %v1979 = vrot.slane %v1977, 5
      %v1980 = vsel %vm896, %v1975, %v1979
      %v1981 = vshrl.u32 %v1899, 16
      %v1983 = vrot.slane %v1981, 4
      %v1984 = vor.u32 %v1983, %v1979
      %v1985 = vrot.slane %v1984, 4
      %v1987 = vshll.u32 %v1900, 16
      %v1989 = vrot.slane %v1987, 5
      %v1990 = vsel %vm896, %v1985, %v1989
      %v1992 = vshrl.u32 %v1901, 16
      %v1994 = vrot.slane %v1992, 4
      %v1995 = vshll.u32 %v1901, 16
      %v1997 = vrot.slane %v1995, 5
      %v1998 = vor.u32 %v1994, %v1997
      %v1999 = vrot.slane %v1998, 4
      %v2001 = vshll.u32 %v1902, 16
      %v2003 = vrot.slane %v2001, 5
      %v2004 = vsel %vm896, %v1999, %v2003
      %v2005 = vshrl.u32 %v1902, 16
      %v2007 = vrot.slane %v2005, 4
      %v2008 = vor.u32 %v2007, %v2003
      %v2009 = vrot.slane %v2008, 4
      %v2011 = vshll.u32 %v1903, 16
      %v2013 = vrot.slane %v2011, 5
      %v2014 = vsel %vm896, %v2009, %v2013
      %v2016 = vshrl.u32 %v1904, 16
      %v2018 = vrot.slane %v2016, 4
      %v2019 = vshll.u32 %v1904, 16
      %v2021 = vrot.slane %v2019, 5
      %v2022 = vor.u32 %v2018, %v2021
      %v2023 = vrot.slane %v2022, 4
      %v2025 = vshll.u32 %v1905, 16
      %v2027 = vrot.slane %v2025, 5
      %v2028 = vsel %vm896, %v2023, %v2027
      %v2029 = vshrl.u32 %v1905, 16
      %v2031 = vrot.slane %v2029, 4
      %v2032 = vor.u32 %v2031, %v2027
      %v2033 = vrot.slane %v2032, 4
      %v2035 = vshll.u32 %v1906, 16
      %v2037 = vrot.slane %v2035, 5
      %v2038 = vsel %vm896, %v2033, %v2037
      %v2040 = vshrl.u32 %v1907, 16
      %v2042 = vrot.slane %v2040, 4
      %v2043 = vshll.u32 %v1907, 16
      %v2045 = vrot.slane %v2043, 5
      %v2046 = vor.u32 %v2042, %v2045
      %v2047 = vrot.slane %v2046, 4
      %v2049 = vshll.u32 %v1908, 16
      %v2051 = vrot.slane %v2049, 5
      %v2052 = vsel %vm896, %v2047, %v2051
      %v2053 = vshrl.u32 %v1908, 16
      %v2055 = vrot.slane %v2053, 4
      %v2056 = vor.u32 %v2055, %v2051
      %v2057 = vrot.slane %v2056, 4
      %v2059 = vshll.u32 %v1909, 16
      %v2061 = vrot.slane %v2059, 5
      %v2062 = vsel %vm896, %v2057, %v2061
      %v2064 = vshrl.u32 %v1910, 16
      %v2066 = vrot.slane %v2064, 4
      %v2067 = vshll.u32 %v1910, 16
      %v2069 = vrot.slane %v2067, 5
      %v2070 = vor.u32 %v2066, %v2069
      %v2071 = vrot.slane %v2070, 4
      %v2073 = vshll.u32 %v1911, 16
      %v2075 = vrot.slane %v2073, 5
      %v2076 = vsel %vm896, %v2071, %v2075
      %v2077 = vshrl.u32 %v1911, 16
      %v2079 = vrot.slane %v2077, 4
      %v2080 = vor.u32 %v2079, %v2075
      %v2081 = vrot.slane %v2080, 4
      %v2083 = vshll.u32 %v1912, 16
      %v2085 = vrot.slane %v2083, 5
      %v2086 = vsel %vm896, %v2081, %v2085
      %v2088 = vshrl.u32 %v1913, 16
      %v2090 = vrot.slane %v2088, 4
      %v2091 = vshll.u32 %v1913, 16
      %v2093 = vrot.slane %v2091, 5
      %v2094 = vor.u32 %v2090, %v2093
      %v2095 = vrot.slane %v2094, 4
      %v2097 = vshll.u32 %v1914, 16
      %v2099 = vrot.slane %v2097, 5
      %v2100 = vsel %vm896, %v2095, %v2099
      %v2101 = vshrl.u32 %v1914, 16
      %v2103 = vrot.slane %v2101, 4
      %v2104 = vor.u32 %v2103, %v2099
      %v2105 = vrot.slane %v2104, 4
      %v2107 = vshll.u32 %v1915, 16
      %v2109 = vrot.slane %v2107, 5
      %v2110 = vsel %vm896, %v2105, %v2109
      %v2112 = vshrl.u32 %v1916, 16
      %v2114 = vrot.slane %v2112, 4
      %v2115 = vshll.u32 %v1916, 16
      %v2117 = vrot.slane %v2115, 5
      %v2118 = vor.u32 %v2114, %v2117
      %v2119 = vrot.slane %v2118, 4
      %v2121 = vshll.u32 %v1917, 16
      %v2123 = vrot.slane %v2121, 5
      %v2124 = vsel %vm896, %v2119, %v2123
      %v2125 = vshrl.u32 %v1917, 16
      %v2127 = vrot.slane %v2125, 4
      %v2128 = vor.u32 %v2127, %v2123
      %v2129 = vrot.slane %v2128, 4
      %v2131 = vshll.u32 %v1918, 16
      %v2133 = vrot.slane %v2131, 5
      %v2134 = vsel %vm896, %v2129, %v2133
      %v2136 = vshrl.u32 %v1919, 16
      %v2138 = vrot.slane %v2136, 4
      %v2139 = vshll.u32 %v1919, 16
      %v2141 = vrot.slane %v2139, 5
      %v2142 = vor.u32 %v2138, %v2141
      %v2143 = vrot.slane %v2142, 4
      %v2145 = vshll.u32 %v1920, 16
      %v2147 = vrot.slane %v2145, 5
      %v2148 = vsel %vm896, %v2143, %v2147
      %v2149 = vshrl.u32 %v1920, 16
      %v2151 = vrot.slane %v2149, 4
      %v2152 = vor.u32 %v2151, %v2147
      %v2153 = vrot.slane %v2152, 4
      %v2155 = vshll.u32 %v1921, 16
      %v2157 = vrot.slane %v2155, 5
      %v2158 = vsel %vm896, %v2153, %v2157
      %v2160 = vshrl.u32 %v1922, 16
      %v2162 = vrot.slane %v2160, 4
      %v2163 = vshll.u32 %v1922, 16
      %v2165 = vrot.slane %v2163, 5
      %v2166 = vor.u32 %v2162, %v2165
      %v2167 = vrot.slane %v2166, 4
      %v2169 = vshll.u32 %v1923, 16
      %v2171 = vrot.slane %v2169, 5
      %v2172 = vsel %vm896, %v2167, %v2171
      %v2173 = vshrl.u32 %v1923, 16
      %v2175 = vrot.slane %v2173, 4
      %v2176 = vor.u32 %v2175, %v2171
      %v2177 = vrot.slane %v2176, 4
      %v2179 = vshll.u32 %v1924, 16
      %v2181 = vrot.slane %v2179, 5
      %v2182 = vsel %vm896, %v2177, %v2181
      %v2184 = vshrl.u32 %v1925, 16
      %v2186 = vrot.slane %v2184, 4
      %v2187 = vshll.u32 %v1925, 16
      %v2189 = vrot.slane %v2187, 5
      %v2190 = vor.u32 %v2186, %v2189
      %v2191 = vrot.slane %v2190, 4
      %v2193 = vshll.u32 %v1926, 16
      %v2195 = vrot.slane %v2193, 5
      %v2196 = vsel %vm896, %v2191, %v2195
      %v2197 = vshrl.u32 %v1926, 16
      %v2199 = vrot.slane %v2197, 4
      %v2200 = vor.u32 %v2199, %v2195
      %v2201 = vrot.slane %v2200, 4
      %v2203 = vshll.u32 %v1927, 16
      %v2205 = vrot.slane %v2203, 5
      %v2206 = vsel %vm896, %v2201, %v2205
      %v2208 = vshrl.u32 %v1928, 16
      %v2210 = vrot.slane %v2208, 4
      %v2211 = vshll.u32 %v1928, 16
      %v2213 = vrot.slane %v2211, 5
      %v2214 = vor.u32 %v2210, %v2213
      %v2215 = vrot.slane %v2214, 4
      %v2217 = vshll.u32 %v1929, 16
      %v2219 = vrot.slane %v2217, 5
      %v2220 = vsel %vm896, %v2215, %v2219
      %v2221 = vshrl.u32 %v1929, 16
      %v2223 = vrot.slane %v2221, 4
      %v2224 = vor.u32 %v2223, %v2219
      %v2225 = vrot.slane %v2224, 4
      %v2227 = vshll.u32 %v1930, 16
      %v2229 = vrot.slane %v2227, 5
      %v2230 = vsel %vm896, %v2225, %v2229
      %v2232 = vshrl.u32 %v1931, 16
      %v2234 = vrot.slane %v2232, 4
      %v2235 = vshll.u32 %v1931, 16
      %v2237 = vrot.slane %v2235, 5
      %v2238 = vor.u32 %v2234, %v2237
      %v2239 = vrot.slane %v2238, 4
      %v2241 = vshll.u32 %v1932, 16
      %v2243 = vrot.slane %v2241, 5
      %v2244 = vsel %vm896, %v2239, %v2243
      %v2245 = vshrl.u32 %v1932, 16
      %v2247 = vrot.slane %v2245, 4
      %v2248 = vor.u32 %v2247, %v2243
      %v2249 = vrot.slane %v2248, 4
      %v2251 = vshll.u32 %v1933, 16
      %v2253 = vrot.slane %v2251, 5
      %v2254 = vsel %vm896, %v2249, %v2253
      %v2256 = vshrl.u32 %v1934, 16
      %v2258 = vrot.slane %v2256, 4
      %v2259 = vshll.u32 %v1934, 16
      %v2261 = vrot.slane %v2259, 5
      %v2262 = vor.u32 %v2258, %v2261
      %v2263 = vrot.slane %v2262, 4
      %v2265 = vshll.u32 %v1935, 16
      %v2267 = vrot.slane %v2265, 5
      %v2268 = vsel %vm896, %v2263, %v2267
      %v2269 = vshrl.u32 %v1935, 16
      %v2271 = vrot.slane %v2269, 4
      %v2272 = vor.u32 %v2271, %v2267
      %v2273 = vrot.slane %v2272, 4
      %v2275 = vshll.u32 %v1936, 16
      %v2277 = vrot.slane %v2275, 5
      %v2278 = vsel %vm896, %v2273, %v2277
      %v2280 = vshrl.u32 %v1937, 16
      %v2282 = vrot.slane %v2280, 4
      %v2283 = vshll.u32 %v1937, 16
      %v2285 = vrot.slane %v2283, 5
      %v2286 = vor.u32 %v2282, %v2285
      %v2287 = vrot.slane %v2286, 4
      %v2289 = vshll.u32 %v1938, 16
      %v2291 = vrot.slane %v2289, 5
      %v2292 = vsel %vm896, %v2287, %v2291
      %v2293 = vshrl.u32 %v1938, 16
      %v2295 = vrot.slane %v2293, 4
      %v2296 = vor.u32 %v2295, %v2291
      %v2297 = vrot.slane %v2296, 4
      %v2299 = vshll.u32 %v1939, 16
      %v2301 = vrot.slane %v2299, 5
      %v2302 = vsel %vm896, %v2297, %v2301
      %v2304 = vshrl.u32 %v1940, 16
      %v2306 = vrot.slane %v2304, 4
      %v2307 = vshll.u32 %v1940, 16
      %v2309 = vrot.slane %v2307, 5
      %v2310 = vor.u32 %v2306, %v2309
      %v2311 = vrot.slane %v2310, 4
      %v2313 = vshll.u32 %v1941, 16
      %v2315 = vrot.slane %v2313, 5
      %v2316 = vsel %vm896, %v2311, %v2315
      %v2317 = vshrl.u32 %v1941, 16
      %v2319 = vrot.slane %v2317, 4
      %v2320 = vor.u32 %v2319, %v2315
      %v2321 = vrot.slane %v2320, 4
      %v2323 = vshll.u32 %v1942, 16
      %v2325 = vrot.slane %v2323, 5
      %v2326 = vsel %vm896, %v2321, %v2325
      %v2327 = vunpack.c.l.b16 %v1956
      %v2328 = vunpack.c.l.b16 %v1966
      %v2329 = vunpack.c.l.b16 %v1980
      %v2330 = vunpack.c.l.b16 %v1990
      %v2331 = vunpack.c.l.b16 %v2004
      %v2332 = vunpack.c.l.b16 %v2014
      %v2333 = vunpack.c.l.b16 %v2028
      %v2334 = vunpack.c.l.b16 %v2038
      %v2335 = vunpack.c.l.b16 %v2052
      %v2336 = vunpack.c.l.b16 %v2062
      %v2337 = vunpack.c.l.b16 %v2076
      %v2338 = vunpack.c.l.b16 %v2086
      %v2339 = vunpack.c.l.b16 %v2100
      %v2340 = vunpack.c.l.b16 %v2110
      %v2341 = vunpack.c.l.b16 %v2124
      %v2342 = vunpack.c.l.b16 %v2134
      %v2343 = vunpack.c.l.b16 %v2148
      %v2344 = vunpack.c.l.b16 %v2158
      %v2345 = vunpack.c.l.b16 %v2172
      %v2346 = vunpack.c.l.b16 %v2182
      %v2347 = vunpack.c.l.b16 %v2196
      %v2348 = vunpack.c.l.b16 %v2206
      %v2349 = vunpack.c.l.b16 %v2220
      %v2350 = vunpack.c.l.b16 %v2230
      %v2351 = vunpack.c.l.b16 %v2244
      %v2352 = vunpack.c.l.b16 %v2254
      %v2353 = vunpack.c.l.b16 %v2268
      %v2354 = vunpack.c.l.b16 %v2278
      %v2355 = vunpack.c.l.b16 %v2292
      %v2356 = vunpack.c.l.b16 %v2302
      %v2357 = vunpack.c.l.b16 %v2316
      %v2358 = vunpack.c.l.b16 %v2326
      %v2359 = vpack.c.b16 %v2328, %v2327
      %v2360 = vpack.c.b16 %v2330, %v2329
      %v2361 = vpack.c.b16 %v2332, %v2331
      %v2362 = vpack.c.b16 %v2334, %v2333
      %v2363 = vpack.c.b16 %v2336, %v2335
      %v2364 = vpack.c.b16 %v2338, %v2337
      %v2365 = vpack.c.b16 %v2340, %v2339
      %v2366 = vpack.c.b16 %v2342, %v2341
      %v2367 = vpack.c.b16 %v2344, %v2343
      %v2368 = vpack.c.b16 %v2346, %v2345
      %v2369 = vpack.c.b16 %v2348, %v2347
      %v2370 = vpack.c.b16 %v2350, %v2349
      %v2371 = vpack.c.b16 %v2352, %v2351
      %v2372 = vpack.c.b16 %v2354, %v2353
      %v2373 = vpack.c.b16 %v2356, %v2355
      %v2374 = vpack.c.b16 %v2358, %v2357
      %2375 = vrot.lane.b32.xlu0 %v2359, 16
      %v2376 = vpop.permute.xlu0 %2375
      %2377 = vrot.lane.b32.xlu0 %v2360, 16
      %v2378 = vpop.permute.xlu0 %2377
      %2379 = vrot.lane.b32.xlu0 %v2361, 16
      %v2380 = vpop.permute.xlu0 %2379
      %2381 = vrot.lane.b32.xlu0 %v2362, 16
      %v2382 = vpop.permute.xlu0 %2381
      %2383 = vrot.lane.b32.xlu0 %v2363, 16
      %v2384 = vpop.permute.xlu0 %2383
      %2385 = vrot.lane.b32.xlu0 %v2364, 16
      %v2386 = vpop.permute.xlu0 %2385
      %2387 = vrot.lane.b32.xlu0 %v2365, 16
      %v2388 = vpop.permute.xlu0 %2387
      %2389 = vrot.lane.b32.xlu0 %v2366, 16
      %v2390 = vpop.permute.xlu0 %2389
      %2391 = vrot.lane.b32.xlu0 %v2367, 16
      %v2392 = vpop.permute.xlu0 %2391
      %2393 = vrot.lane.b32.xlu0 %v2368, 16
      %v2394 = vpop.permute.xlu0 %2393
      %2395 = vrot.lane.b32.xlu0 %v2369, 16
      %v2396 = vpop.permute.xlu0 %2395
      %2397 = vrot.lane.b32.xlu0 %v2370, 16
      %v2398 = vpop.permute.xlu0 %2397
      %2399 = vrot.lane.b32.xlu0 %v2371, 16
      %v2400 = vpop.permute.xlu0 %2399
      %2401 = vrot.lane.b32.xlu0 %v2372, 16
      %v2402 = vpop.permute.xlu0 %2401
      %2403 = vrot.lane.b32.xlu0 %v2373, 16
      %v2404 = vpop.permute.xlu0 %2403
      %2405 = vrot.lane.b32.xlu0 %v2374, 16
      %v2406 = vpop.permute.xlu0 %2405
      %vm2423 = vcmask 162944
      %2424 = vst.msk [vmem:[#allocation3] sm:$0xff] %vm2423, %v2376
      %2425 = vst.msk [vmem:[#allocation3 + $0x8] sm:$0xff] %vm2423, %v2378
      %2426 = vst.msk [vmem:[#allocation3 + $0x10] sm:$0xff] %vm2423, %v2380
      %2427 = vst.msk [vmem:[#allocation3 + $0x18] sm:$0xff] %vm2423, %v2382
      %2428 = vst.msk [vmem:[#allocation3 + $0x20] sm:$0xff] %vm2423, %v2384
      %2429 = vst.msk [vmem:[#allocation3 + $0x28] sm:$0xff] %vm2423, %v2386
      %2430 = vst.msk [vmem:[#allocation3 + $0x30] sm:$0xff] %vm2423, %v2388
      %2431 = vst.msk [vmem:[#allocation3 + $0x38] sm:$0xff] %vm2423, %v2390
      %2432 = vst.msk [vmem:[#allocation3 + $0x40] sm:$0xff] %vm2423, %v2392
      %2433 = vst.msk [vmem:[#allocation3 + $0x48] sm:$0xff] %vm2423, %v2394
      %2434 = vst.msk [vmem:[#allocation3 + $0x50] sm:$0xff] %vm2423, %v2396
      %2435 = vst.msk [vmem:[#allocation3 + $0x58] sm:$0xff] %vm2423, %v2398
      %2436 = vst.msk [vmem:[#allocation3 + $0x60] sm:$0xff] %vm2423, %v2400
      %2437 = vst.msk [vmem:[#allocation3 + $0x68] sm:$0xff] %vm2423, %v2402
      %2438 = vst.msk [vmem:[#allocation3 + $0x70] sm:$0xff] %vm2423, %v2404
      %2439 = vst.msk [vmem:[#allocation3 + $0x78] sm:$0xff] %vm2423, %v2406
      %v2440 = vld [vmem:[%s583] sm:$0xe]
      %v2441 = vld [vmem:[%s583 + $0x4] sm:$0xf]
      %v2442 = vld [vmem:[%s583 + $0x8] sm:$0x1]
      %v2443 = vld [vmem:[%s583 + $0xc] sm:$0xe]
      %v2444 = vld [vmem:[%s583 + $0x10] sm:$0xf]
      %v2445 = vld [vmem:[%s583 + $0x14] sm:$0x1]
      %v2446 = vld [vmem:[%s583 + $0x18] sm:$0xe]
      %v2447 = vld [vmem:[%s583 + $0x1c] sm:$0xf]
      %v2448 = vld [vmem:[%s583 + $0x20] sm:$0x1]
      %v2449 = vld [vmem:[%s583 + $0x24] sm:$0xe]
      %v2450 = vld [vmem:[%s583 + $0x28] sm:$0xf]
      %v2451 = vld [vmem:[%s583 + $0x2c] sm:$0x1]
      %v2452 = vld [vmem:[%s583 + $0x30] sm:$0xe]
      %v2453 = vld [vmem:[%s583 + $0x34] sm:$0xf]
      %v2454 = vld [vmem:[%s583 + $0x38] sm:$0x1]
      %v2455 = vld [vmem:[%s583 + $0x3c] sm:$0xe]
      %v2456 = vld [vmem:[%s583 + $0x40] sm:$0xf]
      %v2457 = vld [vmem:[%s583 + $0x44] sm:$0x1]
      %v2458 = vld [vmem:[%s583 + $0x48] sm:$0xe]
      %v2459 = vld [vmem:[%s583 + $0x4c] sm:$0xf]
      %v2460 = vld [vmem:[%s583 + $0x50] sm:$0x1]
      %v2461 = vld [vmem:[%s583 + $0x54] sm:$0xe]
      %v2462 = vld [vmem:[%s583 + $0x58] sm:$0xf]
      %v2463 = vld [vmem:[%s583 + $0x5c] sm:$0x1]
      %v2464 = vld [vmem:[%s583 + $0x60] sm:$0xe]
      %v2465 = vld [vmem:[%s583 + $0x64] sm:$0xf]
      %v2466 = vld [vmem:[%s583 + $0x68] sm:$0x1]
      %v2467 = vld [vmem:[%s583 + $0x6c] sm:$0xe]
      %v2468 = vld [vmem:[%s583 + $0x70] sm:$0xf]
      %v2469 = vld [vmem:[%s583 + $0x74] sm:$0x1]
      %v2470 = vld [vmem:[%s583 + $0x78] sm:$0xe]
      %v2471 = vld [vmem:[%s583 + $0x7c] sm:$0xf]
      %v2472 = vld [vmem:[%s583 + $0x80] sm:$0x1]
      %v2473 = vld [vmem:[%s583 + $0x84] sm:$0xe]
      %v2474 = vld [vmem:[%s583 + $0x88] sm:$0xf]
      %v2475 = vld [vmem:[%s583 + $0x8c] sm:$0x1]
      %v2476 = vld [vmem:[%s583 + $0x90] sm:$0xe]
      %v2477 = vld [vmem:[%s583 + $0x94] sm:$0xf]
      %v2478 = vld [vmem:[%s583 + $0x98] sm:$0x1]
      %v2479 = vld [vmem:[%s583 + $0x9c] sm:$0xe]
      %v2480 = vld [vmem:[%s583 + $0xa0] sm:$0xf]
      %v2481 = vld [vmem:[%s583 + $0xa4] sm:$0x1]
      %v2482 = vld [vmem:[%s583 + $0xa8] sm:$0xe]
      %v2483 = vld [vmem:[%s583 + $0xac] sm:$0xf]
      %v2484 = vld [vmem:[%s583 + $0xb0] sm:$0x1]
      %v2485 = vld [vmem:[%s583 + $0xb4] sm:$0xe]
      %v2486 = vld [vmem:[%s583 + $0xb8] sm:$0xf]
      %v2487 = vld [vmem:[%s583 + $0xbc] sm:$0x1]
      %v2536 = vrot.slane %v2440, 5
      %v2537 = vrot.slane %v2536, 4
      %v2538 = vrot.slane %v2441, 5
      %v2539 = vsel %vm1492, %v2537, %v2538
      %v2540 = vrot.slane %v2538, 4
      %v2541 = vrot.slane %v2442, 5
      %v2542 = vsel %vm1492, %v2540, %v2541
      %v2543 = vrot.slane %v2443, 5
      %v2544 = vrot.slane %v2543, 4
      %v2545 = vrot.slane %v2444, 5
      %v2546 = vsel %vm1492, %v2544, %v2545
      %v2547 = vrot.slane %v2545, 4
      %v2548 = vrot.slane %v2445, 5
      %v2549 = vsel %vm1492, %v2547, %v2548
      %v2550 = vrot.slane %v2446, 5
      %v2551 = vrot.slane %v2550, 4
      %v2552 = vrot.slane %v2447, 5
      %v2553 = vsel %vm1492, %v2551, %v2552
      %v2554 = vrot.slane %v2552, 4
      %v2555 = vrot.slane %v2448, 5
      %v2556 = vsel %vm1492, %v2554, %v2555
      %v2557 = vrot.slane %v2449, 5
      %v2558 = vrot.slane %v2557, 4
      %v2559 = vrot.slane %v2450, 5
      %v2560 = vsel %vm1492, %v2558, %v2559
      %v2561 = vrot.slane %v2559, 4
      %v2562 = vrot.slane %v2451, 5
      %v2563 = vsel %vm1492, %v2561, %v2562
      %v2564 = vrot.slane %v2452, 5
      %v2565 = vrot.slane %v2564, 4
      %v2566 = vrot.slane %v2453, 5
      %v2567 = vsel %vm1492, %v2565, %v2566
      %v2568 = vrot.slane %v2566, 4
      %v2569 = vrot.slane %v2454, 5
      %v2570 = vsel %vm1492, %v2568, %v2569
      %v2571 = vrot.slane %v2455, 5
      %v2572 = vrot.slane %v2571, 4
      %v2573 = vrot.slane %v2456, 5
      %v2574 = vsel %vm1492, %v2572, %v2573
      %v2575 = vrot.slane %v2573, 4
      %v2576 = vrot.slane %v2457, 5
      %v2577 = vsel %vm1492, %v2575, %v2576
      %v2578 = vrot.slane %v2458, 5
      %v2579 = vrot.slane %v2578, 4
      %v2580 = vrot.slane %v2459, 5
      %v2581 = vsel %vm1492, %v2579, %v2580
      %v2582 = vrot.slane %v2580, 4
      %v2583 = vrot.slane %v2460, 5
      %v2584 = vsel %vm1492, %v2582, %v2583
      %v2585 = vrot.slane %v2461, 5
      %v2586 = vrot.slane %v2585, 4
      %v2587 = vrot.slane %v2462, 5
      %v2588 = vsel %vm1492, %v2586, %v2587
      %v2589 = vrot.slane %v2587, 4
      %v2590 = vrot.slane %v2463, 5
      %v2591 = vsel %vm1492, %v2589, %v2590
      %v2592 = vrot.slane %v2464, 5
      %v2593 = vrot.slane %v2592, 4
      %v2594 = vrot.slane %v2465, 5
      %v2595 = vsel %vm1492, %v2593, %v2594
      %v2596 = vrot.slane %v2594, 4
      %v2597 = vrot.slane %v2466, 5
      %v2598 = vsel %vm1492, %v2596, %v2597
      %v2599 = vrot.slane %v2467, 5
      %v2600 = vrot.slane %v2599, 4
      %v2601 = vrot.slane %v2468, 5
      %v2602 = vsel %vm1492, %v2600, %v2601
      %v2603 = vrot.slane %v2601, 4
      %v2604 = vrot.slane %v2469, 5
      %v2605 = vsel %vm1492, %v2603, %v2604
      %v2606 = vrot.slane %v2470, 5
      %v2607 = vrot.slane %v2606, 4
      %v2608 = vrot.slane %v2471, 5
      %v2609 = vsel %vm1492, %v2607, %v2608
      %v2610 = vrot.slane %v2608, 4
      %v2611 = vrot.slane %v2472, 5
      %v2612 = vsel %vm1492, %v2610, %v2611
      %v2613 = vrot.slane %v2473, 5
      %v2614 = vrot.slane %v2613, 4
      %v2615 = vrot.slane %v2474, 5
      %v2616 = vsel %vm1492, %v2614, %v2615
      %v2617 = vrot.slane %v2615, 4
      %v2618 = vrot.slane %v2475, 5
      %v2619 = vsel %vm1492, %v2617, %v2618
      %v2620 = vrot.slane %v2476, 5
      %v2621 = vrot.slane %v2620, 4
      %v2622 = vrot.slane %v2477, 5
      %v2623 = vsel %vm1492, %v2621, %v2622
      %v2624 = vrot.slane %v2622, 4
      %v2625 = vrot.slane %v2478, 5
      %v2626 = vsel %vm1492, %v2624, %v2625
      %v2627 = vrot.slane %v2479, 5
      %v2628 = vrot.slane %v2627, 4
      %v2629 = vrot.slane %v2480, 5
      %v2630 = vsel %vm1492, %v2628, %v2629
      %v2631 = vrot.slane %v2629, 4
      %v2632 = vrot.slane %v2481, 5
      %v2633 = vsel %vm1492, %v2631, %v2632
      %v2634 = vrot.slane %v2482, 5
      %v2635 = vrot.slane %v2634, 4
      %v2636 = vrot.slane %v2483, 5
      %v2637 = vsel %vm1492, %v2635, %v2636
      %v2638 = vrot.slane %v2636, 4
      %v2639 = vrot.slane %v2484, 5
      %v2640 = vsel %vm1492, %v2638, %v2639
      %v2641 = vrot.slane %v2485, 5
      %v2642 = vrot.slane %v2641, 4
      %v2643 = vrot.slane %v2486, 5
      %v2644 = vsel %vm1492, %v2642, %v2643
      %v2645 = vrot.slane %v2643, 4
      %v2646 = vrot.slane %v2487, 5
      %v2647 = vsel %vm1492, %v2645, %v2646
      %v2648 = vunpack.c.l.b16 %v2539
      %v2649 = vunpack.c.l.b16 %v2542
      %v2650 = vunpack.c.l.b16 %v2546
      %v2651 = vunpack.c.l.b16 %v2549
      %v2652 = vunpack.c.l.b16 %v2553
      %v2653 = vunpack.c.l.b16 %v2556
      %v2654 = vunpack.c.l.b16 %v2560
      %v2655 = vunpack.c.l.b16 %v2563
      %v2656 = vunpack.c.l.b16 %v2567
      %v2657 = vunpack.c.l.b16 %v2570
      %v2658 = vunpack.c.l.b16 %v2574
      %v2659 = vunpack.c.l.b16 %v2577
      %v2660 = vunpack.c.l.b16 %v2581
      %v2661 = vunpack.c.l.b16 %v2584
      %v2662 = vunpack.c.l.b16 %v2588
      %v2663 = vunpack.c.l.b16 %v2591
      %v2664 = vunpack.c.l.b16 %v2595
      %v2665 = vunpack.c.l.b16 %v2598
      %v2666 = vunpack.c.l.b16 %v2602
      %v2667 = vunpack.c.l.b16 %v2605
      %v2668 = vunpack.c.l.b16 %v2609
      %v2669 = vunpack.c.l.b16 %v2612
      %v2670 = vunpack.c.l.b16 %v2616
      %v2671 = vunpack.c.l.b16 %v2619
      %v2672 = vunpack.c.l.b16 %v2623
      %v2673 = vunpack.c.l.b16 %v2626
      %v2674 = vunpack.c.l.b16 %v2630
      %v2675 = vunpack.c.l.b16 %v2633
      %v2676 = vunpack.c.l.b16 %v2637
      %v2677 = vunpack.c.l.b16 %v2640
      %v2678 = vunpack.c.l.b16 %v2644
      %v2679 = vunpack.c.l.b16 %v2647
      %v2680 = vpack.c.b16 %v2649, %v2648
      %v2681 = vpack.c.b16 %v2651, %v2650
      %v2682 = vpack.c.b16 %v2653, %v2652
      %v2683 = vpack.c.b16 %v2655, %v2654
      %v2684 = vpack.c.b16 %v2657, %v2656
      %v2685 = vpack.c.b16 %v2659, %v2658
      %v2686 = vpack.c.b16 %v2661, %v2660
      %v2687 = vpack.c.b16 %v2663, %v2662
      %v2688 = vpack.c.b16 %v2665, %v2664
      %v2689 = vpack.c.b16 %v2667, %v2666
      %v2690 = vpack.c.b16 %v2669, %v2668
      %v2691 = vpack.c.b16 %v2671, %v2670
      %v2692 = vpack.c.b16 %v2673, %v2672
      %v2693 = vpack.c.b16 %v2675, %v2674
      %v2694 = vpack.c.b16 %v2677, %v2676
      %v2695 = vpack.c.b16 %v2679, %v2678
      %2696 = vrot.lane.b32.xlu0 %v2680, 20
      %v2697 = vpop.permute.xlu0 %2696
      %2698 = vrot.lane.b32.xlu0 %v2681, 20
      %v2699 = vpop.permute.xlu0 %2698
      %2700 = vrot.lane.b32.xlu0 %v2682, 20
      %v2701 = vpop.permute.xlu0 %2700
      %2702 = vrot.lane.b32.xlu0 %v2683, 20
      %v2703 = vpop.permute.xlu0 %2702
      %2704 = vrot.lane.b32.xlu0 %v2684, 20
      %v2705 = vpop.permute.xlu0 %2704
      %2706 = vrot.lane.b32.xlu0 %v2685, 20
      %v2707 = vpop.permute.xlu0 %2706
      %2708 = vrot.lane.b32.xlu0 %v2686, 20
      %v2709 = vpop.permute.xlu0 %2708
      %2710 = vrot.lane.b32.xlu0 %v2687, 20
      %v2711 = vpop.permute.xlu0 %2710
      %2712 = vrot.lane.b32.xlu0 %v2688, 20
      %v2713 = vpop.permute.xlu0 %2712
      %2714 = vrot.lane.b32.xlu0 %v2689, 20
      %v2715 = vpop.permute.xlu0 %2714
      %2716 = vrot.lane.b32.xlu0 %v2690, 20
      %v2717 = vpop.permute.xlu0 %2716
      %2718 = vrot.lane.b32.xlu0 %v2691, 20
      %v2719 = vpop.permute.xlu0 %2718
      %2720 = vrot.lane.b32.xlu0 %v2692, 20
      %v2721 = vpop.permute.xlu0 %2720
      %2722 = vrot.lane.b32.xlu0 %v2693, 20
      %v2723 = vpop.permute.xlu0 %2722
      %2724 = vrot.lane.b32.xlu0 %v2694, 20
      %v2725 = vpop.permute.xlu0 %2724
      %2726 = vrot.lane.b32.xlu0 %v2695, 20
      %v2727 = vpop.permute.xlu0 %2726
      %vm2744 = vcmask 195744
      %2745 = vst.msk [vmem:[#allocation3] sm:$0xff] %vm2744, %v2697
      %2746 = vst.msk [vmem:[#allocation3 + $0x8] sm:$0xff] %vm2744, %v2699
      %2747 = vst.msk [vmem:[#allocation3 + $0x10] sm:$0xff] %vm2744, %v2701
      %2748 = vst.msk [vmem:[#allocation3 + $0x18] sm:$0xff] %vm2744, %v2703
      %2749 = vst.msk [vmem:[#allocation3 + $0x20] sm:$0xff] %vm2744, %v2705
      %2750 = vst.msk [vmem:[#allocation3 + $0x28] sm:$0xff] %vm2744, %v2707
      %2751 = vst.msk [vmem:[#allocation3 + $0x30] sm:$0xff] %vm2744, %v2709
      %2752 = vst.msk [vmem:[#allocation3 + $0x38] sm:$0xff] %vm2744, %v2711
      %2753 = vst.msk [vmem:[#allocation3 + $0x40] sm:$0xff] %vm2744, %v2713
      %2754 = vst.msk [vmem:[#allocation3 + $0x48] sm:$0xff] %vm2744, %v2715
      %2755 = vst.msk [vmem:[#allocation3 + $0x50] sm:$0xff] %vm2744, %v2717
      %2756 = vst.msk [vmem:[#allocation3 + $0x58] sm:$0xff] %vm2744, %v2719
      %2757 = vst.msk [vmem:[#allocation3 + $0x60] sm:$0xff] %vm2744, %v2721
      %2758 = vst.msk [vmem:[#allocation3 + $0x68] sm:$0xff] %vm2744, %v2723
      %2759 = vst.msk [vmem:[#allocation3 + $0x70] sm:$0xff] %vm2744, %v2725
      %2760 = vst.msk [vmem:[#allocation3 + $0x78] sm:$0xff] %vm2744, %v2727
      %s2761 = scalar_lea.vmem [#allocation2], 24
      %v2762 = vld [vmem:[%s2761] sm:$0xf]
      %v2763 = vld [vmem:[%s2761 + $0x4] sm:$0xf]
      %v2764 = vld [vmem:[%s2761 + $0xc] sm:$0xf]
      %v2765 = vld [vmem:[%s2761 + $0x10] sm:$0xf]
      %v2766 = vld [vmem:[%s2761 + $0x18] sm:$0xf]
      %v2767 = vld [vmem:[%s2761 + $0x1c] sm:$0xf]
      %v2768 = vld [vmem:[%s2761 + $0x24] sm:$0xf]
      %v2769 = vld [vmem:[%s2761 + $0x28] sm:$0xf]
      %v2770 = vld [vmem:[%s2761 + $0x30] sm:$0xf]
      %v2771 = vld [vmem:[%s2761 + $0x34] sm:$0xf]
      %v2772 = vld [vmem:[%s2761 + $0x3c] sm:$0xf]
      %v2773 = vld [vmem:[%s2761 + $0x40] sm:$0xf]
      %v2774 = vld [vmem:[%s2761 + $0x48] sm:$0xf]
      %v2775 = vld [vmem:[%s2761 + $0x4c] sm:$0xf]
      %v2776 = vld [vmem:[%s2761 + $0x54] sm:$0xf]
      %v2777 = vld [vmem:[%s2761 + $0x58] sm:$0xf]
      %v2778 = vld [vmem:[%s2761 + $0x60] sm:$0xf]
      %v2779 = vld [vmem:[%s2761 + $0x64] sm:$0xf]
      %v2780 = vld [vmem:[%s2761 + $0x6c] sm:$0xf]
      %v2781 = vld [vmem:[%s2761 + $0x70] sm:$0xf]
      %v2782 = vld [vmem:[%s2761 + $0x78] sm:$0xf]
      %v2783 = vld [vmem:[%s2761 + $0x7c] sm:$0xf]
      %v2784 = vld [vmem:[%s2761 + $0x84] sm:$0xf]
      %v2785 = vld [vmem:[%s2761 + $0x88] sm:$0xf]
      %v2786 = vld [vmem:[%s2761 + $0x90] sm:$0xf]
      %v2787 = vld [vmem:[%s2761 + $0x94] sm:$0xf]
      %v2788 = vld [vmem:[%s2761 + $0x9c] sm:$0xf]
      %v2789 = vld [vmem:[%s2761 + $0xa0] sm:$0xf]
      %v2790 = vld [vmem:[%s2761 + $0xa8] sm:$0xf]
      %v2791 = vld [vmem:[%s2761 + $0xac] sm:$0xf]
      %v2792 = vld [vmem:[%s2761 + $0xb4] sm:$0xf]
      %v2793 = vld [vmem:[%s2761 + $0xb8] sm:$0xf]
      %v2826 = vunpack.c.l.b16 %v2762
      %v2827 = vunpack.c.l.b16 %v2763
      %v2828 = vunpack.c.l.b16 %v2764
      %v2829 = vunpack.c.l.b16 %v2765
      %v2830 = vunpack.c.l.b16 %v2766
      %v2831 = vunpack.c.l.b16 %v2767
      %v2832 = vunpack.c.l.b16 %v2768
      %v2833 = vunpack.c.l.b16 %v2769
      %v2834 = vunpack.c.l.b16 %v2770
      %v2835 = vunpack.c.l.b16 %v2771
      %v2836 = vunpack.c.l.b16 %v2772
      %v2837 = vunpack.c.l.b16 %v2773
      %v2838 = vunpack.c.l.b16 %v2774
      %v2839 = vunpack.c.l.b16 %v2775
      %v2840 = vunpack.c.l.b16 %v2776
      %v2841 = vunpack.c.l.b16 %v2777
      %v2842 = vunpack.c.l.b16 %v2778
      %v2843 = vunpack.c.l.b16 %v2779
      %v2844 = vunpack.c.l.b16 %v2780
      %v2845 = vunpack.c.l.b16 %v2781
      %v2846 = vunpack.c.l.b16 %v2782
      %v2847 = vunpack.c.l.b16 %v2783
      %v2848 = vunpack.c.l.b16 %v2784
      %v2849 = vunpack.c.l.b16 %v2785
      %v2850 = vunpack.c.l.b16 %v2786
      %v2851 = vunpack.c.l.b16 %v2787
      %v2852 = vunpack.c.l.b16 %v2788
      %v2853 = vunpack.c.l.b16 %v2789
      %v2854 = vunpack.c.l.b16 %v2790
      %v2855 = vunpack.c.l.b16 %v2791
      %v2856 = vunpack.c.l.b16 %v2792
      %v2857 = vunpack.c.l.b16 %v2793
      %v2858 = vpack.c.b16 %v2827, %v2826
      %v2859 = vpack.c.b16 %v2829, %v2828
      %v2860 = vpack.c.b16 %v2831, %v2830
      %v2861 = vpack.c.b16 %v2833, %v2832
      %v2862 = vpack.c.b16 %v2835, %v2834
      %v2863 = vpack.c.b16 %v2837, %v2836
      %v2864 = vpack.c.b16 %v2839, %v2838
      %v2865 = vpack.c.b16 %v2841, %v2840
      %v2866 = vpack.c.b16 %v2843, %v2842
      %v2867 = vpack.c.b16 %v2845, %v2844
      %v2868 = vpack.c.b16 %v2847, %v2846
      %v2869 = vpack.c.b16 %v2849, %v2848
      %v2870 = vpack.c.b16 %v2851, %v2850
      %v2871 = vpack.c.b16 %v2853, %v2852
      %v2872 = vpack.c.b16 %v2855, %v2854
      %v2873 = vpack.c.b16 %v2857, %v2856
      %2874 = vrot.lane.b32.xlu0 %v2858, 24
      %v2875 = vpop.permute.xlu0 %2874
      %2876 = vrot.lane.b32.xlu0 %v2859, 24
      %v2877 = vpop.permute.xlu0 %2876
      %2878 = vrot.lane.b32.xlu0 %v2860, 24
      %v2879 = vpop.permute.xlu0 %2878
      %2880 = vrot.lane.b32.xlu0 %v2861, 24
      %v2881 = vpop.permute.xlu0 %2880
      %2882 = vrot.lane.b32.xlu0 %v2862, 24
      %v2883 = vpop.permute.xlu0 %2882
      %2884 = vrot.lane.b32.xlu0 %v2863, 24
      %v2885 = vpop.permute.xlu0 %2884
      %2886 = vrot.lane.b32.xlu0 %v2864, 24
      %v2887 = vpop.permute.xlu0 %2886
      %2888 = vrot.lane.b32.xlu0 %v2865, 24
      %v2889 = vpop.permute.xlu0 %2888
      %2890 = vrot.lane.b32.xlu0 %v2866, 24
      %v2891 = vpop.permute.xlu0 %2890
      %2892 = vrot.lane.b32.xlu0 %v2867, 24
      %v2893 = vpop.permute.xlu0 %2892
      %2894 = vrot.lane.b32.xlu0 %v2868, 24
      %v2895 = vpop.permute.xlu0 %2894
      %2896 = vrot.lane.b32.xlu0 %v2869, 24
      %v2897 = vpop.permute.xlu0 %2896
      %2898 = vrot.lane.b32.xlu0 %v2870, 24
      %v2899 = vpop.permute.xlu0 %2898
      %2900 = vrot.lane.b32.xlu0 %v2871, 24
      %v2901 = vpop.permute.xlu0 %2900
      %2902 = vrot.lane.b32.xlu0 %v2872, 24
      %v2903 = vpop.permute.xlu0 %2902
      %2904 = vrot.lane.b32.xlu0 %v2873, 24
      %v2905 = vpop.permute.xlu0 %2904
      %vm2922 = vcmask 228544
      %2923 = vst.msk [vmem:[#allocation3] sm:$0xff] %vm2922, %v2875
      %2924 = vst.msk [vmem:[#allocation3 + $0x8] sm:$0xff] %vm2922, %v2877
      %2925 = vst.msk [vmem:[#allocation3 + $0x10] sm:$0xff] %vm2922, %v2879
      %2926 = vst.msk [vmem:[#allocation3 + $0x18] sm:$0xff] %vm2922, %v2881
      %2927 = vst.msk [vmem:[#allocation3 + $0x20] sm:$0xff] %vm2922, %v2883
      %2928 = vst.msk [vmem:[#allocation3 + $0x28] sm:$0xff] %vm2922, %v2885
      %2929 = vst.msk [vmem:[#allocation3 + $0x30] sm:$0xff] %vm2922, %v2887
      %2930 = vst.msk [vmem:[#allocation3 + $0x38] sm:$0xff] %vm2922, %v2889
      %2931 = vst.msk [vmem:[#allocation3 + $0x40] sm:$0xff] %vm2922, %v2891
      %2932 = vst.msk [vmem:[#allocation3 + $0x48] sm:$0xff] %vm2922, %v2893
      %2933 = vst.msk [vmem:[#allocation3 + $0x50] sm:$0xff] %vm2922, %v2895
      %2934 = vst.msk [vmem:[#allocation3 + $0x58] sm:$0xff] %vm2922, %v2897
      %2935 = vst.msk [vmem:[#allocation3 + $0x60] sm:$0xff] %vm2922, %v2899
      %2936 = vst.msk [vmem:[#allocation3 + $0x68] sm:$0xff] %vm2922, %v2901
      %2937 = vst.msk [vmem:[#allocation3 + $0x70] sm:$0xff] %vm2922, %v2903
      %2938 = vst.msk [vmem:[#allocation3 + $0x78] sm:$0xff] %vm2922, %v2905
      %v2939 = vld [vmem:[%s2761] sm:$0xf]
      %v2940 = vld [vmem:[%s2761 + $0x4] sm:$0xf]
      %v2941 = vld [vmem:[%s2761 + $0x8] sm:$0x1]
      %v2942 = vld [vmem:[%s2761 + $0xc] sm:$0xf]
      %v2943 = vld [vmem:[%s2761 + $0x10] sm:$0xf]
      %v2944 = vld [vmem:[%s2761 + $0x14] sm:$0x1]
      %v2945 = vld [vmem:[%s2761 + $0x18] sm:$0xf]
      %v2946 = vld [vmem:[%s2761 + $0x1c] sm:$0xf]
      %v2947 = vld [vmem:[%s2761 + $0x20] sm:$0x1]
      %v2948 = vld [vmem:[%s2761 + $0x24] sm:$0xf]
      %v2949 = vld [vmem:[%s2761 + $0x28] sm:$0xf]
      %v2950 = vld [vmem:[%s2761 + $0x2c] sm:$0x1]
      %v2951 = vld [vmem:[%s2761 + $0x30] sm:$0xf]
      %v2952 = vld [vmem:[%s2761 + $0x34] sm:$0xf]
      %v2953 = vld [vmem:[%s2761 + $0x38] sm:$0x1]
      %v2954 = vld [vmem:[%s2761 + $0x3c] sm:$0xf]
      %v2955 = vld [vmem:[%s2761 + $0x40] sm:$0xf]
      %v2956 = vld [vmem:[%s2761 + $0x44] sm:$0x1]
      %v2957 = vld [vmem:[%s2761 + $0x48] sm:$0xf]
      %v2958 = vld [vmem:[%s2761 + $0x4c] sm:$0xf]
      %v2959 = vld [vmem:[%s2761 + $0x50] sm:$0x1]
      %v2960 = vld [vmem:[%s2761 + $0x54] sm:$0xf]
      %v2961 = vld [vmem:[%s2761 + $0x58] sm:$0xf]
      %v2962 = vld [vmem:[%s2761 + $0x5c] sm:$0x1]
      %v2963 = vld [vmem:[%s2761 + $0x60] sm:$0xf]
      %v2964 = vld [vmem:[%s2761 + $0x64] sm:$0xf]
      %v2965 = vld [vmem:[%s2761 + $0x68] sm:$0x1]
      %v2966 = vld [vmem:[%s2761 + $0x6c] sm:$0xf]
      %v2967 = vld [vmem:[%s2761 + $0x70] sm:$0xf]
      %v2968 = vld [vmem:[%s2761 + $0x74] sm:$0x1]
      %v2969 = vld [vmem:[%s2761 + $0x78] sm:$0xf]
      %v2970 = vld [vmem:[%s2761 + $0x7c] sm:$0xf]
      %v2971 = vld [vmem:[%s2761 + $0x80] sm:$0x1]
      %v2972 = vld [vmem:[%s2761 + $0x84] sm:$0xf]
      %v2973 = vld [vmem:[%s2761 + $0x88] sm:$0xf]
      %v2974 = vld [vmem:[%s2761 + $0x8c] sm:$0x1]
      %v2975 = vld [vmem:[%s2761 + $0x90] sm:$0xf]
      %v2976 = vld [vmem:[%s2761 + $0x94] sm:$0xf]
      %v2977 = vld [vmem:[%s2761 + $0x98] sm:$0x1]
      %v2978 = vld [vmem:[%s2761 + $0x9c] sm:$0xf]
      %v2979 = vld [vmem:[%s2761 + $0xa0] sm:$0xf]
      %v2980 = vld [vmem:[%s2761 + $0xa4] sm:$0x1]
      %v2981 = vld [vmem:[%s2761 + $0xa8] sm:$0xf]
      %v2982 = vld [vmem:[%s2761 + $0xac] sm:$0xf]
      %v2983 = vld [vmem:[%s2761 + $0xb0] sm:$0x1]
      %v2984 = vld [vmem:[%s2761 + $0xb4] sm:$0xf]
      %v2985 = vld [vmem:[%s2761 + $0xb8] sm:$0xf]
      %v2986 = vld [vmem:[%s2761 + $0xbc] sm:$0x1]
      %v2988 = vshrl.u32 %v2939, 16
      %v2990 = vrot.slane %v2988, 4
      %v2991 = vshll.u32 %v2939, 16
      %v2993 = vrot.slane %v2991, 5
      %v2994 = vor.u32 %v2990, %v2993
      %v2995 = vrot.slane %v2994, 4
      %v2997 = vshll.u32 %v2940, 16
      %v2999 = vrot.slane %v2997, 5
      %v3000 = vsel %vm896, %v2995, %v2999
      %v3001 = vshrl.u32 %v2940, 16
      %v3003 = vrot.slane %v3001, 4
      %v3004 = vor.u32 %v3003, %v2999
      %v3005 = vrot.slane %v3004, 4
      %v3007 = vshll.u32 %v2941, 16
      %v3009 = vrot.slane %v3007, 5
      %v3010 = vsel %vm896, %v3005, %v3009
      %v3012 = vshrl.u32 %v2942, 16
      %v3014 = vrot.slane %v3012, 4
      %v3015 = vshll.u32 %v2942, 16
      %v3017 = vrot.slane %v3015, 5
      %v3018 = vor.u32 %v3014, %v3017
      %v3019 = vrot.slane %v3018, 4
      %v3021 = vshll.u32 %v2943, 16
      %v3023 = vrot.slane %v3021, 5
      %v3024 = vsel %vm896, %v3019, %v3023
      %v3025 = vshrl.u32 %v2943, 16
      %v3027 = vrot.slane %v3025, 4
      %v3028 = vor.u32 %v3027, %v3023
      %v3029 = vrot.slane %v3028, 4
      %v3031 = vshll.u32 %v2944, 16
      %v3033 = vrot.slane %v3031, 5
      %v3034 = vsel %vm896, %v3029, %v3033
      %v3036 = vshrl.u32 %v2945, 16
      %v3038 = vrot.slane %v3036, 4
      %v3039 = vshll.u32 %v2945, 16
      %v3041 = vrot.slane %v3039, 5
      %v3042 = vor.u32 %v3038, %v3041
      %v3043 = vrot.slane %v3042, 4
      %v3045 = vshll.u32 %v2946, 16
      %v3047 = vrot.slane %v3045, 5
      %v3048 = vsel %vm896, %v3043, %v3047
      %v3049 = vshrl.u32 %v2946, 16
      %v3051 = vrot.slane %v3049, 4
      %v3052 = vor.u32 %v3051, %v3047
      %v3053 = vrot.slane %v3052, 4
      %v3055 = vshll.u32 %v2947, 16
      %v3057 = vrot.slane %v3055, 5
      %v3058 = vsel %vm896, %v3053, %v3057
      %v3060 = vshrl.u32 %v2948, 16
      %v3062 = vrot.slane %v3060, 4
      %v3063 = vshll.u32 %v2948, 16
      %v3065 = vrot.slane %v3063, 5
      %v3066 = vor.u32 %v3062, %v3065
      %v3067 = vrot.slane %v3066, 4
      %v3069 = vshll.u32 %v2949, 16
      %v3071 = vrot.slane %v3069, 5
      %v3072 = vsel %vm896, %v3067, %v3071
      %v3073 = vshrl.u32 %v2949, 16
      %v3075 = vrot.slane %v3073, 4
      %v3076 = vor.u32 %v3075, %v3071
      %v3077 = vrot.slane %v3076, 4
      %v3079 = vshll.u32 %v2950, 16
      %v3081 = vrot.slane %v3079, 5
      %v3082 = vsel %vm896, %v3077, %v3081
      %v3084 = vshrl.u32 %v2951, 16
      %v3086 = vrot.slane %v3084, 4
      %v3087 = vshll.u32 %v2951, 16
      %v3089 = vrot.slane %v3087, 5
      %v3090 = vor.u32 %v3086, %v3089
      %v3091 = vrot.slane %v3090, 4
      %v3093 = vshll.u32 %v2952, 16
      %v3095 = vrot.slane %v3093, 5
      %v3096 = vsel %vm896, %v3091, %v3095
      %v3097 = vshrl.u32 %v2952, 16
      %v3099 = vrot.slane %v3097, 4
      %v3100 = vor.u32 %v3099, %v3095
      %v3101 = vrot.slane %v3100, 4
      %v3103 = vshll.u32 %v2953, 16
      %v3105 = vrot.slane %v3103, 5
      %v3106 = vsel %vm896, %v3101, %v3105
      %v3108 = vshrl.u32 %v2954, 16
      %v3110 = vrot.slane %v3108, 4
      %v3111 = vshll.u32 %v2954, 16
      %v3113 = vrot.slane %v3111, 5
      %v3114 = vor.u32 %v3110, %v3113
      %v3115 = vrot.slane %v3114, 4
      %v3117 = vshll.u32 %v2955, 16
      %v3119 = vrot.slane %v3117, 5
      %v3120 = vsel %vm896, %v3115, %v3119
      %v3121 = vshrl.u32 %v2955, 16
      %v3123 = vrot.slane %v3121, 4
      %v3124 = vor.u32 %v3123, %v3119
      %v3125 = vrot.slane %v3124, 4
      %v3127 = vshll.u32 %v2956, 16
      %v3129 = vrot.slane %v3127, 5
      %v3130 = vsel %vm896, %v3125, %v3129
      %v3132 = vshrl.u32 %v2957, 16
      %v3134 = vrot.slane %v3132, 4
      %v3135 = vshll.u32 %v2957, 16
      %v3137 = vrot.slane %v3135, 5
      %v3138 = vor.u32 %v3134, %v3137
      %v3139 = vrot.slane %v3138, 4
      %v3141 = vshll.u32 %v2958, 16
      %v3143 = vrot.slane %v3141, 5
      %v3144 = vsel %vm896, %v3139, %v3143
      %v3145 = vshrl.u32 %v2958, 16
      %v3147 = vrot.slane %v3145, 4
      %v3148 = vor.u32 %v3147, %v3143
      %v3149 = vrot.slane %v3148, 4
      %v3151 = vshll.u32 %v2959, 16
      %v3153 = vrot.slane %v3151, 5
      %v3154 = vsel %vm896, %v3149, %v3153
      %v3156 = vshrl.u32 %v2960, 16
      %v3158 = vrot.slane %v3156, 4
      %v3159 = vshll.u32 %v2960, 16
      %v3161 = vrot.slane %v3159, 5
      %v3162 = vor.u32 %v3158, %v3161
      %v3163 = vrot.slane %v3162, 4
      %v3165 = vshll.u32 %v2961, 16
      %v3167 = vrot.slane %v3165, 5
      %v3168 = vsel %vm896, %v3163, %v3167
      %v3169 = vshrl.u32 %v2961, 16
      %v3171 = vrot.slane %v3169, 4
      %v3172 = vor.u32 %v3171, %v3167
      %v3173 = vrot.slane %v3172, 4
      %v3175 = vshll.u32 %v2962, 16
      %v3177 = vrot.slane %v3175, 5
      %v3178 = vsel %vm896, %v3173, %v3177
      %v3180 = vshrl.u32 %v2963, 16
      %v3182 = vrot.slane %v3180, 4
      %v3183 = vshll.u32 %v2963, 16
      %v3185 = vrot.slane %v3183, 5
      %v3186 = vor.u32 %v3182, %v3185
      %v3187 = vrot.slane %v3186, 4
      %v3189 = vshll.u32 %v2964, 16
      %v3191 = vrot.slane %v3189, 5
      %v3192 = vsel %vm896, %v3187, %v3191
      %v3193 = vshrl.u32 %v2964, 16
      %v3195 = vrot.slane %v3193, 4
      %v3196 = vor.u32 %v3195, %v3191
      %v3197 = vrot.slane %v3196, 4
      %v3199 = vshll.u32 %v2965, 16
      %v3201 = vrot.slane %v3199, 5
      %v3202 = vsel %vm896, %v3197, %v3201
      %v3204 = vshrl.u32 %v2966, 16
      %v3206 = vrot.slane %v3204, 4
      %v3207 = vshll.u32 %v2966, 16
      %v3209 = vrot.slane %v3207, 5
      %v3210 = vor.u32 %v3206, %v3209
      %v3211 = vrot.slane %v3210, 4
      %v3213 = vshll.u32 %v2967, 16
      %v3215 = vrot.slane %v3213, 5
      %v3216 = vsel %vm896, %v3211, %v3215
      %v3217 = vshrl.u32 %v2967, 16
      %v3219 = vrot.slane %v3217, 4
      %v3220 = vor.u32 %v3219, %v3215
      %v3221 = vrot.slane %v3220, 4
      %v3223 = vshll.u32 %v2968, 16
      %v3225 = vrot.slane %v3223, 5
      %v3226 = vsel %vm896, %v3221, %v3225
      %v3228 = vshrl.u32 %v2969, 16
      %v3230 = vrot.slane %v3228, 4
      %v3231 = vshll.u32 %v2969, 16
      %v3233 = vrot.slane %v3231, 5
      %v3234 = vor.u32 %v3230, %v3233
      %v3235 = vrot.slane %v3234, 4
      %v3237 = vshll.u32 %v2970, 16
      %v3239 = vrot.slane %v3237, 5
      %v3240 = vsel %vm896, %v3235, %v3239
      %v3241 = vshrl.u32 %v2970, 16
      %v3243 = vrot.slane %v3241, 4
      %v3244 = vor.u32 %v3243, %v3239
      %v3245 = vrot.slane %v3244, 4
      %v3247 = vshll.u32 %v2971, 16
      %v3249 = vrot.slane %v3247, 5
      %v3250 = vsel %vm896, %v3245, %v3249
      %v3252 = vshrl.u32 %v2972, 16
      %v3254 = vrot.slane %v3252, 4
      %v3255 = vshll.u32 %v2972, 16
      %v3257 = vrot.slane %v3255, 5
      %v3258 = vor.u32 %v3254, %v3257
      %v3259 = vrot.slane %v3258, 4
      %v3261 = vshll.u32 %v2973, 16
      %v3263 = vrot.slane %v3261, 5
      %v3264 = vsel %vm896, %v3259, %v3263
      %v3265 = vshrl.u32 %v2973, 16
      %v3267 = vrot.slane %v3265, 4
      %v3268 = vor.u32 %v3267, %v3263
      %v3269 = vrot.slane %v3268, 4
      %v3271 = vshll.u32 %v2974, 16
      %v3273 = vrot.slane %v3271, 5
      %v3274 = vsel %vm896, %v3269, %v3273
      %v3276 = vshrl.u32 %v2975, 16
      %v3278 = vrot.slane %v3276, 4
      %v3279 = vshll.u32 %v2975, 16
      %v3281 = vrot.slane %v3279, 5
      %v3282 = vor.u32 %v3278, %v3281
      %v3283 = vrot.slane %v3282, 4
      %v3285 = vshll.u32 %v2976, 16
      %v3287 = vrot.slane %v3285, 5
      %v3288 = vsel %vm896, %v3283, %v3287
      %v3289 = vshrl.u32 %v2976, 16
      %v3291 = vrot.slane %v3289, 4
      %v3292 = vor.u32 %v3291, %v3287
      %v3293 = vrot.slane %v3292, 4
      %v3295 = vshll.u32 %v2977, 16
      %v3297 = vrot.slane %v3295, 5
      %v3298 = vsel %vm896, %v3293, %v3297
      %v3300 = vshrl.u32 %v2978, 16
      %v3302 = vrot.slane %v3300, 4
      %v3303 = vshll.u32 %v2978, 16
      %v3305 = vrot.slane %v3303, 5
      %v3306 = vor.u32 %v3302, %v3305
      %v3307 = vrot.slane %v3306, 4
      %v3309 = vshll.u32 %v2979, 16
      %v3311 = vrot.slane %v3309, 5
      %v3312 = vsel %vm896, %v3307, %v3311
      %v3313 = vshrl.u32 %v2979, 16
      %v3315 = vrot.slane %v3313, 4
      %v3316 = vor.u32 %v3315, %v3311
      %v3317 = vrot.slane %v3316, 4
      %v3319 = vshll.u32 %v2980, 16
      %v3321 = vrot.slane %v3319, 5
      %v3322 = vsel %vm896, %v3317, %v3321
      %v3324 = vshrl.u32 %v2981, 16
      %v3326 = vrot.slane %v3324, 4
      %v3327 = vshll.u32 %v2981, 16
      %v3329 = vrot.slane %v3327, 5
      %v3330 = vor.u32 %v3326, %v3329
      %v3331 = vrot.slane %v3330, 4
      %v3333 = vshll.u32 %v2982, 16
      %v3335 = vrot.slane %v3333, 5
      %v3336 = vsel %vm896, %v3331, %v3335
      %v3337 = vshrl.u32 %v2982, 16
      %v3339 = vrot.slane %v3337, 4
      %v3340 = vor.u32 %v3339, %v3335
      %v3341 = vrot.slane %v3340, 4
      %v3343 = vshll.u32 %v2983, 16
      %v3345 = vrot.slane %v3343, 5
      %v3346 = vsel %vm896, %v3341, %v3345
      %v3348 = vshrl.u32 %v2984, 16
      %v3350 = vrot.slane %v3348, 4
      %v3351 = vshll.u32 %v2984, 16
      %v3353 = vrot.slane %v3351, 5
      %v3354 = vor.u32 %v3350, %v3353
      %v3355 = vrot.slane %v3354, 4
      %v3357 = vshll.u32 %v2985, 16
      %v3359 = vrot.slane %v3357, 5
      %v3360 = vsel %vm896, %v3355, %v3359
      %v3361 = vshrl.u32 %v2985, 16
      %v3363 = vrot.slane %v3361, 4
      %v3364 = vor.u32 %v3363, %v3359
      %v3365 = vrot.slane %v3364, 4
      %v3367 = vshll.u32 %v2986, 16
      %v3369 = vrot.slane %v3367, 5
      %v3370 = vsel %vm896, %v3365, %v3369
      %v3371 = vunpack.c.l.b16 %v3000
      %v3372 = vunpack.c.l.b16 %v3010
      %v3373 = vunpack.c.l.b16 %v3024
      %v3374 = vunpack.c.l.b16 %v3034
      %v3375 = vunpack.c.l.b16 %v3048
      %v3376 = vunpack.c.l.b16 %v3058
      %v3377 = vunpack.c.l.b16 %v3072
      %v3378 = vunpack.c.l.b16 %v3082
      %v3379 = vunpack.c.l.b16 %v3096
      %v3380 = vunpack.c.l.b16 %v3106
      %v3381 = vunpack.c.l.b16 %v3120
      %v3382 = vunpack.c.l.b16 %v3130
      %v3383 = vunpack.c.l.b16 %v3144
      %v3384 = vunpack.c.l.b16 %v3154
      %v3385 = vunpack.c.l.b16 %v3168
      %v3386 = vunpack.c.l.b16 %v3178
      %v3387 = vunpack.c.l.b16 %v3192
      %v3388 = vunpack.c.l.b16 %v3202
      %v3389 = vunpack.c.l.b16 %v3216
      %v3390 = vunpack.c.l.b16 %v3226
      %v3391 = vunpack.c.l.b16 %v3240
      %v3392 = vunpack.c.l.b16 %v3250
      %v3393 = vunpack.c.l.b16 %v3264
      %v3394 = vunpack.c.l.b16 %v3274
      %v3395 = vunpack.c.l.b16 %v3288
      %v3396 = vunpack.c.l.b16 %v3298
      %v3397 = vunpack.c.l.b16 %v3312
      %v3398 = vunpack.c.l.b16 %v3322
      %v3399 = vunpack.c.l.b16 %v3336
      %v3400 = vunpack.c.l.b16 %v3346
      %v3401 = vunpack.c.l.b16 %v3360
      %v3402 = vunpack.c.l.b16 %v3370
      %v3403 = vpack.c.b16 %v3372, %v3371
      %v3404 = vpack.c.b16 %v3374, %v3373
      %v3405 = vpack.c.b16 %v3376, %v3375
      %v3406 = vpack.c.b16 %v3378, %v3377
      %v3407 = vpack.c.b16 %v3380, %v3379
      %v3408 = vpack.c.b16 %v3382, %v3381
      %v3409 = vpack.c.b16 %v3384, %v3383
      %v3410 = vpack.c.b16 %v3386, %v3385
      %v3411 = vpack.c.b16 %v3388, %v3387
      %v3412 = vpack.c.b16 %v3390, %v3389
      %v3413 = vpack.c.b16 %v3392, %v3391
      %v3414 = vpack.c.b16 %v3394, %v3393
      %v3415 = vpack.c.b16 %v3396, %v3395
      %v3416 = vpack.c.b16 %v3398, %v3397
      %v3417 = vpack.c.b16 %v3400, %v3399
      %v3418 = vpack.c.b16 %v3402, %v3401
      %3419 = vrot.lane.b32.xlu0 %v3403, 28
      %v3420 = vpop.permute.xlu0 %3419
      %3421 = vrot.lane.b32.xlu0 %v3404, 28
      %v3422 = vpop.permute.xlu0 %3421
      %3423 = vrot.lane.b32.xlu0 %v3405, 28
      %v3424 = vpop.permute.xlu0 %3423
      %3425 = vrot.lane.b32.xlu0 %v3406, 28
      %v3426 = vpop.permute.xlu0 %3425
      %3427 = vrot.lane.b32.xlu0 %v3407, 28
      %v3428 = vpop.permute.xlu0 %3427
      %3429 = vrot.lane.b32.xlu0 %v3408, 28
      %v3430 = vpop.permute.xlu0 %3429
      %3431 = vrot.lane.b32.xlu0 %v3409, 28
      %v3432 = vpop.permute.xlu0 %3431
      %3433 = vrot.lane.b32.xlu0 %v3410, 28
      %v3434 = vpop.permute.xlu0 %3433
      %3435 = vrot.lane.b32.xlu0 %v3411, 28
      %v3436 = vpop.permute.xlu0 %3435
      %3437 = vrot.lane.b32.xlu0 %v3412, 28
      %v3438 = vpop.permute.xlu0 %3437
      %3439 = vrot.lane.b32.xlu0 %v3413, 28
      %v3440 = vpop.permute.xlu0 %3439
      %3441 = vrot.lane.b32.xlu0 %v3414, 28
      %v3442 = vpop.permute.xlu0 %3441
      %3443 = vrot.lane.b32.xlu0 %v3415, 28
      %v3444 = vpop.permute.xlu0 %3443
      %3445 = vrot.lane.b32.xlu0 %v3416, 28
      %v3446 = vpop.permute.xlu0 %3445
      %3447 = vrot.lane.b32.xlu0 %v3417, 28
      %v3448 = vpop.permute.xlu0 %3447
      %3449 = vrot.lane.b32.xlu0 %v3418, 28
      %v3450 = vpop.permute.xlu0 %3449
      %vm3467 = vcmask 261344
      %3468 = vst.msk [vmem:[#allocation3] sm:$0xff] %vm3467, %v3420
      %3469 = vst.msk [vmem:[#allocation3 + $0x8] sm:$0xff] %vm3467, %v3422
      %3470 = vst.msk [vmem:[#allocation3 + $0x10] sm:$0xff] %vm3467, %v3424
      %3471 = vst.msk [vmem:[#allocation3 + $0x18] sm:$0xff] %vm3467, %v3426
      %3472 = vst.msk [vmem:[#allocation3 + $0x20] sm:$0xff] %vm3467, %v3428
      %3473 = vst.msk [vmem:[#allocation3 + $0x28] sm:$0xff] %vm3467, %v3430
      %3474 = vst.msk [vmem:[#allocation3 + $0x30] sm:$0xff] %vm3467, %v3432
      %3475 = vst.msk [vmem:[#allocation3 + $0x38] sm:$0xff] %vm3467, %v3434
      %3476 = vst.msk [vmem:[#allocation3 + $0x40] sm:$0xff] %vm3467, %v3436
      %3477 = vst.msk [vmem:[#allocation3 + $0x48] sm:$0xff] %vm3467, %v3438
      %3478 = vst.msk [vmem:[#allocation3 + $0x50] sm:$0xff] %vm3467, %v3440
      %3479 = vst.msk [vmem:[#allocation3 + $0x58] sm:$0xff] %vm3467, %v3442
      %3480 = vst.msk [vmem:[#allocation3 + $0x60] sm:$0xff] %vm3467, %v3444
      %3481 = vst.msk [vmem:[#allocation3 + $0x68] sm:$0xff] %vm3467, %v3446
      %3482 = vst.msk [vmem:[#allocation3 + $0x70] sm:$0xff] %vm3467, %v3448
      %3483 = vst.msk [vmem:[#allocation3 + $0x78] sm:$0xff] %vm3467, %v3450
      %v3484 = vld [vmem:[%s2761] sm:$0xe]
      %v3485 = vld [vmem:[%s2761 + $0x4] sm:$0xf]
      %v3486 = vld [vmem:[%s2761 + $0x8] sm:$0x1]
      %v3487 = vld [vmem:[%s2761 + $0xc] sm:$0xe]
      %v3488 = vld [vmem:[%s2761 + $0x10] sm:$0xf]
      %v3489 = vld [vmem:[%s2761 + $0x14] sm:$0x1]
      %v3490 = vld [vmem:[%s2761 + $0x18] sm:$0xe]
      %v3491 = vld [vmem:[%s2761 + $0x1c] sm:$0xf]
      %v3492 = vld [vmem:[%s2761 + $0x20] sm:$0x1]
      %v3493 = vld [vmem:[%s2761 + $0x24] sm:$0xe]
      %v3494 = vld [vmem:[%s2761 + $0x28] sm:$0xf]
      %v3495 = vld [vmem:[%s2761 + $0x2c] sm:$0x1]
      %v3496 = vld [vmem:[%s2761 + $0x30] sm:$0xe]
      %v3497 = vld [vmem:[%s2761 + $0x34] sm:$0xf]
      %v3498 = vld [vmem:[%s2761 + $0x38] sm:$0x1]
      %v3499 = vld [vmem:[%s2761 + $0x3c] sm:$0xe]
      %v3500 = vld [vmem:[%s2761 + $0x40] sm:$0xf]
      %v3501 = vld [vmem:[%s2761 + $0x44] sm:$0x1]
      %v3502 = vld [vmem:[%s2761 + $0x48] sm:$0xe]
      %v3503 = vld [vmem:[%s2761 + $0x4c] sm:$0xf]
      %v3504 = vld [vmem:[%s2761 + $0x50] sm:$0x1]
      %v3505 = vld [vmem:[%s2761 + $0x54] sm:$0xe]
      %v3506 = vld [vmem:[%s2761 + $0x58] sm:$0xf]
      %v3507 = vld [vmem:[%s2761 + $0x5c] sm:$0x1]
      %v3508 = vld [vmem:[%s2761 + $0x60] sm:$0xe]
      %v3509 = vld [vmem:[%s2761 + $0x64] sm:$0xf]
      %v3510 = vld [vmem:[%s2761 + $0x68] sm:$0x1]
      %v3511 = vld [vmem:[%s2761 + $0x6c] sm:$0xe]
      %v3512 = vld [vmem:[%s2761 + $0x70] sm:$0xf]
      %v3513 = vld [vmem:[%s2761 + $0x74] sm:$0x1]
      %v3514 = vld [vmem:[%s2761 + $0x78] sm:$0xe]
      %v3515 = vld [vmem:[%s2761 + $0x7c] sm:$0xf]
      %v3516 = vld [vmem:[%s2761 + $0x80] sm:$0x1]
      %v3517 = vld [vmem:[%s2761 + $0x84] sm:$0xe]
      %v3518 = vld [vmem:[%s2761 + $0x88] sm:$0xf]
      %v3519 = vld [vmem:[%s2761 + $0x8c] sm:$0x1]
      %v3520 = vld [vmem:[%s2761 + $0x90] sm:$0xe]
      %v3521 = vld [vmem:[%s2761 + $0x94] sm:$0xf]
      %v3522 = vld [vmem:[%s2761 + $0x98] sm:$0x1]
      %v3523 = vld [vmem:[%s2761 + $0x9c] sm:$0xe]
      %v3524 = vld [vmem:[%s2761 + $0xa0] sm:$0xf]
      %v3525 = vld [vmem:[%s2761 + $0xa4] sm:$0x1]
      %v3526 = vld [vmem:[%s2761 + $0xa8] sm:$0xe]
      %v3527 = vld [vmem:[%s2761 + $0xac] sm:$0xf]
      %v3528 = vld [vmem:[%s2761 + $0xb0] sm:$0x1]
      %v3529 = vld [vmem:[%s2761 + $0xb4] sm:$0xe]
      %v3530 = vld [vmem:[%s2761 + $0xb8] sm:$0xf]
      %v3531 = vld [vmem:[%s2761 + $0xbc] sm:$0x1]
      %v3580 = vrot.slane %v3484, 5
      %v3581 = vrot.slane %v3580, 4
      %v3582 = vrot.slane %v3485, 5
      %v3583 = vsel %vm1492, %v3581, %v3582
      %v3584 = vrot.slane %v3582, 4
      %v3585 = vrot.slane %v3486, 5
      %v3586 = vsel %vm1492, %v3584, %v3585
      %v3587 = vrot.slane %v3487, 5
      %v3588 = vrot.slane %v3587, 4
      %v3589 = vrot.slane %v3488, 5
      %v3590 = vsel %vm1492, %v3588, %v3589
      %v3591 = vrot.slane %v3589, 4
      %v3592 = vrot.slane %v3489, 5
      %v3593 = vsel %vm1492, %v3591, %v3592
      %v3594 = vrot.slane %v3490, 5
      %v3595 = vrot.slane %v3594, 4
      %v3596 = vrot.slane %v3491, 5
      %v3597 = vsel %vm1492, %v3595, %v3596
      %v3598 = vrot.slane %v3596, 4
      %v3599 = vrot.slane %v3492, 5
      %v3600 = vsel %vm1492, %v3598, %v3599
      %v3601 = vrot.slane %v3493, 5
      %v3602 = vrot.slane %v3601, 4
      %v3603 = vrot.slane %v3494, 5
      %v3604 = vsel %vm1492, %v3602, %v3603
      %v3605 = vrot.slane %v3603, 4
      %v3606 = vrot.slane %v3495, 5
      %v3607 = vsel %vm1492, %v3605, %v3606
      %v3608 = vrot.slane %v3496, 5
      %v3609 = vrot.slane %v3608, 4
      %v3610 = vrot.slane %v3497, 5
      %v3611 = vsel %vm1492, %v3609, %v3610
      %v3612 = vrot.slane %v3610, 4
      %v3613 = vrot.slane %v3498, 5
      %v3614 = vsel %vm1492, %v3612, %v3613
      %v3615 = vrot.slane %v3499, 5
      %v3616 = vrot.slane %v3615, 4
      %v3617 = vrot.slane %v3500, 5
      %v3618 = vsel %vm1492, %v3616, %v3617
      %v3619 = vrot.slane %v3617, 4
      %v3620 = vrot.slane %v3501, 5
      %v3621 = vsel %vm1492, %v3619, %v3620
      %v3622 = vrot.slane %v3502, 5
      %v3623 = vrot.slane %v3622, 4
      %v3624 = vrot.slane %v3503, 5
      %v3625 = vsel %vm1492, %v3623, %v3624
      %v3626 = vrot.slane %v3624, 4
      %v3627 = vrot.slane %v3504, 5
      %v3628 = vsel %vm1492, %v3626, %v3627
      %v3629 = vrot.slane %v3505, 5
      %v3630 = vrot.slane %v3629, 4
      %v3631 = vrot.slane %v3506, 5
      %v3632 = vsel %vm1492, %v3630, %v3631
      %v3633 = vrot.slane %v3631, 4
      %v3634 = vrot.slane %v3507, 5
      %v3635 = vsel %vm1492, %v3633, %v3634
      %v3636 = vrot.slane %v3508, 5
      %v3637 = vrot.slane %v3636, 4
      %v3638 = vrot.slane %v3509, 5
      %v3639 = vsel %vm1492, %v3637, %v3638
      %v3640 = vrot.slane %v3638, 4
      %v3641 = vrot.slane %v3510, 5
      %v3642 = vsel %vm1492, %v3640, %v3641
      %v3643 = vrot.slane %v3511, 5
      %v3644 = vrot.slane %v3643, 4
      %v3645 = vrot.slane %v3512, 5
      %v3646 = vsel %vm1492, %v3644, %v3645
      %v3647 = vrot.slane %v3645, 4
      %v3648 = vrot.slane %v3513, 5
      %v3649 = vsel %vm1492, %v3647, %v3648
      %v3650 = vrot.slane %v3514, 5
      %v3651 = vrot.slane %v3650, 4
      %v3652 = vrot.slane %v3515, 5
      %v3653 = vsel %vm1492, %v3651, %v3652
      %v3654 = vrot.slane %v3652, 4
      %v3655 = vrot.slane %v3516, 5
      %v3656 = vsel %vm1492, %v3654, %v3655
      %v3657 = vrot.slane %v3517, 5
      %v3658 = vrot.slane %v3657, 4
      %v3659 = vrot.slane %v3518, 5
      %v3660 = vsel %vm1492, %v3658, %v3659
      %v3661 = vrot.slane %v3659, 4
      %v3662 = vrot.slane %v3519, 5
      %v3663 = vsel %vm1492, %v3661, %v3662
      %v3664 = vrot.slane %v3520, 5
      %v3665 = vrot.slane %v3664, 4
      %v3666 = vrot.slane %v3521, 5
      %v3667 = vsel %vm1492, %v3665, %v3666
      %v3668 = vrot.slane %v3666, 4
      %v3669 = vrot.slane %v3522, 5
      %v3670 = vsel %vm1492, %v3668, %v3669
      %v3671 = vrot.slane %v3523, 5
      %v3672 = vrot.slane %v3671, 4
      %v3673 = vrot.slane %v3524, 5
      %v3674 = vsel %vm1492, %v3672, %v3673
      %v3675 = vrot.slane %v3673, 4
      %v3676 = vrot.slane %v3525, 5
      %v3677 = vsel %vm1492, %v3675, %v3676
      %v3678 = vrot.slane %v3526, 5
      %v3679 = vrot.slane %v3678, 4
      %v3680 = vrot.slane %v3527, 5
      %v3681 = vsel %vm1492, %v3679, %v3680
      %v3682 = vrot.slane %v3680, 4
      %v3683 = vrot.slane %v3528, 5
      %v3684 = vsel %vm1492, %v3682, %v3683
      %v3685 = vrot.slane %v3529, 5
      %v3686 = vrot.slane %v3685, 4
      %v3687 = vrot.slane %v3530, 5
      %v3688 = vsel %vm1492, %v3686, %v3687
      %v3689 = vrot.slane %v3687, 4
      %v3690 = vrot.slane %v3531, 5
      %v3691 = vsel %vm1492, %v3689, %v3690
      %v3692 = vunpack.c.l.b16 %v3583
      %v3693 = vunpack.c.l.b16 %v3586
      %v3694 = vunpack.c.l.b16 %v3590
      %v3695 = vunpack.c.l.b16 %v3593
      %v3696 = vunpack.c.l.b16 %v3597
      %v3697 = vunpack.c.l.b16 %v3600
      %v3698 = vunpack.c.l.b16 %v3604
      %v3699 = vunpack.c.l.b16 %v3607
      %v3700 = vunpack.c.l.b16 %v3611
      %v3701 = vunpack.c.l.b16 %v3614
      %v3702 = vunpack.c.l.b16 %v3618
      %v3703 = vunpack.c.l.b16 %v3621
      %v3704 = vunpack.c.l.b16 %v3625
      %v3705 = vunpack.c.l.b16 %v3628
      %v3706 = vunpack.c.l.b16 %v3632
      %v3707 = vunpack.c.l.b16 %v3635
      %v3708 = vunpack.c.l.b16 %v3639
      %v3709 = vunpack.c.l.b16 %v3642
      %v3710 = vunpack.c.l.b16 %v3646
      %v3711 = vunpack.c.l.b16 %v3649
      %v3712 = vunpack.c.l.b16 %v3653
      %v3713 = vunpack.c.l.b16 %v3656
      %v3714 = vunpack.c.l.b16 %v3660
      %v3715 = vunpack.c.l.b16 %v3663
      %v3716 = vunpack.c.l.b16 %v3667
      %v3717 = vunpack.c.l.b16 %v3670
      %v3718 = vunpack.c.l.b16 %v3674
      %v3719 = vunpack.c.l.b16 %v3677
      %v3720 = vunpack.c.l.b16 %v3681
      %v3721 = vunpack.c.l.b16 %v3684
      %v3722 = vunpack.c.l.b16 %v3688
      %v3723 = vunpack.c.l.b16 %v3691
      %v3724 = vpack.c.b16 %v3693, %v3692
      %v3725 = vpack.c.b16 %v3695, %v3694
      %v3726 = vpack.c.b16 %v3697, %v3696
      %v3727 = vpack.c.b16 %v3699, %v3698
      %v3728 = vpack.c.b16 %v3701, %v3700
      %v3729 = vpack.c.b16 %v3703, %v3702
      %v3730 = vpack.c.b16 %v3705, %v3704
      %v3731 = vpack.c.b16 %v3707, %v3706
      %v3732 = vpack.c.b16 %v3709, %v3708
      %v3733 = vpack.c.b16 %v3711, %v3710
      %v3734 = vpack.c.b16 %v3713, %v3712
      %v3735 = vpack.c.b16 %v3715, %v3714
      %v3736 = vpack.c.b16 %v3717, %v3716
      %v3737 = vpack.c.b16 %v3719, %v3718
      %v3738 = vpack.c.b16 %v3721, %v3720
      %v3739 = vpack.c.b16 %v3723, %v3722
      %3740 = vrot.lane.b32.xlu0 %v3724, 32
      %v3741 = vpop.permute.xlu0 %3740
      %3742 = vrot.lane.b32.xlu0 %v3725, 32
      %v3743 = vpop.permute.xlu0 %3742
      %3744 = vrot.lane.b32.xlu0 %v3726, 32
      %v3745 = vpop.permute.xlu0 %3744
      %3746 = vrot.lane.b32.xlu0 %v3727, 32
      %v3747 = vpop.permute.xlu0 %3746
      %3748 = vrot.lane.b32.xlu0 %v3728, 32
      %v3749 = vpop.permute.xlu0 %3748
      %3750 = vrot.lane.b32.xlu0 %v3729, 32
      %v3751 = vpop.permute.xlu0 %3750
      %3752 = vrot.lane.b32.xlu0 %v3730, 32
      %v3753 = vpop.permute.xlu0 %3752
      %3754 = vrot.lane.b32.xlu0 %v3731, 32
      %v3755 = vpop.permute.xlu0 %3754
      %3756 = vrot.lane.b32.xlu0 %v3732, 32
      %v3757 = vpop.permute.xlu0 %3756
      %3758 = vrot.lane.b32.xlu0 %v3733, 32
      %v3759 = vpop.permute.xlu0 %3758
      %3760 = vrot.lane.b32.xlu0 %v3734, 32
      %v3761 = vpop.permute.xlu0 %3760
      %3762 = vrot.lane.b32.xlu0 %v3735, 32
      %v3763 = vpop.permute.xlu0 %3762
      %3764 = vrot.lane.b32.xlu0 %v3736, 32
      %v3765 = vpop.permute.xlu0 %3764
      %3766 = vrot.lane.b32.xlu0 %v3737, 32
      %v3767 = vpop.permute.xlu0 %3766
      %3768 = vrot.lane.b32.xlu0 %v3738, 32
      %v3769 = vpop.permute.xlu0 %3768
      %3770 = vrot.lane.b32.xlu0 %v3739, 32
      %v3771 = vpop.permute.xlu0 %3770
      %vm3788 = vcmask 294144
      %3789 = vst.msk [vmem:[#allocation3] sm:$0xff] %vm3788, %v3741
      %3790 = vst.msk [vmem:[#allocation3 + $0x8] sm:$0xff] %vm3788, %v3743
      %3791 = vst.msk [vmem:[#allocation3 + $0x10] sm:$0xff] %vm3788, %v3745
      %3792 = vst.msk [vmem:[#allocation3 + $0x18] sm:$0xff] %vm3788, %v3747
      %3793 = vst.msk [vmem:[#allocation3 + $0x20] sm:$0xff] %vm3788, %v3749
      %3794 = vst.msk [vmem:[#allocation3 + $0x28] sm:$0xff] %vm3788, %v3751
      %3795 = vst.msk [vmem:[#allocation3 + $0x30] sm:$0xff] %vm3788, %v3753
      %3796 = vst.msk [vmem:[#allocation3 + $0x38] sm:$0xff] %vm3788, %v3755
      %3797 = vst.msk [vmem:[#allocation3 + $0x40] sm:$0xff] %vm3788, %v3757
      %3798 = vst.msk [vmem:[#allocation3 + $0x48] sm:$0xff] %vm3788, %v3759
      %3799 = vst.msk [vmem:[#allocation3 + $0x50] sm:$0xff] %vm3788, %v3761
      %3800 = vst.msk [vmem:[#allocation3 + $0x58] sm:$0xff] %vm3788, %v3763
      %3801 = vst.msk [vmem:[#allocation3 + $0x60] sm:$0xff] %vm3788, %v3765
      %3802 = vst.msk [vmem:[#allocation3 + $0x68] sm:$0xff] %vm3788, %v3767
      %3803 = vst.msk [vmem:[#allocation3 + $0x70] sm:$0xff] %vm3788, %v3769
      %3804 = vst.msk [vmem:[#allocation3 + $0x78] sm:$0xff] %vm3788, %v3771
      %v3805 = vld [vmem:[#allocation3] sm:$0xff]
      %v3806 = vld [vmem:[#allocation3 + $0x8] sm:$0xff]
      %v3807 = vld [vmem:[#allocation3 + $0x10] sm:$0xff]
      %v3808 = vld [vmem:[#allocation3 + $0x18] sm:$0xff]
      %v3809 = vld [vmem:[#allocation3 + $0x20] sm:$0xff]
      %v3810 = vld [vmem:[#allocation3 + $0x28] sm:$0xff]
      %v3811 = vld [vmem:[#allocation3 + $0x30] sm:$0xff]
      %v3812 = vld [vmem:[#allocation3 + $0x38] sm:$0xff]
      %v3813 = vld [vmem:[#allocation3 + $0x40] sm:$0xff]
      %v3814 = vld [vmem:[#allocation3 + $0x48] sm:$0xff]
      %v3815 = vld [vmem:[#allocation3 + $0x50] sm:$0xff]
      %v3816 = vld [vmem:[#allocation3 + $0x58] sm:$0xff]
      %v3817 = vld [vmem:[#allocation3 + $0x60] sm:$0xff]
      %v3818 = vld [vmem:[#allocation3 + $0x68] sm:$0xff]
      %v3819 = vld [vmem:[#allocation3 + $0x70] sm:$0xff]
      %v3820 = vld [vmem:[#allocation3 + $0x78] sm:$0xff]
      %v3821 = vld [vmem:[%s1] sm:$0xf]
      %v3822 = vld [vmem:[%s1 + $0x4] sm:$0xf]
      %v3823 = vld [vmem:[%s1 + $0x8] sm:$0xf]
      %v3824 = vld [vmem:[%s1 + $0xc] sm:$0xf]
      %v3825 = vld [vmem:[%s1 + $0x10] sm:$0x3]
      %v3831 = vunpack.c.l.b16 %v3821
      %v3832 = vunpack.c.l.b16 %v3822
      %v3833 = vunpack.c.l.b16 %v3823
      %v3834 = vunpack.c.l.b16 %v3824
      %v3835 = vunpack.c.l.b16 %v3825
      %v3836 = vpack.c.b16 %v3832, %v3831
      %v3837 = vpack.c.b16 %v3834, %v3833
      %v3838 = vpack.c.b16 %v3835, %v3835
      %vm3841 = vcmask 293888
      %v3843 = vsel %vm3841, %v3805, 0
      %v3846 = vsel %vm3841, %v3806, 0
      %v3849 = vsel %vm3841, %v3807, 0
      %v3852 = vsel %vm3841, %v3808, 0
      %v3855 = vsel %vm3841, %v3809, 0
      %v3858 = vsel %vm3841, %v3810, 0
      %v3861 = vsel %vm3841, %v3811, 0
      %v3864 = vsel %vm3841, %v3812, 0
      %v3867 = vsel %vm3841, %v3813, 0
      %v3870 = vsel %vm3841, %v3814, 0
      %v3873 = vsel %vm3841, %v3815, 0
      %v3876 = vsel %vm3841, %v3816, 0
      %v3879 = vsel %vm3841, %v3817, 0
      %v3882 = vsel %vm3841, %v3818, 0
      %v3885 = vsel %vm3841, %v3819, 0
      %v3888 = vsel %vm3841, %v3820, 0
      %vm3890 = vcmask 1041408
      %v3892 = vsel %vm3890, %v3838, 0
      %3894 = vmatprep.subr.bf16.mxu0 0
      %3895 = vmatpush1.bf16.msra.mxu0 %v3836
      %3896 = vmatprep.subr.bf16.mxu0 0
      %3897 = vmatpush1.bf16.msra.mxu0 %v3837
      %3898 = vmatprep.subr.bf16.mxu0 0
      %3899 = vmatpush1.bf16.msra.mxu0 %v3892
      %3900 = vmatprep.subr.bf16.mxu0 0
      %3901 = vmatpush1.bf16.msra.mxu0 0
      %3902 = vmatprep.subr.bf16.mxu0 0
      %3903 = vmatpush1.bf16.msra.mxu0 0
      %3904 = vmatprep.subr.bf16.mxu0 0
      %3905 = vmatpush1.bf16.msra.mxu0 0
      %3906 = vmatprep.subr.bf16.mxu0 0
      %3907 = vmatpush1.bf16.msra.mxu0 0
      %3908 = vmatprep.subr.bf16.mxu0 0
      %3909 = vmatpush1.bf16.msra.mxu0 0
      %3910 = vmatprep.subr.bf16.mxu0 0
      %3911 = vmatpush1.bf16.msra.mxu0 0
      %3912 = vmatprep.subr.bf16.mxu0 0
      %3913 = vmatpush1.bf16.msra.mxu0 0
      %3914 = vmatprep.subr.bf16.mxu0 0
      %3915 = vmatpush1.bf16.msra.mxu0 0
      %3916 = vmatprep.subr.bf16.mxu0 0
      %3917 = vmatpush1.bf16.msra.mxu0 0
      %3918 = vmatprep.subr.bf16.mxu0 0
      %3919 = vmatpush1.bf16.msra.mxu0 0
      %3920 = vmatprep.subr.bf16.mxu0 0
      %3921 = vmatpush1.bf16.msra.mxu0 0
      %3922 = vmatprep.subr.bf16.mxu0 0
      %3923 = vmatpush1.bf16.msra.mxu0 0
      %3924 = vmatprep.subr.bf16.mxu0 0
      %3925 = vmatpush1.bf16.msra.mxu0 0
      %3926 = vmatprep.mubr.bf16.mxu0 0
      %3927 = vmatmul.mubr.bf16.gmra.mrb[0].mxu0 %v3843
      %v3928 = vpop.f32.mrb[0].mxu0
      %v3929 = vadd.f32 0.0, %v3928
      %v3930 = vpop.f32.mrb[0].mxu0
      %v3931 = vpop.f32.mrb[0].mxu0
      %v3932 = vadd.f32 0.0, %v3931
      %v3933 = vpop.f32.mrb[0].mxu0
      %3934 = vmatprep.mubr.bf16.mxu0 0
      %3935 = vmatmul.mubr.bf16.gmra.mrb[0].mxu0 %v3846
      %v3936 = vpop.f32.mrb[0].mxu0
      %v3937 = vadd.f32 0.0, %v3936
      %v3938 = vpop.f32.mrb[0].mxu0
      %v3939 = vpop.f32.mrb[0].mxu0
      %v3940 = vadd.f32 0.0, %v3939
      %v3941 = vpop.f32.mrb[0].mxu0
      %3942 = vmatprep.mubr.bf16.mxu0 0
      %3943 = vmatmul.mubr.bf16.gmra.mrb[0].mxu0 %v3849
      %v3944 = vpop.f32.mrb[0].mxu0
      %v3945 = vadd.f32 0.0, %v3944
      %v3946 = vpop.f32.mrb[0].mxu0
      %v3947 = vpop.f32.mrb[0].mxu0
      %v3948 = vadd.f32 0.0, %v3947
      %v3949 = vpop.f32.mrb[0].mxu0
      %3950 = vmatprep.mubr.bf16.mxu0 0
      %3951 = vmatmul.mubr.bf16.gmra.mrb[0].mxu0 %v3852
      %v3952 = vpop.f32.mrb[0].mxu0
      %v3953 = vadd.f32 0.0, %v3952
      %v3954 = vpop.f32.mrb[0].mxu0
      %v3955 = vpop.f32.mrb[0].mxu0
      %v3956 = vadd.f32 0.0, %v3955
      %v3957 = vpop.f32.mrb[0].mxu0
      %3958 = vmatprep.mubr.bf16.mxu0 0
      %3959 = vmatmul.mubr.bf16.gmra.mrb[0].mxu0 %v3855
      %v3960 = vpop.f32.mrb[0].mxu0
      %v3961 = vadd.f32 0.0, %v3960
      %v3962 = vpop.f32.mrb[0].mxu0
      %v3963 = vpop.f32.mrb[0].mxu0
      %v3964 = vadd.f32 0.0, %v3963
      %v3965 = vpop.f32.mrb[0].mxu0
      %3966 = vmatprep.mubr.bf16.mxu0 0
      %3967 = vmatmul.mubr.bf16.gmra.mrb[0].mxu0 %v3858
      %v3968 = vpop.f32.mrb[0].mxu0
      %v3969 = vadd.f32 0.0, %v3968
      %v3970 = vpop.f32.mrb[0].mxu0
      %v3971 = vpop.f32.mrb[0].mxu0
      %v3972 = vadd.f32 0.0, %v3971
      %v3973 = vpop.f32.mrb[0].mxu0
      %3974 = vmatprep.mubr.bf16.mxu0 0
      %3975 = vmatmul.mubr.bf16.gmra.mrb[0].mxu0 %v3861
      %v3976 = vpop.f32.mrb[0].mxu0
      %v3977 = vadd.f32 0.0, %v3976
      %v3978 = vpop.f32.mrb[0].mxu0
      %v3979 = vpop.f32.mrb[0].mxu0
      %v3980 = vadd.f32 0.0, %v3979
      %v3981 = vpop.f32.mrb[0].mxu0
      %3982 = vmatprep.mubr.bf16.mxu0 0
      %3983 = vmatmul.mubr.bf16.gmra.mrb[0].mxu0 %v3864
      %v3984 = vpop.f32.mrb[0].mxu0
      %v3985 = vadd.f32 0.0, %v3984
      %v3986 = vpop.f32.mrb[0].mxu0
      %v3987 = vpop.f32.mrb[0].mxu0
      %v3988 = vadd.f32 0.0, %v3987
      %v3989 = vpop.f32.mrb[0].mxu0
      %3990 = vmatprep.mubr.bf16.mxu0 0
      %3991 = vmatmul.mubr.bf16.gmra.mrb[0].mxu0 %v3867
      %v3992 = vpop.f32.mrb[0].mxu0
      %v3993 = vadd.f32 0.0, %v3992
      %v3994 = vpop.f32.mrb[0].mxu0
      %v3995 = vpop.f32.mrb[0].mxu0
      %v3996 = vadd.f32 0.0, %v3995
      %v3997 = vpop.f32.mrb[0].mxu0
      %3998 = vmatprep.mubr.bf16.mxu0 0
      %3999 = vmatmul.mubr.bf16.gmra.mrb[0].mxu0 %v3870
      %v4000 = vpop.f32.mrb[0].mxu0
      %v4001 = vadd.f32 0.0, %v4000
      %v4002 = vpop.f32.mrb[0].mxu0
      %v4003 = vpop.f32.mrb[0].mxu0
      %v4004 = vadd.f32 0.0, %v4003
      %v4005 = vpop.f32.mrb[0].mxu0
      %4006 = vmatprep.mubr.bf16.mxu0 0
      %4007 = vmatmul.mubr.bf16.gmra.mrb[0].mxu0 %v3873
      %v4008 = vpop.f32.mrb[0].mxu0
      %v4009 = vadd.f32 0.0, %v4008
      %v4010 = vpop.f32.mrb[0].mxu0
      %v4011 = vpop.f32.mrb[0].mxu0
      %v4012 = vadd.f32 0.0, %v4011
      %v4013 = vpop.f32.mrb[0].mxu0
      %4014 = vmatprep.mubr.bf16.mxu0 0
      %4015 = vmatmul.mubr.bf16.gmra.mrb[0].mxu0 %v3876
      %v4016 = vpop.f32.mrb[0].mxu0
      %v4017 = vadd.f32 0.0, %v4016
      %v4018 = vpop.f32.mrb[0].mxu0
      %v4019 = vpop.f32.mrb[0].mxu0
      %v4020 = vadd.f32 0.0, %v4019
      %v4021 = vpop.f32.mrb[0].mxu0
      %4022 = vmatprep.mubr.bf16.mxu0 0
      %4023 = vmatmul.mubr.bf16.gmra.mrb[0].mxu0 %v3879
      %v4024 = vpop.f32.mrb[0].mxu0
      %v4025 = vadd.f32 0.0, %v4024
      %v4026 = vpop.f32.mrb[0].mxu0
      %v4027 = vpop.f32.mrb[0].mxu0
      %v4028 = vadd.f32 0.0, %v4027
      %v4029 = vpop.f32.mrb[0].mxu0
      %4030 = vmatprep.mubr.bf16.mxu0 0
      %4031 = vmatmul.mubr.bf16.gmra.mrb[0].mxu0 %v3882
      %v4032 = vpop.f32.mrb[0].mxu0
      %v4033 = vadd.f32 0.0, %v4032
      %v4034 = vpop.f32.mrb[0].mxu0
      %v4035 = vpop.f32.mrb[0].mxu0
      %v4036 = vadd.f32 0.0, %v4035
      %v4037 = vpop.f32.mrb[0].mxu0
      %4038 = vmatprep.mubr.bf16.mxu0 0
      %4039 = vmatmul.mubr.bf16.gmra.mrb[0].mxu0 %v3885
      %v4040 = vpop.f32.mrb[0].mxu0
      %v4041 = vadd.f32 0.0, %v4040
      %v4042 = vpop.f32.mrb[0].mxu0
      %v4043 = vpop.f32.mrb[0].mxu0
      %v4044 = vadd.f32 0.0, %v4043
      %v4045 = vpop.f32.mrb[0].mxu0
      %4046 = vmatprep.mubr.bf16.mxu0 0
      %4047 = vmatmul.mubr.bf16.gmra.mrb[0].mxu0 %v3888
      %v4048 = vpop.f32.mrb[0].mxu0
      %v4049 = vadd.f32 0.0, %v4048
      %v4050 = vpop.f32.mrb[0].mxu0
      %v4051 = vpop.f32.mrb[0].mxu0
      %v4052 = vadd.f32 0.0, %v4051
      %v4053 = vpop.f32.mrb[0].mxu0
      %4054 = vdwg.mxu0
      %v4055 = vadd.f32 %v3929, %v3932
      %v4056 = vadd.f32 %v4055, %v3937
      %v4057 = vadd.f32 %v4056, %v3940
      %v4058 = vadd.f32 %v4057, %v3945
      %v4059 = vadd.f32 %v4058, %v3948
      %v4060 = vadd.f32 %v4059, %v3953
      %v4061 = vadd.f32 %v4060, %v3956
      %v4062 = vadd.f32 %v4061, %v3961
      %v4063 = vadd.f32 %v4062, %v3964
      %v4064 = vadd.f32 %v4063, %v3969
      %v4065 = vadd.f32 %v4064, %v3972
      %v4066 = vadd.f32 %v4065, %v3977
      %v4067 = vadd.f32 %v4066, %v3980
      %v4068 = vadd.f32 %v4067, %v3985
      %v4069 = vadd.f32 %v4068, %v3988
      %v4070 = vadd.f32 %v4069, %v3993
      %v4071 = vadd.f32 %v4070, %v3996
      %v4072 = vadd.f32 %v4071, %v4001
      %v4073 = vadd.f32 %v4072, %v4004
      %v4074 = vadd.f32 %v4073, %v4009
      %v4075 = vadd.f32 %v4074, %v4012
      %v4076 = vadd.f32 %v4075, %v4017
      %v4077 = vadd.f32 %v4076, %v4020
      %v4078 = vadd.f32 %v4077, %v4025
      %v4079 = vadd.f32 %v4078, %v4028
      %v4080 = vadd.f32 %v4079, %v4033
      %v4081 = vadd.f32 %v4080, %v4036
      %v4082 = vadd.f32 %v4081, %v4041
      %v4083 = vadd.f32 %v4082, %v4044
      %v4084 = vadd.f32 %v4083, %v4049
      %v4085 = vadd.f32 %v4084, %v4052
      %v4086 = vrot.slane %v4085, 4
      %v4087 = vadd.f32 %v4085, %v4086
      %v4088 = vrot.slane %v4087, 2
      %v4089 = vadd.f32 %v4087, %v4088
      %v4090 = vrot.slane %v4089, 1
      %v4091 = vadd.f32 %v4089, %v4090
      %v4092 = vrcp.pop 256.0
      %v4093 = vmul.f32 %v4091, %v4092
      %v4094 = vmul.f32 %v3929, %v3929
      %v4095 = vmul.f32 %v3932, %v3932
      %v4096 = vmul.f32 %v3937, %v3937
      %v4097 = vmul.f32 %v3940, %v3940
      %v4098 = vmul.f32 %v3945, %v3945
      %v4099 = vmul.f32 %v3948, %v3948
      %v4100 = vmul.f32 %v3953, %v3953
      %v4101 = vmul.f32 %v3956, %v3956
      %v4102 = vmul.f32 %v3961, %v3961
      %v4103 = vmul.f32 %v3964, %v3964
      %v4104 = vmul.f32 %v3969, %v3969
      %v4105 = vmul.f32 %v3972, %v3972
      %v4106 = vmul.f32 %v3977, %v3977
      %v4107 = vmul.f32 %v3980, %v3980
      %v4108 = vmul.f32 %v3985, %v3985
      %v4109 = vmul.f32 %v3988, %v3988
      %v4110 = vmul.f32 %v3993, %v3993
      %v4111 = vmul.f32 %v3996, %v3996
      %v4112 = vmul.f32 %v4001, %v4001
      %v4113 = vmul.f32 %v4004, %v4004
      %v4114 = vmul.f32 %v4009, %v4009
      %v4115 = vmul.f32 %v4012, %v4012
      %v4116 = vmul.f32 %v4017, %v4017
      %v4117 = vmul.f32 %v4020, %v4020
      %v4118 = vmul.f32 %v4025, %v4025
      %v4119 = vmul.f32 %v4028, %v4028
      %v4120 = vmul.f32 %v4033, %v4033
      %v4121 = vmul.f32 %v4036, %v4036
      %v4122 = vmul.f32 %v4041, %v4041
      %v4123 = vmul.f32 %v4044, %v4044
      %v4124 = vmul.f32 %v4049, %v4049
      %v4125 = vmul.f32 %v4052, %v4052
      %v4126 = vadd.f32 %v4094, %v4095
      %v4127 = vadd.f32 %v4126, %v4096
      %v4128 = vadd.f32 %v4127, %v4097
      %v4129 = vadd.f32 %v4128, %v4098
      %v4130 = vadd.f32 %v4129, %v4099
      %v4131 = vadd.f32 %v4130, %v4100
      %v4132 = vadd.f32 %v4131, %v4101
      %v4133 = vadd.f32 %v4132, %v4102
      %v4134 = vadd.f32 %v4133, %v4103
      %v4135 = vadd.f32 %v4134, %v4104
      %v4136 = vadd.f32 %v4135, %v4105
      %v4137 = vadd.f32 %v4136, %v4106
      %v4138 = vadd.f32 %v4137, %v4107
      %v4139 = vadd.f32 %v4138, %v4108
      %v4140 = vadd.f32 %v4139, %v4109
      %v4141 = vadd.f32 %v4140, %v4110
      %v4142 = vadd.f32 %v4141, %v4111
      %v4143 = vadd.f32 %v4142, %v4112
      %v4144 = vadd.f32 %v4143, %v4113
      %v4145 = vadd.f32 %v4144, %v4114
      %v4146 = vadd.f32 %v4145, %v4115
      %v4147 = vadd.f32 %v4146, %v4116
      %v4148 = vadd.f32 %v4147, %v4117
      %v4149 = vadd.f32 %v4148, %v4118
      %v4150 = vadd.f32 %v4149, %v4119
      %v4151 = vadd.f32 %v4150, %v4120
      %v4152 = vadd.f32 %v4151, %v4121
      %v4153 = vadd.f32 %v4152, %v4122
      %v4154 = vadd.f32 %v4153, %v4123
      %v4155 = vadd.f32 %v4154, %v4124
      %v4156 = vadd.f32 %v4155, %v4125
      %v4157 = vrot.slane %v4156, 4
      %v4158 = vadd.f32 %v4156, %v4157
      %v4159 = vrot.slane %v4158, 2
      %v4160 = vadd.f32 %v4158, %v4159
      %v4161 = vrot.slane %v4160, 1
      %v4162 = vadd.f32 %v4160, %v4161
      %v4163 = vmul.f32 %v4162, %v4092
      %v4164 = vmul.f32 %v4093, %v4093
      %v4165 = vsub.f32 %v4163, %v4164
      %v4166 = vmax.f32 %v4165, 0.0
      %v4167 = vsub.f32 %v3929, %v4093
      %v4168 = vsub.f32 %v3932, %v4093
      %v4169 = vsub.f32 %v3937, %v4093
      %v4170 = vsub.f32 %v3940, %v4093
      %v4171 = vsub.f32 %v3945, %v4093
      %v4172 = vsub.f32 %v3948, %v4093
      %v4173 = vsub.f32 %v3953, %v4093
      %v4174 = vsub.f32 %v3956, %v4093
      %v4175 = vsub.f32 %v3961, %v4093
      %v4176 = vsub.f32 %v3964, %v4093
      %v4177 = vsub.f32 %v3969, %v4093
      %v4178 = vsub.f32 %v3972, %v4093
      %v4179 = vsub.f32 %v3977, %v4093
      %v4180 = vsub.f32 %v3980, %v4093
      %v4181 = vsub.f32 %v3985, %v4093
      %v4182 = vsub.f32 %v3988, %v4093
      %v4183 = vsub.f32 %v3993, %v4093
      %v4184 = vsub.f32 %v3996, %v4093
      %v4185 = vsub.f32 %v4001, %v4093
      %v4186 = vsub.f32 %v4004, %v4093
      %v4187 = vsub.f32 %v4009, %v4093
      %v4188 = vsub.f32 %v4012, %v4093
      %v4189 = vsub.f32 %v4017, %v4093
      %v4190 = vsub.f32 %v4020, %v4093
      %v4191 = vsub.f32 %v4025, %v4093
      %v4192 = vsub.f32 %v4028, %v4093
      %v4193 = vsub.f32 %v4033, %v4093
      %v4194 = vsub.f32 %v4036, %v4093
      %v4195 = vsub.f32 %v4041, %v4093
      %v4196 = vsub.f32 %v4044, %v4093
      %v4197 = vsub.f32 %v4049, %v4093
      %v4198 = vsub.f32 %v4052, %v4093
      %v4199 = vadd.f32 %v4166, 1e-05
      %v4200 = vrsqrt.pop %v4199
      %v4201 = vmul.f32 %v4167, %v4200
      %v4202 = vmul.f32 %v4168, %v4200
      %v4203 = vmul.f32 %v4169, %v4200
      %v4204 = vmul.f32 %v4170, %v4200
      %v4205 = vmul.f32 %v4171, %v4200
      %v4206 = vmul.f32 %v4172, %v4200
      %v4207 = vmul.f32 %v4173, %v4200
      %v4208 = vmul.f32 %v4174, %v4200
      %v4209 = vmul.f32 %v4175, %v4200
      %v4210 = vmul.f32 %v4176, %v4200
      %v4211 = vmul.f32 %v4177, %v4200
      %v4212 = vmul.f32 %v4178, %v4200
      %v4213 = vmul.f32 %v4179, %v4200
      %v4214 = vmul.f32 %v4180, %v4200
      %v4215 = vmul.f32 %v4181, %v4200
      %v4216 = vmul.f32 %v4182, %v4200
      %v4217 = vmul.f32 %v4183, %v4200
      %v4218 = vmul.f32 %v4184, %v4200
      %v4219 = vmul.f32 %v4185, %v4200
      %v4220 = vmul.f32 %v4186, %v4200
      %v4221 = vmul.f32 %v4187, %v4200
      %v4222 = vmul.f32 %v4188, %v4200
      %v4223 = vmul.f32 %v4189, %v4200
      %v4224 = vmul.f32 %v4190, %v4200
      %v4225 = vmul.f32 %v4191, %v4200
      %v4226 = vmul.f32 %v4192, %v4200
      %v4227 = vmul.f32 %v4193, %v4200
      %v4228 = vmul.f32 %v4194, %v4200
      %v4229 = vmul.f32 %v4195, %v4200
      %v4230 = vmul.f32 %v4196, %v4200
      %v4231 = vmul.f32 %v4197, %v4200
      %v4232 = vmul.f32 %v4198, %v4200
      %vm4233 = vcmp.ge.f32.partialorder %v4201, 0.0
      %vm4234 = vcmp.ge.f32.partialorder %v4202, 0.0
      %vm4235 = vcmp.ge.f32.partialorder %v4203, 0.0
      %vm4236 = vcmp.ge.f32.partialorder %v4204, 0.0
      %vm4237 = vcmp.ge.f32.partialorder %v4205, 0.0
      %vm4238 = vcmp.ge.f32.partialorder %v4206, 0.0
      %vm4239 = vcmp.ge.f32.partialorder %v4207, 0.0
      %vm4240 = vcmp.ge.f32.partialorder %v4208, 0.0
      %vm4241 = vcmp.ge.f32.partialorder %v4209, 0.0
      %vm4242 = vcmp.ge.f32.partialorder %v4210, 0.0
      %vm4243 = vcmp.ge.f32.partialorder %v4211, 0.0
      %vm4244 = vcmp.ge.f32.partialorder %v4212, 0.0
      %vm4245 = vcmp.ge.f32.partialorder %v4213, 0.0
      %vm4246 = vcmp.ge.f32.partialorder %v4214, 0.0
      %vm4247 = vcmp.ge.f32.partialorder %v4215, 0.0
      %vm4248 = vcmp.ge.f32.partialorder %v4216, 0.0
      %vm4249 = vcmp.ge.f32.partialorder %v4217, 0.0
      %vm4250 = vcmp.ge.f32.partialorder %v4218, 0.0
      %vm4251 = vcmp.ge.f32.partialorder %v4219, 0.0
      %vm4252 = vcmp.ge.f32.partialorder %v4220, 0.0
      %vm4253 = vcmp.ge.f32.partialorder %v4221, 0.0
      %vm4254 = vcmp.ge.f32.partialorder %v4222, 0.0
      %vm4255 = vcmp.ge.f32.partialorder %v4223, 0.0
      %vm4256 = vcmp.ge.f32.partialorder %v4224, 0.0
      %vm4257 = vcmp.ge.f32.partialorder %v4225, 0.0
      %vm4258 = vcmp.ge.f32.partialorder %v4226, 0.0
      %vm4259 = vcmp.ge.f32.partialorder %v4227, 0.0
      %vm4260 = vcmp.ge.f32.partialorder %v4228, 0.0
      %vm4261 = vcmp.ge.f32.partialorder %v4229, 0.0
      %vm4262 = vcmp.ge.f32.partialorder %v4230, 0.0
      %vm4263 = vcmp.ge.f32.partialorder %v4231, 0.0
      %vm4264 = vcmp.ge.f32.partialorder %v4232, 0.0
      %v4265 = vmul.f32 %v4201, 0.2
      %v4266 = vmul.f32 %v4202, 0.2
      %v4267 = vmul.f32 %v4203, 0.2
      %v4268 = vmul.f32 %v4204, 0.2
      %v4269 = vmul.f32 %v4205, 0.2
      %v4270 = vmul.f32 %v4206, 0.2
      %v4271 = vmul.f32 %v4207, 0.2
      %v4272 = vmul.f32 %v4208, 0.2
      %v4273 = vmul.f32 %v4209, 0.2
      %v4274 = vmul.f32 %v4210, 0.2
      %v4275 = vmul.f32 %v4211, 0.2
      %v4276 = vmul.f32 %v4212, 0.2
      %v4277 = vmul.f32 %v4213, 0.2
      %v4278 = vmul.f32 %v4214, 0.2
      %v4279 = vmul.f32 %v4215, 0.2
      %v4280 = vmul.f32 %v4216, 0.2
      %v4281 = vmul.f32 %v4217, 0.2
      %v4282 = vmul.f32 %v4218, 0.2
      %v4283 = vmul.f32 %v4219, 0.2
      %v4284 = vmul.f32 %v4220, 0.2
      %v4285 = vmul.f32 %v4221, 0.2
      %v4286 = vmul.f32 %v4222, 0.2
      %v4287 = vmul.f32 %v4223, 0.2
      %v4288 = vmul.f32 %v4224, 0.2
      %v4289 = vmul.f32 %v4225, 0.2
      %v4290 = vmul.f32 %v4226, 0.2
      %v4291 = vmul.f32 %v4227, 0.2
      %v4292 = vmul.f32 %v4228, 0.2
      %v4293 = vmul.f32 %v4229, 0.2
      %v4294 = vmul.f32 %v4230, 0.2
      %v4295 = vmul.f32 %v4231, 0.2
      %v4296 = vmul.f32 %v4232, 0.2
      %v4297 = vsel %vm4233, %v4201, %v4265
      %v4298 = vsel %vm4234, %v4202, %v4266
      %v4299 = vsel %vm4235, %v4203, %v4267
      %v4300 = vsel %vm4236, %v4204, %v4268
      %v4301 = vsel %vm4237, %v4205, %v4269
      %v4302 = vsel %vm4238, %v4206, %v4270
      %v4303 = vsel %vm4239, %v4207, %v4271
      %v4304 = vsel %vm4240, %v4208, %v4272
      %v4305 = vsel %vm4241, %v4209, %v4273
      %v4306 = vsel %vm4242, %v4210, %v4274
      %v4307 = vsel %vm4243, %v4211, %v4275
      %v4308 = vsel %vm4244, %v4212, %v4276
      %v4309 = vsel %vm4245, %v4213, %v4277
      %v4310 = vsel %vm4246, %v4214, %v4278
      %v4311 = vsel %vm4247, %v4215, %v4279
      %v4312 = vsel %vm4248, %v4216, %v4280
      %v4313 = vsel %vm4249, %v4217, %v4281
      %v4314 = vsel %vm4250, %v4218, %v4282
      %v4315 = vsel %vm4251, %v4219, %v4283
      %v4316 = vsel %vm4252, %v4220, %v4284
      %v4317 = vsel %vm4253, %v4221, %v4285
      %v4318 = vsel %vm4254, %v4222, %v4286
      %v4319 = vsel %vm4255, %v4223, %v4287
      %v4320 = vsel %vm4256, %v4224, %v4288
      %v4321 = vsel %vm4257, %v4225, %v4289
      %v4322 = vsel %vm4258, %v4226, %v4290
      %v4323 = vsel %vm4259, %v4227, %v4291
      %v4324 = vsel %vm4260, %v4228, %v4292
      %v4325 = vsel %vm4261, %v4229, %v4293
      %v4326 = vsel %vm4262, %v4230, %v4294
      %v4327 = vsel %vm4263, %v4231, %v4295
      %v4328 = vsel %vm4264, %v4232, %v4296
      %4329 = vst [vmem:[#allocation4] sm:$0xf] 0
      %4330 = vst [vmem:[#allocation4 + $0x4] sm:$0xf] 0
      %4331 = vst [vmem:[#allocation4 + $0x8] sm:$0x1] 0
      %4332 = vst [vmem:[#allocation4 + $0xc] sm:$0xf] 0
      %4333 = vst [vmem:[#allocation4 + $0x10] sm:$0xf] 0
      %4334 = vst [vmem:[#allocation4 + $0x14] sm:$0x1] 0
      %4335 = vst [vmem:[#allocation4 + $0x18] sm:$0xf] 0
      %4336 = vst [vmem:[#allocation4 + $0x1c] sm:$0xf] 0
      %4337 = vst [vmem:[#allocation4 + $0x20] sm:$0x1] 0
      %4338 = vst [vmem:[#allocation4 + $0x24] sm:$0xf] 0
      %4339 = vst [vmem:[#allocation4 + $0x28] sm:$0xf] 0
      %4340 = vst [vmem:[#allocation4 + $0x2c] sm:$0x1] 0
      %4341 = vst [vmem:[#allocation4 + $0x30] sm:$0xf] 0
      %4342 = vst [vmem:[#allocation4 + $0x34] sm:$0xf] 0
      %4343 = vst [vmem:[#allocation4 + $0x38] sm:$0x1] 0
      %4344 = vst [vmem:[#allocation4 + $0x3c] sm:$0xf] 0
      %4345 = vst [vmem:[#allocation4 + $0x40] sm:$0xf] 0
      %4346 = vst [vmem:[#allocation4 + $0x44] sm:$0x1] 0
      %4347 = vst [vmem:[#allocation4 + $0x48] sm:$0xf] 0
      %4348 = vst [vmem:[#allocation4 + $0x4c] sm:$0xf] 0
      %4349 = vst [vmem:[#allocation4 + $0x50] sm:$0x1] 0
      %4350 = vst [vmem:[#allocation4 + $0x54] sm:$0xf] 0
      %4351 = vst [vmem:[#allocation4 + $0x58] sm:$0xf] 0
      %4352 = vst [vmem:[#allocation4 + $0x5c] sm:$0x1] 0
      %4353 = vst [vmem:[#allocation4 + $0x60] sm:$0xf] 0
      %4354 = vst [vmem:[#allocation4 + $0x64] sm:$0xf] 0
      %4355 = vst [vmem:[#allocation4 + $0x68] sm:$0x1] 0
      %4356 = vst [vmem:[#allocation4 + $0x6c] sm:$0xf] 0
      %4357 = vst [vmem:[#allocation4 + $0x70] sm:$0xf] 0
      %4358 = vst [vmem:[#allocation4 + $0x74] sm:$0x1] 0
      %4359 = vst [vmem:[#allocation4 + $0x78] sm:$0xf] 0
      %4360 = vst [vmem:[#allocation4 + $0x7c] sm:$0xf] 0
      %4361 = vst [vmem:[#allocation4 + $0x80] sm:$0x1] 0
      %4362 = vst [vmem:[#allocation4 + $0x84] sm:$0xf] 0
      %4363 = vst [vmem:[#allocation4 + $0x88] sm:$0xf] 0
      %4364 = vst [vmem:[#allocation4 + $0x8c] sm:$0x1] 0
      %4365 = vst [vmem:[#allocation4 + $0x90] sm:$0xf] 0
      %4366 = vst [vmem:[#allocation4 + $0x94] sm:$0xf] 0
      %4367 = vst [vmem:[#allocation4 + $0x98] sm:$0x1] 0
      %4368 = vst [vmem:[#allocation4 + $0x9c] sm:$0xf] 0
      %4369 = vst [vmem:[#allocation4 + $0xa0] sm:$0xf] 0
      %4370 = vst [vmem:[#allocation4 + $0xa4] sm:$0x1] 0
      %4371 = vst [vmem:[#allocation4 + $0xa8] sm:$0xf] 0
      %4372 = vst [vmem:[#allocation4 + $0xac] sm:$0xf] 0
      %4373 = vst [vmem:[#allocation4 + $0xb0] sm:$0x1] 0
      %4374 = vst [vmem:[#allocation4 + $0xb4] sm:$0xf] 0
      %4375 = vst [vmem:[#allocation4 + $0xb8] sm:$0xf] 0
      %4376 = vst [vmem:[#allocation4 + $0xbc] sm:$0x1] 0
      %4377 = vst [vmem:[#allocation4 + $0xc0] sm:$0xf] 0
      %4378 = vst [vmem:[#allocation4 + $0xc4] sm:$0xf] 0
      %4379 = vst [vmem:[#allocation4 + $0xc8] sm:$0x1] 0
      %4380 = vst [vmem:[#allocation4 + $0xcc] sm:$0xf] 0
      %4381 = vst [vmem:[#allocation4 + $0xd0] sm:$0xf] 0
      %4382 = vst [vmem:[#allocation4 + $0xd4] sm:$0x1] 0
      %v4383 = vpack.c.bf16 %v4298, %v4297
      %v4384 = vpack.c.bf16 %v4300, %v4299
      %v4385 = vpack.c.bf16 %v4302, %v4301
      %v4386 = vpack.c.bf16 %v4304, %v4303
      %v4387 = vpack.c.bf16 %v4306, %v4305
      %v4388 = vpack.c.bf16 %v4308, %v4307
      %v4389 = vpack.c.bf16 %v4310, %v4309
      %v4390 = vpack.c.bf16 %v4312, %v4311
      %v4391 = vpack.c.bf16 %v4314, %v4313
      %v4392 = vpack.c.bf16 %v4316, %v4315
      %v4393 = vpack.c.bf16 %v4318, %v4317
      %v4394 = vpack.c.bf16 %v4320, %v4319
      %v4395 = vpack.c.bf16 %v4322, %v4321
      %v4396 = vpack.c.bf16 %v4324, %v4323
      %v4397 = vpack.c.bf16 %v4326, %v4325
      %v4398 = vpack.c.bf16 %v4328, %v4327
      %v4415 = vunpack.c.l.b16 %v4383
      %v4416 = vunpack.c.h.b16 %v4383
      %v4417 = vunpack.c.l.b16 %v4384
      %v4418 = vunpack.c.h.b16 %v4384
      %v4419 = vunpack.c.l.b16 %v4385
      %v4420 = vunpack.c.h.b16 %v4385
      %v4421 = vunpack.c.l.b16 %v4386
      %v4422 = vunpack.c.h.b16 %v4386
      %v4423 = vunpack.c.l.b16 %v4387
      %v4424 = vunpack.c.h.b16 %v4387
      %v4425 = vunpack.c.l.b16 %v4388
      %v4426 = vunpack.c.h.b16 %v4388
      %v4427 = vunpack.c.l.b16 %v4389
      %v4428 = vunpack.c.h.b16 %v4389
      %v4429 = vunpack.c.l.b16 %v4390
      %v4430 = vunpack.c.h.b16 %v4390
      %v4431 = vunpack.c.l.b16 %v4391
      %v4432 = vunpack.c.h.b16 %v4391
      %v4433 = vunpack.c.l.b16 %v4392
      %v4434 = vunpack.c.h.b16 %v4392
      %v4435 = vunpack.c.l.b16 %v4393
      %v4436 = vunpack.c.h.b16 %v4393
      %v4437 = vunpack.c.l.b16 %v4394
      %v4438 = vunpack.c.h.b16 %v4394
      %v4439 = vunpack.c.l.b16 %v4395
      %v4440 = vunpack.c.h.b16 %v4395
      %v4441 = vunpack.c.l.b16 %v4396
      %v4442 = vunpack.c.h.b16 %v4396
      %v4443 = vunpack.c.l.b16 %v4397
      %v4444 = vunpack.c.h.b16 %v4397
      %v4445 = vunpack.c.l.b16 %v4398
      %v4446 = vunpack.c.h.b16 %v4398
      %v4447 = vpack.c.b16 %v4415, %v4415
      %v4448 = vpack.c.b16 %v4416, %v4416
      %v4449 = vpack.c.b16 %v4417, %v4417
      %v4450 = vpack.c.b16 %v4418, %v4418
      %v4451 = vpack.c.b16 %v4419, %v4419
      %v4452 = vpack.c.b16 %v4420, %v4420
      %v4453 = vpack.c.b16 %v4421, %v4421
      %v4454 = vpack.c.b16 %v4422, %v4422
      %v4455 = vpack.c.b16 %v4423, %v4423
      %v4456 = vpack.c.b16 %v4424, %v4424
      %v4457 = vpack.c.b16 %v4425, %v4425
      %v4458 = vpack.c.b16 %v4426, %v4426
      %v4459 = vpack.c.b16 %v4427, %v4427
      %v4460 = vpack.c.b16 %v4428, %v4428
      %v4461 = vpack.c.b16 %v4429, %v4429
      %v4462 = vpack.c.b16 %v4430, %v4430
      %v4463 = vpack.c.b16 %v4431, %v4431
      %v4464 = vpack.c.b16 %v4432, %v4432
      %v4465 = vpack.c.b16 %v4433, %v4433
      %v4466 = vpack.c.b16 %v4434, %v4434
      %v4467 = vpack.c.b16 %v4435, %v4435
      %v4468 = vpack.c.b16 %v4436, %v4436
      %v4469 = vpack.c.b16 %v4437, %v4437
      %v4470 = vpack.c.b16 %v4438, %v4438
      %v4471 = vpack.c.b16 %v4439, %v4439
      %v4472 = vpack.c.b16 %v4440, %v4440
      %v4473 = vpack.c.b16 %v4441, %v4441
      %v4474 = vpack.c.b16 %v4442, %v4442
      %v4475 = vpack.c.b16 %v4443, %v4443
      %v4476 = vpack.c.b16 %v4444, %v4444
      %v4477 = vpack.c.b16 %v4445, %v4445
      %v4478 = vpack.c.b16 %v4446, %v4446
      %v4480 = vshrl.u32 %v4447, 16
      %v4482 = vrot.slane %v4480, 7
      %v4483 = vshll.u32 %v4447, 16
      %v4485 = vor.u32 %v4482, %v4483
      %v4486 = vrot.slane %v4482, 4
      %v4488 = vshrl.u32 %v4448, 16
      %v4490 = vrot.slane %v4488, 7
      %v4491 = vshll.u32 %v4448, 16
      %v4493 = vor.u32 %v4490, %v4491
      %v4494 = vsel %vm262, %v4486, %v4493
      %v4495 = vrot.slane %v4490, 4
      %v4497 = vshrl.u32 %v4449, 16
      %v4499 = vrot.slane %v4497, 7
      %v4500 = vshll.u32 %v4449, 16
      %v4502 = vor.u32 %v4499, %v4500
      %v4503 = vrot.slane %v4499, 4
      %v4505 = vshrl.u32 %v4450, 16
      %v4507 = vrot.slane %v4505, 7
      %v4508 = vshll.u32 %v4450, 16
      %v4510 = vor.u32 %v4507, %v4508
      %v4511 = vsel %vm262, %v4503, %v4510
      %v4512 = vrot.slane %v4507, 4
      %v4514 = vshrl.u32 %v4451, 16
      %v4516 = vrot.slane %v4514, 7
      %v4517 = vshll.u32 %v4451, 16
      %v4519 = vor.u32 %v4516, %v4517
      %v4520 = vrot.slane %v4516, 4
      %v4522 = vshrl.u32 %v4452, 16
      %v4524 = vrot.slane %v4522, 7
      %v4525 = vshll.u32 %v4452, 16
      %v4527 = vor.u32 %v4524, %v4525
      %v4528 = vsel %vm262, %v4520, %v4527
      %v4529 = vrot.slane %v4524, 4
      %v4531 = vshrl.u32 %v4453, 16
      %v4533 = vrot.slane %v4531, 7
      %v4534 = vshll.u32 %v4453, 16
      %v4536 = vor.u32 %v4533, %v4534
      %v4537 = vrot.slane %v4533, 4
      %v4539 = vshrl.u32 %v4454, 16
      %v4541 = vrot.slane %v4539, 7
      %v4542 = vshll.u32 %v4454, 16
      %v4544 = vor.u32 %v4541, %v4542
      %v4545 = vsel %vm262, %v4537, %v4544
      %v4546 = vrot.slane %v4541, 4
      %v4548 = vshrl.u32 %v4455, 16
      %v4550 = vrot.slane %v4548, 7
      %v4551 = vshll.u32 %v4455, 16
      %v4553 = vor.u32 %v4550, %v4551
      %v4554 = vrot.slane %v4550, 4
      %v4556 = vshrl.u32 %v4456, 16
      %v4558 = vrot.slane %v4556, 7
      %v4559 = vshll.u32 %v4456, 16
      %v4561 = vor.u32 %v4558, %v4559
      %v4562 = vsel %vm262, %v4554, %v4561
      %v4563 = vrot.slane %v4558, 4
      %v4565 = vshrl.u32 %v4457, 16
      %v4567 = vrot.slane %v4565, 7
      %v4568 = vshll.u32 %v4457, 16
      %v4570 = vor.u32 %v4567, %v4568
      %v4571 = vrot.slane %v4567, 4
      %v4573 = vshrl.u32 %v4458, 16
      %v4575 = vrot.slane %v4573, 7
      %v4576 = vshll.u32 %v4458, 16
      %v4578 = vor.u32 %v4575, %v4576
      %v4579 = vsel %vm262, %v4571, %v4578
      %v4580 = vrot.slane %v4575, 4
      %v4582 = vshrl.u32 %v4459, 16
      %v4584 = vrot.slane %v4582, 7
      %v4585 = vshll.u32 %v4459, 16
      %v4587 = vor.u32 %v4584, %v4585
      %v4588 = vrot.slane %v4584, 4
      %v4590 = vshrl.u32 %v4460, 16
      %v4592 = vrot.slane %v4590, 7
      %v4593 = vshll.u32 %v4460, 16
      %v4595 = vor.u32 %v4592, %v4593
      %v4596 = vsel %vm262, %v4588, %v4595
      %v4597 = vrot.slane %v4592, 4
      %v4599 = vshrl.u32 %v4461, 16
      %v4601 = vrot.slane %v4599, 7
      %v4602 = vshll.u32 %v4461, 16
      %v4604 = vor.u32 %v4601, %v4602
      %v4605 = vrot.slane %v4601, 4
      %v4607 = vshrl.u32 %v4462, 16
      %v4609 = vrot.slane %v4607, 7
      %v4610 = vshll.u32 %v4462, 16
      %v4612 = vor.u32 %v4609, %v4610
      %v4613 = vsel %vm262, %v4605, %v4612
      %v4614 = vrot.slane %v4609, 4
      %v4616 = vshrl.u32 %v4463, 16
      %v4618 = vrot.slane %v4616, 7
      %v4619 = vshll.u32 %v4463, 16
      %v4621 = vor.u32 %v4618, %v4619
      %v4622 = vrot.slane %v4618, 4
      %v4624 = vshrl.u32 %v4464, 16
      %v4626 = vrot.slane %v4624, 7
      %v4627 = vshll.u32 %v4464, 16
      %v4629 = vor.u32 %v4626, %v4627
      %v4630 = vsel %vm262, %v4622, %v4629
      %v4631 = vrot.slane %v4626, 4
      %v4633 = vshrl.u32 %v4465, 16
      %v4635 = vrot.slane %v4633, 7
      %v4636 = vshll.u32 %v4465, 16
      %v4638 = vor.u32 %v4635, %v4636
      %v4639 = vrot.slane %v4635, 4
      %v4641 = vshrl.u32 %v4466, 16
      %v4643 = vrot.slane %v4641, 7
      %v4644 = vshll.u32 %v4466, 16
      %v4646 = vor.u32 %v4643, %v4644
      %v4647 = vsel %vm262, %v4639, %v4646
      %v4648 = vrot.slane %v4643, 4
      %v4650 = vshrl.u32 %v4467, 16
      %v4652 = vrot.slane %v4650, 7
      %v4653 = vshll.u32 %v4467, 16
      %v4655 = vor.u32 %v4652, %v4653
      %v4656 = vrot.slane %v4652, 4
      %v4658 = vshrl.u32 %v4468, 16
      %v4660 = vrot.slane %v4658, 7
      %v4661 = vshll.u32 %v4468, 16
      %v4663 = vor.u32 %v4660, %v4661
      %v4664 = vsel %vm262, %v4656, %v4663
      %v4665 = vrot.slane %v4660, 4
      %v4667 = vshrl.u32 %v4469, 16
      %v4669 = vrot.slane %v4667, 7
      %v4670 = vshll.u32 %v4469, 16
      %v4672 = vor.u32 %v4669, %v4670
      %v4673 = vrot.slane %v4669, 4
      %v4675 = vshrl.u32 %v4470, 16
      %v4677 = vrot.slane %v4675, 7
      %v4678 = vshll.u32 %v4470, 16
      %v4680 = vor.u32 %v4677, %v4678
      %v4681 = vsel %vm262, %v4673, %v4680
      %v4682 = vrot.slane %v4677, 4
      %v4684 = vshrl.u32 %v4471, 16
      %v4686 = vrot.slane %v4684, 7
      %v4687 = vshll.u32 %v4471, 16
      %v4689 = vor.u32 %v4686, %v4687
      %v4690 = vrot.slane %v4686, 4
      %v4692 = vshrl.u32 %v4472, 16
      %v4694 = vrot.slane %v4692, 7
      %v4695 = vshll.u32 %v4472, 16
      %v4697 = vor.u32 %v4694, %v4695
      %v4698 = vsel %vm262, %v4690, %v4697
      %v4699 = vrot.slane %v4694, 4
      %v4701 = vshrl.u32 %v4473, 16
      %v4703 = vrot.slane %v4701, 7
      %v4704 = vshll.u32 %v4473, 16
      %v4706 = vor.u32 %v4703, %v4704
      %v4707 = vrot.slane %v4703, 4
      %v4709 = vshrl.u32 %v4474, 16
      %v4711 = vrot.slane %v4709, 7
      %v4712 = vshll.u32 %v4474, 16
      %v4714 = vor.u32 %v4711, %v4712
      %v4715 = vsel %vm262, %v4707, %v4714
      %v4716 = vrot.slane %v4711, 4
      %v4718 = vshrl.u32 %v4475, 16
      %v4720 = vrot.slane %v4718, 7
      %v4721 = vshll.u32 %v4475, 16
      %v4723 = vor.u32 %v4720, %v4721
      %v4724 = vrot.slane %v4720, 4
      %v4726 = vshrl.u32 %v4476, 16
      %v4728 = vrot.slane %v4726, 7
      %v4729 = vshll.u32 %v4476, 16
      %v4731 = vor.u32 %v4728, %v4729
      %v4732 = vsel %vm262, %v4724, %v4731
      %v4733 = vrot.slane %v4728, 4
      %v4735 = vshrl.u32 %v4477, 16
      %v4737 = vrot.slane %v4735, 7
      %v4738 = vshll.u32 %v4477, 16
      %v4740 = vor.u32 %v4737, %v4738
      %v4741 = vrot.slane %v4737, 4
      %v4743 = vshrl.u32 %v4478, 16
      %v4745 = vrot.slane %v4743, 7
      %v4746 = vshll.u32 %v4478, 16
      %v4748 = vor.u32 %v4745, %v4746
      %v4749 = vsel %vm262, %v4741, %v4748
      %v4750 = vrot.slane %v4745, 4
      %s4799 = scalar_lea.vmem [#allocation4], 12
      %vm4800 = vcmask 1043456
      %vm4801 = vmand %vm4800, %vm585
      %v4802 = vld [vmem:[%s4799] sm:$0xf]
      %v4803 = vsel %vm4801, %v4485, %v4802
      %4804 = vst [vmem:[%s4799] sm:$0xf] %v4803
      %4805 = vst [vmem:[%s4799 + $0x4] sm:$0xf] %v4494
      %vm4806 = vcmask 1040384
      %vm4807 = vmand %vm4806, %vm260
      %v4808 = vld [vmem:[%s4799 + $0x8] sm:$0x1]
      %v4809 = vsel %vm4807, %v4495, %v4808
      %4810 = vst [vmem:[%s4799 + $0x8] sm:$0x1] %v4809
      %v4811 = vld [vmem:[%s4799 + $0xc] sm:$0xf]
      %v4812 = vsel %vm4801, %v4502, %v4811
      %4813 = vst [vmem:[%s4799 + $0xc] sm:$0xf] %v4812
      %4814 = vst [vmem:[%s4799 + $0x10] sm:$0xf] %v4511
      %v4815 = vld [vmem:[%s4799 + $0x14] sm:$0x1]
      %v4816 = vsel %vm4807, %v4512, %v4815
      %4817 = vst [vmem:[%s4799 + $0x14] sm:$0x1] %v4816
      %v4818 = vld [vmem:[%s4799 + $0x18] sm:$0xf]
      %v4819 = vsel %vm4801, %v4519, %v4818
      %4820 = vst [vmem:[%s4799 + $0x18] sm:$0xf] %v4819
      %4821 = vst [vmem:[%s4799 + $0x1c] sm:$0xf] %v4528
      %v4822 = vld [vmem:[%s4799 + $0x20] sm:$0x1]
      %v4823 = vsel %vm4807, %v4529, %v4822
      %4824 = vst [vmem:[%s4799 + $0x20] sm:$0x1] %v4823
      %v4825 = vld [vmem:[%s4799 + $0x24] sm:$0xf]
      %v4826 = vsel %vm4801, %v4536, %v4825
      %4827 = vst [vmem:[%s4799 + $0x24] sm:$0xf] %v4826
      %4828 = vst [vmem:[%s4799 + $0x28] sm:$0xf] %v4545
      %v4829 = vld [vmem:[%s4799 + $0x2c] sm:$0x1]
      %v4830 = vsel %vm4807, %v4546, %v4829
      %4831 = vst [vmem:[%s4799 + $0x2c] sm:$0x1] %v4830
      %v4832 = vld [vmem:[%s4799 + $0x30] sm:$0xf]
      %v4833 = vsel %vm4801, %v4553, %v4832
      %4834 = vst [vmem:[%s4799 + $0x30] sm:$0xf] %v4833
      %4835 = vst [vmem:[%s4799 + $0x34] sm:$0xf] %v4562
      %v4836 = vld [vmem:[%s4799 + $0x38] sm:$0x1]
      %v4837 = vsel %vm4807, %v4563, %v4836
      %4838 = vst [vmem:[%s4799 + $0x38] sm:$0x1] %v4837
      %v4839 = vld [vmem:[%s4799 + $0x3c] sm:$0xf]
      %v4840 = vsel %vm4801, %v4570, %v4839
      %4841 = vst [vmem:[%s4799 + $0x3c] sm:$0xf] %v4840
      %4842 = vst [vmem:[%s4799 + $0x40] sm:$0xf] %v4579
      %v4843 = vld [vmem:[%s4799 + $0x44] sm:$0x1]
      %v4844 = vsel %vm4807, %v4580, %v4843
      %4845 = vst [vmem:[%s4799 + $0x44] sm:$0x1] %v4844
      %v4846 = vld [vmem:[%s4799 + $0x48] sm:$0xf]
      %v4847 = vsel %vm4801, %v4587, %v4846
      %4848 = vst [vmem:[%s4799 + $0x48] sm:$0xf] %v4847
      %4849 = vst [vmem:[%s4799 + $0x4c] sm:$0xf] %v4596
      %v4850 = vld [vmem:[%s4799 + $0x50] sm:$0x1]
      %v4851 = vsel %vm4807, %v4597, %v4850
      %4852 = vst [vmem:[%s4799 + $0x50] sm:$0x1] %v4851
      %v4853 = vld [vmem:[%s4799 + $0x54] sm:$0xf]
      %v4854 = vsel %vm4801, %v4604, %v4853
      %4855 = vst [vmem:[%s4799 + $0x54] sm:$0xf] %v4854
      %4856 = vst [vmem:[%s4799 + $0x58] sm:$0xf] %v4613
      %v4857 = vld [vmem:[%s4799 + $0x5c] sm:$0x1]
      %v4858 = vsel %vm4807, %v4614, %v4857
      %4859 = vst [vmem:[%s4799 + $0x5c] sm:$0x1] %v4858
      %v4860 = vld [vmem:[%s4799 + $0x60] sm:$0xf]
      %v4861 = vsel %vm4801, %v4621, %v4860
      %4862 = vst [vmem:[%s4799 + $0x60] sm:$0xf] %v4861
      %4863 = vst [vmem:[%s4799 + $0x64] sm:$0xf] %v4630
      %v4864 = vld [vmem:[%s4799 + $0x68] sm:$0x1]
      %v4865 = vsel %vm4807, %v4631, %v4864
      %4866 = vst [vmem:[%s4799 + $0x68] sm:$0x1] %v4865
      %v4867 = vld [vmem:[%s4799 + $0x6c] sm:$0xf]
      %v4868 = vsel %vm4801, %v4638, %v4867
      %4869 = vst [vmem:[%s4799 + $0x6c] sm:$0xf] %v4868
      %4870 = vst [vmem:[%s4799 + $0x70] sm:$0xf] %v4647
      %v4871 = vld [vmem:[%s4799 + $0x74] sm:$0x1]
      %v4872 = vsel %vm4807, %v4648, %v4871
      %4873 = vst [vmem:[%s4799 + $0x74] sm:$0x1] %v4872
      %v4874 = vld [vmem:[%s4799 + $0x78] sm:$0xf]
      %v4875 = vsel %vm4801, %v4655, %v4874
      %4876 = vst [vmem:[%s4799 + $0x78] sm:$0xf] %v4875
      %4877 = vst [vmem:[%s4799 + $0x7c] sm:$0xf] %v4664
      %v4878 = vld [vmem:[%s4799 + $0x80] sm:$0x1]
      %v4879 = vsel %vm4807, %v4665, %v4878
      %4880 = vst [vmem:[%s4799 + $0x80] sm:$0x1] %v4879
      %v4881 = vld [vmem:[%s4799 + $0x84] sm:$0xf]
      %v4882 = vsel %vm4801, %v4672, %v4881
      %4883 = vst [vmem:[%s4799 + $0x84] sm:$0xf] %v4882
      %4884 = vst [vmem:[%s4799 + $0x88] sm:$0xf] %v4681
      %v4885 = vld [vmem:[%s4799 + $0x8c] sm:$0x1]
      %v4886 = vsel %vm4807, %v4682, %v4885
      %4887 = vst [vmem:[%s4799 + $0x8c] sm:$0x1] %v4886
      %v4888 = vld [vmem:[%s4799 + $0x90] sm:$0xf]
      %v4889 = vsel %vm4801, %v4689, %v4888
      %4890 = vst [vmem:[%s4799 + $0x90] sm:$0xf] %v4889
      %4891 = vst [vmem:[%s4799 + $0x94] sm:$0xf] %v4698
      %v4892 = vld [vmem:[%s4799 + $0x98] sm:$0x1]
      %v4893 = vsel %vm4807, %v4699, %v4892
      %4894 = vst [vmem:[%s4799 + $0x98] sm:$0x1] %v4893
      %v4895 = vld [vmem:[%s4799 + $0x9c] sm:$0xf]
      %v4896 = vsel %vm4801, %v4706, %v4895
      %4897 = vst [vmem:[%s4799 + $0x9c] sm:$0xf] %v4896
      %4898 = vst [vmem:[%s4799 + $0xa0] sm:$0xf] %v4715
      %v4899 = vld [vmem:[%s4799 + $0xa4] sm:$0x1]
      %v4900 = vsel %vm4807, %v4716, %v4899
      %4901 = vst [vmem:[%s4799 + $0xa4] sm:$0x1] %v4900
      %v4902 = vld [vmem:[%s4799 + $0xa8] sm:$0xf]
      %v4903 = vsel %vm4801, %v4723, %v4902
      %4904 = vst [vmem:[%s4799 + $0xa8] sm:$0xf] %v4903
      %4905 = vst [vmem:[%s4799 + $0xac] sm:$0xf] %v4732
      %v4906 = vld [vmem:[%s4799 + $0xb0] sm:$0x1]
      %v4907 = vsel %vm4807, %v4733, %v4906
      %4908 = vst [vmem:[%s4799 + $0xb0] sm:$0x1] %v4907
      %v4909 = vld [vmem:[%s4799 + $0xb4] sm:$0xf]
      %v4910 = vsel %vm4801, %v4740, %v4909
      %4911 = vst [vmem:[%s4799 + $0xb4] sm:$0xf] %v4910
      %4912 = vst [vmem:[%s4799 + $0xb8] sm:$0xf] %v4749
      %v4913 = vld [vmem:[%s4799 + $0xbc] sm:$0x1]
      %v4914 = vsel %vm4807, %v4750, %v4913
      %4915 = vst [vmem:[%s4799 + $0xbc] sm:$0x1] %v4914
      %v4916 = vld [vmem:[#allocation4] sm:$0xf]
      %v4917 = vld [vmem:[#allocation4 + $0x4] sm:$0xf]
      %v4918 = vld [vmem:[#allocation4 + $0xc] sm:$0xf]
      %v4919 = vld [vmem:[#allocation4 + $0x10] sm:$0xf]
      %v4920 = vld [vmem:[#allocation4 + $0x18] sm:$0xf]
      %v4921 = vld [vmem:[#allocation4 + $0x1c] sm:$0xf]
      %v4922 = vld [vmem:[#allocation4 + $0x24] sm:$0xf]
      %v4923 = vld [vmem:[#allocation4 + $0x28] sm:$0xf]
      %v4924 = vld [vmem:[#allocation4 + $0x30] sm:$0xf]
      %v4925 = vld [vmem:[#allocation4 + $0x34] sm:$0xf]
      %v4926 = vld [vmem:[#allocation4 + $0x3c] sm:$0xf]
      %v4927 = vld [vmem:[#allocation4 + $0x40] sm:$0xf]
      %v4928 = vld [vmem:[#allocation4 + $0x48] sm:$0xf]
      %v4929 = vld [vmem:[#allocation4 + $0x4c] sm:$0xf]
      %v4930 = vld [vmem:[#allocation4 + $0x54] sm:$0xf]
      %v4931 = vld [vmem:[#allocation4 + $0x58] sm:$0xf]
      %v4932 = vld [vmem:[#allocation4 + $0x60] sm:$0xf]
      %v4933 = vld [vmem:[#allocation4 + $0x64] sm:$0xf]
      %v4934 = vld [vmem:[#allocation4 + $0x6c] sm:$0xf]
      %v4935 = vld [vmem:[#allocation4 + $0x70] sm:$0xf]
      %v4936 = vld [vmem:[#allocation4 + $0x78] sm:$0xf]
      %v4937 = vld [vmem:[#allocation4 + $0x7c] sm:$0xf]
      %v4938 = vld [vmem:[#allocation4 + $0x84] sm:$0xf]
      %v4939 = vld [vmem:[#allocation4 + $0x88] sm:$0xf]
      %v4940 = vld [vmem:[#allocation4 + $0x90] sm:$0xf]
      %v4941 = vld [vmem:[#allocation4 + $0x94] sm:$0xf]
      %v4942 = vld [vmem:[#allocation4 + $0x9c] sm:$0xf]
      %v4943 = vld [vmem:[#allocation4 + $0xa0] sm:$0xf]
      %v4944 = vld [vmem:[#allocation4 + $0xa8] sm:$0xf]
      %v4945 = vld [vmem:[#allocation4 + $0xac] sm:$0xf]
      %v4946 = vld [vmem:[#allocation4 + $0xb4] sm:$0xf]
      %v4947 = vld [vmem:[#allocation4 + $0xb8] sm:$0xf]
      %v4980 = vunpack.c.l.b16 %v4916
      %v4981 = vunpack.c.l.b16 %v4917
      %v4982 = vunpack.c.l.b16 %v4918
      %v4983 = vunpack.c.l.b16 %v4919
      %v4984 = vunpack.c.l.b16 %v4920
      %v4985 = vunpack.c.l.b16 %v4921
      %v4986 = vunpack.c.l.b16 %v4922
      %v4987 = vunpack.c.l.b16 %v4923
      %v4988 = vunpack.c.l.b16 %v4924
      %v4989 = vunpack.c.l.b16 %v4925
      %v4990 = vunpack.c.l.b16 %v4926
      %v4991 = vunpack.c.l.b16 %v4927
      %v4992 = vunpack.c.l.b16 %v4928
      %v4993 = vunpack.c.l.b16 %v4929
      %v4994 = vunpack.c.l.b16 %v4930
      %v4995 = vunpack.c.l.b16 %v4931
      %v4996 = vunpack.c.l.b16 %v4932
      %v4997 = vunpack.c.l.b16 %v4933
      %v4998 = vunpack.c.l.b16 %v4934
      %v4999 = vunpack.c.l.b16 %v4935
      %v5000 = vunpack.c.l.b16 %v4936
      %v5001 = vunpack.c.l.b16 %v4937
      %v5002 = vunpack.c.l.b16 %v4938
      %v5003 = vunpack.c.l.b16 %v4939
      %v5004 = vunpack.c.l.b16 %v4940
      %v5005 = vunpack.c.l.b16 %v4941
      %v5006 = vunpack.c.l.b16 %v4942
      %v5007 = vunpack.c.l.b16 %v4943
      %v5008 = vunpack.c.l.b16 %v4944
      %v5009 = vunpack.c.l.b16 %v4945
      %v5010 = vunpack.c.l.b16 %v4946
      %v5011 = vunpack.c.l.b16 %v4947
      %v5012 = vpack.c.b16 %v4981, %v4980
      %v5013 = vpack.c.b16 %v4983, %v4982
      %v5014 = vpack.c.b16 %v4985, %v4984
      %v5015 = vpack.c.b16 %v4987, %v4986
      %v5016 = vpack.c.b16 %v4989, %v4988
      %v5017 = vpack.c.b16 %v4991, %v4990
      %v5018 = vpack.c.b16 %v4993, %v4992
      %v5019 = vpack.c.b16 %v4995, %v4994
      %v5020 = vpack.c.b16 %v4997, %v4996
      %v5021 = vpack.c.b16 %v4999, %v4998
      %v5022 = vpack.c.b16 %v5001, %v5000
      %v5023 = vpack.c.b16 %v5003, %v5002
      %v5024 = vpack.c.b16 %v5005, %v5004
      %v5025 = vpack.c.b16 %v5007, %v5006
      %v5026 = vpack.c.b16 %v5009, %v5008
      %v5027 = vpack.c.b16 %v5011, %v5010
      %vm5044 = vcmask 64512
      %5045 = vst.msk [vmem:[#allocation5] sm:$0xff] %vm5044, %v5012
      %5046 = vst.msk [vmem:[#allocation5 + $0x8] sm:$0xff] %vm5044, %v5013
      %5047 = vst.msk [vmem:[#allocation5 + $0x10] sm:$0xff] %vm5044, %v5014
      %5048 = vst.msk [vmem:[#allocation5 + $0x18] sm:$0xff] %vm5044, %v5015
      %5049 = vst.msk [vmem:[#allocation5 + $0x20] sm:$0xff] %vm5044, %v5016
      %5050 = vst.msk [vmem:[#allocation5 + $0x28] sm:$0xff] %vm5044, %v5017
      %5051 = vst.msk [vmem:[#allocation5 + $0x30] sm:$0xff] %vm5044, %v5018
      %5052 = vst.msk [vmem:[#allocation5 + $0x38] sm:$0xff] %vm5044, %v5019
      %5053 = vst.msk [vmem:[#allocation5 + $0x40] sm:$0xff] %vm5044, %v5020
      %5054 = vst.msk [vmem:[#allocation5 + $0x48] sm:$0xff] %vm5044, %v5021
      %5055 = vst.msk [vmem:[#allocation5 + $0x50] sm:$0xff] %vm5044, %v5022
      %5056 = vst.msk [vmem:[#allocation5 + $0x58] sm:$0xff] %vm5044, %v5023
      %5057 = vst.msk [vmem:[#allocation5 + $0x60] sm:$0xff] %vm5044, %v5024
      %5058 = vst.msk [vmem:[#allocation5 + $0x68] sm:$0xff] %vm5044, %v5025
      %5059 = vst.msk [vmem:[#allocation5 + $0x70] sm:$0xff] %vm5044, %v5026
      %5060 = vst.msk [vmem:[#allocation5 + $0x78] sm:$0xff] %vm5044, %v5027
      %v5061 = vld [vmem:[#allocation4] sm:$0xf]
      %v5062 = vld [vmem:[#allocation4 + $0x4] sm:$0xf]
      %v5063 = vld [vmem:[#allocation4 + $0x8] sm:$0x1]
      %v5064 = vld [vmem:[#allocation4 + $0xc] sm:$0xf]
      %v5065 = vld [vmem:[#allocation4 + $0x10] sm:$0xf]
      %v5066 = vld [vmem:[#allocation4 + $0x14] sm:$0x1]
      %v5067 = vld [vmem:[#allocation4 + $0x18] sm:$0xf]
      %v5068 = vld [vmem:[#allocation4 + $0x1c] sm:$0xf]
      %v5069 = vld [vmem:[#allocation4 + $0x20] sm:$0x1]
      %v5070 = vld [vmem:[#allocation4 + $0x24] sm:$0xf]
      %v5071 = vld [vmem:[#allocation4 + $0x28] sm:$0xf]
      %v5072 = vld [vmem:[#allocation4 + $0x2c] sm:$0x1]
      %v5073 = vld [vmem:[#allocation4 + $0x30] sm:$0xf]
      %v5074 = vld [vmem:[#allocation4 + $0x34] sm:$0xf]
      %v5075 = vld [vmem:[#allocation4 + $0x38] sm:$0x1]
      %v5076 = vld [vmem:[#allocation4 + $0x3c] sm:$0xf]
      %v5077 = vld [vmem:[#allocation4 + $0x40] sm:$0xf]
      %v5078 = vld [vmem:[#allocation4 + $0x44] sm:$0x1]
      %v5079 = vld [vmem:[#allocation4 + $0x48] sm:$0xf]
      %v5080 = vld [vmem:[#allocation4 + $0x4c] sm:$0xf]
      %v5081 = vld [vmem:[#allocation4 + $0x50] sm:$0x1]
      %v5082 = vld [vmem:[#allocation4 + $0x54] sm:$0xf]
      %v5083 = vld [vmem:[#allocation4 + $0x58] sm:$0xf]
      %v5084 = vld [vmem:[#allocation4 + $0x5c] sm:$0x1]
      %v5085 = vld [vmem:[#allocation4 + $0x60] sm:$0xf]
      %v5086 = vld [vmem:[#allocation4 + $0x64] sm:$0xf]
      %v5087 = vld [vmem:[#allocation4 + $0x68] sm:$0x1]
      %v5088 = vld [vmem:[#allocation4 + $0x6c] sm:$0xf]
      %v5089 = vld [vmem:[#allocation4 + $0x70] sm:$0xf]
      %v5090 = vld [vmem:[#allocation4 + $0x74] sm:$0x1]
      %v5091 = vld [vmem:[#allocation4 + $0x78] sm:$0xf]
      %v5092 = vld [vmem:[#allocation4 + $0x7c] sm:$0xf]
      %v5093 = vld [vmem:[#allocation4 + $0x80] sm:$0x1]
      %v5094 = vld [vmem:[#allocation4 + $0x84] sm:$0xf]
      %v5095 = vld [vmem:[#allocation4 + $0x88] sm:$0xf]
      %v5096 = vld [vmem:[#allocation4 + $0x8c] sm:$0x1]
      %v5097 = vld [vmem:[#allocation4 + $0x90] sm:$0xf]
      %v5098 = vld [vmem:[#allocation4 + $0x94] sm:$0xf]
      %v5099 = vld [vmem:[#allocation4 + $0x98] sm:$0x1]
      %v5100 = vld [vmem:[#allocation4 + $0x9c] sm:$0xf]
      %v5101 = vld [vmem:[#allocation4 + $0xa0] sm:$0xf]
      %v5102 = vld [vmem:[#allocation4 + $0xa4] sm:$0x1]
      %v5103 = vld [vmem:[#allocation4 + $0xa8] sm:$0xf]
      %v5104 = vld [vmem:[#allocation4 + $0xac] sm:$0xf]
      %v5105 = vld [vmem:[#allocation4 + $0xb0] sm:$0x1]
      %v5106 = vld [vmem:[#allocation4 + $0xb4] sm:$0xf]
      %v5107 = vld [vmem:[#allocation4 + $0xb8] sm:$0xf]
      %v5108 = vld [vmem:[#allocation4 + $0xbc] sm:$0x1]
      %v5110 = vshrl.u32 %v5061, 16
      %v5112 = vrot.slane %v5110, 4
      %v5113 = vshll.u32 %v5061, 16
      %v5115 = vrot.slane %v5113, 5
      %v5116 = vor.u32 %v5112, %v5115
      %v5117 = vrot.slane %v5116, 4
      %v5119 = vshll.u32 %v5062, 16
      %v5121 = vrot.slane %v5119, 5
      %v5122 = vsel %vm896, %v5117, %v5121
      %v5123 = vshrl.u32 %v5062, 16
      %v5125 = vrot.slane %v5123, 4
      %v5126 = vor.u32 %v5125, %v5121
      %v5127 = vrot.slane %v5126, 4
      %v5129 = vshll.u32 %v5063, 16
      %v5131 = vrot.slane %v5129, 5
      %v5132 = vsel %vm896, %v5127, %v5131
      %v5134 = vshrl.u32 %v5064, 16
      %v5136 = vrot.slane %v5134, 4
      %v5137 = vshll.u32 %v5064, 16
      %v5139 = vrot.slane %v5137, 5
      %v5140 = vor.u32 %v5136, %v5139
      %v5141 = vrot.slane %v5140, 4
      %v5143 = vshll.u32 %v5065, 16
      %v5145 = vrot.slane %v5143, 5
      %v5146 = vsel %vm896, %v5141, %v5145
      %v5147 = vshrl.u32 %v5065, 16
      %v5149 = vrot.slane %v5147, 4
      %v5150 = vor.u32 %v5149, %v5145
      %v5151 = vrot.slane %v5150, 4
      %v5153 = vshll.u32 %v5066, 16
      %v5155 = vrot.slane %v5153, 5
      %v5156 = vsel %vm896, %v5151, %v5155
      %v5158 = vshrl.u32 %v5067, 16
      %v5160 = vrot.slane %v5158, 4
      %v5161 = vshll.u32 %v5067, 16
      %v5163 = vrot.slane %v5161, 5
      %v5164 = vor.u32 %v5160, %v5163
      %v5165 = vrot.slane %v5164, 4
      %v5167 = vshll.u32 %v5068, 16
      %v5169 = vrot.slane %v5167, 5
      %v5170 = vsel %vm896, %v5165, %v5169
      %v5171 = vshrl.u32 %v5068, 16
      %v5173 = vrot.slane %v5171, 4
      %v5174 = vor.u32 %v5173, %v5169
      %v5175 = vrot.slane %v5174, 4
      %v5177 = vshll.u32 %v5069, 16
      %v5179 = vrot.slane %v5177, 5
      %v5180 = vsel %vm896, %v5175, %v5179
      %v5182 = vshrl.u32 %v5070, 16
      %v5184 = vrot.slane %v5182, 4
      %v5185 = vshll.u32 %v5070, 16
      %v5187 = vrot.slane %v5185, 5
      %v5188 = vor.u32 %v5184, %v5187
      %v5189 = vrot.slane %v5188, 4
      %v5191 = vshll.u32 %v5071, 16
      %v5193 = vrot.slane %v5191, 5
      %v5194 = vsel %vm896, %v5189, %v5193
      %v5195 = vshrl.u32 %v5071, 16
      %v5197 = vrot.slane %v5195, 4
      %v5198 = vor.u32 %v5197, %v5193
      %v5199 = vrot.slane %v5198, 4
      %v5201 = vshll.u32 %v5072, 16
      %v5203 = vrot.slane %v5201, 5
      %v5204 = vsel %vm896, %v5199, %v5203
      %v5206 = vshrl.u32 %v5073, 16
      %v5208 = vrot.slane %v5206, 4
      %v5209 = vshll.u32 %v5073, 16
      %v5211 = vrot.slane %v5209, 5
      %v5212 = vor.u32 %v5208, %v5211
      %v5213 = vrot.slane %v5212, 4
      %v5215 = vshll.u32 %v5074, 16
      %v5217 = vrot.slane %v5215, 5
      %v5218 = vsel %vm896, %v5213, %v5217
      %v5219 = vshrl.u32 %v5074, 16
      %v5221 = vrot.slane %v5219, 4
      %v5222 = vor.u32 %v5221, %v5217
      %v5223 = vrot.slane %v5222, 4
      %v5225 = vshll.u32 %v5075, 16
      %v5227 = vrot.slane %v5225, 5
      %v5228 = vsel %vm896, %v5223, %v5227
      %v5230 = vshrl.u32 %v5076, 16
      %v5232 = vrot.slane %v5230, 4
      %v5233 = vshll.u32 %v5076, 16
      %v5235 = vrot.slane %v5233, 5
      %v5236 = vor.u32 %v5232, %v5235
      %v5237 = vrot.slane %v5236, 4
      %v5239 = vshll.u32 %v5077, 16
      %v5241 = vrot.slane %v5239, 5
      %v5242 = vsel %vm896, %v5237, %v5241
      %v5243 = vshrl.u32 %v5077, 16
      %v5245 = vrot.slane %v5243, 4
      %v5246 = vor.u32 %v5245, %v5241
      %v5247 = vrot.slane %v5246, 4
      %v5249 = vshll.u32 %v5078, 16
      %v5251 = vrot.slane %v5249, 5
      %v5252 = vsel %vm896, %v5247, %v5251
      %v5254 = vshrl.u32 %v5079, 16
      %v5256 = vrot.slane %v5254, 4
      %v5257 = vshll.u32 %v5079, 16
      %v5259 = vrot.slane %v5257, 5
      %v5260 = vor.u32 %v5256, %v5259
      %v5261 = vrot.slane %v5260, 4
      %v5263 = vshll.u32 %v5080, 16
      %v5265 = vrot.slane %v5263, 5
      %v5266 = vsel %vm896, %v5261, %v5265
      %v5267 = vshrl.u32 %v5080, 16
      %v5269 = vrot.slane %v5267, 4
      %v5270 = vor.u32 %v5269, %v5265
      %v5271 = vrot.slane %v5270, 4
      %v5273 = vshll.u32 %v5081, 16
      %v5275 = vrot.slane %v5273, 5
      %v5276 = vsel %vm896, %v5271, %v5275
      %v5278 = vshrl.u32 %v5082, 16
      %v5280 = vrot.slane %v5278, 4
      %v5281 = vshll.u32 %v5082, 16
      %v5283 = vrot.slane %v5281, 5
      %v5284 = vor.u32 %v5280, %v5283
      %v5285 = vrot.slane %v5284, 4
      %v5287 = vshll.u32 %v5083, 16
      %v5289 = vrot.slane %v5287, 5
      %v5290 = vsel %vm896, %v5285, %v5289
      %v5291 = vshrl.u32 %v5083, 16
      %v5293 = vrot.slane %v5291, 4
      %v5294 = vor.u32 %v5293, %v5289
      %v5295 = vrot.slane %v5294, 4
      %v5297 = vshll.u32 %v5084, 16
      %v5299 = vrot.slane %v5297, 5
      %v5300 = vsel %vm896, %v5295, %v5299
      %v5302 = vshrl.u32 %v5085, 16
      %v5304 = vrot.slane %v5302, 4
      %v5305 = vshll.u32 %v5085, 16
      %v5307 = vrot.slane %v5305, 5
      %v5308 = vor.u32 %v5304, %v5307
      %v5309 = vrot.slane %v5308, 4
      %v5311 = vshll.u32 %v5086, 16
      %v5313 = vrot.slane %v5311, 5
      %v5314 = vsel %vm896, %v5309, %v5313
      %v5315 = vshrl.u32 %v5086, 16
      %v5317 = vrot.slane %v5315, 4
      %v5318 = vor.u32 %v5317, %v5313
      %v5319 = vrot.slane %v5318, 4
      %v5321 = vshll.u32 %v5087, 16
      %v5323 = vrot.slane %v5321, 5
      %v5324 = vsel %vm896, %v5319, %v5323
      %v5326 = vshrl.u32 %v5088, 16
      %v5328 = vrot.slane %v5326, 4
      %v5329 = vshll.u32 %v5088, 16
      %v5331 = vrot.slane %v5329, 5
      %v5332 = vor.u32 %v5328, %v5331
      %v5333 = vrot.slane %v5332, 4
      %v5335 = vshll.u32 %v5089, 16
      %v5337 = vrot.slane %v5335, 5
      %v5338 = vsel %vm896, %v5333, %v5337
      %v5339 = vshrl.u32 %v5089, 16
      %v5341 = vrot.slane %v5339, 4
      %v5342 = vor.u32 %v5341, %v5337
      %v5343 = vrot.slane %v5342, 4
      %v5345 = vshll.u32 %v5090, 16
      %v5347 = vrot.slane %v5345, 5
      %v5348 = vsel %vm896, %v5343, %v5347
      %v5350 = vshrl.u32 %v5091, 16
      %v5352 = vrot.slane %v5350, 4
      %v5353 = vshll.u32 %v5091, 16
      %v5355 = vrot.slane %v5353, 5
      %v5356 = vor.u32 %v5352, %v5355
      %v5357 = vrot.slane %v5356, 4
      %v5359 = vshll.u32 %v5092, 16
      %v5361 = vrot.slane %v5359, 5
      %v5362 = vsel %vm896, %v5357, %v5361
      %v5363 = vshrl.u32 %v5092, 16
      %v5365 = vrot.slane %v5363, 4
      %v5366 = vor.u32 %v5365, %v5361
      %v5367 = vrot.slane %v5366, 4
      %v5369 = vshll.u32 %v5093, 16
      %v5371 = vrot.slane %v5369, 5
      %v5372 = vsel %vm896, %v5367, %v5371
      %v5374 = vshrl.u32 %v5094, 16
      %v5376 = vrot.slane %v5374, 4
      %v5377 = vshll.u32 %v5094, 16
      %v5379 = vrot.slane %v5377, 5
      %v5380 = vor.u32 %v5376, %v5379
      %v5381 = vrot.slane %v5380, 4
      %v5383 = vshll.u32 %v5095, 16
      %v5385 = vrot.slane %v5383, 5
      %v5386 = vsel %vm896, %v5381, %v5385
      %v5387 = vshrl.u32 %v5095, 16
      %v5389 = vrot.slane %v5387, 4
      %v5390 = vor.u32 %v5389, %v5385
      %v5391 = vrot.slane %v5390, 4
      %v5393 = vshll.u32 %v5096, 16
      %v5395 = vrot.slane %v5393, 5
      %v5396 = vsel %vm896, %v5391, %v5395
      %v5398 = vshrl.u32 %v5097, 16
      %v5400 = vrot.slane %v5398, 4
      %v5401 = vshll.u32 %v5097, 16
      %v5403 = vrot.slane %v5401, 5
      %v5404 = vor.u32 %v5400, %v5403
      %v5405 = vrot.slane %v5404, 4
      %v5407 = vshll.u32 %v5098, 16
      %v5409 = vrot.slane %v5407, 5
      %v5410 = vsel %vm896, %v5405, %v5409
      %v5411 = vshrl.u32 %v5098, 16
      %v5413 = vrot.slane %v5411, 4
      %v5414 = vor.u32 %v5413, %v5409
      %v5415 = vrot.slane %v5414, 4
      %v5417 = vshll.u32 %v5099, 16
      %v5419 = vrot.slane %v5417, 5
      %v5420 = vsel %vm896, %v5415, %v5419
      %v5422 = vshrl.u32 %v5100, 16
      %v5424 = vrot.slane %v5422, 4
      %v5425 = vshll.u32 %v5100, 16
      %v5427 = vrot.slane %v5425, 5
      %v5428 = vor.u32 %v5424, %v5427
      %v5429 = vrot.slane %v5428, 4
      %v5431 = vshll.u32 %v5101, 16
      %v5433 = vrot.slane %v5431, 5
      %v5434 = vsel %vm896, %v5429, %v5433
      %v5435 = vshrl.u32 %v5101, 16
      %v5437 = vrot.slane %v5435, 4
      %v5438 = vor.u32 %v5437, %v5433
      %v5439 = vrot.slane %v5438, 4
      %v5441 = vshll.u32 %v5102, 16
      %v5443 = vrot.slane %v5441, 5
      %v5444 = vsel %vm896, %v5439, %v5443
      %v5446 = vshrl.u32 %v5103, 16
      %v5448 = vrot.slane %v5446, 4
      %v5449 = vshll.u32 %v5103, 16
      %v5451 = vrot.slane %v5449, 5
      %v5452 = vor.u32 %v5448, %v5451
      %v5453 = vrot.slane %v5452, 4
      %v5455 = vshll.u32 %v5104, 16
      %v5457 = vrot.slane %v5455, 5
      %v5458 = vsel %vm896, %v5453, %v5457
      %v5459 = vshrl.u32 %v5104, 16
      %v5461 = vrot.slane %v5459, 4
      %v5462 = vor.u32 %v5461, %v5457
      %v5463 = vrot.slane %v5462, 4
      %v5465 = vshll.u32 %v5105, 16
      %v5467 = vrot.slane %v5465, 5
      %v5468 = vsel %vm896, %v5463, %v5467
      %v5470 = vshrl.u32 %v5106, 16
      %v5472 = vrot.slane %v5470, 4
      %v5473 = vshll.u32 %v5106, 16
      %v5475 = vrot.slane %v5473, 5
      %v5476 = vor.u32 %v5472, %v5475
      %v5477 = vrot.slane %v5476, 4
      %v5479 = vshll.u32 %v5107, 16
      %v5481 = vrot.slane %v5479, 5
      %v5482 = vsel %vm896, %v5477, %v5481
      %v5483 = vshrl.u32 %v5107, 16
      %v5485 = vrot.slane %v5483, 4
      %v5486 = vor.u32 %v5485, %v5481
      %v5487 = vrot.slane %v5486, 4
      %v5489 = vshll.u32 %v5108, 16
      %v5491 = vrot.slane %v5489, 5
      %v5492 = vsel %vm896, %v5487, %v5491
      %v5493 = vunpack.c.l.b16 %v5122
      %v5494 = vunpack.c.l.b16 %v5132
      %v5495 = vunpack.c.l.b16 %v5146
      %v5496 = vunpack.c.l.b16 %v5156
      %v5497 = vunpack.c.l.b16 %v5170
      %v5498 = vunpack.c.l.b16 %v5180
      %v5499 = vunpack.c.l.b16 %v5194
      %v5500 = vunpack.c.l.b16 %v5204
      %v5501 = vunpack.c.l.b16 %v5218
      %v5502 = vunpack.c.l.b16 %v5228
      %v5503 = vunpack.c.l.b16 %v5242
      %v5504 = vunpack.c.l.b16 %v5252
      %v5505 = vunpack.c.l.b16 %v5266
      %v5506 = vunpack.c.l.b16 %v5276
      %v5507 = vunpack.c.l.b16 %v5290
      %v5508 = vunpack.c.l.b16 %v5300
      %v5509 = vunpack.c.l.b16 %v5314
      %v5510 = vunpack.c.l.b16 %v5324
      %v5511 = vunpack.c.l.b16 %v5338
      %v5512 = vunpack.c.l.b16 %v5348
      %v5513 = vunpack.c.l.b16 %v5362
      %v5514 = vunpack.c.l.b16 %v5372
      %v5515 = vunpack.c.l.b16 %v5386
      %v5516 = vunpack.c.l.b16 %v5396
      %v5517 = vunpack.c.l.b16 %v5410
      %v5518 = vunpack.c.l.b16 %v5420
      %v5519 = vunpack.c.l.b16 %v5434
      %v5520 = vunpack.c.l.b16 %v5444
      %v5521 = vunpack.c.l.b16 %v5458
      %v5522 = vunpack.c.l.b16 %v5468
      %v5523 = vunpack.c.l.b16 %v5482
      %v5524 = vunpack.c.l.b16 %v5492
      %v5525 = vpack.c.b16 %v5494, %v5493
      %v5526 = vpack.c.b16 %v5496, %v5495
      %v5527 = vpack.c.b16 %v5498, %v5497
      %v5528 = vpack.c.b16 %v5500, %v5499
      %v5529 = vpack.c.b16 %v5502, %v5501
      %v5530 = vpack.c.b16 %v5504, %v5503
      %v5531 = vpack.c.b16 %v5506, %v5505
      %v5532 = vpack.c.b16 %v5508, %v5507
      %v5533 = vpack.c.b16 %v5510, %v5509
      %v5534 = vpack.c.b16 %v5512, %v5511
      %v5535 = vpack.c.b16 %v5514, %v5513
      %v5536 = vpack.c.b16 %v5516, %v5515
      %v5537 = vpack.c.b16 %v5518, %v5517
      %v5538 = vpack.c.b16 %v5520, %v5519
      %v5539 = vpack.c.b16 %v5522, %v5521
      %v5540 = vpack.c.b16 %v5524, %v5523
      %5541 = vrot.lane.b32.xlu0 %v5525, 8
      %v5542 = vpop.permute.xlu0 %5541
      %5543 = vrot.lane.b32.xlu0 %v5526, 8
      %v5544 = vpop.permute.xlu0 %5543
      %5545 = vrot.lane.b32.xlu0 %v5527, 8
      %v5546 = vpop.permute.xlu0 %5545
      %5547 = vrot.lane.b32.xlu0 %v5528, 8
      %v5548 = vpop.permute.xlu0 %5547
      %5549 = vrot.lane.b32.xlu0 %v5529, 8
      %v5550 = vpop.permute.xlu0 %5549
      %5551 = vrot.lane.b32.xlu0 %v5530, 8
      %v5552 = vpop.permute.xlu0 %5551
      %5553 = vrot.lane.b32.xlu0 %v5531, 8
      %v5554 = vpop.permute.xlu0 %5553
      %5555 = vrot.lane.b32.xlu0 %v5532, 8
      %v5556 = vpop.permute.xlu0 %5555
      %5557 = vrot.lane.b32.xlu0 %v5533, 8
      %v5558 = vpop.permute.xlu0 %5557
      %5559 = vrot.lane.b32.xlu0 %v5534, 8
      %v5560 = vpop.permute.xlu0 %5559
      %5561 = vrot.lane.b32.xlu0 %v5535, 8
      %v5562 = vpop.permute.xlu0 %5561
      %5563 = vrot.lane.b32.xlu0 %v5536, 8
      %v5564 = vpop.permute.xlu0 %5563
      %5565 = vrot.lane.b32.xlu0 %v5537, 8
      %v5566 = vpop.permute.xlu0 %5565
      %5567 = vrot.lane.b32.xlu0 %v5538, 8
      %v5568 = vpop.permute.xlu0 %5567
      %5569 = vrot.lane.b32.xlu0 %v5539, 8
      %v5570 = vpop.permute.xlu0 %5569
      %5571 = vrot.lane.b32.xlu0 %v5540, 8
      %v5572 = vpop.permute.xlu0 %5571
      %vm5589 = vcmask 130112
      %5590 = vst.msk [vmem:[#allocation5] sm:$0xff] %vm5589, %v5542
      %5591 = vst.msk [vmem:[#allocation5 + $0x8] sm:$0xff] %vm5589, %v5544
      %5592 = vst.msk [vmem:[#allocation5 + $0x10] sm:$0xff] %vm5589, %v5546
      %5593 = vst.msk [vmem:[#allocation5 + $0x18] sm:$0xff] %vm5589, %v5548
      %5594 = vst.msk [vmem:[#allocation5 + $0x20] sm:$0xff] %vm5589, %v5550
      %5595 = vst.msk [vmem:[#allocation5 + $0x28] sm:$0xff] %vm5589, %v5552
      %5596 = vst.msk [vmem:[#allocation5 + $0x30] sm:$0xff] %vm5589, %v5554
      %5597 = vst.msk [vmem:[#allocation5 + $0x38] sm:$0xff] %vm5589, %v5556
      %5598 = vst.msk [vmem:[#allocation5 + $0x40] sm:$0xff] %vm5589, %v5558
      %5599 = vst.msk [vmem:[#allocation5 + $0x48] sm:$0xff] %vm5589, %v5560
      %5600 = vst.msk [vmem:[#allocation5 + $0x50] sm:$0xff] %vm5589, %v5562
      %5601 = vst.msk [vmem:[#allocation5 + $0x58] sm:$0xff] %vm5589, %v5564
      %5602 = vst.msk [vmem:[#allocation5 + $0x60] sm:$0xff] %vm5589, %v5566
      %5603 = vst.msk [vmem:[#allocation5 + $0x68] sm:$0xff] %vm5589, %v5568
      %5604 = vst.msk [vmem:[#allocation5 + $0x70] sm:$0xff] %vm5589, %v5570
      %5605 = vst.msk [vmem:[#allocation5 + $0x78] sm:$0xff] %vm5589, %v5572
      %v5606 = vld [vmem:[#allocation4] sm:$0xe]
      %v5607 = vld [vmem:[#allocation4 + $0x4] sm:$0xf]
      %v5608 = vld [vmem:[#allocation4 + $0x8] sm:$0x1]
      %v5609 = vld [vmem:[#allocation4 + $0xc] sm:$0xe]
      %v5610 = vld [vmem:[#allocation4 + $0x10] sm:$0xf]
      %v5611 = vld [vmem:[#allocation4 + $0x14] sm:$0x1]
      %v5612 = vld [vmem:[#allocation4 + $0x18] sm:$0xe]
      %v5613 = vld [vmem:[#allocation4 + $0x1c] sm:$0xf]
      %v5614 = vld [vmem:[#allocation4 + $0x20] sm:$0x1]
      %v5615 = vld [vmem:[#allocation4 + $0x24] sm:$0xe]
      %v5616 = vld [vmem:[#allocation4 + $0x28] sm:$0xf]
      %v5617 = vld [vmem:[#allocation4 + $0x2c] sm:$0x1]
      %v5618 = vld [vmem:[#allocation4 + $0x30] sm:$0xe]
      %v5619 = vld [vmem:[#allocation4 + $0x34] sm:$0xf]
      %v5620 = vld [vmem:[#allocation4 + $0x38] sm:$0x1]
      %v5621 = vld [vmem:[#allocation4 + $0x3c] sm:$0xe]
      %v5622 = vld [vmem:[#allocation4 + $0x40] sm:$0xf]
      %v5623 = vld [vmem:[#allocation4 + $0x44] sm:$0x1]
      %v5624 = vld [vmem:[#allocation4 + $0x48] sm:$0xe]
      %v5625 = vld [vmem:[#allocation4 + $0x4c] sm:$0xf]
      %v5626 = vld [vmem:[#allocation4 + $0x50] sm:$0x1]
      %v5627 = vld [vmem:[#allocation4 + $0x54] sm:$0xe]
      %v5628 = vld [vmem:[#allocation4 + $0x58] sm:$0xf]
      %v5629 = vld [vmem:[#allocation4 + $0x5c] sm:$0x1]
      %v5630 = vld [vmem:[#allocation4 + $0x60] sm:$0xe]
      %v5631 = vld [vmem:[#allocation4 + $0x64] sm:$0xf]
      %v5632 = vld [vmem:[#allocation4 + $0x68] sm:$0x1]
      %v5633 = vld [vmem:[#allocation4 + $0x6c] sm:$0xe]
      %v5634 = vld [vmem:[#allocation4 + $0x70] sm:$0xf]
      %v5635 = vld [vmem:[#allocation4 + $0x74] sm:$0x1]
      %v5636 = vld [vmem:[#allocation4 + $0x78] sm:$0xe]
      %v5637 = vld [vmem:[#allocation4 + $0x7c] sm:$0xf]
      %v5638 = vld [vmem:[#allocation4 + $0x80] sm:$0x1]
      %v5639 = vld [vmem:[#allocation4 + $0x84] sm:$0xe]
      %v5640 = vld [vmem:[#allocation4 + $0x88] sm:$0xf]
      %v5641 = vld [vmem:[#allocation4 + $0x8c] sm:$0x1]
      %v5642 = vld [vmem:[#allocation4 + $0x90] sm:$0xe]
      %v5643 = vld [vmem:[#allocation4 + $0x94] sm:$0xf]
      %v5644 = vld [vmem:[#allocation4 + $0x98] sm:$0x1]
      %v5645 = vld [vmem:[#allocation4 + $0x9c] sm:$0xe]
      %v5646 = vld [vmem:[#allocation4 + $0xa0] sm:$0xf]
      %v5647 = vld [vmem:[#allocation4 + $0xa4] sm:$0x1]
      %v5648 = vld [vmem:[#allocation4 + $0xa8] sm:$0xe]
      %v5649 = vld [vmem:[#allocation4 + $0xac] sm:$0xf]
      %v5650 = vld [vmem:[#allocation4 + $0xb0] sm:$0x1]
      %v5651 = vld [vmem:[#allocation4 + $0xb4] sm:$0xe]
      %v5652 = vld [vmem:[#allocation4 + $0xb8] sm:$0xf]
      %v5653 = vld [vmem:[#allocation4 + $0xbc] sm:$0x1]
      %v5702 = vrot.slane %v5606, 5
      %v5703 = vrot.slane %v5702, 4
      %v5704 = vrot.slane %v5607, 5
      %v5705 = vsel %vm1492, %v5703, %v5704
      %v5706 = vrot.slane %v5704, 4
      %v5707 = vrot.slane %v5608, 5
      %v5708 = vsel %vm1492, %v5706, %v5707
      %v5709 = vrot.slane %v5609, 5
      %v5710 = vrot.slane %v5709, 4
      %v5711 = vrot.slane %v5610, 5
      %v5712 = vsel %vm1492, %v5710, %v5711
      %v5713 = vrot.slane %v5711, 4
      %v5714 = vrot.slane %v5611, 5
      %v5715 = vsel %vm1492, %v5713, %v5714
      %v5716 = vrot.slane %v5612, 5
      %v5717 = vrot.slane %v5716, 4
      %v5718 = vrot.slane %v5613, 5
      %v5719 = vsel %vm1492, %v5717, %v5718
      %v5720 = vrot.slane %v5718, 4
      %v5721 = vrot.slane %v5614, 5
      %v5722 = vsel %vm1492, %v5720, %v5721
      %v5723 = vrot.slane %v5615, 5
      %v5724 = vrot.slane %v5723, 4
      %v5725 = vrot.slane %v5616, 5
      %v5726 = vsel %vm1492, %v5724, %v5725
      %v5727 = vrot.slane %v5725, 4
      %v5728 = vrot.slane %v5617, 5
      %v5729 = vsel %vm1492, %v5727, %v5728
      %v5730 = vrot.slane %v5618, 5
      %v5731 = vrot.slane %v5730, 4
      %v5732 = vrot.slane %v5619, 5
      %v5733 = vsel %vm1492, %v5731, %v5732
      %v5734 = vrot.slane %v5732, 4
      %v5735 = vrot.slane %v5620, 5
      %v5736 = vsel %vm1492, %v5734, %v5735
      %v5737 = vrot.slane %v5621, 5
      %v5738 = vrot.slane %v5737, 4
      %v5739 = vrot.slane %v5622, 5
      %v5740 = vsel %vm1492, %v5738, %v5739
      %v5741 = vrot.slane %v5739, 4
      %v5742 = vrot.slane %v5623, 5
      %v5743 = vsel %vm1492, %v5741, %v5742
      %v5744 = vrot.slane %v5624, 5
      %v5745 = vrot.slane %v5744, 4
      %v5746 = vrot.slane %v5625, 5
      %v5747 = vsel %vm1492, %v5745, %v5746
      %v5748 = vrot.slane %v5746, 4
      %v5749 = vrot.slane %v5626, 5
      %v5750 = vsel %vm1492, %v5748, %v5749
      %v5751 = vrot.slane %v5627, 5
      %v5752 = vrot.slane %v5751, 4
      %v5753 = vrot.slane %v5628, 5
      %v5754 = vsel %vm1492, %v5752, %v5753
      %v5755 = vrot.slane %v5753, 4
      %v5756 = vrot.slane %v5629, 5
      %v5757 = vsel %vm1492, %v5755, %v5756
      %v5758 = vrot.slane %v5630, 5
      %v5759 = vrot.slane %v5758, 4
      %v5760 = vrot.slane %v5631, 5
      %v5761 = vsel %vm1492, %v5759, %v5760
      %v5762 = vrot.slane %v5760, 4
      %v5763 = vrot.slane %v5632, 5
      %v5764 = vsel %vm1492, %v5762, %v5763
      %v5765 = vrot.slane %v5633, 5
      %v5766 = vrot.slane %v5765, 4
      %v5767 = vrot.slane %v5634, 5
      %v5768 = vsel %vm1492, %v5766, %v5767
      %v5769 = vrot.slane %v5767, 4
      %v5770 = vrot.slane %v5635, 5
      %v5771 = vsel %vm1492, %v5769, %v5770
      %v5772 = vrot.slane %v5636, 5
      %v5773 = vrot.slane %v5772, 4
      %v5774 = vrot.slane %v5637, 5
      %v5775 = vsel %vm1492, %v5773, %v5774
      %v5776 = vrot.slane %v5774, 4
      %v5777 = vrot.slane %v5638, 5
      %v5778 = vsel %vm1492, %v5776, %v5777
      %v5779 = vrot.slane %v5639, 5
      %v5780 = vrot.slane %v5779, 4
      %v5781 = vrot.slane %v5640, 5
      %v5782 = vsel %vm1492, %v5780, %v5781
      %v5783 = vrot.slane %v5781, 4
      %v5784 = vrot.slane %v5641, 5
      %v5785 = vsel %vm1492, %v5783, %v5784
      %v5786 = vrot.slane %v5642, 5
      %v5787 = vrot.slane %v5786, 4
      %v5788 = vrot.slane %v5643, 5
      %v5789 = vsel %vm1492, %v5787, %v5788
      %v5790 = vrot.slane %v5788, 4
      %v5791 = vrot.slane %v5644, 5
      %v5792 = vsel %vm1492, %v5790, %v5791
      %v5793 = vrot.slane %v5645, 5
      %v5794 = vrot.slane %v5793, 4
      %v5795 = vrot.slane %v5646, 5
      %v5796 = vsel %vm1492, %v5794, %v5795
      %v5797 = vrot.slane %v5795, 4
      %v5798 = vrot.slane %v5647, 5
      %v5799 = vsel %vm1492, %v5797, %v5798
      %v5800 = vrot.slane %v5648, 5
      %v5801 = vrot.slane %v5800, 4
      %v5802 = vrot.slane %v5649, 5
      %v5803 = vsel %vm1492, %v5801, %v5802
      %v5804 = vrot.slane %v5802, 4
      %v5805 = vrot.slane %v5650, 5
      %v5806 = vsel %vm1492, %v5804, %v5805
      %v5807 = vrot.slane %v5651, 5
      %v5808 = vrot.slane %v5807, 4
      %v5809 = vrot.slane %v5652, 5
      %v5810 = vsel %vm1492, %v5808, %v5809
      %v5811 = vrot.slane %v5809, 4
      %v5812 = vrot.slane %v5653, 5
      %v5813 = vsel %vm1492, %v5811, %v5812
      %v5814 = vunpack.c.l.b16 %v5705
      %v5815 = vunpack.c.l.b16 %v5708
      %v5816 = vunpack.c.l.b16 %v5712
      %v5817 = vunpack.c.l.b16 %v5715
      %v5818 = vunpack.c.l.b16 %v5719
      %v5819 = vunpack.c.l.b16 %v5722
      %v5820 = vunpack.c.l.b16 %v5726
      %v5821 = vunpack.c.l.b16 %v5729
      %v5822 = vunpack.c.l.b16 %v5733
      %v5823 = vunpack.c.l.b16 %v5736
      %v5824 = vunpack.c.l.b16 %v5740
      %v5825 = vunpack.c.l.b16 %v5743
      %v5826 = vunpack.c.l.b16 %v5747
      %v5827 = vunpack.c.l.b16 %v5750
      %v5828 = vunpack.c.l.b16 %v5754
      %v5829 = vunpack.c.l.b16 %v5757
      %v5830 = vunpack.c.l.b16 %v5761
      %v5831 = vunpack.c.l.b16 %v5764
      %v5832 = vunpack.c.l.b16 %v5768
      %v5833 = vunpack.c.l.b16 %v5771
      %v5834 = vunpack.c.l.b16 %v5775
      %v5835 = vunpack.c.l.b16 %v5778
      %v5836 = vunpack.c.l.b16 %v5782
      %v5837 = vunpack.c.l.b16 %v5785
      %v5838 = vunpack.c.l.b16 %v5789
      %v5839 = vunpack.c.l.b16 %v5792
      %v5840 = vunpack.c.l.b16 %v5796
      %v5841 = vunpack.c.l.b16 %v5799
      %v5842 = vunpack.c.l.b16 %v5803
      %v5843 = vunpack.c.l.b16 %v5806
      %v5844 = vunpack.c.l.b16 %v5810
      %v5845 = vunpack.c.l.b16 %v5813
      %v5846 = vpack.c.b16 %v5815, %v5814
      %v5847 = vpack.c.b16 %v5817, %v5816
      %v5848 = vpack.c.b16 %v5819, %v5818
      %v5849 = vpack.c.b16 %v5821, %v5820
      %v5850 = vpack.c.b16 %v5823, %v5822
      %v5851 = vpack.c.b16 %v5825, %v5824
      %v5852 = vpack.c.b16 %v5827, %v5826
      %v5853 = vpack.c.b16 %v5829, %v5828
      %v5854 = vpack.c.b16 %v5831, %v5830
      %v5855 = vpack.c.b16 %v5833, %v5832
      %v5856 = vpack.c.b16 %v5835, %v5834
      %v5857 = vpack.c.b16 %v5837, %v5836
      %v5858 = vpack.c.b16 %v5839, %v5838
      %v5859 = vpack.c.b16 %v5841, %v5840
      %v5860 = vpack.c.b16 %v5843, %v5842
      %v5861 = vpack.c.b16 %v5845, %v5844
      %5862 = vrot.lane.b32.xlu0 %v5846, 16
      %v5863 = vpop.permute.xlu0 %5862
      %5864 = vrot.lane.b32.xlu0 %v5847, 16
      %v5865 = vpop.permute.xlu0 %5864
      %5866 = vrot.lane.b32.xlu0 %v5848, 16
      %v5867 = vpop.permute.xlu0 %5866
      %5868 = vrot.lane.b32.xlu0 %v5849, 16
      %v5869 = vpop.permute.xlu0 %5868
      %5870 = vrot.lane.b32.xlu0 %v5850, 16
      %v5871 = vpop.permute.xlu0 %5870
      %5872 = vrot.lane.b32.xlu0 %v5851, 16
      %v5873 = vpop.permute.xlu0 %5872
      %5874 = vrot.lane.b32.xlu0 %v5852, 16
      %v5875 = vpop.permute.xlu0 %5874
      %5876 = vrot.lane.b32.xlu0 %v5853, 16
      %v5877 = vpop.permute.xlu0 %5876
      %5878 = vrot.lane.b32.xlu0 %v5854, 16
      %v5879 = vpop.permute.xlu0 %5878
      %5880 = vrot.lane.b32.xlu0 %v5855, 16
      %v5881 = vpop.permute.xlu0 %5880
      %5882 = vrot.lane.b32.xlu0 %v5856, 16
      %v5883 = vpop.permute.xlu0 %5882
      %5884 = vrot.lane.b32.xlu0 %v5857, 16
      %v5885 = vpop.permute.xlu0 %5884
      %5886 = vrot.lane.b32.xlu0 %v5858, 16
      %v5887 = vpop.permute.xlu0 %5886
      %5888 = vrot.lane.b32.xlu0 %v5859, 16
      %v5889 = vpop.permute.xlu0 %5888
      %5890 = vrot.lane.b32.xlu0 %v5860, 16
      %v5891 = vpop.permute.xlu0 %5890
      %5892 = vrot.lane.b32.xlu0 %v5861, 16
      %v5893 = vpop.permute.xlu0 %5892
      %vm5910 = vcmask 195712
      %5911 = vst.msk [vmem:[#allocation5] sm:$0xff] %vm5910, %v5863
      %5912 = vst.msk [vmem:[#allocation5 + $0x8] sm:$0xff] %vm5910, %v5865
      %5913 = vst.msk [vmem:[#allocation5 + $0x10] sm:$0xff] %vm5910, %v5867
      %5914 = vst.msk [vmem:[#allocation5 + $0x18] sm:$0xff] %vm5910, %v5869
      %5915 = vst.msk [vmem:[#allocation5 + $0x20] sm:$0xff] %vm5910, %v5871
      %5916 = vst.msk [vmem:[#allocation5 + $0x28] sm:$0xff] %vm5910, %v5873
      %5917 = vst.msk [vmem:[#allocation5 + $0x30] sm:$0xff] %vm5910, %v5875
      %5918 = vst.msk [vmem:[#allocation5 + $0x38] sm:$0xff] %vm5910, %v5877
      %5919 = vst.msk [vmem:[#allocation5 + $0x40] sm:$0xff] %vm5910, %v5879
      %5920 = vst.msk [vmem:[#allocation5 + $0x48] sm:$0xff] %vm5910, %v5881
      %5921 = vst.msk [vmem:[#allocation5 + $0x50] sm:$0xff] %vm5910, %v5883
      %5922 = vst.msk [vmem:[#allocation5 + $0x58] sm:$0xff] %vm5910, %v5885
      %5923 = vst.msk [vmem:[#allocation5 + $0x60] sm:$0xff] %vm5910, %v5887
      %5924 = vst.msk [vmem:[#allocation5 + $0x68] sm:$0xff] %vm5910, %v5889
      %5925 = vst.msk [vmem:[#allocation5 + $0x70] sm:$0xff] %vm5910, %v5891
      %5926 = vst.msk [vmem:[#allocation5 + $0x78] sm:$0xff] %vm5910, %v5893
      %v5927 = vld [vmem:[%s4799] sm:$0xf]
      %v5928 = vld [vmem:[%s4799 + $0x4] sm:$0xf]
      %v5929 = vld [vmem:[%s4799 + $0xc] sm:$0xf]
      %v5930 = vld [vmem:[%s4799 + $0x10] sm:$0xf]
      %v5931 = vld [vmem:[%s4799 + $0x18] sm:$0xf]
      %v5932 = vld [vmem:[%s4799 + $0x1c] sm:$0xf]
      %v5933 = vld [vmem:[%s4799 + $0x24] sm:$0xf]
      %v5934 = vld [vmem:[%s4799 + $0x28] sm:$0xf]
      %v5935 = vld [vmem:[%s4799 + $0x30] sm:$0xf]
      %v5936 = vld [vmem:[%s4799 + $0x34] sm:$0xf]
      %v5937 = vld [vmem:[%s4799 + $0x3c] sm:$0xf]
      %v5938 = vld [vmem:[%s4799 + $0x40] sm:$0xf]
      %v5939 = vld [vmem:[%s4799 + $0x48] sm:$0xf]
      %v5940 = vld [vmem:[%s4799 + $0x4c] sm:$0xf]
      %v5941 = vld [vmem:[%s4799 + $0x54] sm:$0xf]
      %v5942 = vld [vmem:[%s4799 + $0x58] sm:$0xf]
      %v5943 = vld [vmem:[%s4799 + $0x60] sm:$0xf]
      %v5944 = vld [vmem:[%s4799 + $0x64] sm:$0xf]
      %v5945 = vld [vmem:[%s4799 + $0x6c] sm:$0xf]
      %v5946 = vld [vmem:[%s4799 + $0x70] sm:$0xf]
      %v5947 = vld [vmem:[%s4799 + $0x78] sm:$0xf]
      %v5948 = vld [vmem:[%s4799 + $0x7c] sm:$0xf]
      %v5949 = vld [vmem:[%s4799 + $0x84] sm:$0xf]
      %v5950 = vld [vmem:[%s4799 + $0x88] sm:$0xf]
      %v5951 = vld [vmem:[%s4799 + $0x90] sm:$0xf]
      %v5952 = vld [vmem:[%s4799 + $0x94] sm:$0xf]
      %v5953 = vld [vmem:[%s4799 + $0x9c] sm:$0xf]
      %v5954 = vld [vmem:[%s4799 + $0xa0] sm:$0xf]
      %v5955 = vld [vmem:[%s4799 + $0xa8] sm:$0xf]
      %v5956 = vld [vmem:[%s4799 + $0xac] sm:$0xf]
      %v5957 = vld [vmem:[%s4799 + $0xb4] sm:$0xf]
      %v5958 = vld [vmem:[%s4799 + $0xb8] sm:$0xf]
      %v5991 = vunpack.c.l.b16 %v5927
      %v5992 = vunpack.c.l.b16 %v5928
      %v5993 = vunpack.c.l.b16 %v5929
      %v5994 = vunpack.c.l.b16 %v5930
      %v5995 = vunpack.c.l.b16 %v5931
      %v5996 = vunpack.c.l.b16 %v5932
      %v5997 = vunpack.c.l.b16 %v5933
      %v5998 = vunpack.c.l.b16 %v5934
      %v5999 = vunpack.c.l.b16 %v5935
      %v6000 = vunpack.c.l.b16 %v5936
      %v6001 = vunpack.c.l.b16 %v5937
      %v6002 = vunpack.c.l.b16 %v5938
      %v6003 = vunpack.c.l.b16 %v5939
      %v6004 = vunpack.c.l.b16 %v5940
      %v6005 = vunpack.c.l.b16 %v5941
      %v6006 = vunpack.c.l.b16 %v5942
      %v6007 = vunpack.c.l.b16 %v5943
      %v6008 = vunpack.c.l.b16 %v5944
      %v6009 = vunpack.c.l.b16 %v5945
      %v6010 = vunpack.c.l.b16 %v5946
      %v6011 = vunpack.c.l.b16 %v5947
      %v6012 = vunpack.c.l.b16 %v5948
      %v6013 = vunpack.c.l.b16 %v5949
      %v6014 = vunpack.c.l.b16 %v5950
      %v6015 = vunpack.c.l.b16 %v5951
      %v6016 = vunpack.c.l.b16 %v5952
      %v6017 = vunpack.c.l.b16 %v5953
      %v6018 = vunpack.c.l.b16 %v5954
      %v6019 = vunpack.c.l.b16 %v5955
      %v6020 = vunpack.c.l.b16 %v5956
      %v6021 = vunpack.c.l.b16 %v5957
      %v6022 = vunpack.c.l.b16 %v5958
      %v6023 = vpack.c.b16 %v5992, %v5991
      %v6024 = vpack.c.b16 %v5994, %v5993
      %v6025 = vpack.c.b16 %v5996, %v5995
      %v6026 = vpack.c.b16 %v5998, %v5997
      %v6027 = vpack.c.b16 %v6000, %v5999
      %v6028 = vpack.c.b16 %v6002, %v6001
      %v6029 = vpack.c.b16 %v6004, %v6003
      %v6030 = vpack.c.b16 %v6006, %v6005
      %v6031 = vpack.c.b16 %v6008, %v6007
      %v6032 = vpack.c.b16 %v6010, %v6009
      %v6033 = vpack.c.b16 %v6012, %v6011
      %v6034 = vpack.c.b16 %v6014, %v6013
      %v6035 = vpack.c.b16 %v6016, %v6015
      %v6036 = vpack.c.b16 %v6018, %v6017
      %v6037 = vpack.c.b16 %v6020, %v6019
      %v6038 = vpack.c.b16 %v6022, %v6021
      %6039 = vrot.lane.b32.xlu0 %v6023, 24
      %v6040 = vpop.permute.xlu0 %6039
      %6041 = vrot.lane.b32.xlu0 %v6024, 24
      %v6042 = vpop.permute.xlu0 %6041
      %6043 = vrot.lane.b32.xlu0 %v6025, 24
      %v6044 = vpop.permute.xlu0 %6043
      %6045 = vrot.lane.b32.xlu0 %v6026, 24
      %v6046 = vpop.permute.xlu0 %6045
      %6047 = vrot.lane.b32.xlu0 %v6027, 24
      %v6048 = vpop.permute.xlu0 %6047
      %6049 = vrot.lane.b32.xlu0 %v6028, 24
      %v6050 = vpop.permute.xlu0 %6049
      %6051 = vrot.lane.b32.xlu0 %v6029, 24
      %v6052 = vpop.permute.xlu0 %6051
      %6053 = vrot.lane.b32.xlu0 %v6030, 24
      %v6054 = vpop.permute.xlu0 %6053
      %6055 = vrot.lane.b32.xlu0 %v6031, 24
      %v6056 = vpop.permute.xlu0 %6055
      %6057 = vrot.lane.b32.xlu0 %v6032, 24
      %v6058 = vpop.permute.xlu0 %6057
      %6059 = vrot.lane.b32.xlu0 %v6033, 24
      %v6060 = vpop.permute.xlu0 %6059
      %6061 = vrot.lane.b32.xlu0 %v6034, 24
      %v6062 = vpop.permute.xlu0 %6061
      %6063 = vrot.lane.b32.xlu0 %v6035, 24
      %v6064 = vpop.permute.xlu0 %6063
      %6065 = vrot.lane.b32.xlu0 %v6036, 24
      %v6066 = vpop.permute.xlu0 %6065
      %6067 = vrot.lane.b32.xlu0 %v6037, 24
      %v6068 = vpop.permute.xlu0 %6067
      %6069 = vrot.lane.b32.xlu0 %v6038, 24
      %v6070 = vpop.permute.xlu0 %6069
      %vm6087 = vcmask 261312
      %6088 = vst.msk [vmem:[#allocation5] sm:$0xff] %vm6087, %v6040
      %6089 = vst.msk [vmem:[#allocation5 + $0x8] sm:$0xff] %vm6087, %v6042
      %6090 = vst.msk [vmem:[#allocation5 + $0x10] sm:$0xff] %vm6087, %v6044
      %6091 = vst.msk [vmem:[#allocation5 + $0x18] sm:$0xff] %vm6087, %v6046
      %6092 = vst.msk [vmem:[#allocation5 + $0x20] sm:$0xff] %vm6087, %v6048
      %6093 = vst.msk [vmem:[#allocation5 + $0x28] sm:$0xff] %vm6087, %v6050
      %6094 = vst.msk [vmem:[#allocation5 + $0x30] sm:$0xff] %vm6087, %v6052
      %6095 = vst.msk [vmem:[#allocation5 + $0x38] sm:$0xff] %vm6087, %v6054
      %6096 = vst.msk [vmem:[#allocation5 + $0x40] sm:$0xff] %vm6087, %v6056
      %6097 = vst.msk [vmem:[#allocation5 + $0x48] sm:$0xff] %vm6087, %v6058
      %6098 = vst.msk [vmem:[#allocation5 + $0x50] sm:$0xff] %vm6087, %v6060
      %6099 = vst.msk [vmem:[#allocation5 + $0x58] sm:$0xff] %vm6087, %v6062
      %6100 = vst.msk [vmem:[#allocation5 + $0x60] sm:$0xff] %vm6087, %v6064
      %6101 = vst.msk [vmem:[#allocation5 + $0x68] sm:$0xff] %vm6087, %v6066
      %6102 = vst.msk [vmem:[#allocation5 + $0x70] sm:$0xff] %vm6087, %v6068
      %6103 = vst.msk [vmem:[#allocation5 + $0x78] sm:$0xff] %vm6087, %v6070
      %v6104 = vld [vmem:[%s4799] sm:$0xf]
      %v6105 = vld [vmem:[%s4799 + $0x4] sm:$0xf]
      %v6106 = vld [vmem:[%s4799 + $0x8] sm:$0x1]
      %v6107 = vld [vmem:[%s4799 + $0xc] sm:$0xf]
      %v6108 = vld [vmem:[%s4799 + $0x10] sm:$0xf]
      %v6109 = vld [vmem:[%s4799 + $0x14] sm:$0x1]
      %v6110 = vld [vmem:[%s4799 + $0x18] sm:$0xf]
      %v6111 = vld [vmem:[%s4799 + $0x1c] sm:$0xf]
      %v6112 = vld [vmem:[%s4799 + $0x20] sm:$0x1]
      %v6113 = vld [vmem:[%s4799 + $0x24] sm:$0xf]
      %v6114 = vld [vmem:[%s4799 + $0x28] sm:$0xf]
      %v6115 = vld [vmem:[%s4799 + $0x2c] sm:$0x1]
      %v6116 = vld [vmem:[%s4799 + $0x30] sm:$0xf]
      %v6117 = vld [vmem:[%s4799 + $0x34] sm:$0xf]
      %v6118 = vld [vmem:[%s4799 + $0x38] sm:$0x1]
      %v6119 = vld [vmem:[%s4799 + $0x3c] sm:$0xf]
      %v6120 = vld [vmem:[%s4799 + $0x40] sm:$0xf]
      %v6121 = vld [vmem:[%s4799 + $0x44] sm:$0x1]
      %v6122 = vld [vmem:[%s4799 + $0x48] sm:$0xf]
      %v6123 = vld [vmem:[%s4799 + $0x4c] sm:$0xf]
      %v6124 = vld [vmem:[%s4799 + $0x50] sm:$0x1]
      %v6125 = vld [vmem:[%s4799 + $0x54] sm:$0xf]
      %v6126 = vld [vmem:[%s4799 + $0x58] sm:$0xf]
      %v6127 = vld [vmem:[%s4799 + $0x5c] sm:$0x1]
      %v6128 = vld [vmem:[%s4799 + $0x60] sm:$0xf]
      %v6129 = vld [vmem:[%s4799 + $0x64] sm:$0xf]
      %v6130 = vld [vmem:[%s4799 + $0x68] sm:$0x1]
      %v6131 = vld [vmem:[%s4799 + $0x6c] sm:$0xf]
      %v6132 = vld [vmem:[%s4799 + $0x70] sm:$0xf]
      %v6133 = vld [vmem:[%s4799 + $0x74] sm:$0x1]
      %v6134 = vld [vmem:[%s4799 + $0x78] sm:$0xf]
      %v6135 = vld [vmem:[%s4799 + $0x7c] sm:$0xf]
      %v6136 = vld [vmem:[%s4799 + $0x80] sm:$0x1]
      %v6137 = vld [vmem:[%s4799 + $0x84] sm:$0xf]
      %v6138 = vld [vmem:[%s4799 + $0x88] sm:$0xf]
      %v6139 = vld [vmem:[%s4799 + $0x8c] sm:$0x1]
      %v6140 = vld [vmem:[%s4799 + $0x90] sm:$0xf]
      %v6141 = vld [vmem:[%s4799 + $0x94] sm:$0xf]
      %v6142 = vld [vmem:[%s4799 + $0x98] sm:$0x1]
      %v6143 = vld [vmem:[%s4799 + $0x9c] sm:$0xf]
      %v6144 = vld [vmem:[%s4799 + $0xa0] sm:$0xf]
      %v6145 = vld [vmem:[%s4799 + $0xa4] sm:$0x1]
      %v6146 = vld [vmem:[%s4799 + $0xa8] sm:$0xf]
      %v6147 = vld [vmem:[%s4799 + $0xac] sm:$0xf]
      %v6148 = vld [vmem:[%s4799 + $0xb0] sm:$0x1]
      %v6149 = vld [vmem:[%s4799 + $0xb4] sm:$0xf]
      %v6150 = vld [vmem:[%s4799 + $0xb8] sm:$0xf]
      %v6151 = vld [vmem:[%s4799 + $0xbc] sm:$0x1]
      %v6153 = vshrl.u32 %v6104, 16
      %v6155 = vrot.slane %v6153, 4
      %v6156 = vshll.u32 %v6104, 16
      %v6158 = vrot.slane %v6156, 5
      %v6159 = vor.u32 %v6155, %v6158
      %v6160 = vrot.slane %v6159, 4
      %v6162 = vshll.u32 %v6105, 16
      %v6164 = vrot.slane %v6162, 5
      %v6165 = vsel %vm896, %v6160, %v6164
      %v6166 = vshrl.u32 %v6105, 16
      %v6168 = vrot.slane %v6166, 4
      %v6169 = vor.u32 %v6168, %v6164
      %v6170 = vrot.slane %v6169, 4
      %v6172 = vshll.u32 %v6106, 16
      %v6174 = vrot.slane %v6172, 5
      %v6175 = vsel %vm896, %v6170, %v6174
      %v6177 = vshrl.u32 %v6107, 16
      %v6179 = vrot.slane %v6177, 4
      %v6180 = vshll.u32 %v6107, 16
      %v6182 = vrot.slane %v6180, 5
      %v6183 = vor.u32 %v6179, %v6182
      %v6184 = vrot.slane %v6183, 4
      %v6186 = vshll.u32 %v6108, 16
      %v6188 = vrot.slane %v6186, 5
      %v6189 = vsel %vm896, %v6184, %v6188
      %v6190 = vshrl.u32 %v6108, 16
      %v6192 = vrot.slane %v6190, 4
      %v6193 = vor.u32 %v6192, %v6188
      %v6194 = vrot.slane %v6193, 4
      %v6196 = vshll.u32 %v6109, 16
      %v6198 = vrot.slane %v6196, 5
      %v6199 = vsel %vm896, %v6194, %v6198
      %v6201 = vshrl.u32 %v6110, 16
      %v6203 = vrot.slane %v6201, 4
      %v6204 = vshll.u32 %v6110, 16
      %v6206 = vrot.slane %v6204, 5
      %v6207 = vor.u32 %v6203, %v6206
      %v6208 = vrot.slane %v6207, 4
      %v6210 = vshll.u32 %v6111, 16
      %v6212 = vrot.slane %v6210, 5
      %v6213 = vsel %vm896, %v6208, %v6212
      %v6214 = vshrl.u32 %v6111, 16
      %v6216 = vrot.slane %v6214, 4
      %v6217 = vor.u32 %v6216, %v6212
      %v6218 = vrot.slane %v6217, 4
      %v6220 = vshll.u32 %v6112, 16
      %v6222 = vrot.slane %v6220, 5
      %v6223 = vsel %vm896, %v6218, %v6222
      %v6225 = vshrl.u32 %v6113, 16
      %v6227 = vrot.slane %v6225, 4
      %v6228 = vshll.u32 %v6113, 16
      %v6230 = vrot.slane %v6228, 5
      %v6231 = vor.u32 %v6227, %v6230
      %v6232 = vrot.slane %v6231, 4
      %v6234 = vshll.u32 %v6114, 16
      %v6236 = vrot.slane %v6234, 5
      %v6237 = vsel %vm896, %v6232, %v6236
      %v6238 = vshrl.u32 %v6114, 16
      %v6240 = vrot.slane %v6238, 4
      %v6241 = vor.u32 %v6240, %v6236
      %v6242 = vrot.slane %v6241, 4
      %v6244 = vshll.u32 %v6115, 16
      %v6246 = vrot.slane %v6244, 5
      %v6247 = vsel %vm896, %v6242, %v6246
      %v6249 = vshrl.u32 %v6116, 16
      %v6251 = vrot.slane %v6249, 4
      %v6252 = vshll.u32 %v6116, 16
      %v6254 = vrot.slane %v6252, 5
      %v6255 = vor.u32 %v6251, %v6254
      %v6256 = vrot.slane %v6255, 4
      %v6258 = vshll.u32 %v6117, 16
      %v6260 = vrot.slane %v6258, 5
      %v6261 = vsel %vm896, %v6256, %v6260
      %v6262 = vshrl.u32 %v6117, 16
      %v6264 = vrot.slane %v6262, 4
      %v6265 = vor.u32 %v6264, %v6260
      %v6266 = vrot.slane %v6265, 4
      %v6268 = vshll.u32 %v6118, 16
      %v6270 = vrot.slane %v6268, 5
      %v6271 = vsel %vm896, %v6266, %v6270
      %v6273 = vshrl.u32 %v6119, 16
      %v6275 = vrot.slane %v6273, 4
      %v6276 = vshll.u32 %v6119, 16
      %v6278 = vrot.slane %v6276, 5
      %v6279 = vor.u32 %v6275, %v6278
      %v6280 = vrot.slane %v6279, 4
      %v6282 = vshll.u32 %v6120, 16
      %v6284 = vrot.slane %v6282, 5
      %v6285 = vsel %vm896, %v6280, %v6284
      %v6286 = vshrl.u32 %v6120, 16
      %v6288 = vrot.slane %v6286, 4
      %v6289 = vor.u32 %v6288, %v6284
      %v6290 = vrot.slane %v6289, 4
      %v6292 = vshll.u32 %v6121, 16
      %v6294 = vrot.slane %v6292, 5
      %v6295 = vsel %vm896, %v6290, %v6294
      %v6297 = vshrl.u32 %v6122, 16
      %v6299 = vrot.slane %v6297, 4
      %v6300 = vshll.u32 %v6122, 16
      %v6302 = vrot.slane %v6300, 5
      %v6303 = vor.u32 %v6299, %v6302
      %v6304 = vrot.slane %v6303, 4
      %v6306 = vshll.u32 %v6123, 16
      %v6308 = vrot.slane %v6306, 5
      %v6309 = vsel %vm896, %v6304, %v6308
      %v6310 = vshrl.u32 %v6123, 16
      %v6312 = vrot.slane %v6310, 4
      %v6313 = vor.u32 %v6312, %v6308
      %v6314 = vrot.slane %v6313, 4
      %v6316 = vshll.u32 %v6124, 16
      %v6318 = vrot.slane %v6316, 5
      %v6319 = vsel %vm896, %v6314, %v6318
      %v6321 = vshrl.u32 %v6125, 16
      %v6323 = vrot.slane %v6321, 4
      %v6324 = vshll.u32 %v6125, 16
      %v6326 = vrot.slane %v6324, 5
      %v6327 = vor.u32 %v6323, %v6326
      %v6328 = vrot.slane %v6327, 4
      %v6330 = vshll.u32 %v6126, 16
      %v6332 = vrot.slane %v6330, 5
      %v6333 = vsel %vm896, %v6328, %v6332
      %v6334 = vshrl.u32 %v6126, 16
      %v6336 = vrot.slane %v6334, 4
      %v6337 = vor.u32 %v6336, %v6332
      %v6338 = vrot.slane %v6337, 4
      %v6340 = vshll.u32 %v6127, 16
      %v6342 = vrot.slane %v6340, 5
      %v6343 = vsel %vm896, %v6338, %v6342
      %v6345 = vshrl.u32 %v6128, 16
      %v6347 = vrot.slane %v6345, 4
      %v6348 = vshll.u32 %v6128, 16
      %v6350 = vrot.slane %v6348, 5
      %v6351 = vor.u32 %v6347, %v6350
      %v6352 = vrot.slane %v6351, 4
      %v6354 = vshll.u32 %v6129, 16
      %v6356 = vrot.slane %v6354, 5
      %v6357 = vsel %vm896, %v6352, %v6356
      %v6358 = vshrl.u32 %v6129, 16
      %v6360 = vrot.slane %v6358, 4
      %v6361 = vor.u32 %v6360, %v6356
      %v6362 = vrot.slane %v6361, 4
      %v6364 = vshll.u32 %v6130, 16
      %v6366 = vrot.slane %v6364, 5
      %v6367 = vsel %vm896, %v6362, %v6366
      %v6369 = vshrl.u32 %v6131, 16
      %v6371 = vrot.slane %v6369, 4
      %v6372 = vshll.u32 %v6131, 16
      %v6374 = vrot.slane %v6372, 5
      %v6375 = vor.u32 %v6371, %v6374
      %v6376 = vrot.slane %v6375, 4
      %v6378 = vshll.u32 %v6132, 16
      %v6380 = vrot.slane %v6378, 5
      %v6381 = vsel %vm896, %v6376, %v6380
      %v6382 = vshrl.u32 %v6132, 16
      %v6384 = vrot.slane %v6382, 4
      %v6385 = vor.u32 %v6384, %v6380
      %v6386 = vrot.slane %v6385, 4
      %v6388 = vshll.u32 %v6133, 16
      %v6390 = vrot.slane %v6388, 5
      %v6391 = vsel %vm896, %v6386, %v6390
      %v6393 = vshrl.u32 %v6134, 16
      %v6395 = vrot.slane %v6393, 4
      %v6396 = vshll.u32 %v6134, 16
      %v6398 = vrot.slane %v6396, 5
      %v6399 = vor.u32 %v6395, %v6398
      %v6400 = vrot.slane %v6399, 4
      %v6402 = vshll.u32 %v6135, 16
      %v6404 = vrot.slane %v6402, 5
      %v6405 = vsel %vm896, %v6400, %v6404
      %v6406 = vshrl.u32 %v6135, 16
      %v6408 = vrot.slane %v6406, 4
      %v6409 = vor.u32 %v6408, %v6404
      %v6410 = vrot.slane %v6409, 4
      %v6412 = vshll.u32 %v6136, 16
      %v6414 = vrot.slane %v6412, 5
      %v6415 = vsel %vm896, %v6410, %v6414
      %v6417 = vshrl.u32 %v6137, 16
      %v6419 = vrot.slane %v6417, 4
      %v6420 = vshll.u32 %v6137, 16
      %v6422 = vrot.slane %v6420, 5
      %v6423 = vor.u32 %v6419, %v6422
      %v6424 = vrot.slane %v6423, 4
      %v6426 = vshll.u32 %v6138, 16
      %v6428 = vrot.slane %v6426, 5
      %v6429 = vsel %vm896, %v6424, %v6428
      %v6430 = vshrl.u32 %v6138, 16
      %v6432 = vrot.slane %v6430, 4
      %v6433 = vor.u32 %v6432, %v6428
      %v6434 = vrot.slane %v6433, 4
      %v6436 = vshll.u32 %v6139, 16
      %v6438 = vrot.slane %v6436, 5
      %v6439 = vsel %vm896, %v6434, %v6438
      %v6441 = vshrl.u32 %v6140, 16
      %v6443 = vrot.slane %v6441, 4
      %v6444 = vshll.u32 %v6140, 16
      %v6446 = vrot.slane %v6444, 5
      %v6447 = vor.u32 %v6443, %v6446
      %v6448 = vrot.slane %v6447, 4
      %v6450 = vshll.u32 %v6141, 16
      %v6452 = vrot.slane %v6450, 5
      %v6453 = vsel %vm896, %v6448, %v6452
      %v6454 = vshrl.u32 %v6141, 16
      %v6456 = vrot.slane %v6454, 4
      %v6457 = vor.u32 %v6456, %v6452
      %v6458 = vrot.slane %v6457, 4
      %v6460 = vshll.u32 %v6142, 16
      %v6462 = vrot.slane %v6460, 5
      %v6463 = vsel %vm896, %v6458, %v6462
      %v6465 = vshrl.u32 %v6143, 16
      %v6467 = vrot.slane %v6465, 4
      %v6468 = vshll.u32 %v6143, 16
      %v6470 = vrot.slane %v6468, 5
      %v6471 = vor.u32 %v6467, %v6470
      %v6472 = vrot.slane %v6471, 4
      %v6474 = vshll.u32 %v6144, 16
      %v6476 = vrot.slane %v6474, 5
      %v6477 = vsel %vm896, %v6472, %v6476
      %v6478 = vshrl.u32 %v6144, 16
      %v6480 = vrot.slane %v6478, 4
      %v6481 = vor.u32 %v6480, %v6476
      %v6482 = vrot.slane %v6481, 4
      %v6484 = vshll.u32 %v6145, 16
      %v6486 = vrot.slane %v6484, 5
      %v6487 = vsel %vm896, %v6482, %v6486
      %v6489 = vshrl.u32 %v6146, 16
      %v6491 = vrot.slane %v6489, 4
      %v6492 = vshll.u32 %v6146, 16
      %v6494 = vrot.slane %v6492, 5
      %v6495 = vor.u32 %v6491, %v6494
      %v6496 = vrot.slane %v6495, 4
      %v6498 = vshll.u32 %v6147, 16
      %v6500 = vrot.slane %v6498, 5
      %v6501 = vsel %vm896, %v6496, %v6500
      %v6502 = vshrl.u32 %v6147, 16
      %v6504 = vrot.slane %v6502, 4
      %v6505 = vor.u32 %v6504, %v6500
      %v6506 = vrot.slane %v6505, 4
      %v6508 = vshll.u32 %v6148, 16
      %v6510 = vrot.slane %v6508, 5
      %v6511 = vsel %vm896, %v6506, %v6510
      %v6513 = vshrl.u32 %v6149, 16
      %v6515 = vrot.slane %v6513, 4
      %v6516 = vshll.u32 %v6149, 16
      %v6518 = vrot.slane %v6516, 5
      %v6519 = vor.u32 %v6515, %v6518
      %v6520 = vrot.slane %v6519, 4
      %v6522 = vshll.u32 %v6150, 16
      %v6524 = vrot.slane %v6522, 5
      %v6525 = vsel %vm896, %v6520, %v6524
      %v6526 = vshrl.u32 %v6150, 16
      %v6528 = vrot.slane %v6526, 4
      %v6529 = vor.u32 %v6528, %v6524
      %v6530 = vrot.slane %v6529, 4
      %v6532 = vshll.u32 %v6151, 16
      %v6534 = vrot.slane %v6532, 5
      %v6535 = vsel %vm896, %v6530, %v6534
      %v6536 = vunpack.c.l.b16 %v6165
      %v6537 = vunpack.c.l.b16 %v6175
      %v6538 = vunpack.c.l.b16 %v6189
      %v6539 = vunpack.c.l.b16 %v6199
      %v6540 = vunpack.c.l.b16 %v6213
      %v6541 = vunpack.c.l.b16 %v6223
      %v6542 = vunpack.c.l.b16 %v6237
      %v6543 = vunpack.c.l.b16 %v6247
      %v6544 = vunpack.c.l.b16 %v6261
      %v6545 = vunpack.c.l.b16 %v6271
      %v6546 = vunpack.c.l.b16 %v6285
      %v6547 = vunpack.c.l.b16 %v6295
      %v6548 = vunpack.c.l.b16 %v6309
      %v6549 = vunpack.c.l.b16 %v6319
      %v6550 = vunpack.c.l.b16 %v6333
      %v6551 = vunpack.c.l.b16 %v6343
      %v6552 = vunpack.c.l.b16 %v6357
      %v6553 = vunpack.c.l.b16 %v6367
      %v6554 = vunpack.c.l.b16 %v6381
      %v6555 = vunpack.c.l.b16 %v6391
      %v6556 = vunpack.c.l.b16 %v6405
      %v6557 = vunpack.c.l.b16 %v6415
      %v6558 = vunpack.c.l.b16 %v6429
      %v6559 = vunpack.c.l.b16 %v6439
      %v6560 = vunpack.c.l.b16 %v6453
      %v6561 = vunpack.c.l.b16 %v6463
      %v6562 = vunpack.c.l.b16 %v6477
      %v6563 = vunpack.c.l.b16 %v6487
      %v6564 = vunpack.c.l.b16 %v6501
      %v6565 = vunpack.c.l.b16 %v6511
      %v6566 = vunpack.c.l.b16 %v6525
      %v6567 = vunpack.c.l.b16 %v6535
      %v6568 = vpack.c.b16 %v6537, %v6536
      %v6569 = vpack.c.b16 %v6539, %v6538
      %v6570 = vpack.c.b16 %v6541, %v6540
      %v6571 = vpack.c.b16 %v6543, %v6542
      %v6572 = vpack.c.b16 %v6545, %v6544
      %v6573 = vpack.c.b16 %v6547, %v6546
      %v6574 = vpack.c.b16 %v6549, %v6548
      %v6575 = vpack.c.b16 %v6551, %v6550
      %v6576 = vpack.c.b16 %v6553, %v6552
      %v6577 = vpack.c.b16 %v6555, %v6554
      %v6578 = vpack.c.b16 %v6557, %v6556
      %v6579 = vpack.c.b16 %v6559, %v6558
      %v6580 = vpack.c.b16 %v6561, %v6560
      %v6581 = vpack.c.b16 %v6563, %v6562
      %v6582 = vpack.c.b16 %v6565, %v6564
      %v6583 = vpack.c.b16 %v6567, %v6566
      %6584 = vrot.lane.b32.xlu0 %v6568, 32
      %v6585 = vpop.permute.xlu0 %6584
      %6586 = vrot.lane.b32.xlu0 %v6569, 32
      %v6587 = vpop.permute.xlu0 %6586
      %6588 = vrot.lane.b32.xlu0 %v6570, 32
      %v6589 = vpop.permute.xlu0 %6588
      %6590 = vrot.lane.b32.xlu0 %v6571, 32
      %v6591 = vpop.permute.xlu0 %6590
      %6592 = vrot.lane.b32.xlu0 %v6572, 32
      %v6593 = vpop.permute.xlu0 %6592
      %6594 = vrot.lane.b32.xlu0 %v6573, 32
      %v6595 = vpop.permute.xlu0 %6594
      %6596 = vrot.lane.b32.xlu0 %v6574, 32
      %v6597 = vpop.permute.xlu0 %6596
      %6598 = vrot.lane.b32.xlu0 %v6575, 32
      %v6599 = vpop.permute.xlu0 %6598
      %6600 = vrot.lane.b32.xlu0 %v6576, 32
      %v6601 = vpop.permute.xlu0 %6600
      %6602 = vrot.lane.b32.xlu0 %v6577, 32
      %v6603 = vpop.permute.xlu0 %6602
      %6604 = vrot.lane.b32.xlu0 %v6578, 32
      %v6605 = vpop.permute.xlu0 %6604
      %6606 = vrot.lane.b32.xlu0 %v6579, 32
      %v6607 = vpop.permute.xlu0 %6606
      %6608 = vrot.lane.b32.xlu0 %v6580, 32
      %v6609 = vpop.permute.xlu0 %6608
      %6610 = vrot.lane.b32.xlu0 %v6581, 32
      %v6611 = vpop.permute.xlu0 %6610
      %6612 = vrot.lane.b32.xlu0 %v6582, 32
      %v6613 = vpop.permute.xlu0 %6612
      %6614 = vrot.lane.b32.xlu0 %v6583, 32
      %v6615 = vpop.permute.xlu0 %6614
      %vm6632 = vcmask 326912
      %6633 = vst.msk [vmem:[#allocation5] sm:$0xff] %vm6632, %v6585
      %6634 = vst.msk [vmem:[#allocation5 + $0x8] sm:$0xff] %vm6632, %v6587
      %6635 = vst.msk [vmem:[#allocation5 + $0x10] sm:$0xff] %vm6632, %v6589
      %6636 = vst.msk [vmem:[#allocation5 + $0x18] sm:$0xff] %vm6632, %v6591
      %6637 = vst.msk [vmem:[#allocation5 + $0x20] sm:$0xff] %vm6632, %v6593
      %6638 = vst.msk [vmem:[#allocation5 + $0x28] sm:$0xff] %vm6632, %v6595
      %6639 = vst.msk [vmem:[#allocation5 + $0x30] sm:$0xff] %vm6632, %v6597
      %6640 = vst.msk [vmem:[#allocation5 + $0x38] sm:$0xff] %vm6632, %v6599
      %6641 = vst.msk [vmem:[#allocation5 + $0x40] sm:$0xff] %vm6632, %v6601
      %6642 = vst.msk [vmem:[#allocation5 + $0x48] sm:$0xff] %vm6632, %v6603
      %6643 = vst.msk [vmem:[#allocation5 + $0x50] sm:$0xff] %vm6632, %v6605
      %6644 = vst.msk [vmem:[#allocation5 + $0x58] sm:$0xff] %vm6632, %v6607
      %6645 = vst.msk [vmem:[#allocation5 + $0x60] sm:$0xff] %vm6632, %v6609
      %6646 = vst.msk [vmem:[#allocation5 + $0x68] sm:$0xff] %vm6632, %v6611
      %6647 = vst.msk [vmem:[#allocation5 + $0x70] sm:$0xff] %vm6632, %v6613
      %6648 = vst.msk [vmem:[#allocation5 + $0x78] sm:$0xff] %vm6632, %v6615
      %v6649 = vld [vmem:[%s4799] sm:$0xe]
      %v6650 = vld [vmem:[%s4799 + $0x4] sm:$0xf]
      %v6651 = vld [vmem:[%s4799 + $0x8] sm:$0x1]
      %v6652 = vld [vmem:[%s4799 + $0xc] sm:$0xe]
      %v6653 = vld [vmem:[%s4799 + $0x10] sm:$0xf]
      %v6654 = vld [vmem:[%s4799 + $0x14] sm:$0x1]
      %v6655 = vld [vmem:[%s4799 + $0x18] sm:$0xe]
      %v6656 = vld [vmem:[%s4799 + $0x1c] sm:$0xf]
      %v6657 = vld [vmem:[%s4799 + $0x20] sm:$0x1]
      %v6658 = vld [vmem:[%s4799 + $0x24] sm:$0xe]
      %v6659 = vld [vmem:[%s4799 + $0x28] sm:$0xf]
      %v6660 = vld [vmem:[%s4799 + $0x2c] sm:$0x1]
      %v6661 = vld [vmem:[%s4799 + $0x30] sm:$0xe]
      %v6662 = vld [vmem:[%s4799 + $0x34] sm:$0xf]
      %v6663 = vld [vmem:[%s4799 + $0x38] sm:$0x1]
      %v6664 = vld [vmem:[%s4799 + $0x3c] sm:$0xe]
      %v6665 = vld [vmem:[%s4799 + $0x40] sm:$0xf]
      %v6666 = vld [vmem:[%s4799 + $0x44] sm:$0x1]
      %v6667 = vld [vmem:[%s4799 + $0x48] sm:$0xe]
      %v6668 = vld [vmem:[%s4799 + $0x4c] sm:$0xf]
      %v6669 = vld [vmem:[%s4799 + $0x50] sm:$0x1]
      %v6670 = vld [vmem:[%s4799 + $0x54] sm:$0xe]
      %v6671 = vld [vmem:[%s4799 + $0x58] sm:$0xf]
      %v6672 = vld [vmem:[%s4799 + $0x5c] sm:$0x1]
      %v6673 = vld [vmem:[%s4799 + $0x60] sm:$0xe]
      %v6674 = vld [vmem:[%s4799 + $0x64] sm:$0xf]
      %v6675 = vld [vmem:[%s4799 + $0x68] sm:$0x1]
      %v6676 = vld [vmem:[%s4799 + $0x6c] sm:$0xe]
      %v6677 = vld [vmem:[%s4799 + $0x70] sm:$0xf]
      %v6678 = vld [vmem:[%s4799 + $0x74] sm:$0x1]
      %v6679 = vld [vmem:[%s4799 + $0x78] sm:$0xe]
      %v6680 = vld [vmem:[%s4799 + $0x7c] sm:$0xf]
      %v6681 = vld [vmem:[%s4799 + $0x80] sm:$0x1]
      %v6682 = vld [vmem:[%s4799 + $0x84] sm:$0xe]
      %v6683 = vld [vmem:[%s4799 + $0x88] sm:$0xf]
      %v6684 = vld [vmem:[%s4799 + $0x8c] sm:$0x1]
      %v6685 = vld [vmem:[%s4799 + $0x90] sm:$0xe]
      %v6686 = vld [vmem:[%s4799 + $0x94] sm:$0xf]
      %v6687 = vld [vmem:[%s4799 + $0x98] sm:$0x1]
      %v6688 = vld [vmem:[%s4799 + $0x9c] sm:$0xe]
      %v6689 = vld [vmem:[%s4799 + $0xa0] sm:$0xf]
      %v6690 = vld [vmem:[%s4799 + $0xa4] sm:$0x1]
      %v6691 = vld [vmem:[%s4799 + $0xa8] sm:$0xe]
      %v6692 = vld [vmem:[%s4799 + $0xac] sm:$0xf]
      %v6693 = vld [vmem:[%s4799 + $0xb0] sm:$0x1]
      %v6694 = vld [vmem:[%s4799 + $0xb4] sm:$0xe]
      %v6695 = vld [vmem:[%s4799 + $0xb8] sm:$0xf]
      %v6696 = vld [vmem:[%s4799 + $0xbc] sm:$0x1]
      %v6745 = vrot.slane %v6649, 5
      %v6746 = vrot.slane %v6745, 4
      %v6747 = vrot.slane %v6650, 5
      %v6748 = vsel %vm1492, %v6746, %v6747
      %v6749 = vrot.slane %v6747, 4
      %v6750 = vrot.slane %v6651, 5
      %v6751 = vsel %vm1492, %v6749, %v6750
      %v6752 = vrot.slane %v6652, 5
      %v6753 = vrot.slane %v6752, 4
      %v6754 = vrot.slane %v6653, 5
      %v6755 = vsel %vm1492, %v6753, %v6754
      %v6756 = vrot.slane %v6754, 4
      %v6757 = vrot.slane %v6654, 5
      %v6758 = vsel %vm1492, %v6756, %v6757
      %v6759 = vrot.slane %v6655, 5
      %v6760 = vrot.slane %v6759, 4
      %v6761 = vrot.slane %v6656, 5
      %v6762 = vsel %vm1492, %v6760, %v6761
      %v6763 = vrot.slane %v6761, 4
      %v6764 = vrot.slane %v6657, 5
      %v6765 = vsel %vm1492, %v6763, %v6764
      %v6766 = vrot.slane %v6658, 5
      %v6767 = vrot.slane %v6766, 4
      %v6768 = vrot.slane %v6659, 5
      %v6769 = vsel %vm1492, %v6767, %v6768
      %v6770 = vrot.slane %v6768, 4
      %v6771 = vrot.slane %v6660, 5
      %v6772 = vsel %vm1492, %v6770, %v6771
      %v6773 = vrot.slane %v6661, 5
      %v6774 = vrot.slane %v6773, 4
      %v6775 = vrot.slane %v6662, 5
      %v6776 = vsel %vm1492, %v6774, %v6775
      %v6777 = vrot.slane %v6775, 4
      %v6778 = vrot.slane %v6663, 5
      %v6779 = vsel %vm1492, %v6777, %v6778
      %v6780 = vrot.slane %v6664, 5
      %v6781 = vrot.slane %v6780, 4
      %v6782 = vrot.slane %v6665, 5
      %v6783 = vsel %vm1492, %v6781, %v6782
      %v6784 = vrot.slane %v6782, 4
      %v6785 = vrot.slane %v6666, 5
      %v6786 = vsel %vm1492, %v6784, %v6785
      %v6787 = vrot.slane %v6667, 5
      %v6788 = vrot.slane %v6787, 4
      %v6789 = vrot.slane %v6668, 5
      %v6790 = vsel %vm1492, %v6788, %v6789
      %v6791 = vrot.slane %v6789, 4
      %v6792 = vrot.slane %v6669, 5
      %v6793 = vsel %vm1492, %v6791, %v6792
      %v6794 = vrot.slane %v6670, 5
      %v6795 = vrot.slane %v6794, 4
      %v6796 = vrot.slane %v6671, 5
      %v6797 = vsel %vm1492, %v6795, %v6796
      %v6798 = vrot.slane %v6796, 4
      %v6799 = vrot.slane %v6672, 5
      %v6800 = vsel %vm1492, %v6798, %v6799
      %v6801 = vrot.slane %v6673, 5
      %v6802 = vrot.slane %v6801, 4
      %v6803 = vrot.slane %v6674, 5
      %v6804 = vsel %vm1492, %v6802, %v6803
      %v6805 = vrot.slane %v6803, 4
      %v6806 = vrot.slane %v6675, 5
      %v6807 = vsel %vm1492, %v6805, %v6806
      %v6808 = vrot.slane %v6676, 5
      %v6809 = vrot.slane %v6808, 4
      %v6810 = vrot.slane %v6677, 5
      %v6811 = vsel %vm1492, %v6809, %v6810
      %v6812 = vrot.slane %v6810, 4
      %v6813 = vrot.slane %v6678, 5
      %v6814 = vsel %vm1492, %v6812, %v6813
      %v6815 = vrot.slane %v6679, 5
      %v6816 = vrot.slane %v6815, 4
      %v6817 = vrot.slane %v6680, 5
      %v6818 = vsel %vm1492, %v6816, %v6817
      %v6819 = vrot.slane %v6817, 4
      %v6820 = vrot.slane %v6681, 5
      %v6821 = vsel %vm1492, %v6819, %v6820
      %v6822 = vrot.slane %v6682, 5
      %v6823 = vrot.slane %v6822, 4
      %v6824 = vrot.slane %v6683, 5
      %v6825 = vsel %vm1492, %v6823, %v6824
      %v6826 = vrot.slane %v6824, 4
      %v6827 = vrot.slane %v6684, 5
      %v6828 = vsel %vm1492, %v6826, %v6827
      %v6829 = vrot.slane %v6685, 5
      %v6830 = vrot.slane %v6829, 4
      %v6831 = vrot.slane %v6686, 5
      %v6832 = vsel %vm1492, %v6830, %v6831
      %v6833 = vrot.slane %v6831, 4
      %v6834 = vrot.slane %v6687, 5
      %v6835 = vsel %vm1492, %v6833, %v6834
      %v6836 = vrot.slane %v6688, 5
      %v6837 = vrot.slane %v6836, 4
      %v6838 = vrot.slane %v6689, 5
      %v6839 = vsel %vm1492, %v6837, %v6838
      %v6840 = vrot.slane %v6838, 4
      %v6841 = vrot.slane %v6690, 5
      %v6842 = vsel %vm1492, %v6840, %v6841
      %v6843 = vrot.slane %v6691, 5
      %v6844 = vrot.slane %v6843, 4
      %v6845 = vrot.slane %v6692, 5
      %v6846 = vsel %vm1492, %v6844, %v6845
      %v6847 = vrot.slane %v6845, 4
      %v6848 = vrot.slane %v6693, 5
      %v6849 = vsel %vm1492, %v6847, %v6848
      %v6850 = vrot.slane %v6694, 5
      %v6851 = vrot.slane %v6850, 4
      %v6852 = vrot.slane %v6695, 5
      %v6853 = vsel %vm1492, %v6851, %v6852
      %v6854 = vrot.slane %v6852, 4
      %v6855 = vrot.slane %v6696, 5
      %v6856 = vsel %vm1492, %v6854, %v6855
      %v6857 = vunpack.c.l.b16 %v6748
      %v6858 = vunpack.c.l.b16 %v6751
      %v6859 = vunpack.c.l.b16 %v6755
      %v6860 = vunpack.c.l.b16 %v6758
      %v6861 = vunpack.c.l.b16 %v6762
      %v6862 = vunpack.c.l.b16 %v6765
      %v6863 = vunpack.c.l.b16 %v6769
      %v6864 = vunpack.c.l.b16 %v6772
      %v6865 = vunpack.c.l.b16 %v6776
      %v6866 = vunpack.c.l.b16 %v6779
      %v6867 = vunpack.c.l.b16 %v6783
      %v6868 = vunpack.c.l.b16 %v6786
      %v6869 = vunpack.c.l.b16 %v6790
      %v6870 = vunpack.c.l.b16 %v6793
      %v6871 = vunpack.c.l.b16 %v6797
      %v6872 = vunpack.c.l.b16 %v6800
      %v6873 = vunpack.c.l.b16 %v6804
      %v6874 = vunpack.c.l.b16 %v6807
      %v6875 = vunpack.c.l.b16 %v6811
      %v6876 = vunpack.c.l.b16 %v6814
      %v6877 = vunpack.c.l.b16 %v6818
      %v6878 = vunpack.c.l.b16 %v6821
      %v6879 = vunpack.c.l.b16 %v6825
      %v6880 = vunpack.c.l.b16 %v6828
      %v6881 = vunpack.c.l.b16 %v6832
      %v6882 = vunpack.c.l.b16 %v6835
      %v6883 = vunpack.c.l.b16 %v6839
      %v6884 = vunpack.c.l.b16 %v6842
      %v6885 = vunpack.c.l.b16 %v6846
      %v6886 = vunpack.c.l.b16 %v6849
      %v6887 = vunpack.c.l.b16 %v6853
      %v6888 = vunpack.c.l.b16 %v6856
      %v6889 = vpack.c.b16 %v6858, %v6857
      %v6890 = vpack.c.b16 %v6860, %v6859
      %v6891 = vpack.c.b16 %v6862, %v6861
      %v6892 = vpack.c.b16 %v6864, %v6863
      %v6893 = vpack.c.b16 %v6866, %v6865
      %v6894 = vpack.c.b16 %v6868, %v6867
      %v6895 = vpack.c.b16 %v6870, %v6869
      %v6896 = vpack.c.b16 %v6872, %v6871
      %v6897 = vpack.c.b16 %v6874, %v6873
      %v6898 = vpack.c.b16 %v6876, %v6875
      %v6899 = vpack.c.b16 %v6878, %v6877
      %v6900 = vpack.c.b16 %v6880, %v6879
      %v6901 = vpack.c.b16 %v6882, %v6881
      %v6902 = vpack.c.b16 %v6884, %v6883
      %v6903 = vpack.c.b16 %v6886, %v6885
      %v6904 = vpack.c.b16 %v6888, %v6887
      %6905 = vrot.lane.b32.xlu0 %v6889, 40
      %v6906 = vpop.permute.xlu0 %6905
      %6907 = vrot.lane.b32.xlu0 %v6890, 40
      %v6908 = vpop.permute.xlu0 %6907
      %6909 = vrot.lane.b32.xlu0 %v6891, 40
      %v6910 = vpop.permute.xlu0 %6909
      %6911 = vrot.lane.b32.xlu0 %v6892, 40
      %v6912 = vpop.permute.xlu0 %6911
      %6913 = vrot.lane.b32.xlu0 %v6893, 40
      %v6914 = vpop.permute.xlu0 %6913
      %6915 = vrot.lane.b32.xlu0 %v6894, 40
      %v6916 = vpop.permute.xlu0 %6915
      %6917 = vrot.lane.b32.xlu0 %v6895, 40
      %v6918 = vpop.permute.xlu0 %6917
      %6919 = vrot.lane.b32.xlu0 %v6896, 40
      %v6920 = vpop.permute.xlu0 %6919
      %6921 = vrot.lane.b32.xlu0 %v6897, 40
      %v6922 = vpop.permute.xlu0 %6921
      %6923 = vrot.lane.b32.xlu0 %v6898, 40
      %v6924 = vpop.permute.xlu0 %6923
      %6925 = vrot.lane.b32.xlu0 %v6899, 40
      %v6926 = vpop.permute.xlu0 %6925
      %6927 = vrot.lane.b32.xlu0 %v6900, 40
      %v6928 = vpop.permute.xlu0 %6927
      %6929 = vrot.lane.b32.xlu0 %v6901, 40
      %v6930 = vpop.permute.xlu0 %6929
      %6931 = vrot.lane.b32.xlu0 %v6902, 40
      %v6932 = vpop.permute.xlu0 %6931
      %6933 = vrot.lane.b32.xlu0 %v6903, 40
      %v6934 = vpop.permute.xlu0 %6933
      %6935 = vrot.lane.b32.xlu0 %v6904, 40
      %v6936 = vpop.permute.xlu0 %6935
      %vm6953 = vcmask 392512
      %6954 = vst.msk [vmem:[#allocation5] sm:$0xff] %vm6953, %v6906
      %6955 = vst.msk [vmem:[#allocation5 + $0x8] sm:$0xff] %vm6953, %v6908
      %6956 = vst.msk [vmem:[#allocation5 + $0x10] sm:$0xff] %vm6953, %v6910
      %6957 = vst.msk [vmem:[#allocation5 + $0x18] sm:$0xff] %vm6953, %v6912
      %6958 = vst.msk [vmem:[#allocation5 + $0x20] sm:$0xff] %vm6953, %v6914
      %6959 = vst.msk [vmem:[#allocation5 + $0x28] sm:$0xff] %vm6953, %v6916
      %6960 = vst.msk [vmem:[#allocation5 + $0x30] sm:$0xff] %vm6953, %v6918
      %6961 = vst.msk [vmem:[#allocation5 + $0x38] sm:$0xff] %vm6953, %v6920
      %6962 = vst.msk [vmem:[#allocation5 + $0x40] sm:$0xff] %vm6953, %v6922
      %6963 = vst.msk [vmem:[#allocation5 + $0x48] sm:$0xff] %vm6953, %v6924
      %6964 = vst.msk [vmem:[#allocation5 + $0x50] sm:$0xff] %vm6953, %v6926
      %6965 = vst.msk [vmem:[#allocation5 + $0x58] sm:$0xff] %vm6953, %v6928
      %6966 = vst.msk [vmem:[#allocation5 + $0x60] sm:$0xff] %vm6953, %v6930
      %6967 = vst.msk [vmem:[#allocation5 + $0x68] sm:$0xff] %vm6953, %v6932
      %6968 = vst.msk [vmem:[#allocation5 + $0x70] sm:$0xff] %vm6953, %v6934
      %6969 = vst.msk [vmem:[#allocation5 + $0x78] sm:$0xff] %vm6953, %v6936
      %s6970 = scalar_lea.vmem [#allocation4], 24
      %v6971 = vld [vmem:[%s6970] sm:$0xf]
      %v6972 = vld [vmem:[%s6970 + $0x4] sm:$0xf]
      %v6973 = vld [vmem:[%s6970 + $0xc] sm:$0xf]
      %v6974 = vld [vmem:[%s6970 + $0x10] sm:$0xf]
      %v6975 = vld [vmem:[%s6970 + $0x18] sm:$0xf]
      %v6976 = vld [vmem:[%s6970 + $0x1c] sm:$0xf]
      %v6977 = vld [vmem:[%s6970 + $0x24] sm:$0xf]
      %v6978 = vld [vmem:[%s6970 + $0x28] sm:$0xf]
      %v6979 = vld [vmem:[%s6970 + $0x30] sm:$0xf]
      %v6980 = vld [vmem:[%s6970 + $0x34] sm:$0xf]
      %v6981 = vld [vmem:[%s6970 + $0x3c] sm:$0xf]
      %v6982 = vld [vmem:[%s6970 + $0x40] sm:$0xf]
      %v6983 = vld [vmem:[%s6970 + $0x48] sm:$0xf]
      %v6984 = vld [vmem:[%s6970 + $0x4c] sm:$0xf]
      %v6985 = vld [vmem:[%s6970 + $0x54] sm:$0xf]
      %v6986 = vld [vmem:[%s6970 + $0x58] sm:$0xf]
      %v6987 = vld [vmem:[%s6970 + $0x60] sm:$0xf]
      %v6988 = vld [vmem:[%s6970 + $0x64] sm:$0xf]
      %v6989 = vld [vmem:[%s6970 + $0x6c] sm:$0xf]
      %v6990 = vld [vmem:[%s6970 + $0x70] sm:$0xf]
      %v6991 = vld [vmem:[%s6970 + $0x78] sm:$0xf]
      %v6992 = vld [vmem:[%s6970 + $0x7c] sm:$0xf]
      %v6993 = vld [vmem:[%s6970 + $0x84] sm:$0xf]
      %v6994 = vld [vmem:[%s6970 + $0x88] sm:$0xf]
      %v6995 = vld [vmem:[%s6970 + $0x90] sm:$0xf]
      %v6996 = vld [vmem:[%s6970 + $0x94] sm:$0xf]
      %v6997 = vld [vmem:[%s6970 + $0x9c] sm:$0xf]
      %v6998 = vld [vmem:[%s6970 + $0xa0] sm:$0xf]
      %v6999 = vld [vmem:[%s6970 + $0xa8] sm:$0xf]
      %v7000 = vld [vmem:[%s6970 + $0xac] sm:$0xf]
      %v7001 = vld [vmem:[%s6970 + $0xb4] sm:$0xf]
      %v7002 = vld [vmem:[%s6970 + $0xb8] sm:$0xf]
      %v7035 = vunpack.c.l.b16 %v6971
      %v7036 = vunpack.c.l.b16 %v6972
      %v7037 = vunpack.c.l.b16 %v6973
      %v7038 = vunpack.c.l.b16 %v6974
      %v7039 = vunpack.c.l.b16 %v6975
      %v7040 = vunpack.c.l.b16 %v6976
      %v7041 = vunpack.c.l.b16 %v6977
      %v7042 = vunpack.c.l.b16 %v6978
      %v7043 = vunpack.c.l.b16 %v6979
      %v7044 = vunpack.c.l.b16 %v6980
      %v7045 = vunpack.c.l.b16 %v6981
      %v7046 = vunpack.c.l.b16 %v6982
      %v7047 = vunpack.c.l.b16 %v6983
      %v7048 = vunpack.c.l.b16 %v6984
      %v7049 = vunpack.c.l.b16 %v6985
      %v7050 = vunpack.c.l.b16 %v6986
      %v7051 = vunpack.c.l.b16 %v6987
      %v7052 = vunpack.c.l.b16 %v6988
      %v7053 = vunpack.c.l.b16 %v6989
      %v7054 = vunpack.c.l.b16 %v6990
      %v7055 = vunpack.c.l.b16 %v6991
      %v7056 = vunpack.c.l.b16 %v6992
      %v7057 = vunpack.c.l.b16 %v6993
      %v7058 = vunpack.c.l.b16 %v6994
      %v7059 = vunpack.c.l.b16 %v6995
      %v7060 = vunpack.c.l.b16 %v6996
      %v7061 = vunpack.c.l.b16 %v6997
      %v7062 = vunpack.c.l.b16 %v6998
      %v7063 = vunpack.c.l.b16 %v6999
      %v7064 = vunpack.c.l.b16 %v7000
      %v7065 = vunpack.c.l.b16 %v7001
      %v7066 = vunpack.c.l.b16 %v7002
      %v7067 = vpack.c.b16 %v7036, %v7035
      %v7068 = vpack.c.b16 %v7038, %v7037
      %v7069 = vpack.c.b16 %v7040, %v7039
      %v7070 = vpack.c.b16 %v7042, %v7041
      %v7071 = vpack.c.b16 %v7044, %v7043
      %v7072 = vpack.c.b16 %v7046, %v7045
      %v7073 = vpack.c.b16 %v7048, %v7047
      %v7074 = vpack.c.b16 %v7050, %v7049
      %v7075 = vpack.c.b16 %v7052, %v7051
      %v7076 = vpack.c.b16 %v7054, %v7053
      %v7077 = vpack.c.b16 %v7056, %v7055
      %v7078 = vpack.c.b16 %v7058, %v7057
      %v7079 = vpack.c.b16 %v7060, %v7059
      %v7080 = vpack.c.b16 %v7062, %v7061
      %v7081 = vpack.c.b16 %v7064, %v7063
      %v7082 = vpack.c.b16 %v7066, %v7065
      %7083 = vrot.lane.b32.xlu0 %v7067, 48
      %v7084 = vpop.permute.xlu0 %7083
      %7085 = vrot.lane.b32.xlu0 %v7068, 48
      %v7086 = vpop.permute.xlu0 %7085
      %7087 = vrot.lane.b32.xlu0 %v7069, 48
      %v7088 = vpop.permute.xlu0 %7087
      %7089 = vrot.lane.b32.xlu0 %v7070, 48
      %v7090 = vpop.permute.xlu0 %7089
      %7091 = vrot.lane.b32.xlu0 %v7071, 48
      %v7092 = vpop.permute.xlu0 %7091
      %7093 = vrot.lane.b32.xlu0 %v7072, 48
      %v7094 = vpop.permute.xlu0 %7093
      %7095 = vrot.lane.b32.xlu0 %v7073, 48
      %v7096 = vpop.permute.xlu0 %7095
      %7097 = vrot.lane.b32.xlu0 %v7074, 48
      %v7098 = vpop.permute.xlu0 %7097
      %7099 = vrot.lane.b32.xlu0 %v7075, 48
      %v7100 = vpop.permute.xlu0 %7099
      %7101 = vrot.lane.b32.xlu0 %v7076, 48
      %v7102 = vpop.permute.xlu0 %7101
      %7103 = vrot.lane.b32.xlu0 %v7077, 48
      %v7104 = vpop.permute.xlu0 %7103
      %7105 = vrot.lane.b32.xlu0 %v7078, 48
      %v7106 = vpop.permute.xlu0 %7105
      %7107 = vrot.lane.b32.xlu0 %v7079, 48
      %v7108 = vpop.permute.xlu0 %7107
      %7109 = vrot.lane.b32.xlu0 %v7080, 48
      %v7110 = vpop.permute.xlu0 %7109
      %7111 = vrot.lane.b32.xlu0 %v7081, 48
      %v7112 = vpop.permute.xlu0 %7111
      %7113 = vrot.lane.b32.xlu0 %v7082, 48
      %v7114 = vpop.permute.xlu0 %7113
      %vm7131 = vcmask 458112
      %7132 = vst.msk [vmem:[#allocation5] sm:$0xff] %vm7131, %v7084
      %7133 = vst.msk [vmem:[#allocation5 + $0x8] sm:$0xff] %vm7131, %v7086
      %7134 = vst.msk [vmem:[#allocation5 + $0x10] sm:$0xff] %vm7131, %v7088
      %7135 = vst.msk [vmem:[#allocation5 + $0x18] sm:$0xff] %vm7131, %v7090
      %7136 = vst.msk [vmem:[#allocation5 + $0x20] sm:$0xff] %vm7131, %v7092
      %7137 = vst.msk [vmem:[#allocation5 + $0x28] sm:$0xff] %vm7131, %v7094
      %7138 = vst.msk [vmem:[#allocation5 + $0x30] sm:$0xff] %vm7131, %v7096
      %7139 = vst.msk [vmem:[#allocation5 + $0x38] sm:$0xff] %vm7131, %v7098
      %7140 = vst.msk [vmem:[#allocation5 + $0x40] sm:$0xff] %vm7131, %v7100
      %7141 = vst.msk [vmem:[#allocation5 + $0x48] sm:$0xff] %vm7131, %v7102
      %7142 = vst.msk [vmem:[#allocation5 + $0x50] sm:$0xff] %vm7131, %v7104
      %7143 = vst.msk [vmem:[#allocation5 + $0x58] sm:$0xff] %vm7131, %v7106
      %7144 = vst.msk [vmem:[#allocation5 + $0x60] sm:$0xff] %vm7131, %v7108
      %7145 = vst.msk [vmem:[#allocation5 + $0x68] sm:$0xff] %vm7131, %v7110
      %7146 = vst.msk [vmem:[#allocation5 + $0x70] sm:$0xff] %vm7131, %v7112
      %7147 = vst.msk [vmem:[#allocation5 + $0x78] sm:$0xff] %vm7131, %v7114
      %v7148 = vld [vmem:[%s6970] sm:$0xf]
      %v7149 = vld [vmem:[%s6970 + $0x4] sm:$0xf]
      %v7150 = vld [vmem:[%s6970 + $0x8] sm:$0x1]
      %v7151 = vld [vmem:[%s6970 + $0xc] sm:$0xf]
      %v7152 = vld [vmem:[%s6970 + $0x10] sm:$0xf]
      %v7153 = vld [vmem:[%s6970 + $0x14] sm:$0x1]
      %v7154 = vld [vmem:[%s6970 + $0x18] sm:$0xf]
      %v7155 = vld [vmem:[%s6970 + $0x1c] sm:$0xf]
      %v7156 = vld [vmem:[%s6970 + $0x20] sm:$0x1]
      %v7157 = vld [vmem:[%s6970 + $0x24] sm:$0xf]
      %v7158 = vld [vmem:[%s6970 + $0x28] sm:$0xf]
      %v7159 = vld [vmem:[%s6970 + $0x2c] sm:$0x1]
      %v7160 = vld [vmem:[%s6970 + $0x30] sm:$0xf]
      %v7161 = vld [vmem:[%s6970 + $0x34] sm:$0xf]
      %v7162 = vld [vmem:[%s6970 + $0x38] sm:$0x1]
      %v7163 = vld [vmem:[%s6970 + $0x3c] sm:$0xf]
      %v7164 = vld [vmem:[%s6970 + $0x40] sm:$0xf]
      %v7165 = vld [vmem:[%s6970 + $0x44] sm:$0x1]
      %v7166 = vld [vmem:[%s6970 + $0x48] sm:$0xf]
      %v7167 = vld [vmem:[%s6970 + $0x4c] sm:$0xf]
      %v7168 = vld [vmem:[%s6970 + $0x50] sm:$0x1]
      %v7169 = vld [vmem:[%s6970 + $0x54] sm:$0xf]
      %v7170 = vld [vmem:[%s6970 + $0x58] sm:$0xf]
      %v7171 = vld [vmem:[%s6970 + $0x5c] sm:$0x1]
      %v7172 = vld [vmem:[%s6970 + $0x60] sm:$0xf]
      %v7173 = vld [vmem:[%s6970 + $0x64] sm:$0xf]
      %v7174 = vld [vmem:[%s6970 + $0x68] sm:$0x1]
      %v7175 = vld [vmem:[%s6970 + $0x6c] sm:$0xf]
      %v7176 = vld [vmem:[%s6970 + $0x70] sm:$0xf]
      %v7177 = vld [vmem:[%s6970 + $0x74] sm:$0x1]
      %v7178 = vld [vmem:[%s6970 + $0x78] sm:$0xf]
      %v7179 = vld [vmem:[%s6970 + $0x7c] sm:$0xf]
      %v7180 = vld [vmem:[%s6970 + $0x80] sm:$0x1]
      %v7181 = vld [vmem:[%s6970 + $0x84] sm:$0xf]
      %v7182 = vld [vmem:[%s6970 + $0x88] sm:$0xf]
      %v7183 = vld [vmem:[%s6970 + $0x8c] sm:$0x1]
      %v7184 = vld [vmem:[%s6970 + $0x90] sm:$0xf]
      %v7185 = vld [vmem:[%s6970 + $0x94] sm:$0xf]
      %v7186 = vld [vmem:[%s6970 + $0x98] sm:$0x1]
      %v7187 = vld [vmem:[%s6970 + $0x9c] sm:$0xf]
      %v7188 = vld [vmem:[%s6970 + $0xa0] sm:$0xf]
      %v7189 = vld [vmem:[%s6970 + $0xa4] sm:$0x1]
      %v7190 = vld [vmem:[%s6970 + $0xa8] sm:$0xf]
      %v7191 = vld [vmem:[%s6970 + $0xac] sm:$0xf]
      %v7192 = vld [vmem:[%s6970 + $0xb0] sm:$0x1]
      %v7193 = vld [vmem:[%s6970 + $0xb4] sm:$0xf]
      %v7194 = vld [vmem:[%s6970 + $0xb8] sm:$0xf]
      %v7195 = vld [vmem:[%s6970 + $0xbc] sm:$0x1]
      %v7197 = vshrl.u32 %v7148, 16
      %v7199 = vrot.slane %v7197, 4
      %v7200 = vshll.u32 %v7148, 16
      %v7202 = vrot.slane %v7200, 5
      %v7203 = vor.u32 %v7199, %v7202
      %v7204 = vrot.slane %v7203, 4
      %v7206 = vshll.u32 %v7149, 16
      %v7208 = vrot.slane %v7206, 5
      %v7209 = vsel %vm896, %v7204, %v7208
      %v7210 = vshrl.u32 %v7149, 16
      %v7212 = vrot.slane %v7210, 4
      %v7213 = vor.u32 %v7212, %v7208
      %v7214 = vrot.slane %v7213, 4
      %v7216 = vshll.u32 %v7150, 16
      %v7218 = vrot.slane %v7216, 5
      %v7219 = vsel %vm896, %v7214, %v7218
      %v7221 = vshrl.u32 %v7151, 16
      %v7223 = vrot.slane %v7221, 4
      %v7224 = vshll.u32 %v7151, 16
      %v7226 = vrot.slane %v7224, 5
      %v7227 = vor.u32 %v7223, %v7226
      %v7228 = vrot.slane %v7227, 4
      %v7230 = vshll.u32 %v7152, 16
      %v7232 = vrot.slane %v7230, 5
      %v7233 = vsel %vm896, %v7228, %v7232
      %v7234 = vshrl.u32 %v7152, 16
      %v7236 = vrot.slane %v7234, 4
      %v7237 = vor.u32 %v7236, %v7232
      %v7238 = vrot.slane %v7237, 4
      %v7240 = vshll.u32 %v7153, 16
      %v7242 = vrot.slane %v7240, 5
      %v7243 = vsel %vm896, %v7238, %v7242
      %v7245 = vshrl.u32 %v7154, 16
      %v7247 = vrot.slane %v7245, 4
      %v7248 = vshll.u32 %v7154, 16
      %v7250 = vrot.slane %v7248, 5
      %v7251 = vor.u32 %v7247, %v7250
      %v7252 = vrot.slane %v7251, 4
      %v7254 = vshll.u32 %v7155, 16
      %v7256 = vrot.slane %v7254, 5
      %v7257 = vsel %vm896, %v7252, %v7256
      %v7258 = vshrl.u32 %v7155, 16
      %v7260 = vrot.slane %v7258, 4
      %v7261 = vor.u32 %v7260, %v7256
      %v7262 = vrot.slane %v7261, 4
      %v7264 = vshll.u32 %v7156, 16
      %v7266 = vrot.slane %v7264, 5
      %v7267 = vsel %vm896, %v7262, %v7266
      %v7269 = vshrl.u32 %v7157, 16
      %v7271 = vrot.slane %v7269, 4
      %v7272 = vshll.u32 %v7157, 16
      %v7274 = vrot.slane %v7272, 5
      %v7275 = vor.u32 %v7271, %v7274
      %v7276 = vrot.slane %v7275, 4
      %v7278 = vshll.u32 %v7158, 16
      %v7280 = vrot.slane %v7278, 5
      %v7281 = vsel %vm896, %v7276, %v7280
      %v7282 = vshrl.u32 %v7158, 16
      %v7284 = vrot.slane %v7282, 4
      %v7285 = vor.u32 %v7284, %v7280
      %v7286 = vrot.slane %v7285, 4
      %v7288 = vshll.u32 %v7159, 16
      %v7290 = vrot.slane %v7288, 5
      %v7291 = vsel %vm896, %v7286, %v7290
      %v7293 = vshrl.u32 %v7160, 16
      %v7295 = vrot.slane %v7293, 4
      %v7296 = vshll.u32 %v7160, 16
      %v7298 = vrot.slane %v7296, 5
      %v7299 = vor.u32 %v7295, %v7298
      %v7300 = vrot.slane %v7299, 4
      %v7302 = vshll.u32 %v7161, 16
      %v7304 = vrot.slane %v7302, 5
      %v7305 = vsel %vm896, %v7300, %v7304
      %v7306 = vshrl.u32 %v7161, 16
      %v7308 = vrot.slane %v7306, 4
      %v7309 = vor.u32 %v7308, %v7304
      %v7310 = vrot.slane %v7309, 4
      %v7312 = vshll.u32 %v7162, 16
      %v7314 = vrot.slane %v7312, 5
      %v7315 = vsel %vm896, %v7310, %v7314
      %v7317 = vshrl.u32 %v7163, 16
      %v7319 = vrot.slane %v7317, 4
      %v7320 = vshll.u32 %v7163, 16
      %v7322 = vrot.slane %v7320, 5
      %v7323 = vor.u32 %v7319, %v7322
      %v7324 = vrot.slane %v7323, 4
      %v7326 = vshll.u32 %v7164, 16
      %v7328 = vrot.slane %v7326, 5
      %v7329 = vsel %vm896, %v7324, %v7328
      %v7330 = vshrl.u32 %v7164, 16
      %v7332 = vrot.slane %v7330, 4
      %v7333 = vor.u32 %v7332, %v7328
      %v7334 = vrot.slane %v7333, 4
      %v7336 = vshll.u32 %v7165, 16
      %v7338 = vrot.slane %v7336, 5
      %v7339 = vsel %vm896, %v7334, %v7338
      %v7341 = vshrl.u32 %v7166, 16
      %v7343 = vrot.slane %v7341, 4
      %v7344 = vshll.u32 %v7166, 16
      %v7346 = vrot.slane %v7344, 5
      %v7347 = vor.u32 %v7343, %v7346
      %v7348 = vrot.slane %v7347, 4
      %v7350 = vshll.u32 %v7167, 16
      %v7352 = vrot.slane %v7350, 5
      %v7353 = vsel %vm896, %v7348, %v7352
      %v7354 = vshrl.u32 %v7167, 16
      %v7356 = vrot.slane %v7354, 4
      %v7357 = vor.u32 %v7356, %v7352
      %v7358 = vrot.slane %v7357, 4
      %v7360 = vshll.u32 %v7168, 16
      %v7362 = vrot.slane %v7360, 5
      %v7363 = vsel %vm896, %v7358, %v7362
      %v7365 = vshrl.u32 %v7169, 16
      %v7367 = vrot.slane %v7365, 4
      %v7368 = vshll.u32 %v7169, 16
      %v7370 = vrot.slane %v7368, 5
      %v7371 = vor.u32 %v7367, %v7370
      %v7372 = vrot.slane %v7371, 4
      %v7374 = vshll.u32 %v7170, 16
      %v7376 = vrot.slane %v7374, 5
      %v7377 = vsel %vm896, %v7372, %v7376
      %v7378 = vshrl.u32 %v7170, 16
      %v7380 = vrot.slane %v7378, 4
      %v7381 = vor.u32 %v7380, %v7376
      %v7382 = vrot.slane %v7381, 4
      %v7384 = vshll.u32 %v7171, 16
      %v7386 = vrot.slane %v7384, 5
      %v7387 = vsel %vm896, %v7382, %v7386
      %v7389 = vshrl.u32 %v7172, 16
      %v7391 = vrot.slane %v7389, 4
      %v7392 = vshll.u32 %v7172, 16
      %v7394 = vrot.slane %v7392, 5
      %v7395 = vor.u32 %v7391, %v7394
      %v7396 = vrot.slane %v7395, 4
      %v7398 = vshll.u32 %v7173, 16
      %v7400 = vrot.slane %v7398, 5
      %v7401 = vsel %vm896, %v7396, %v7400
      %v7402 = vshrl.u32 %v7173, 16
      %v7404 = vrot.slane %v7402, 4
      %v7405 = vor.u32 %v7404, %v7400
      %v7406 = vrot.slane %v7405, 4
      %v7408 = vshll.u32 %v7174, 16
      %v7410 = vrot.slane %v7408, 5
      %v7411 = vsel %vm896, %v7406, %v7410
      %v7413 = vshrl.u32 %v7175, 16
      %v7415 = vrot.slane %v7413, 4
      %v7416 = vshll.u32 %v7175, 16
      %v7418 = vrot.slane %v7416, 5
      %v7419 = vor.u32 %v7415, %v7418
      %v7420 = vrot.slane %v7419, 4
      %v7422 = vshll.u32 %v7176, 16
      %v7424 = vrot.slane %v7422, 5
      %v7425 = vsel %vm896, %v7420, %v7424
      %v7426 = vshrl.u32 %v7176, 16
      %v7428 = vrot.slane %v7426, 4
      %v7429 = vor.u32 %v7428, %v7424
      %v7430 = vrot.slane %v7429, 4
      %v7432 = vshll.u32 %v7177, 16
      %v7434 = vrot.slane %v7432, 5
      %v7435 = vsel %vm896, %v7430, %v7434
      %v7437 = vshrl.u32 %v7178, 16
      %v7439 = vrot.slane %v7437, 4
      %v7440 = vshll.u32 %v7178, 16
      %v7442 = vrot.slane %v7440, 5
      %v7443 = vor.u32 %v7439, %v7442
      %v7444 = vrot.slane %v7443, 4
      %v7446 = vshll.u32 %v7179, 16
      %v7448 = vrot.slane %v7446, 5
      %v7449 = vsel %vm896, %v7444, %v7448
      %v7450 = vshrl.u32 %v7179, 16
      %v7452 = vrot.slane %v7450, 4
      %v7453 = vor.u32 %v7452, %v7448
      %v7454 = vrot.slane %v7453, 4
      %v7456 = vshll.u32 %v7180, 16
      %v7458 = vrot.slane %v7456, 5
      %v7459 = vsel %vm896, %v7454, %v7458
      %v7461 = vshrl.u32 %v7181, 16
      %v7463 = vrot.slane %v7461, 4
      %v7464 = vshll.u32 %v7181, 16
      %v7466 = vrot.slane %v7464, 5
      %v7467 = vor.u32 %v7463, %v7466
      %v7468 = vrot.slane %v7467, 4
      %v7470 = vshll.u32 %v7182, 16
      %v7472 = vrot.slane %v7470, 5
      %v7473 = vsel %vm896, %v7468, %v7472
      %v7474 = vshrl.u32 %v7182, 16
      %v7476 = vrot.slane %v7474, 4
      %v7477 = vor.u32 %v7476, %v7472
      %v7478 = vrot.slane %v7477, 4
      %v7480 = vshll.u32 %v7183, 16
      %v7482 = vrot.slane %v7480, 5
      %v7483 = vsel %vm896, %v7478, %v7482
      %v7485 = vshrl.u32 %v7184, 16
      %v7487 = vrot.slane %v7485, 4
      %v7488 = vshll.u32 %v7184, 16
      %v7490 = vrot.slane %v7488, 5
      %v7491 = vor.u32 %v7487, %v7490
      %v7492 = vrot.slane %v7491, 4
      %v7494 = vshll.u32 %v7185, 16
      %v7496 = vrot.slane %v7494, 5
      %v7497 = vsel %vm896, %v7492, %v7496
      %v7498 = vshrl.u32 %v7185, 16
      %v7500 = vrot.slane %v7498, 4
      %v7501 = vor.u32 %v7500, %v7496
      %v7502 = vrot.slane %v7501, 4
      %v7504 = vshll.u32 %v7186, 16
      %v7506 = vrot.slane %v7504, 5
      %v7507 = vsel %vm896, %v7502, %v7506
      %v7509 = vshrl.u32 %v7187, 16
      %v7511 = vrot.slane %v7509, 4
      %v7512 = vshll.u32 %v7187, 16
      %v7514 = vrot.slane %v7512, 5
      %v7515 = vor.u32 %v7511, %v7514
      %v7516 = vrot.slane %v7515, 4
      %v7518 = vshll.u32 %v7188, 16
      %v7520 = vrot.slane %v7518, 5
      %v7521 = vsel %vm896, %v7516, %v7520
      %v7522 = vshrl.u32 %v7188, 16
      %v7524 = vrot.slane %v7522, 4
      %v7525 = vor.u32 %v7524, %v7520
      %v7526 = vrot.slane %v7525, 4
      %v7528 = vshll.u32 %v7189, 16
      %v7530 = vrot.slane %v7528, 5
      %v7531 = vsel %vm896, %v7526, %v7530
      %v7533 = vshrl.u32 %v7190, 16
      %v7535 = vrot.slane %v7533, 4
      %v7536 = vshll.u32 %v7190, 16
      %v7538 = vrot.slane %v7536, 5
      %v7539 = vor.u32 %v7535, %v7538
      %v7540 = vrot.slane %v7539, 4
      %v7542 = vshll.u32 %v7191, 16
      %v7544 = vrot.slane %v7542, 5
      %v7545 = vsel %vm896, %v7540, %v7544
      %v7546 = vshrl.u32 %v7191, 16
      %v7548 = vrot.slane %v7546, 4
      %v7549 = vor.u32 %v7548, %v7544
      %v7550 = vrot.slane %v7549, 4
      %v7552 = vshll.u32 %v7192, 16
      %v7554 = vrot.slane %v7552, 5
      %v7555 = vsel %vm896, %v7550, %v7554
      %v7557 = vshrl.u32 %v7193, 16
      %v7559 = vrot.slane %v7557, 4
      %v7560 = vshll.u32 %v7193, 16
      %v7562 = vrot.slane %v7560, 5
      %v7563 = vor.u32 %v7559, %v7562
      %v7564 = vrot.slane %v7563, 4
      %v7566 = vshll.u32 %v7194, 16
      %v7568 = vrot.slane %v7566, 5
      %v7569 = vsel %vm896, %v7564, %v7568
      %v7570 = vshrl.u32 %v7194, 16
      %v7572 = vrot.slane %v7570, 4
      %v7573 = vor.u32 %v7572, %v7568
      %v7574 = vrot.slane %v7573, 4
      %v7576 = vshll.u32 %v7195, 16
      %v7578 = vrot.slane %v7576, 5
      %v7579 = vsel %vm896, %v7574, %v7578
      %v7580 = vunpack.c.l.b16 %v7209
      %v7581 = vunpack.c.l.b16 %v7219
      %v7582 = vunpack.c.l.b16 %v7233
      %v7583 = vunpack.c.l.b16 %v7243
      %v7584 = vunpack.c.l.b16 %v7257
      %v7585 = vunpack.c.l.b16 %v7267
      %v7586 = vunpack.c.l.b16 %v7281
      %v7587 = vunpack.c.l.b16 %v7291
      %v7588 = vunpack.c.l.b16 %v7305
      %v7589 = vunpack.c.l.b16 %v7315
      %v7590 = vunpack.c.l.b16 %v7329
      %v7591 = vunpack.c.l.b16 %v7339
      %v7592 = vunpack.c.l.b16 %v7353
      %v7593 = vunpack.c.l.b16 %v7363
      %v7594 = vunpack.c.l.b16 %v7377
      %v7595 = vunpack.c.l.b16 %v7387
      %v7596 = vunpack.c.l.b16 %v7401
      %v7597 = vunpack.c.l.b16 %v7411
      %v7598 = vunpack.c.l.b16 %v7425
      %v7599 = vunpack.c.l.b16 %v7435
      %v7600 = vunpack.c.l.b16 %v7449
      %v7601 = vunpack.c.l.b16 %v7459
      %v7602 = vunpack.c.l.b16 %v7473
      %v7603 = vunpack.c.l.b16 %v7483
      %v7604 = vunpack.c.l.b16 %v7497
      %v7605 = vunpack.c.l.b16 %v7507
      %v7606 = vunpack.c.l.b16 %v7521
      %v7607 = vunpack.c.l.b16 %v7531
      %v7608 = vunpack.c.l.b16 %v7545
      %v7609 = vunpack.c.l.b16 %v7555
      %v7610 = vunpack.c.l.b16 %v7569
      %v7611 = vunpack.c.l.b16 %v7579
      %v7612 = vpack.c.b16 %v7581, %v7580
      %v7613 = vpack.c.b16 %v7583, %v7582
      %v7614 = vpack.c.b16 %v7585, %v7584
      %v7615 = vpack.c.b16 %v7587, %v7586
      %v7616 = vpack.c.b16 %v7589, %v7588
      %v7617 = vpack.c.b16 %v7591, %v7590
      %v7618 = vpack.c.b16 %v7593, %v7592
      %v7619 = vpack.c.b16 %v7595, %v7594
      %v7620 = vpack.c.b16 %v7597, %v7596
      %v7621 = vpack.c.b16 %v7599, %v7598
      %v7622 = vpack.c.b16 %v7601, %v7600
      %v7623 = vpack.c.b16 %v7603, %v7602
      %v7624 = vpack.c.b16 %v7605, %v7604
      %v7625 = vpack.c.b16 %v7607, %v7606
      %v7626 = vpack.c.b16 %v7609, %v7608
      %v7627 = vpack.c.b16 %v7611, %v7610
      %7628 = vrot.lane.b32.xlu0 %v7612, 56
      %v7629 = vpop.permute.xlu0 %7628
      %7630 = vrot.lane.b32.xlu0 %v7613, 56
      %v7631 = vpop.permute.xlu0 %7630
      %7632 = vrot.lane.b32.xlu0 %v7614, 56
      %v7633 = vpop.permute.xlu0 %7632
      %7634 = vrot.lane.b32.xlu0 %v7615, 56
      %v7635 = vpop.permute.xlu0 %7634
      %7636 = vrot.lane.b32.xlu0 %v7616, 56
      %v7637 = vpop.permute.xlu0 %7636
      %7638 = vrot.lane.b32.xlu0 %v7617, 56
      %v7639 = vpop.permute.xlu0 %7638
      %7640 = vrot.lane.b32.xlu0 %v7618, 56
      %v7641 = vpop.permute.xlu0 %7640
      %7642 = vrot.lane.b32.xlu0 %v7619, 56
      %v7643 = vpop.permute.xlu0 %7642
      %7644 = vrot.lane.b32.xlu0 %v7620, 56
      %v7645 = vpop.permute.xlu0 %7644
      %7646 = vrot.lane.b32.xlu0 %v7621, 56
      %v7647 = vpop.permute.xlu0 %7646
      %7648 = vrot.lane.b32.xlu0 %v7622, 56
      %v7649 = vpop.permute.xlu0 %7648
      %7650 = vrot.lane.b32.xlu0 %v7623, 56
      %v7651 = vpop.permute.xlu0 %7650
      %7652 = vrot.lane.b32.xlu0 %v7624, 56
      %v7653 = vpop.permute.xlu0 %7652
      %7654 = vrot.lane.b32.xlu0 %v7625, 56
      %v7655 = vpop.permute.xlu0 %7654
      %7656 = vrot.lane.b32.xlu0 %v7626, 56
      %v7657 = vpop.permute.xlu0 %7656
      %7658 = vrot.lane.b32.xlu0 %v7627, 56
      %v7659 = vpop.permute.xlu0 %7658
      %vm7676 = vcmask 523712
      %7677 = vst.msk [vmem:[#allocation5] sm:$0xff] %vm7676, %v7629
      %7678 = vst.msk [vmem:[#allocation5 + $0x8] sm:$0xff] %vm7676, %v7631
      %7679 = vst.msk [vmem:[#allocation5 + $0x10] sm:$0xff] %vm7676, %v7633
      %7680 = vst.msk [vmem:[#allocation5 + $0x18] sm:$0xff] %vm7676, %v7635
      %7681 = vst.msk [vmem:[#allocation5 + $0x20] sm:$0xff] %vm7676, %v7637
      %7682 = vst.msk [vmem:[#allocation5 + $0x28] sm:$0xff] %vm7676, %v7639
      %7683 = vst.msk [vmem:[#allocation5 + $0x30] sm:$0xff] %vm7676, %v7641
      %7684 = vst.msk [vmem:[#allocation5 + $0x38] sm:$0xff] %vm7676, %v7643
      %7685 = vst.msk [vmem:[#allocation5 + $0x40] sm:$0xff] %vm7676, %v7645
      %7686 = vst.msk [vmem:[#allocation5 + $0x48] sm:$0xff] %vm7676, %v7647
      %7687 = vst.msk [vmem:[#allocation5 + $0x50] sm:$0xff] %vm7676, %v7649
      %7688 = vst.msk [vmem:[#allocation5 + $0x58] sm:$0xff] %vm7676, %v7651
      %7689 = vst.msk [vmem:[#allocation5 + $0x60] sm:$0xff] %vm7676, %v7653
      %7690 = vst.msk [vmem:[#allocation5 + $0x68] sm:$0xff] %vm7676, %v7655
      %7691 = vst.msk [vmem:[#allocation5 + $0x70] sm:$0xff] %vm7676, %v7657
      %7692 = vst.msk [vmem:[#allocation5 + $0x78] sm:$0xff] %vm7676, %v7659
      %v7693 = vld [vmem:[%s6970] sm:$0xe]
      %v7694 = vld [vmem:[%s6970 + $0x4] sm:$0xf]
      %v7695 = vld [vmem:[%s6970 + $0x8] sm:$0x1]
      %v7696 = vld [vmem:[%s6970 + $0xc] sm:$0xe]
      %v7697 = vld [vmem:[%s6970 + $0x10] sm:$0xf]
      %v7698 = vld [vmem:[%s6970 + $0x14] sm:$0x1]
      %v7699 = vld [vmem:[%s6970 + $0x18] sm:$0xe]
      %v7700 = vld [vmem:[%s6970 + $0x1c] sm:$0xf]
      %v7701 = vld [vmem:[%s6970 + $0x20] sm:$0x1]
      %v7702 = vld [vmem:[%s6970 + $0x24] sm:$0xe]
      %v7703 = vld [vmem:[%s6970 + $0x28] sm:$0xf]
      %v7704 = vld [vmem:[%s6970 + $0x2c] sm:$0x1]
      %v7705 = vld [vmem:[%s6970 + $0x30] sm:$0xe]
      %v7706 = vld [vmem:[%s6970 + $0x34] sm:$0xf]
      %v7707 = vld [vmem:[%s6970 + $0x38] sm:$0x1]
      %v7708 = vld [vmem:[%s6970 + $0x3c] sm:$0xe]
      %v7709 = vld [vmem:[%s6970 + $0x40] sm:$0xf]
      %v7710 = vld [vmem:[%s6970 + $0x44] sm:$0x1]
      %v7711 = vld [vmem:[%s6970 + $0x48] sm:$0xe]
      %v7712 = vld [vmem:[%s6970 + $0x4c] sm:$0xf]
      %v7713 = vld [vmem:[%s6970 + $0x50] sm:$0x1]
      %v7714 = vld [vmem:[%s6970 + $0x54] sm:$0xe]
      %v7715 = vld [vmem:[%s6970 + $0x58] sm:$0xf]
      %v7716 = vld [vmem:[%s6970 + $0x5c] sm:$0x1]
      %v7717 = vld [vmem:[%s6970 + $0x60] sm:$0xe]
      %v7718 = vld [vmem:[%s6970 + $0x64] sm:$0xf]
      %v7719 = vld [vmem:[%s6970 + $0x68] sm:$0x1]
      %v7720 = vld [vmem:[%s6970 + $0x6c] sm:$0xe]
      %v7721 = vld [vmem:[%s6970 + $0x70] sm:$0xf]
      %v7722 = vld [vmem:[%s6970 + $0x74] sm:$0x1]
      %v7723 = vld [vmem:[%s6970 + $0x78] sm:$0xe]
      %v7724 = vld [vmem:[%s6970 + $0x7c] sm:$0xf]
      %v7725 = vld [vmem:[%s6970 + $0x80] sm:$0x1]
      %v7726 = vld [vmem:[%s6970 + $0x84] sm:$0xe]
      %v7727 = vld [vmem:[%s6970 + $0x88] sm:$0xf]
      %v7728 = vld [vmem:[%s6970 + $0x8c] sm:$0x1]
      %v7729 = vld [vmem:[%s6970 + $0x90] sm:$0xe]
      %v7730 = vld [vmem:[%s6970 + $0x94] sm:$0xf]
      %v7731 = vld [vmem:[%s6970 + $0x98] sm:$0x1]
      %v7732 = vld [vmem:[%s6970 + $0x9c] sm:$0xe]
      %v7733 = vld [vmem:[%s6970 + $0xa0] sm:$0xf]
      %v7734 = vld [vmem:[%s6970 + $0xa4] sm:$0x1]
      %v7735 = vld [vmem:[%s6970 + $0xa8] sm:$0xe]
      %v7736 = vld [vmem:[%s6970 + $0xac] sm:$0xf]
      %v7737 = vld [vmem:[%s6970 + $0xb0] sm:$0x1]
      %v7738 = vld [vmem:[%s6970 + $0xb4] sm:$0xe]
      %v7739 = vld [vmem:[%s6970 + $0xb8] sm:$0xf]
      %v7740 = vld [vmem:[%s6970 + $0xbc] sm:$0x1]
      %v7789 = vrot.slane %v7693, 5
      %v7790 = vrot.slane %v7789, 4
      %v7791 = vrot.slane %v7694, 5
      %v7792 = vsel %vm1492, %v7790, %v7791
      %v7793 = vrot.slane %v7791, 4
      %v7794 = vrot.slane %v7695, 5
      %v7795 = vsel %vm1492, %v7793, %v7794
      %v7796 = vrot.slane %v7696, 5
      %v7797 = vrot.slane %v7796, 4
      %v7798 = vrot.slane %v7697, 5
      %v7799 = vsel %vm1492, %v7797, %v7798
      %v7800 = vrot.slane %v7798, 4
      %v7801 = vrot.slane %v7698, 5
      %v7802 = vsel %vm1492, %v7800, %v7801
      %v7803 = vrot.slane %v7699, 5
      %v7804 = vrot.slane %v7803, 4
      %v7805 = vrot.slane %v7700, 5
      %v7806 = vsel %vm1492, %v7804, %v7805
      %v7807 = vrot.slane %v7805, 4
      %v7808 = vrot.slane %v7701, 5
      %v7809 = vsel %vm1492, %v7807, %v7808
      %v7810 = vrot.slane %v7702, 5
      %v7811 = vrot.slane %v7810, 4
      %v7812 = vrot.slane %v7703, 5
      %v7813 = vsel %vm1492, %v7811, %v7812
      %v7814 = vrot.slane %v7812, 4
      %v7815 = vrot.slane %v7704, 5
      %v7816 = vsel %vm1492, %v7814, %v7815
      %v7817 = vrot.slane %v7705, 5
      %v7818 = vrot.slane %v7817, 4
      %v7819 = vrot.slane %v7706, 5
      %v7820 = vsel %vm1492, %v7818, %v7819
      %v7821 = vrot.slane %v7819, 4
      %v7822 = vrot.slane %v7707, 5
      %v7823 = vsel %vm1492, %v7821, %v7822
      %v7824 = vrot.slane %v7708, 5
      %v7825 = vrot.slane %v7824, 4
      %v7826 = vrot.slane %v7709, 5
      %v7827 = vsel %vm1492, %v7825, %v7826
      %v7828 = vrot.slane %v7826, 4
      %v7829 = vrot.slane %v7710, 5
      %v7830 = vsel %vm1492, %v7828, %v7829
      %v7831 = vrot.slane %v7711, 5
      %v7832 = vrot.slane %v7831, 4
      %v7833 = vrot.slane %v7712, 5
      %v7834 = vsel %vm1492, %v7832, %v7833
      %v7835 = vrot.slane %v7833, 4
      %v7836 = vrot.slane %v7713, 5
      %v7837 = vsel %vm1492, %v7835, %v7836
      %v7838 = vrot.slane %v7714, 5
      %v7839 = vrot.slane %v7838, 4
      %v7840 = vrot.slane %v7715, 5
      %v7841 = vsel %vm1492, %v7839, %v7840
      %v7842 = vrot.slane %v7840, 4
      %v7843 = vrot.slane %v7716, 5
      %v7844 = vsel %vm1492, %v7842, %v7843
      %v7845 = vrot.slane %v7717, 5
      %v7846 = vrot.slane %v7845, 4
      %v7847 = vrot.slane %v7718, 5
      %v7848 = vsel %vm1492, %v7846, %v7847
      %v7849 = vrot.slane %v7847, 4
      %v7850 = vrot.slane %v7719, 5
      %v7851 = vsel %vm1492, %v7849, %v7850
      %v7852 = vrot.slane %v7720, 5
      %v7853 = vrot.slane %v7852, 4
      %v7854 = vrot.slane %v7721, 5
      %v7855 = vsel %vm1492, %v7853, %v7854
      %v7856 = vrot.slane %v7854, 4
      %v7857 = vrot.slane %v7722, 5
      %v7858 = vsel %vm1492, %v7856, %v7857
      %v7859 = vrot.slane %v7723, 5
      %v7860 = vrot.slane %v7859, 4
      %v7861 = vrot.slane %v7724, 5
      %v7862 = vsel %vm1492, %v7860, %v7861
      %v7863 = vrot.slane %v7861, 4
      %v7864 = vrot.slane %v7725, 5
      %v7865 = vsel %vm1492, %v7863, %v7864
      %v7866 = vrot.slane %v7726, 5
      %v7867 = vrot.slane %v7866, 4
      %v7868 = vrot.slane %v7727, 5
      %v7869 = vsel %vm1492, %v7867, %v7868
      %v7870 = vrot.slane %v7868, 4
      %v7871 = vrot.slane %v7728, 5
      %v7872 = vsel %vm1492, %v7870, %v7871
      %v7873 = vrot.slane %v7729, 5
      %v7874 = vrot.slane %v7873, 4
      %v7875 = vrot.slane %v7730, 5
      %v7876 = vsel %vm1492, %v7874, %v7875
      %v7877 = vrot.slane %v7875, 4
      %v7878 = vrot.slane %v7731, 5
      %v7879 = vsel %vm1492, %v7877, %v7878
      %v7880 = vrot.slane %v7732, 5
      %v7881 = vrot.slane %v7880, 4
      %v7882 = vrot.slane %v7733, 5
      %v7883 = vsel %vm1492, %v7881, %v7882
      %v7884 = vrot.slane %v7882, 4
      %v7885 = vrot.slane %v7734, 5
      %v7886 = vsel %vm1492, %v7884, %v7885
      %v7887 = vrot.slane %v7735, 5
      %v7888 = vrot.slane %v7887, 4
      %v7889 = vrot.slane %v7736, 5
      %v7890 = vsel %vm1492, %v7888, %v7889
      %v7891 = vrot.slane %v7889, 4
      %v7892 = vrot.slane %v7737, 5
      %v7893 = vsel %vm1492, %v7891, %v7892
      %v7894 = vrot.slane %v7738, 5
      %v7895 = vrot.slane %v7894, 4
      %v7896 = vrot.slane %v7739, 5
      %v7897 = vsel %vm1492, %v7895, %v7896
      %v7898 = vrot.slane %v7896, 4
      %v7899 = vrot.slane %v7740, 5
      %v7900 = vsel %vm1492, %v7898, %v7899
      %v7901 = vunpack.c.l.b16 %v7792
      %v7902 = vunpack.c.l.b16 %v7795
      %v7903 = vunpack.c.l.b16 %v7799
      %v7904 = vunpack.c.l.b16 %v7802
      %v7905 = vunpack.c.l.b16 %v7806
      %v7906 = vunpack.c.l.b16 %v7809
      %v7907 = vunpack.c.l.b16 %v7813
      %v7908 = vunpack.c.l.b16 %v7816
      %v7909 = vunpack.c.l.b16 %v7820
      %v7910 = vunpack.c.l.b16 %v7823
      %v7911 = vunpack.c.l.b16 %v7827
      %v7912 = vunpack.c.l.b16 %v7830
      %v7913 = vunpack.c.l.b16 %v7834
      %v7914 = vunpack.c.l.b16 %v7837
      %v7915 = vunpack.c.l.b16 %v7841
      %v7916 = vunpack.c.l.b16 %v7844
      %v7917 = vunpack.c.l.b16 %v7848
      %v7918 = vunpack.c.l.b16 %v7851
      %v7919 = vunpack.c.l.b16 %v7855
      %v7920 = vunpack.c.l.b16 %v7858
      %v7921 = vunpack.c.l.b16 %v7862
      %v7922 = vunpack.c.l.b16 %v7865
      %v7923 = vunpack.c.l.b16 %v7869
      %v7924 = vunpack.c.l.b16 %v7872
      %v7925 = vunpack.c.l.b16 %v7876
      %v7926 = vunpack.c.l.b16 %v7879
      %v7927 = vunpack.c.l.b16 %v7883
      %v7928 = vunpack.c.l.b16 %v7886
      %v7929 = vunpack.c.l.b16 %v7890
      %v7930 = vunpack.c.l.b16 %v7893
      %v7931 = vunpack.c.l.b16 %v7897
      %v7932 = vunpack.c.l.b16 %v7900
      %v7933 = vpack.c.b16 %v7902, %v7901
      %v7934 = vpack.c.b16 %v7904, %v7903
      %v7935 = vpack.c.b16 %v7906, %v7905
      %v7936 = vpack.c.b16 %v7908, %v7907
      %v7937 = vpack.c.b16 %v7910, %v7909
      %v7938 = vpack.c.b16 %v7912, %v7911
      %v7939 = vpack.c.b16 %v7914, %v7913
      %v7940 = vpack.c.b16 %v7916, %v7915
      %v7941 = vpack.c.b16 %v7918, %v7917
      %v7942 = vpack.c.b16 %v7920, %v7919
      %v7943 = vpack.c.b16 %v7922, %v7921
      %v7944 = vpack.c.b16 %v7924, %v7923
      %v7945 = vpack.c.b16 %v7926, %v7925
      %v7946 = vpack.c.b16 %v7928, %v7927
      %v7947 = vpack.c.b16 %v7930, %v7929
      %v7948 = vpack.c.b16 %v7932, %v7931
      %7949 = vrot.lane.b32.xlu0 %v7933, 64
      %v7950 = vpop.permute.xlu0 %7949
      %7951 = vrot.lane.b32.xlu0 %v7934, 64
      %v7952 = vpop.permute.xlu0 %7951
      %7953 = vrot.lane.b32.xlu0 %v7935, 64
      %v7954 = vpop.permute.xlu0 %7953
      %7955 = vrot.lane.b32.xlu0 %v7936, 64
      %v7956 = vpop.permute.xlu0 %7955
      %7957 = vrot.lane.b32.xlu0 %v7937, 64
      %v7958 = vpop.permute.xlu0 %7957
      %7959 = vrot.lane.b32.xlu0 %v7938, 64
      %v7960 = vpop.permute.xlu0 %7959
      %7961 = vrot.lane.b32.xlu0 %v7939, 64
      %v7962 = vpop.permute.xlu0 %7961
      %7963 = vrot.lane.b32.xlu0 %v7940, 64
      %v7964 = vpop.permute.xlu0 %7963
      %7965 = vrot.lane.b32.xlu0 %v7941, 64
      %v7966 = vpop.permute.xlu0 %7965
      %7967 = vrot.lane.b32.xlu0 %v7942, 64
      %v7968 = vpop.permute.xlu0 %7967
      %7969 = vrot.lane.b32.xlu0 %v7943, 64
      %v7970 = vpop.permute.xlu0 %7969
      %7971 = vrot.lane.b32.xlu0 %v7944, 64
      %v7972 = vpop.permute.xlu0 %7971
      %7973 = vrot.lane.b32.xlu0 %v7945, 64
      %v7974 = vpop.permute.xlu0 %7973
      %7975 = vrot.lane.b32.xlu0 %v7946, 64
      %v7976 = vpop.permute.xlu0 %7975
      %7977 = vrot.lane.b32.xlu0 %v7947, 64
      %v7978 = vpop.permute.xlu0 %7977
      %7979 = vrot.lane.b32.xlu0 %v7948, 64
      %v7980 = vpop.permute.xlu0 %7979
      %vm7997 = vcmask 589312
      %7998 = vst.msk [vmem:[#allocation5] sm:$0xff] %vm7997, %v7950
      %7999 = vst.msk [vmem:[#allocation5 + $0x8] sm:$0xff] %vm7997, %v7952
      %8000 = vst.msk [vmem:[#allocation5 + $0x10] sm:$0xff] %vm7997, %v7954
      %8001 = vst.msk [vmem:[#allocation5 + $0x18] sm:$0xff] %vm7997, %v7956
      %8002 = vst.msk [vmem:[#allocation5 + $0x20] sm:$0xff] %vm7997, %v7958
      %8003 = vst.msk [vmem:[#allocation5 + $0x28] sm:$0xff] %vm7997, %v7960
      %8004 = vst.msk [vmem:[#allocation5 + $0x30] sm:$0xff] %vm7997, %v7962
      %8005 = vst.msk [vmem:[#allocation5 + $0x38] sm:$0xff] %vm7997, %v7964
      %8006 = vst.msk [vmem:[#allocation5 + $0x40] sm:$0xff] %vm7997, %v7966
      %8007 = vst.msk [vmem:[#allocation5 + $0x48] sm:$0xff] %vm7997, %v7968
      %8008 = vst.msk [vmem:[#allocation5 + $0x50] sm:$0xff] %vm7997, %v7970
      %8009 = vst.msk [vmem:[#allocation5 + $0x58] sm:$0xff] %vm7997, %v7972
      %8010 = vst.msk [vmem:[#allocation5 + $0x60] sm:$0xff] %vm7997, %v7974
      %8011 = vst.msk [vmem:[#allocation5 + $0x68] sm:$0xff] %vm7997, %v7976
      %8012 = vst.msk [vmem:[#allocation5 + $0x70] sm:$0xff] %vm7997, %v7978
      %8013 = vst.msk [vmem:[#allocation5 + $0x78] sm:$0xff] %vm7997, %v7980
      %v8014 = vld [vmem:[#allocation5] sm:$0xff]
      %v8015 = vld [vmem:[#allocation5 + $0x8] sm:$0xff]
      %v8016 = vld [vmem:[#allocation5 + $0x10] sm:$0xff]
      %v8017 = vld [vmem:[#allocation5 + $0x18] sm:$0xff]
      %v8018 = vld [vmem:[#allocation5 + $0x20] sm:$0xff]
      %v8019 = vld [vmem:[#allocation5 + $0x28] sm:$0xff]
      %v8020 = vld [vmem:[#allocation5 + $0x30] sm:$0xff]
      %v8021 = vld [vmem:[#allocation5 + $0x38] sm:$0xff]
      %v8022 = vld [vmem:[#allocation5 + $0x40] sm:$0xff]
      %v8023 = vld [vmem:[#allocation5 + $0x48] sm:$0xff]
      %v8024 = vld [vmem:[#allocation5 + $0x50] sm:$0xff]
      %v8025 = vld [vmem:[#allocation5 + $0x58] sm:$0xff]
      %v8026 = vld [vmem:[#allocation5 + $0x60] sm:$0xff]
      %v8027 = vld [vmem:[#allocation5 + $0x68] sm:$0xff]
      %v8028 = vld [vmem:[#allocation5 + $0x70] sm:$0xff]
      %v8029 = vld [vmem:[#allocation5 + $0x78] sm:$0xff]
      %v8030 = vld [vmem:[%s2] sm:$0xf]
      %v8031 = vld [vmem:[%s2 + $0x4] sm:$0xf]
      %v8032 = vld [vmem:[%s2 + $0x8] sm:$0xf]
      %v8033 = vld [vmem:[%s2 + $0xc] sm:$0xf]
      %v8034 = vld [vmem:[%s2 + $0x10] sm:$0xf]
      %v8035 = vld [vmem:[%s2 + $0x14] sm:$0xf]
      %v8036 = vld [vmem:[%s2 + $0x18] sm:$0xf]
      %v8037 = vld [vmem:[%s2 + $0x1c] sm:$0xf]
      %v8038 = vld [vmem:[%s2 + $0x20] sm:$0xf]
      %v8048 = vunpack.c.l.b16 %v8030
      %v8049 = vunpack.c.l.b16 %v8031
      %v8050 = vunpack.c.l.b16 %v8032
      %v8051 = vunpack.c.l.b16 %v8033
      %v8052 = vunpack.c.l.b16 %v8034
      %v8053 = vunpack.c.l.b16 %v8035
      %v8054 = vunpack.c.l.b16 %v8036
      %v8055 = vunpack.c.l.b16 %v8037
      %v8056 = vunpack.c.l.b16 %v8038
      %v8057 = vpack.c.b16 %v8049, %v8048
      %v8058 = vpack.c.b16 %v8051, %v8050
      %v8059 = vpack.c.b16 %v8053, %v8052
      %v8060 = vpack.c.b16 %v8055, %v8054
      %v8061 = vpack.c.b16 %v8056, %v8056
      %vm8066 = vcmask 588800
      %v8068 = vsel %vm8066, %v8014, 0
      %v8071 = vsel %vm8066, %v8015, 0
      %v8074 = vsel %vm8066, %v8016, 0
      %v8077 = vsel %vm8066, %v8017, 0
      %v8080 = vsel %vm8066, %v8018, 0
      %v8083 = vsel %vm8066, %v8019, 0
      %v8086 = vsel %vm8066, %v8020, 0
      %v8089 = vsel %vm8066, %v8021, 0
      %v8092 = vsel %vm8066, %v8022, 0
      %v8095 = vsel %vm8066, %v8023, 0
      %v8098 = vsel %vm8066, %v8024, 0
      %v8101 = vsel %vm8066, %v8025, 0
      %v8104 = vsel %vm8066, %v8026, 0
      %v8107 = vsel %vm8066, %v8027, 0
      %v8110 = vsel %vm8066, %v8028, 0
      %v8113 = vsel %vm8066, %v8029, 0
      %vm8115 = vcmask 1043456
      %v8117 = vsel %vm8115, %v8061, 0
      %8119 = vmatprep.subr.bf16.mxu0 0
      %8120 = vmatpush1.bf16.msra.mxu0 %v8057
      %8121 = vmatprep.subr.bf16.mxu0 0
      %8122 = vmatpush1.bf16.msra.mxu0 %v8058
      %8123 = vmatprep.subr.bf16.mxu0 0
      %8124 = vmatpush1.bf16.msra.mxu0 %v8059
      %8125 = vmatprep.subr.bf16.mxu0 0
      %8126 = vmatpush1.bf16.msra.mxu0 %v8060
      %8127 = vmatprep.subr.bf16.mxu0 0
      %8128 = vmatpush1.bf16.msra.mxu0 %v8117
      %8129 = vmatprep.subr.bf16.mxu0 0
      %8130 = vmatpush1.bf16.msra.mxu0 0
      %8131 = vmatprep.subr.bf16.mxu0 0
      %8132 = vmatpush1.bf16.msra.mxu0 0
      %8133 = vmatprep.subr.bf16.mxu0 0
      %8134 = vmatpush1.bf16.msra.mxu0 0
      %8135 = vmatprep.subr.bf16.mxu0 0
      %8136 = vmatpush1.bf16.msra.mxu0 0
      %8137 = vmatprep.subr.bf16.mxu0 0
      %8138 = vmatpush1.bf16.msra.mxu0 0
      %8139 = vmatprep.subr.bf16.mxu0 0
      %8140 = vmatpush1.bf16.msra.mxu0 0
      %8141 = vmatprep.subr.bf16.mxu0 0
      %8142 = vmatpush1.bf16.msra.mxu0 0
      %8143 = vmatprep.subr.bf16.mxu0 0
      %8144 = vmatpush1.bf16.msra.mxu0 0
      %8145 = vmatprep.subr.bf16.mxu0 0
      %8146 = vmatpush1.bf16.msra.mxu0 0
      %8147 = vmatprep.subr.bf16.mxu0 0
      %8148 = vmatpush1.bf16.msra.mxu0 0
      %8149 = vmatprep.subr.bf16.mxu0 0
      %8150 = vmatpush1.bf16.msra.mxu0 0
      %8151 = vmatprep.mubr.bf16.mxu0 0
      %8152 = vmatmul.mubr.bf16.gmra.mrb[0].mxu0 %v8068
      %v8153 = vpop.f32.mrb[0].mxu0
      %v8154 = vadd.f32 0.0, %v8153
      %v8155 = vpop.f32.mrb[0].mxu0
      %v8156 = vpop.f32.mrb[0].mxu0
      %v8157 = vadd.f32 0.0, %v8156
      %v8158 = vpop.f32.mrb[0].mxu0
      %8159 = vmatprep.mubr.bf16.mxu0 0
      %8160 = vmatmul.mubr.bf16.gmra.mrb[0].mxu0 %v8071
      %v8161 = vpop.f32.mrb[0].mxu0
      %v8162 = vadd.f32 0.0, %v8161
      %v8163 = vpop.f32.mrb[0].mxu0
      %v8164 = vpop.f32.mrb[0].mxu0
      %v8165 = vadd.f32 0.0, %v8164
      %v8166 = vpop.f32.mrb[0].mxu0
      %8167 = vmatprep.mubr.bf16.mxu0 0
      %8168 = vmatmul.mubr.bf16.gmra.mrb[0].mxu0 %v8074
      %v8169 = vpop.f32.mrb[0].mxu0
      %v8170 = vadd.f32 0.0, %v8169
      %v8171 = vpop.f32.mrb[0].mxu0
      %v8172 = vpop.f32.mrb[0].mxu0
      %v8173 = vadd.f32 0.0, %v8172
      %v8174 = vpop.f32.mrb[0].mxu0
      %8175 = vmatprep.mubr.bf16.mxu0 0
      %8176 = vmatmul.mubr.bf16.gmra.mrb[0].mxu0 %v8077
      %v8177 = vpop.f32.mrb[0].mxu0
      %v8178 = vadd.f32 0.0, %v8177
      %v8179 = vpop.f32.mrb[0].mxu0
      %v8180 = vpop.f32.mrb[0].mxu0
      %v8181 = vadd.f32 0.0, %v8180
      %v8182 = vpop.f32.mrb[0].mxu0
      %8183 = vmatprep.mubr.bf16.mxu0 0
      %8184 = vmatmul.mubr.bf16.gmra.mrb[0].mxu0 %v8080
      %v8185 = vpop.f32.mrb[0].mxu0
      %v8186 = vadd.f32 0.0, %v8185
      %v8187 = vpop.f32.mrb[0].mxu0
      %v8188 = vpop.f32.mrb[0].mxu0
      %v8189 = vadd.f32 0.0, %v8188
      %v8190 = vpop.f32.mrb[0].mxu0
      %8191 = vmatprep.mubr.bf16.mxu0 0
      %8192 = vmatmul.mubr.bf16.gmra.mrb[0].mxu0 %v8083
      %v8193 = vpop.f32.mrb[0].mxu0
      %v8194 = vadd.f32 0.0, %v8193
      %v8195 = vpop.f32.mrb[0].mxu0
      %v8196 = vpop.f32.mrb[0].mxu0
      %v8197 = vadd.f32 0.0, %v8196
      %v8198 = vpop.f32.mrb[0].mxu0
      %8199 = vmatprep.mubr.bf16.mxu0 0
      %8200 = vmatmul.mubr.bf16.gmra.mrb[0].mxu0 %v8086
      %v8201 = vpop.f32.mrb[0].mxu0
      %v8202 = vadd.f32 0.0, %v8201
      %v8203 = vpop.f32.mrb[0].mxu0
      %v8204 = vpop.f32.mrb[0].mxu0
      %v8205 = vadd.f32 0.0, %v8204
      %v8206 = vpop.f32.mrb[0].mxu0
      %8207 = vmatprep.mubr.bf16.mxu0 0
      %8208 = vmatmul.mubr.bf16.gmra.mrb[0].mxu0 %v8089
      %v8209 = vpop.f32.mrb[0].mxu0
      %v8210 = vadd.f32 0.0, %v8209
      %v8211 = vpop.f32.mrb[0].mxu0
      %v8212 = vpop.f32.mrb[0].mxu0
      %v8213 = vadd.f32 0.0, %v8212
      %v8214 = vpop.f32.mrb[0].mxu0
      %8215 = vmatprep.mubr.bf16.mxu0 0
      %8216 = vmatmul.mubr.bf16.gmra.mrb[0].mxu0 %v8092
      %v8217 = vpop.f32.mrb[0].mxu0
      %v8218 = vadd.f32 0.0, %v8217
      %v8219 = vpop.f32.mrb[0].mxu0
      %v8220 = vpop.f32.mrb[0].mxu0
      %v8221 = vadd.f32 0.0, %v8220
      %v8222 = vpop.f32.mrb[0].mxu0
      %8223 = vmatprep.mubr.bf16.mxu0 0
      %8224 = vmatmul.mubr.bf16.gmra.mrb[0].mxu0 %v8095
      %v8225 = vpop.f32.mrb[0].mxu0
      %v8226 = vadd.f32 0.0, %v8225
      %v8227 = vpop.f32.mrb[0].mxu0
      %v8228 = vpop.f32.mrb[0].mxu0
      %v8229 = vadd.f32 0.0, %v8228
      %v8230 = vpop.f32.mrb[0].mxu0
      %8231 = vmatprep.mubr.bf16.mxu0 0
      %8232 = vmatmul.mubr.bf16.gmra.mrb[0].mxu0 %v8098
      %v8233 = vpop.f32.mrb[0].mxu0
      %v8234 = vadd.f32 0.0, %v8233
      %v8235 = vpop.f32.mrb[0].mxu0
      %v8236 = vpop.f32.mrb[0].mxu0
      %v8237 = vadd.f32 0.0, %v8236
      %v8238 = vpop.f32.mrb[0].mxu0
      %8239 = vmatprep.mubr.bf16.mxu0 0
      %8240 = vmatmul.mubr.bf16.gmra.mrb[0].mxu0 %v8101
      %v8241 = vpop.f32.mrb[0].mxu0
      %v8242 = vadd.f32 0.0, %v8241
      %v8243 = vpop.f32.mrb[0].mxu0
      %v8244 = vpop.f32.mrb[0].mxu0
      %v8245 = vadd.f32 0.0, %v8244
      %v8246 = vpop.f32.mrb[0].mxu0
      %8247 = vmatprep.mubr.bf16.mxu0 0
      %8248 = vmatmul.mubr.bf16.gmra.mrb[0].mxu0 %v8104
      %v8249 = vpop.f32.mrb[0].mxu0
      %v8250 = vadd.f32 0.0, %v8249
      %v8251 = vpop.f32.mrb[0].mxu0
      %v8252 = vpop.f32.mrb[0].mxu0
      %v8253 = vadd.f32 0.0, %v8252
      %v8254 = vpop.f32.mrb[0].mxu0
      %8255 = vmatprep.mubr.bf16.mxu0 0
      %8256 = vmatmul.mubr.bf16.gmra.mrb[0].mxu0 %v8107
      %v8257 = vpop.f32.mrb[0].mxu0
      %v8258 = vadd.f32 0.0, %v8257
      %v8259 = vpop.f32.mrb[0].mxu0
      %v8260 = vpop.f32.mrb[0].mxu0
      %v8261 = vadd.f32 0.0, %v8260
      %v8262 = vpop.f32.mrb[0].mxu0
      %8263 = vmatprep.mubr.bf16.mxu0 0
      %8264 = vmatmul.mubr.bf16.gmra.mrb[0].mxu0 %v8110
      %v8265 = vpop.f32.mrb[0].mxu0
      %v8266 = vadd.f32 0.0, %v8265
      %v8267 = vpop.f32.mrb[0].mxu0
      %v8268 = vpop.f32.mrb[0].mxu0
      %v8269 = vadd.f32 0.0, %v8268
      %v8270 = vpop.f32.mrb[0].mxu0
      %8271 = vmatprep.mubr.bf16.mxu0 0
      %8272 = vmatmul.mubr.bf16.gmra.mrb[0].mxu0 %v8113
      %v8273 = vpop.f32.mrb[0].mxu0
      %v8274 = vadd.f32 0.0, %v8273
      %v8275 = vpop.f32.mrb[0].mxu0
      %v8276 = vpop.f32.mrb[0].mxu0
      %v8277 = vadd.f32 0.0, %v8276
      %v8278 = vpop.f32.mrb[0].mxu0
      %8279 = vdwg.mxu0
      %v8280 = vadd.f32 %v8154, %v8157
      %v8281 = vadd.f32 %v8280, %v8162
      %v8282 = vadd.f32 %v8281, %v8165
      %v8283 = vadd.f32 %v8282, %v8170
      %v8284 = vadd.f32 %v8283, %v8173
      %v8285 = vadd.f32 %v8284, %v8178
      %v8286 = vadd.f32 %v8285, %v8181
      %v8287 = vadd.f32 %v8286, %v8186
      %v8288 = vadd.f32 %v8287, %v8189
      %v8289 = vadd.f32 %v8288, %v8194
      %v8290 = vadd.f32 %v8289, %v8197
      %v8291 = vadd.f32 %v8290, %v8202
      %v8292 = vadd.f32 %v8291, %v8205
      %v8293 = vadd.f32 %v8292, %v8210
      %v8294 = vadd.f32 %v8293, %v8213
      %v8295 = vadd.f32 %v8294, %v8218
      %v8296 = vadd.f32 %v8295, %v8221
      %v8297 = vadd.f32 %v8296, %v8226
      %v8298 = vadd.f32 %v8297, %v8229
      %v8299 = vadd.f32 %v8298, %v8234
      %v8300 = vadd.f32 %v8299, %v8237
      %v8301 = vadd.f32 %v8300, %v8242
      %v8302 = vadd.f32 %v8301, %v8245
      %v8303 = vadd.f32 %v8302, %v8250
      %v8304 = vadd.f32 %v8303, %v8253
      %v8305 = vadd.f32 %v8304, %v8258
      %v8306 = vadd.f32 %v8305, %v8261
      %v8307 = vadd.f32 %v8306, %v8266
      %v8308 = vadd.f32 %v8307, %v8269
      %v8309 = vadd.f32 %v8308, %v8274
      %v8310 = vadd.f32 %v8309, %v8277
      %v8311 = vrot.slane %v8310, 4
      %v8312 = vadd.f32 %v8310, %v8311
      %v8313 = vrot.slane %v8312, 2
      %v8314 = vadd.f32 %v8312, %v8313
      %v8315 = vrot.slane %v8314, 1
      %v8316 = vadd.f32 %v8314, %v8315
      %v8317 = vmul.f32 %v8316, %v4092
      %v8318 = vmul.f32 %v8154, %v8154
      %v8319 = vmul.f32 %v8157, %v8157
      %v8320 = vmul.f32 %v8162, %v8162
      %v8321 = vmul.f32 %v8165, %v8165
      %v8322 = vmul.f32 %v8170, %v8170
      %v8323 = vmul.f32 %v8173, %v8173
      %v8324 = vmul.f32 %v8178, %v8178
      %v8325 = vmul.f32 %v8181, %v8181
      %v8326 = vmul.f32 %v8186, %v8186
      %v8327 = vmul.f32 %v8189, %v8189
      %v8328 = vmul.f32 %v8194, %v8194
      %v8329 = vmul.f32 %v8197, %v8197
      %v8330 = vmul.f32 %v8202, %v8202
      %v8331 = vmul.f32 %v8205, %v8205
      %v8332 = vmul.f32 %v8210, %v8210
      %v8333 = vmul.f32 %v8213, %v8213
      %v8334 = vmul.f32 %v8218, %v8218
      %v8335 = vmul.f32 %v8221, %v8221
      %v8336 = vmul.f32 %v8226, %v8226
      %v8337 = vmul.f32 %v8229, %v8229
      %v8338 = vmul.f32 %v8234, %v8234
      %v8339 = vmul.f32 %v8237, %v8237
      %v8340 = vmul.f32 %v8242, %v8242
      %v8341 = vmul.f32 %v8245, %v8245
      %v8342 = vmul.f32 %v8250, %v8250
      %v8343 = vmul.f32 %v8253, %v8253
      %v8344 = vmul.f32 %v8258, %v8258
      %v8345 = vmul.f32 %v8261, %v8261
      %v8346 = vmul.f32 %v8266, %v8266
      %v8347 = vmul.f32 %v8269, %v8269
      %v8348 = vmul.f32 %v8274, %v8274
      %v8349 = vmul.f32 %v8277, %v8277
      %v8350 = vadd.f32 %v8318, %v8319
      %v8351 = vadd.f32 %v8350, %v8320
      %v8352 = vadd.f32 %v8351, %v8321
      %v8353 = vadd.f32 %v8352, %v8322
      %v8354 = vadd.f32 %v8353, %v8323
      %v8355 = vadd.f32 %v8354, %v8324
      %v8356 = vadd.f32 %v8355, %v8325
      %v8357 = vadd.f32 %v8356, %v8326
      %v8358 = vadd.f32 %v8357, %v8327
      %v8359 = vadd.f32 %v8358, %v8328
      %v8360 = vadd.f32 %v8359, %v8329
      %v8361 = vadd.f32 %v8360, %v8330
      %v8362 = vadd.f32 %v8361, %v8331
      %v8363 = vadd.f32 %v8362, %v8332
      %v8364 = vadd.f32 %v8363, %v8333
      %v8365 = vadd.f32 %v8364, %v8334
      %v8366 = vadd.f32 %v8365, %v8335
      %v8367 = vadd.f32 %v8366, %v8336
      %v8368 = vadd.f32 %v8367, %v8337
      %v8369 = vadd.f32 %v8368, %v8338
      %v8370 = vadd.f32 %v8369, %v8339
      %v8371 = vadd.f32 %v8370, %v8340
      %v8372 = vadd.f32 %v8371, %v8341
      %v8373 = vadd.f32 %v8372, %v8342
      %v8374 = vadd.f32 %v8373, %v8343
      %v8375 = vadd.f32 %v8374, %v8344
      %v8376 = vadd.f32 %v8375, %v8345
      %v8377 = vadd.f32 %v8376, %v8346
      %v8378 = vadd.f32 %v8377, %v8347
      %v8379 = vadd.f32 %v8378, %v8348
      %v8380 = vadd.f32 %v8379, %v8349
      %v8381 = vrot.slane %v8380, 4
      %v8382 = vadd.f32 %v8380, %v8381
      %v8383 = vrot.slane %v8382, 2
      %v8384 = vadd.f32 %v8382, %v8383
      %v8385 = vrot.slane %v8384, 1
      %v8386 = vadd.f32 %v8384, %v8385
      %v8387 = vmul.f32 %v8386, %v4092
      %v8388 = vmul.f32 %v8317, %v8317
      %v8389 = vsub.f32 %v8387, %v8388
      %v8390 = vmax.f32 %v8389, 0.0
      %v8391 = vsub.f32 %v8154, %v8317
      %v8392 = vsub.f32 %v8157, %v8317
      %v8393 = vsub.f32 %v8162, %v8317
      %v8394 = vsub.f32 %v8165, %v8317
      %v8395 = vsub.f32 %v8170, %v8317
      %v8396 = vsub.f32 %v8173, %v8317
      %v8397 = vsub.f32 %v8178, %v8317
      %v8398 = vsub.f32 %v8181, %v8317
      %v8399 = vsub.f32 %v8186, %v8317
      %v8400 = vsub.f32 %v8189, %v8317
      %v8401 = vsub.f32 %v8194, %v8317
      %v8402 = vsub.f32 %v8197, %v8317
      %v8403 = vsub.f32 %v8202, %v8317
      %v8404 = vsub.f32 %v8205, %v8317
      %v8405 = vsub.f32 %v8210, %v8317
      %v8406 = vsub.f32 %v8213, %v8317
      %v8407 = vsub.f32 %v8218, %v8317
      %v8408 = vsub.f32 %v8221, %v8317
      %v8409 = vsub.f32 %v8226, %v8317
      %v8410 = vsub.f32 %v8229, %v8317
      %v8411 = vsub.f32 %v8234, %v8317
      %v8412 = vsub.f32 %v8237, %v8317
      %v8413 = vsub.f32 %v8242, %v8317
      %v8414 = vsub.f32 %v8245, %v8317
      %v8415 = vsub.f32 %v8250, %v8317
      %v8416 = vsub.f32 %v8253, %v8317
      %v8417 = vsub.f32 %v8258, %v8317
      %v8418 = vsub.f32 %v8261, %v8317
      %v8419 = vsub.f32 %v8266, %v8317
      %v8420 = vsub.f32 %v8269, %v8317
      %v8421 = vsub.f32 %v8274, %v8317
      %v8422 = vsub.f32 %v8277, %v8317
      %v8423 = vadd.f32 %v8390, 1e-05
      %v8424 = vrsqrt.pop %v8423
      %v8425 = vmul.f32 %v8391, %v8424
      %v8426 = vmul.f32 %v8392, %v8424
      %v8427 = vmul.f32 %v8393, %v8424
      %v8428 = vmul.f32 %v8394, %v8424
      %v8429 = vmul.f32 %v8395, %v8424
      %v8430 = vmul.f32 %v8396, %v8424
      %v8431 = vmul.f32 %v8397, %v8424
      %v8432 = vmul.f32 %v8398, %v8424
      %v8433 = vmul.f32 %v8399, %v8424
      %v8434 = vmul.f32 %v8400, %v8424
      %v8435 = vmul.f32 %v8401, %v8424
      %v8436 = vmul.f32 %v8402, %v8424
      %v8437 = vmul.f32 %v8403, %v8424
      %v8438 = vmul.f32 %v8404, %v8424
      %v8439 = vmul.f32 %v8405, %v8424
      %v8440 = vmul.f32 %v8406, %v8424
      %v8441 = vmul.f32 %v8407, %v8424
      %v8442 = vmul.f32 %v8408, %v8424
      %v8443 = vmul.f32 %v8409, %v8424
      %v8444 = vmul.f32 %v8410, %v8424
      %v8445 = vmul.f32 %v8411, %v8424
      %v8446 = vmul.f32 %v8412, %v8424
      %v8447 = vmul.f32 %v8413, %v8424
      %v8448 = vmul.f32 %v8414, %v8424
      %v8449 = vmul.f32 %v8415, %v8424
      %v8450 = vmul.f32 %v8416, %v8424
      %v8451 = vmul.f32 %v8417, %v8424
      %v8452 = vmul.f32 %v8418, %v8424
      %v8453 = vmul.f32 %v8419, %v8424
      %v8454 = vmul.f32 %v8420, %v8424
      %v8455 = vmul.f32 %v8421, %v8424
      %v8456 = vmul.f32 %v8422, %v8424
      %vm8457 = vcmp.ge.f32.partialorder %v8425, 0.0
      %vm8458 = vcmp.ge.f32.partialorder %v8426, 0.0
      %vm8459 = vcmp.ge.f32.partialorder %v8427, 0.0
      %vm8460 = vcmp.ge.f32.partialorder %v8428, 0.0
      %vm8461 = vcmp.ge.f32.partialorder %v8429, 0.0
      %vm8462 = vcmp.ge.f32.partialorder %v8430, 0.0
      %vm8463 = vcmp.ge.f32.partialorder %v8431, 0.0
      %vm8464 = vcmp.ge.f32.partialorder %v8432, 0.0
      %vm8465 = vcmp.ge.f32.partialorder %v8433, 0.0
      %vm8466 = vcmp.ge.f32.partialorder %v8434, 0.0
      %vm8467 = vcmp.ge.f32.partialorder %v8435, 0.0
      %vm8468 = vcmp.ge.f32.partialorder %v8436, 0.0
      %vm8469 = vcmp.ge.f32.partialorder %v8437, 0.0
      %vm8470 = vcmp.ge.f32.partialorder %v8438, 0.0
      %vm8471 = vcmp.ge.f32.partialorder %v8439, 0.0
      %vm8472 = vcmp.ge.f32.partialorder %v8440, 0.0
      %vm8473 = vcmp.ge.f32.partialorder %v8441, 0.0
      %vm8474 = vcmp.ge.f32.partialorder %v8442, 0.0
      %vm8475 = vcmp.ge.f32.partialorder %v8443, 0.0
      %vm8476 = vcmp.ge.f32.partialorder %v8444, 0.0
      %vm8477 = vcmp.ge.f32.partialorder %v8445, 0.0
      %vm8478 = vcmp.ge.f32.partialorder %v8446, 0.0
      %vm8479 = vcmp.ge.f32.partialorder %v8447, 0.0
      %vm8480 = vcmp.ge.f32.partialorder %v8448, 0.0
      %vm8481 = vcmp.ge.f32.partialorder %v8449, 0.0
      %vm8482 = vcmp.ge.f32.partialorder %v8450, 0.0
      %vm8483 = vcmp.ge.f32.partialorder %v8451, 0.0
      %vm8484 = vcmp.ge.f32.partialorder %v8452, 0.0
      %vm8485 = vcmp.ge.f32.partialorder %v8453, 0.0
      %vm8486 = vcmp.ge.f32.partialorder %v8454, 0.0
      %vm8487 = vcmp.ge.f32.partialorder %v8455, 0.0
      %vm8488 = vcmp.ge.f32.partialorder %v8456, 0.0
      %v8489 = vmul.f32 %v8425, 0.2
      %v8490 = vmul.f32 %v8426, 0.2
      %v8491 = vmul.f32 %v8427, 0.2
      %v8492 = vmul.f32 %v8428, 0.2
      %v8493 = vmul.f32 %v8429, 0.2
      %v8494 = vmul.f32 %v8430, 0.2
      %v8495 = vmul.f32 %v8431, 0.2
      %v8496 = vmul.f32 %v8432, 0.2
      %v8497 = vmul.f32 %v8433, 0.2
      %v8498 = vmul.f32 %v8434, 0.2
      %v8499 = vmul.f32 %v8435, 0.2
      %v8500 = vmul.f32 %v8436, 0.2
      %v8501 = vmul.f32 %v8437, 0.2
      %v8502 = vmul.f32 %v8438, 0.2
      %v8503 = vmul.f32 %v8439, 0.2
      %v8504 = vmul.f32 %v8440, 0.2
      %v8505 = vmul.f32 %v8441, 0.2
      %v8506 = vmul.f32 %v8442, 0.2
      %v8507 = vmul.f32 %v8443, 0.2
      %v8508 = vmul.f32 %v8444, 0.2
      %v8509 = vmul.f32 %v8445, 0.2
      %v8510 = vmul.f32 %v8446, 0.2
      %v8511 = vmul.f32 %v8447, 0.2
      %v8512 = vmul.f32 %v8448, 0.2
      %v8513 = vmul.f32 %v8449, 0.2
      %v8514 = vmul.f32 %v8450, 0.2
      %v8515 = vmul.f32 %v8451, 0.2
      %v8516 = vmul.f32 %v8452, 0.2
      %v8517 = vmul.f32 %v8453, 0.2
      %v8518 = vmul.f32 %v8454, 0.2
      %v8519 = vmul.f32 %v8455, 0.2
      %v8520 = vmul.f32 %v8456, 0.2
      %v8521 = vsel %vm8457, %v8425, %v8489
      %v8522 = vsel %vm8458, %v8426, %v8490
      %v8523 = vsel %vm8459, %v8427, %v8491
      %v8524 = vsel %vm8460, %v8428, %v8492
      %v8525 = vsel %vm8461, %v8429, %v8493
      %v8526 = vsel %vm8462, %v8430, %v8494
      %v8527 = vsel %vm8463, %v8431, %v8495
      %v8528 = vsel %vm8464, %v8432, %v8496
      %v8529 = vsel %vm8465, %v8433, %v8497
      %v8530 = vsel %vm8466, %v8434, %v8498
      %v8531 = vsel %vm8467, %v8435, %v8499
      %v8532 = vsel %vm8468, %v8436, %v8500
      %v8533 = vsel %vm8469, %v8437, %v8501
      %v8534 = vsel %vm8470, %v8438, %v8502
      %v8535 = vsel %vm8471, %v8439, %v8503
      %v8536 = vsel %vm8472, %v8440, %v8504
      %v8537 = vsel %vm8473, %v8441, %v8505
      %v8538 = vsel %vm8474, %v8442, %v8506
      %v8539 = vsel %vm8475, %v8443, %v8507
      %v8540 = vsel %vm8476, %v8444, %v8508
      %v8541 = vsel %vm8477, %v8445, %v8509
      %v8542 = vsel %vm8478, %v8446, %v8510
      %v8543 = vsel %vm8479, %v8447, %v8511
      %v8544 = vsel %vm8480, %v8448, %v8512
      %v8545 = vsel %vm8481, %v8449, %v8513
      %v8546 = vsel %vm8482, %v8450, %v8514
      %v8547 = vsel %vm8483, %v8451, %v8515
      %v8548 = vsel %vm8484, %v8452, %v8516
      %v8549 = vsel %vm8485, %v8453, %v8517
      %v8550 = vsel %vm8486, %v8454, %v8518
      %v8551 = vsel %vm8487, %v8455, %v8519
      %v8552 = vsel %vm8488, %v8456, %v8520
      %8553 = vst [vmem:[%s170] sm:$0xff] %v8521
      %8554 = vst [vmem:[%s170 + $0x8] sm:$0xff] %v8522
      %8555 = vst [vmem:[%s170 + $0x10] sm:$0xff] %v8523
      %8556 = vst [vmem:[%s170 + $0x18] sm:$0xff] %v8524
      %8557 = vst [vmem:[%s170 + $0x20] sm:$0xff] %v8525
      %8558 = vst [vmem:[%s170 + $0x28] sm:$0xff] %v8526
      %8559 = vst [vmem:[%s170 + $0x30] sm:$0xff] %v8527
      %8560 = vst [vmem:[%s170 + $0x38] sm:$0xff] %v8528
      %8561 = vst [vmem:[%s170 + $0x40] sm:$0xff] %v8529
      %8562 = vst [vmem:[%s170 + $0x48] sm:$0xff] %v8530
      %8563 = vst [vmem:[%s170 + $0x50] sm:$0xff] %v8531
      %8564 = vst [vmem:[%s170 + $0x58] sm:$0xff] %v8532
      %8565 = vst [vmem:[%s170 + $0x60] sm:$0xff] %v8533
      %8566 = vst [vmem:[%s170 + $0x68] sm:$0xff] %v8534
      %8567 = vst [vmem:[%s170 + $0x70] sm:$0xff] %v8535
      %8568 = vst [vmem:[%s170 + $0x78] sm:$0xff] %v8536
      %8569 = vst [vmem:[%s170 + $0x80] sm:$0xff] %v8537
      %8570 = vst [vmem:[%s170 + $0x88] sm:$0xff] %v8538
      %8571 = vst [vmem:[%s170 + $0x90] sm:$0xff] %v8539
      %8572 = vst [vmem:[%s170 + $0x98] sm:$0xff] %v8540
      %8573 = vst [vmem:[%s170 + $0xa0] sm:$0xff] %v8541
      %8574 = vst [vmem:[%s170 + $0xa8] sm:$0xff] %v8542
      %8575 = vst [vmem:[%s170 + $0xb0] sm:$0xff] %v8543
      %8576 = vst [vmem:[%s170 + $0xb8] sm:$0xff] %v8544
      %8577 = vst [vmem:[%s170 + $0xc0] sm:$0xff] %v8545
      %8578 = vst [vmem:[%s170 + $0xc8] sm:$0xff] %v8546
      %8579 = vst [vmem:[%s170 + $0xd0] sm:$0xff] %v8547
      %8580 = vst [vmem:[%s170 + $0xd8] sm:$0xff] %v8548
      %8581 = vst [vmem:[%s170 + $0xe0] sm:$0xff] %v8549
      %8582 = vst [vmem:[%s170 + $0xe8] sm:$0xff] %v8550
      %8583 = vst [vmem:[%s170 + $0xf0] sm:$0xff] %v8551
      %8584 = vst [vmem:[%s170 + $0xf8] sm:$0xff] %v8552
      %p8585 = scmp.lt.s32.totalorder %s14, 1
      %s8586 = scalar_select %p8585, %s14, 1
      %s8587 = smul.addr %s8586, 32
      %s8588 = smul.addr %s8587, 8
      %s8589 = scalar_lea.vmem %s3, %s8588
      // Predicated region
      $region33: #{gen_block_forward.1} parent=31 // pred_check
        %p8590 = pneg %p100
      $region34: #{gen_block_forward.1} parent=31 // pred_check_branch
        %8592 = sbr.rel (%p8590) target = $region36
      $region35: #{gen_block_forward.1} parent=31 // pred_region
        _
      $region36: #{gen_block_forward.1} parent=31 // pred_fallthru
        _
    $region32: #{gen_block_forward.1} parent=5 // pred_fallthru
      _
    %p8593 = scmp.le.s32.totalorder 2, %s9
    // Predicated region
    $region37: #{gen_block_forward.1} parent=5 // pred_check
      %p8594 = pneg %p8593
    $region38: #{gen_block_forward.1} parent=5 // pred_check_branch
      %8596 = sbr.rel (%p8594) target = $region40
    $region39: #{gen_block_forward.1} parent=5 // pred_region
      %s8597 = ssub.s32 %s9, 2
      // Predicated region
      $region41: #{gen_block_forward.1} parent=39 // pred_check
        %p8598 = pneg %p106
      $region42: #{gen_block_forward.1} parent=39 // pred_check_branch
        %8600 = sbr.rel (%p8598) target = $region44
      $region43: #{gen_block_forward.1} parent=39 // pred_region
        %p8601 = scmp.lt.s32.totalorder %s15, 1
        %s8602 = scalar_select %p8601, %s15, 1
        %s8603 = smul.addr %s8602, 32
        %s8604 = smul.addr %s8603, 8
        %s8605 = scalar_lea.vmem %s3, %s8604
      $region44: #{gen_block_forward.1} parent=39 // pred_fallthru
        _
    $region40: #{gen_block_forward.1} parent=5 // pred_fallthru
      _
  $region6: #{gen_block_forward.1} parent=0 // loop_footer
    %s13 = sadd.s32 1, %s9
  $region7: #{gen_block_forward.1} parent=0 // loop_footer_branch
    %8 = sbr.rel target = $region3
  $region8: #{gen_block_forward.1} parent=0 // loop_exit
    _

</llo_original>
